<compile_context>
chip_gen: v5e
topology: v5e:2x2
jax: 0.10.0
libtpu: 0.0.40
codegen_flags: <defaults>
</compile_context>

<pallas_src>
import functools
import math

import jax
import jax.numpy as jnp
from jax.experimental import pallas as pl
from jax.experimental.pallas import tpu as pltpu


# MXU input dtype (fp32 accumulation everywhere).  jnp.float32 -> exact PyTorch parity.
MATMUL_DTYPE = jnp.bfloat16
VMEM_LIMIT_BYTES = 48 * 1024 * 1024   # > v5e/v6e default scoped limit, < v7x 64 MiB physical


# ----------------------------- in-kernel helpers -----------------------------

def _ln(x, g, b, eps=1e-5):
    """LayerNorm over the last dim (matches nn.LayerNorm defaults), fp32."""
    mu = jnp.mean(x, axis=-1, keepdims=True)
    var = jnp.mean(jnp.square(x - mu), axis=-1, keepdims=True)
    return (x - mu) * jax.lax.rsqrt(var + eps) * g + b


def _mm(a, w):
    """MXU matmul: cast activation to the weight dtype, accumulate in fp32."""
    return jnp.dot(a.astype(w.dtype), w, preferred_element_type=jnp.float32)


def _attn_heads(q, k, v, bias, nhead, dh):
    """Scaled-dot-product attention for all heads of one sequence.

    q: [L, D] (softmax scale already folded into the Q projection), k/v: [S, D],
    bias: [1, S] additive key-padding bias or None.
    Returns concat(heads) -> [L, D]; the (single, full-width) output projection is
    done by the caller.
    """
    l, s_len = q.shape[0], k.shape[0]
    if bias is not None:
        bias = jnp.broadcast_to(bias, (l, s_len))     # hoisted: one broadcast, not per head
    ohs = []
    for h in range(nhead):
        sl = slice(h * dh, (h + 1) * dh)
        s = jax.lax.dot_general(q[:, sl].astype(MATMUL_DTYPE), k[:, sl].astype(MATMUL_DTYPE),
                                (((1,), (1,)), ((), ())),
                                preferred_element_type=jnp.float32)        # [L, S]
        if bias is not None:
            s = s + bias
        s = s - jnp.max(s, axis=-1, keepdims=True)
        p = jnp.exp(s)
        p = p / jnp.sum(p, axis=-1, keepdims=True)                         # exact fp32 softmax
        ohs.append(jnp.dot(p.astype(MATMUL_DTYPE), v[:, sl].astype(MATMUL_DTYPE),
                           preferred_element_type=jnp.float32))            # [L, dh]
    return jnp.concatenate(ohs, axis=-1)                                   # [L, D]


# ----------------------------- fused layer kernels -----------------------------

def _encoder_layer_kernel(src_ref, pos_ref, bias_ref,
                          wqkv_ref, bqkv_ref, wo_ref, bo_ref, g1_ref, bn1_ref,
                          w1_ref, bf1_ref, w2_ref, bf2_ref, g2_ref, bn2_ref,
                          gfin_ref, bfin_ref,
                          out_ref, *, nhead, dh, final_ln):
    d = nhead * dh
    x = src_ref[0]                                    # [L, D]
    qk_in = x + pos_ref[0]                            # query = key = src + pos
    wqkv = wqkv_ref[...]
    # Fused Q|K projection (one matmul over [D, 2D]); V projected from src.
    qk = _mm(qk_in, wqkv[:, :2 * d]) + bqkv_ref[:, :2 * d]
    v = _mm(x, wqkv[:, 2 * d:]) + bqkv_ref[:, 2 * d:]
    ctx = _attn_heads(qk[:, :d], qk[:, d:], v, bias_ref[0], nhead, dh)
    attn = _mm(ctx, wo_ref[...]) + bo_ref[...]        # single [L,D]x[D,D] output projection
    x = _ln(x + attn, g1_ref[...], bn1_ref[...])
    # FFN: relu(x W1 + b1) W2 + b2, + residual + LN
    h = jnp.maximum(_mm(x, w1_ref[...]) + bf1_ref[...], 0.0)
    y = _mm(h, w2_ref[...]) + bf2_ref[...]
    x = _ln(x + y, g2_ref[...], bn2_ref[...])
    if final_ln:
        x = _ln(x, gfin_ref[...], bfin_ref[...])      # fused encoder.norm on last layer
    out_ref[0] = x


def _decoder_layer_kernel(tgt_ref, qpos_ref, mem_ref, pos_ref, bias_ref,
                          wqkv_s_ref, bqkv_s_ref, wo_s_ref, bo_s_ref, g1_ref, bn1_ref,
                          wqkv_c_ref, bqkv_c_ref, wo_c_ref, bo_c_ref, g2_ref, bn2_ref,
                          w1_ref, bf1_ref, w2_ref, bf2_ref, g3_ref, bn3_ref,
                          gfin_ref, bfin_ref,
                          out_ref, *, nhead, dh, bblk, final_ln):
    d = nhead * dh
    t3 = tgt_ref[...]                                 # [bblk, Q, D]
    q_len = t3.shape[1]
    m3 = mem_ref[...]                                 # [bblk, S, D]
    s_len = m3.shape[1]
    qp = qpos_ref[...]                                # [Q, D] (shared across batch)
    qp_full = jnp.concatenate([qp] * bblk, axis=0) if bblk > 1 else qp   # [bblk*Q, D]

    t = t3.reshape(bblk * q_len, d)                   # queries of all packed batch elems
    m2 = m3.reshape(bblk * s_len, d)
    mp2 = pos_ref[...].reshape(bblk * s_len, d)

    # --- self-attention (no key padding mask) ---
    wqkv_s = wqkv_s_ref[...]
    qk_in = t + qp_full
    qk = _mm(qk_in, wqkv_s[:, :2 * d]) + bqkv_s_ref[:, :2 * d]
    v = _mm(t, wqkv_s[:, 2 * d:]) + bqkv_s_ref[:, 2 * d:]
    ctxs = []
    for b in range(bblk):
        rows = slice(b * q_len, (b + 1) * q_len)
        ctxs.append(_attn_heads(qk[rows, :d], qk[rows, d:], v[rows, :], None, nhead, dh))
    ctx = jnp.concatenate(ctxs, axis=0) if bblk > 1 else ctxs[0]
    attn = _mm(ctx, wo_s_ref[...]) + bo_s_ref[...]
    t = _ln(t + attn, g1_ref[...], bn1_ref[...])

    # --- cross-attention over encoder memory (key-padding bias) ---
    wqkv_c = wqkv_c_ref[...]
    q_c = _mm(t + qp_full, wqkv_c[:, :d]) + bqkv_c_ref[:, :d]
    k_c = _mm(m2 + mp2, wqkv_c[:, d:2 * d]) + bqkv_c_ref[:, d:2 * d]
    v_c = _mm(m2, wqkv_c[:, 2 * d:]) + bqkv_c_ref[:, 2 * d:]
    ctxs = []
    for b in range(bblk):
        qrows = slice(b * q_len, (b + 1) * q_len)
        krows = slice(b * s_len, (b + 1) * s_len)
        ctxs.append(_attn_heads(q_c[qrows, :], k_c[krows, :], v_c[krows, :],
                                bias_ref[b], nhead, dh))
    ctx = jnp.concatenate(ctxs, axis=0) if bblk > 1 else ctxs[0]
    attn = _mm(ctx, wo_c_ref[...]) + bo_c_ref[...]
    t = _ln(t + attn, g2_ref[...], bn2_ref[...])

    # --- FFN ---
    h = jnp.maximum(_mm(t, w1_ref[...]) + bf1_ref[...], 0.0)
    y = _mm(h, w2_ref[...]) + bf2_ref[...]
    t = _ln(t + y, g3_ref[...], bn3_ref[...])
    if final_ln:
        t = _ln(t, gfin_ref[...], bfin_ref[...])      # fused decoder.norm on last layer
    out_ref[...] = t.reshape(bblk, q_len, d)


# ----------------------------- wrappers (pallas_call plumbing) -----------------------------

def _batch_spec(shape):
    """One batch element per grid step."""
    nd = len(shape)
    return pl.BlockSpec((1,) + tuple(shape[1:]), lambda i: (i,) + (0,) * (nd - 1))


def _blk_spec(bblk, shape):
    """`bblk` batch elements per grid step."""
    nd = len(shape)
    return pl.BlockSpec((bblk,) + tuple(shape[1:]), lambda i: (i,) + (0,) * (nd - 1))


def _rep_spec(shape):
    """Replicated (resident) block: constant index map -> single-buffered (no re-fetch)."""
    nd = len(shape)
    idx = lambda i: (0,) * nd
    try:
        return pl.BlockSpec(tuple(shape), idx, pipeline_mode=pl.Buffered(1))
    except TypeError:  # pipeline_mode unavailable -> fall back to default double buffering
        return pl.BlockSpec(tuple(shape), idx)


def _prep_mha(p, nhead):
    """Torch MHA params -> [D, 3D] fused weight, softmax scale folded into Q, bf16 weights."""
    d = p['out_proj_weight'].shape[0]
    dh = d // nhead
    scale = 1.0 / math.sqrt(dh)
    wqkv = p['in_proj_weight'].T                       # [D, 3D] (torch: y = x W^T)
    bqkv = p['in_proj_bias'].reshape(1, 3 * d)
    wqkv = wqkv.at[:, :d].multiply(scale)              # fold 1/sqrt(dh) into Q proj
    bqkv = bqkv.at[:, :d].multiply(scale)
    return {'wqkv': wqkv.astype(MATMUL_DTYPE), 'bqkv': bqkv.astype(jnp.float32),
            'wo': p['out_proj_weight'].T.astype(MATMUL_DTYPE),
            'bo': p['out_proj_bias'].reshape(1, d).astype(jnp.float32)}


def _prep_ffn(p, d):
    return (p['w1'].T.astype(MATMUL_DTYPE), p['b1'].reshape(1, -1).astype(jnp.float32),
            p['w2'].T.astype(MATMUL_DTYPE), p['b2'].reshape(1, d).astype(jnp.float32))


def _final_ln_args(final_ln_params, d):
    if final_ln_params is None:
        return jnp.ones((1, d), jnp.float32), jnp.zeros((1, d), jnp.float32), False
    g, b = final_ln_params
    return g.reshape(1, d), b.reshape(1, d), True


def encoder_layer(src, pos, bias, p, nhead, final_ln_params=None):
    """src/pos: [B, L, D], bias: [B, 1, L] additive key-padding bias."""
    b, l, d = src.shape
    dh = d // nhead
    ap = _prep_mha(p['self_attn'], nhead)
    w1, bf1, w2, bf2 = _prep_ffn(p['ffn'], d)
    g1 = p['norm1_g'].reshape(1, d); bn1 = p['norm1_b'].reshape(1, d)
    g2 = p['norm2_g'].reshape(1, d); bn2 = p['norm2_b'].reshape(1, d)
    gfin, bfin, final_ln = _final_ln_args(final_ln_params, d)

    operands = (src, pos, bias, ap['wqkv'], ap['bqkv'], ap['wo'], ap['bo'], g1, bn1,
                w1, bf1, w2, bf2, g2, bn2, gfin, bfin)
    in_specs = [_batch_spec(src.shape), _batch_spec(pos.shape), _batch_spec(bias.shape)] + \
               [_rep_spec(x.shape) for x in operands[3:]]

    return pl.pallas_call(
        functools.partial(_encoder_layer_kernel, nhead=nhead, dh=dh, final_ln=final_ln),
        out_shape=jax.ShapeDtypeStruct((b, l, d), jnp.float32),
        grid=(b,),
        in_specs=in_specs,
        out_specs=_batch_spec((b, l, d)),
        compiler_params=pltpu.CompilerParams(
            dimension_semantics=("parallel",),
            vmem_limit_bytes=VMEM_LIMIT_BYTES),
    )(*operands)


def decoder_layer(tgt, query_pos, mem, pos, bias, p, nhead, final_ln_params=None):
    """tgt: [B, Q, D], query_pos: [Q, D], mem/pos: [B, S, D], bias: [B, 1, S]."""
    b, q, d = tgt.shape
    dh = d // nhead
    # Pack batch elements per grid step so matmul M >= Bblk*Q (fills more MXU rows).
    if b <= 4:
        bblk = b
    elif b % 2 == 0:
        bblk = 2
    else:
        bblk = 1
    sa = _prep_mha(p['self_attn'], nhead)
    ca = _prep_mha(p['cross_attn'], nhead)
    w1, bf1, w2, bf2 = _prep_ffn(p['ffn'], d)
    g1 = p['norm1_g'].reshape(1, d); bn1 = p['norm1_b'].reshape(1, d)
    g2 = p['norm2_g'].reshape(1, d); bn2 = p['norm2_b'].reshape(1, d)
    g3 = p['norm3_g'].reshape(1, d); bn3 = p['norm3_b'].reshape(1, d)
    gfin, bfin, final_ln = _final_ln_args(final_ln_params, d)

    operands = (tgt, query_pos, mem, pos, bias,
                sa['wqkv'], sa['bqkv'], sa['wo'], sa['bo'], g1, bn1,
                ca['wqkv'], ca['bqkv'], ca['wo'], ca['bo'], g2, bn2,
                w1, bf1, w2, bf2, g3, bn3, gfin, bfin)
    in_specs = [_blk_spec(bblk, tgt.shape), _rep_spec(query_pos.shape),
                _blk_spec(bblk, mem.shape), _blk_spec(bblk, pos.shape),
                _blk_spec(bblk, bias.shape)] + \
               [_rep_spec(x.shape) for x in operands[5:]]

    return pl.pallas_call(
        functools.partial(_decoder_layer_kernel, nhead=nhead, dh=dh,
                          bblk=bblk, final_ln=final_ln),
        out_shape=jax.ShapeDtypeStruct((b, q, d), jnp.float32),
        grid=(b // bblk,),
        in_specs=in_specs,
        out_specs=_blk_spec(bblk, (b, q, d)),
        compiler_params=pltpu.CompilerParams(
            dimension_semantics=("parallel",),
            vmem_limit_bytes=VMEM_LIMIT_BYTES),
    )(*operands)


def transformer_forward(params, src, mask, query_embed, pos_embed, nhead):
    """src: [B, D, H, W], mask: [B, H, W] bool (True = padded), query_embed: [Q, D],
    pos_embed: [B, D, H, W].  Returns (hs [1, B, Q, D], memory [B, D, H, W])."""
    b, d, h, w = src.shape
    hw = h * w
    src_bf = src.reshape(b, d, hw).transpose(0, 2, 1)        # [B, HW, D]
    pos_bf = pos_embed.reshape(b, d, hw).transpose(0, 2, 1)  # [B, HW, D]
    bias = jnp.where(mask.reshape(b, 1, hw), jnp.float32(-1e9), jnp.float32(0.0))

    enc_layers = params['encoder_layers']
    mem = src_bf
    for idx, lp in enumerate(enc_layers):
        fin = ((params['encoder_norm_g'], params['encoder_norm_b'])
               if idx == len(enc_layers) - 1 else None)
        mem = encoder_layer(mem, pos_bf, bias, lp, nhead, final_ln_params=fin)

    q = query_embed.shape[0]
    dec_layers = params['decoder_layers']
    out = jnp.zeros((b, q, d), jnp.float32)                  # tgt = zeros_like(query_embed)
    for idx, lp in enumerate(dec_layers):
        fin = ((params['decoder_norm_g'], params['decoder_norm_b'])
               if idx == len(dec_layers) - 1 else None)
        out = decoder_layer(out, query_embed, mem, pos_bf, bias, lp, nhead,
                            final_ln_params=fin)

    hs = out[None]                                           # [1, B, Q, D]
    memory = mem.transpose(0, 2, 1).reshape(b, d, h, w)      # [B, D, H, W]
    return hs, memory


# ----------------------------- deterministic parameter init -----------------------------

def _xavier(key, shape):
    fan_out, fan_in = shape[0], shape[1]
    limit = (6.0 / (fan_in + fan_out)) ** 0.5
    return jax.random.uniform(key, shape, jnp.float32, -limit, limit)


def _mha_params(key, d):
    k1, k2 = jax.random.split(key)
    return {
        'in_proj_weight': _xavier(k1, (3 * d, d)),
        'in_proj_bias': jnp.zeros((3 * d,), jnp.float32),
        'out_proj_weight': _xavier(k2, (d, d)),
        'out_proj_bias': jnp.zeros((d,), jnp.float32),
    }


def _ffn_params(key, d, dff):
    k1, k2 = jax.random.split(key)
    return {
        'w1': _xavier(k1, (dff, d)), 'b1': jnp.zeros((dff,), jnp.float32),
        'w2': _xavier(k2, (d, dff)), 'b2': jnp.zeros((d,), jnp.float32),
    }


def _enc_layer_params(key, d, dff):
    k1, k2 = jax.random.split(key)
    return {
        'self_attn': _mha_params(k1, d),
        'ffn': _ffn_params(k2, d, dff),
        'norm1_g': jnp.ones((d,), jnp.float32), 'norm1_b': jnp.zeros((d,), jnp.float32),
        'norm2_g': jnp.ones((d,), jnp.float32), 'norm2_b': jnp.zeros((d,), jnp.float32),
    }


def _dec_layer_params(key, d, dff):
    k1, k2, k3 = jax.random.split(key, 3)
    return {
        'self_attn': _mha_params(k1, d),
        'cross_attn': _mha_params(k2, d),
        'ffn': _ffn_params(k3, d, dff),
        'norm1_g': jnp.ones((d,), jnp.float32), 'norm1_b': jnp.zeros((d,), jnp.float32),
        'norm2_g': jnp.ones((d,), jnp.float32), 'norm2_b': jnp.zeros((d,), jnp.float32),
        'norm3_g': jnp.ones((d,), jnp.float32), 'norm3_b': jnp.zeros((d,), jnp.float32),
    }


def init_transformer_params(key, d, dff, num_enc, num_dec):
    keys = jax.random.split(key, num_enc + num_dec)
    return {
        'encoder_layers': [_enc_layer_params(keys[i], d, dff) for i in range(num_enc)],
        'decoder_layers': [_dec_layer_params(keys[num_enc + i], d, dff) for i in range(num_dec)],
        'encoder_norm_g': jnp.ones((d,), jnp.float32),
        'encoder_norm_b': jnp.zeros((d,), jnp.float32),
        'decoder_norm_g': jnp.ones((d,), jnp.float32),
        'decoder_norm_b': jnp.zeros((d,), jnp.float32),
    }


# ----------------------------- main -----------------------------

if __name__ == "__main__":
    B, D, H, W = 2, 32, 4, 4
    NHEAD = 4
    NUM_QUERIES = 8
    DIM_FF = 64
    NUM_ENC, NUM_DEC = 2, 2

    root = jax.random.PRNGKey(0)
    kp, ks, kq, kpos = jax.random.split(root, 4)

    params = init_transformer_params(kp, D, DIM_FF, NUM_ENC, NUM_DEC)

    src = jax.random.normal(ks, (B, D, H, W), jnp.float32)
    pos_embed = jax.random.normal(kpos, (B, D, H, W), jnp.float32)
    query_embed = jax.random.normal(kq, (NUM_QUERIES, D), jnp.float32)
    # padding mask: True = padded position (last spatial column of batch 1 is padded)
    mask = jnp.zeros((B, H, W), bool).at[1, :, -1].set(True)

    fwd = jax.jit(transformer_forward, static_argnames=('nhead',))
    hs, memory = fwd(params, src, mask, query_embed, pos_embed, nhead=NHEAD)
    jax.block_until_ready((hs, memory))

    assert hs.shape == (1, B, NUM_QUERIES, D), hs.shape
    assert memory.shape == (B, D, H, W), memory.shape
    assert jnp.all(jnp.isfinite(hs)) and jnp.all(jnp.isfinite(memory))
    print("KERNEL_OK")
</pallas_src>

<mosaic_0001>
module attributes {stable_mosaic.version = 11 : i64} {
  func.func @_encoder_layer_kernel(%arg0: i32, %arg1: memref<1x16x32xf32, #tpu.memory_space<vmem>>, %arg2: memref<1x16x32xf32, #tpu.memory_space<vmem>>, %arg3: memref<1x1x16xf32, #tpu.memory_space<vmem>>, %arg4: memref<32x96xbf16, #tpu.memory_space<vmem>>, %arg5: memref<1x96xf32, #tpu.memory_space<vmem>>, %arg6: memref<32x32xbf16, #tpu.memory_space<vmem>>, %arg7: memref<1x32xf32, #tpu.memory_space<vmem>>, %arg8: memref<1x32xf32, #tpu.memory_space<vmem>>, %arg9: memref<1x32xf32, #tpu.memory_space<vmem>>, %arg10: memref<32x64xbf16, #tpu.memory_space<vmem>>, %arg11: memref<1x64xf32, #tpu.memory_space<vmem>>, %arg12: memref<64x32xbf16, #tpu.memory_space<vmem>>, %arg13: memref<1x32xf32, #tpu.memory_space<vmem>>, %arg14: memref<1x32xf32, #tpu.memory_space<vmem>>, %arg15: memref<1x32xf32, #tpu.memory_space<vmem>>, %arg16: memref<1x32xf32, #tpu.memory_space<vmem>>, %arg17: memref<1x32xf32, #tpu.memory_space<vmem>>, %arg18: memref<1x16x32xf32, #tpu.memory_space<vmem>>) attributes {dimension_semantics = [#tpu.dimension_semantics<parallel>], iteration_bounds = array<i64: 2>, scalar_prefetch = 0 : i64, scratch_operands = 0 : i64, tpu.core_type = #tpu.core_type<tc>, window_params = [{transform_indices = @transform_0, window_bounds = array<i64: 1, 16, 32>}, {transform_indices = @transform_1, window_bounds = array<i64: 1, 16, 32>}, {transform_indices = @transform_2, window_bounds = array<i64: 1, 1, 16>}, {pipeline_mode = #tpu.pipeline_mode<synchronous>, transform_indices = @transform_3, window_bounds = array<i64: 32, 96>}, {pipeline_mode = #tpu.pipeline_mode<synchronous>, transform_indices = @transform_4, window_bounds = array<i64: 1, 96>}, {pipeline_mode = #tpu.pipeline_mode<synchronous>, transform_indices = @transform_5, window_bounds = array<i64: 32, 32>}, {pipeline_mode = #tpu.pipeline_mode<synchronous>, transform_indices = @transform_6, window_bounds = array<i64: 1, 32>}, {pipeline_mode = #tpu.pipeline_mode<synchronous>, transform_indices = @transform_7, window_bounds = array<i64: 1, 32>}, {pipeline_mode = #tpu.pipeline_mode<synchronous>, transform_indices = @transform_8, window_bounds = array<i64: 1, 32>}, {pipeline_mode = #tpu.pipeline_mode<synchronous>, transform_indices = @transform_9, window_bounds = array<i64: 32, 64>}, {pipeline_mode = #tpu.pipeline_mode<synchronous>, transform_indices = @transform_10, window_bounds = array<i64: 1, 64>}, {pipeline_mode = #tpu.pipeline_mode<synchronous>, transform_indices = @transform_11, window_bounds = array<i64: 64, 32>}, {pipeline_mode = #tpu.pipeline_mode<synchronous>, transform_indices = @transform_12, window_bounds = array<i64: 1, 32>}, {pipeline_mode = #tpu.pipeline_mode<synchronous>, transform_indices = @transform_13, window_bounds = array<i64: 1, 32>}, {pipeline_mode = #tpu.pipeline_mode<synchronous>, transform_indices = @transform_14, window_bounds = array<i64: 1, 32>}, {pipeline_mode = #tpu.pipeline_mode<synchronous>, transform_indices = @transform_15, window_bounds = array<i64: 1, 32>}, {pipeline_mode = #tpu.pipeline_mode<synchronous>, transform_indices = @transform_16, window_bounds = array<i64: 1, 32>}, {transform_indices = @transform_17, window_bounds = array<i64: 1, 16, 32>}]} {
    %c0 = arith.constant 0 : index
    %c0_0 = arith.constant 0 : index
    %c0_1 = arith.constant 0 : index
    %0 = vector.load %arg1[%c0, %c0_0, %c0_1] : memref<1x16x32xf32, #tpu.memory_space<vmem>>, vector<1x16x32xf32>
    %1 = vector.shape_cast %0 : vector<1x16x32xf32> to vector<16x32xf32>
    %c0_2 = arith.constant 0 : index
    %c0_3 = arith.constant 0 : index
    %c0_4 = arith.constant 0 : index
    %2 = vector.load %arg2[%c0_2, %c0_3, %c0_4] : memref<1x16x32xf32, #tpu.memory_space<vmem>>, vector<1x16x32xf32>
    %3 = vector.shape_cast %2 : vector<1x16x32xf32> to vector<16x32xf32>
    %4 = arith.addf %1, %3 : vector<16x32xf32>
    %c0_5 = arith.constant 0 : index
    %c0_6 = arith.constant 0 : index
    %5 = vector.load %arg4[%c0_5, %c0_6] : memref<32x96xbf16, #tpu.memory_space<vmem>>, vector<32x96xbf16>
    %6 = vector.extract_strided_slice %5 {offsets = [0, 0], sizes = [32, 64], strides = [1, 1]} : vector<32x96xbf16> to vector<32x64xbf16>
    %7 = arith.truncf %4 : vector<16x32xf32> to vector<16x32xbf16>
    %cst = arith.constant dense<0.000000e+00> : vector<16x64xf32>
    %8 = tpu.matmul %7, %6, %cst {dimension_numbers = #tpu.dot_dimension_numbers<[1], [0], [0], [1], [0, 0, 1, 1], [], []>} : vector<16x32xbf16>, vector<32x64xbf16>, vector<16x64xf32> -> vector<16x64xf32>
    %c0_7 = arith.constant 0 : index
    %c0_8 = arith.constant 0 : index
    %9 = vector.load %arg5[%c0_7, %c0_8] : memref<1x96xf32, #tpu.memory_space<vmem>>, vector<1x64xf32>
    %10 = vector.broadcast %9 : vector<1x64xf32> to vector<16x64xf32>
    %11 = arith.addf %8, %10 : vector<16x64xf32>
    %12 = vector.extract_strided_slice %5 {offsets = [0, 64], sizes = [32, 32], strides = [1, 1]} : vector<32x96xbf16> to vector<32x32xbf16>
    %13 = arith.truncf %1 : vector<16x32xf32> to vector<16x32xbf16>
    %cst_9 = arith.constant dense<0.000000e+00> : vector<16x32xf32>
    %14 = tpu.matmul %13, %12, %cst_9 {dimension_numbers = #tpu.dot_dimension_numbers<[1], [0], [0], [1], [0, 0, 1, 1], [], []>} : vector<16x32xbf16>, vector<32x32xbf16>, vector<16x32xf32> -> vector<16x32xf32>
    %c0_10 = arith.constant 0 : index
    %c64 = arith.constant 64 : index
    %15 = vector.load %arg5[%c0_10, %c64] : memref<1x96xf32, #tpu.memory_space<vmem>>, vector<1x32xf32>
    %16 = vector.broadcast %15 : vector<1x32xf32> to vector<16x32xf32>
    %17 = arith.addf %14, %16 : vector<16x32xf32>
    %18 = vector.extract_strided_slice %11 {offsets = [0, 0], sizes = [16, 32], strides = [1, 1]} : vector<16x64xf32> to vector<16x32xf32>
    %19 = vector.extract_strided_slice %11 {offsets = [0, 32], sizes = [16, 32], strides = [1, 1]} : vector<16x64xf32> to vector<16x32xf32>
    %c0_11 = arith.constant 0 : index
    %c0_12 = arith.constant 0 : index
    %c0_13 = arith.constant 0 : index
    %20 = vector.load %arg3[%c0_11, %c0_12, %c0_13] : memref<1x1x16xf32, #tpu.memory_space<vmem>>, vector<1x1x16xf32>
    %21 = vector.shape_cast %20 : vector<1x1x16xf32> to vector<1x16xf32>
    %22 = vector.shape_cast %21 : vector<1x16xf32> to vector<1x16xf32>
    %23 = vector.broadcast %22 : vector<1x16xf32> to vector<16x16xf32>
    %24 = vector.extract_strided_slice %18 {offsets = [0, 0], sizes = [16, 8], strides = [1, 1]} : vector<16x32xf32> to vector<16x8xf32>
    %25 = arith.truncf %24 : vector<16x8xf32> to vector<16x8xbf16>
    %26 = vector.extract_strided_slice %19 {offsets = [0, 0], sizes = [16, 8], strides = [1, 1]} : vector<16x32xf32> to vector<16x8xf32>
    %27 = arith.truncf %26 : vector<16x8xf32> to vector<16x8xbf16>
    %cst_14 = arith.constant dense<0.000000e+00> : vector<16x16xf32>
    %28 = tpu.matmul %25, %27, %cst_14 {dimension_numbers = #tpu.dot_dimension_numbers<[1], [1], [0], [0], [0, 0, 1, 0], [], []>} : vector<16x8xbf16>, vector<16x8xbf16>, vector<16x16xf32> -> vector<16x16xf32>
    %29 = arith.addf %28, %23 : vector<16x16xf32>
    %cst_15 = arith.constant dense<0xFF800000> : vector<16xf32>
    %30 = vector.multi_reduction <maximumf>, %29, %cst_15 [1] : vector<16x16xf32> to vector<16xf32>
    %31 = vector.shape_cast %30 : vector<16xf32> to vector<16x1xf32>
    %32 = vector.broadcast %31 : vector<16x1xf32> to vector<16x16xf32>
    %33 = arith.subf %29, %32 : vector<16x16xf32>
    %34 = math.exp %33 : vector<16x16xf32>
    %cst_16 = arith.constant dense<0.000000e+00> : vector<16xf32>
    %35 = vector.multi_reduction <add>, %34, %cst_16 [1] : vector<16x16xf32> to vector<16xf32>
    %36 = vector.shape_cast %35 : vector<16xf32> to vector<16x1xf32>
    %37 = vector.broadcast %36 : vector<16x1xf32> to vector<16x16xf32>
    %38 = arith.divf %34, %37 : vector<16x16xf32>
    %39 = arith.truncf %38 : vector<16x16xf32> to vector<16x16xbf16>
    %40 = vector.extract_strided_slice %17 {offsets = [0, 0], sizes = [16, 8], strides = [1, 1]} : vector<16x32xf32> to vector<16x8xf32>
    %41 = arith.truncf %40 : vector<16x8xf32> to vector<16x8xbf16>
    %cst_17 = arith.constant dense<0.000000e+00> : vector<16x8xf32>
    %42 = tpu.matmul %39, %41, %cst_17 {dimension_numbers = #tpu.dot_dimension_numbers<[1], [0], [0], [1], [0, 0, 1, 1], [], []>} : vector<16x16xbf16>, vector<16x8xbf16>, vector<16x8xf32> -> vector<16x8xf32>
    %43 = vector.extract_strided_slice %18 {offsets = [0, 8], sizes = [16, 8], strides = [1, 1]} : vector<16x32xf32> to vector<16x8xf32>
    %44 = arith.truncf %43 : vector<16x8xf32> to vector<16x8xbf16>
    %45 = vector.extract_strided_slice %19 {offsets = [0, 8], sizes = [16, 8], strides = [1, 1]} : vector<16x32xf32> to vector<16x8xf32>
    %46 = arith.truncf %45 : vector<16x8xf32> to vector<16x8xbf16>
    %cst_18 = arith.constant dense<0.000000e+00> : vector<16x16xf32>
    %47 = tpu.matmul %44, %46, %cst_18 {dimension_numbers = #tpu.dot_dimension_numbers<[1], [1], [0], [0], [0, 0, 1, 0], [], []>} : vector<16x8xbf16>, vector<16x8xbf16>, vector<16x16xf32> -> vector<16x16xf32>
    %48 = arith.addf %47, %23 : vector<16x16xf32>
    %cst_19 = arith.constant dense<0xFF800000> : vector<16xf32>
    %49 = vector.multi_reduction <maximumf>, %48, %cst_19 [1] : vector<16x16xf32> to vector<16xf32>
    %50 = vector.shape_cast %49 : vector<16xf32> to vector<16x1xf32>
    %51 = vector.broadcast %50 : vector<16x1xf32> to vector<16x16xf32>
    %52 = arith.subf %48, %51 : vector<16x16xf32>
    %53 = math.exp %52 : vector<16x16xf32>
    %cst_20 = arith.constant dense<0.000000e+00> : vector<16xf32>
    %54 = vector.multi_reduction <add>, %53, %cst_20 [1] : vector<16x16xf32> to vector<16xf32>
    %55 = vector.shape_cast %54 : vector<16xf32> to vector<16x1xf32>
    %56 = vector.broadcast %55 : vector<16x1xf32> to vector<16x16xf32>
    %57 = arith.divf %53, %56 : vector<16x16xf32>
    %58 = arith.truncf %57 : vector<16x16xf32> to vector<16x16xbf16>
    %59 = vector.extract_strided_slice %17 {offsets = [0, 8], sizes = [16, 8], strides = [1, 1]} : vector<16x32xf32> to vector<16x8xf32>
    %60 = arith.truncf %59 : vector<16x8xf32> to vector<16x8xbf16>
    %cst_21 = arith.constant dense<0.000000e+00> : vector<16x8xf32>
    %61 = tpu.matmul %58, %60, %cst_21 {dimension_numbers = #tpu.dot_dimension_numbers<[1], [0], [0], [1], [0, 0, 1, 1], [], []>} : vector<16x16xbf16>, vector<16x8xbf16>, vector<16x8xf32> -> vector<16x8xf32>
    %62 = vector.extract_strided_slice %18 {offsets = [0, 16], sizes = [16, 8], strides = [1, 1]} : vector<16x32xf32> to vector<16x8xf32>
    %63 = arith.truncf %62 : vector<16x8xf32> to vector<16x8xbf16>
    %64 = vector.extract_strided_slice %19 {offsets = [0, 16], sizes = [16, 8], strides = [1, 1]} : vector<16x32xf32> to vector<16x8xf32>
    %65 = arith.truncf %64 : vector<16x8xf32> to vector<16x8xbf16>
    %cst_22 = arith.constant dense<0.000000e+00> : vector<16x16xf32>
    %66 = tpu.matmul %63, %65, %cst_22 {dimension_numbers = #tpu.dot_dimension_numbers<[1], [1], [0], [0], [0, 0, 1, 0], [], []>} : vector<16x8xbf16>, vector<16x8xbf16>, vector<16x16xf32> -> vector<16x16xf32>
    %67 = arith.addf %66, %23 : vector<16x16xf32>
    %cst_23 = arith.constant dense<0xFF800000> : vector<16xf32>
    %68 = vector.multi_reduction <maximumf>, %67, %cst_23 [1] : vector<16x16xf32> to vector<16xf32>
    %69 = vector.shape_cast %68 : vector<16xf32> to vector<16x1xf32>
    %70 = vector.broadcast %69 : vector<16x1xf32> to vector<16x16xf32>
    %71 = arith.subf %67, %70 : vector<16x16xf32>
    %72 = math.exp %71 : vector<16x16xf32>
    %cst_24 = arith.constant dense<0.000000e+00> : vector<16xf32>
    %73 = vector.multi_reduction <add>, %72, %cst_24 [1] : vector<16x16xf32> to vector<16xf32>
    %74 = vector.shape_cast %73 : vector<16xf32> to vector<16x1xf32>
    %75 = vector.broadcast %74 : vector<16x1xf32> to vector<16x16xf32>
    %76 = arith.divf %72, %75 : vector<16x16xf32>
    %77 = arith.truncf %76 : vector<16x16xf32> to vector<16x16xbf16>
    %78 = vector.extract_strided_slice %17 {offsets = [0, 16], sizes = [16, 8], strides = [1, 1]} : vector<16x32xf32> to vector<16x8xf32>
    %79 = arith.truncf %78 : vector<16x8xf32> to vector<16x8xbf16>
    %cst_25 = arith.constant dense<0.000000e+00> : vector<16x8xf32>
    %80 = tpu.matmul %77, %79, %cst_25 {dimension_numbers = #tpu.dot_dimension_numbers<[1], [0], [0], [1], [0, 0, 1, 1], [], []>} : vector<16x16xbf16>, vector<16x8xbf16>, vector<16x8xf32> -> vector<16x8xf32>
    %81 = vector.extract_strided_slice %18 {offsets = [0, 24], sizes = [16, 8], strides = [1, 1]} : vector<16x32xf32> to vector<16x8xf32>
    %82 = arith.truncf %81 : vector<16x8xf32> to vector<16x8xbf16>
    %83 = vector.extract_strided_slice %19 {offsets = [0, 24], sizes = [16, 8], strides = [1, 1]} : vector<16x32xf32> to vector<16x8xf32>
    %84 = arith.truncf %83 : vector<16x8xf32> to vector<16x8xbf16>
    %cst_26 = arith.constant dense<0.000000e+00> : vector<16x16xf32>
    %85 = tpu.matmul %82, %84, %cst_26 {dimension_numbers = #tpu.dot_dimension_numbers<[1], [1], [0], [0], [0, 0, 1, 0], [], []>} : vector<16x8xbf16>, vector<16x8xbf16>, vector<16x16xf32> -> vector<16x16xf32>
    %86 = arith.addf %85, %23 : vector<16x16xf32>
    %cst_27 = arith.constant dense<0xFF800000> : vector<16xf32>
    %87 = vector.multi_reduction <maximumf>, %86, %cst_27 [1] : vector<16x16xf32> to vector<16xf32>
    %88 = vector.shape_cast %87 : vector<16xf32> to vector<16x1xf32>
    %89 = vector.broadcast %88 : vector<16x1xf32> to vector<16x16xf32>
    %90 = arith.subf %86, %89 : vector<16x16xf32>
    %91 = math.exp %90 : vector<16x16xf32>
    %cst_28 = arith.constant dense<0.000000e+00> : vector<16xf32>
    %92 = vector.multi_reduction <add>, %91, %cst_28 [1] : vector<16x16xf32> to vector<16xf32>
    %93 = vector.shape_cast %92 : vector<16xf32> to vector<16x1xf32>
    %94 = vector.broadcast %93 : vector<16x1xf32> to vector<16x16xf32>
    %95 = arith.divf %91, %94 : vector<16x16xf32>
    %96 = arith.truncf %95 : vector<16x16xf32> to vector<16x16xbf16>
    %97 = vector.extract_strided_slice %17 {offsets = [0, 24], sizes = [16, 8], strides = [1, 1]} : vector<16x32xf32> to vector<16x8xf32>
    %98 = arith.truncf %97 : vector<16x8xf32> to vector<16x8xbf16>
    %cst_29 = arith.constant dense<0.000000e+00> : vector<16x8xf32>
    %99 = tpu.matmul %96, %98, %cst_29 {dimension_numbers = #tpu.dot_dimension_numbers<[1], [0], [0], [1], [0, 0, 1, 1], [], []>} : vector<16x16xbf16>, vector<16x8xbf16>, vector<16x8xf32> -> vector<16x8xf32>
    %100 = tpu.concatenate %42, %61, %80, %99 in 1 : vector<16x8xf32>, vector<16x8xf32>, vector<16x8xf32>, vector<16x8xf32> -> vector<16x32xf32>
    %c0_30 = arith.constant 0 : index
    %c0_31 = arith.constant 0 : index
    %101 = vector.load %arg6[%c0_30, %c0_31] : memref<32x32xbf16, #tpu.memory_space<vmem>>, vector<32x32xbf16>
    %102 = arith.truncf %100 : vector<16x32xf32> to vector<16x32xbf16>
    %cst_32 = arith.constant dense<0.000000e+00> : vector<16x32xf32>
    %103 = tpu.matmul %102, %101, %cst_32 {dimension_numbers = #tpu.dot_dimension_numbers<[1], [0], [0], [1], [0, 0, 1, 1], [], []>} : vector<16x32xbf16>, vector<32x32xbf16>, vector<16x32xf32> -> vector<16x32xf32>
    %c0_33 = arith.constant 0 : index
    %c0_34 = arith.constant 0 : index
    %104 = vector.load %arg7[%c0_33, %c0_34] : memref<1x32xf32, #tpu.memory_space<vmem>>, vector<1x32xf32>
    %105 = vector.broadcast %104 : vector<1x32xf32> to vector<16x32xf32>
    %106 = arith.addf %103, %105 : vector<16x32xf32>
    %107 = arith.addf %1, %106 : vector<16x32xf32>
    %c0_35 = arith.constant 0 : index
    %c0_36 = arith.constant 0 : index
    %108 = vector.load %arg8[%c0_35, %c0_36] : memref<1x32xf32, #tpu.memory_space<vmem>>, vector<1x32xf32>
    %c0_37 = arith.constant 0 : index
    %c0_38 = arith.constant 0 : index
    %109 = vector.load %arg9[%c0_37, %c0_38] : memref<1x32xf32, #tpu.memory_space<vmem>>, vector<1x32xf32>
    %cst_39 = arith.constant dense<0.000000e+00> : vector<16xf32>
    %110 = vector.multi_reduction <add>, %107, %cst_39 [1] : vector<16x32xf32> to vector<16xf32>
    %111 = vector.shape_cast %110 : vector<16xf32> to vector<16x1xf32>
    %cst_40 = arith.constant 3.200000e+01 : f32
    %112 = vector.broadcast %cst_40 : f32 to vector<16x1xf32>
    %113 = arith.divf %111, %112 : vector<16x1xf32>
    %114 = vector.broadcast %113 : vector<16x1xf32> to vector<16x32xf32>
    %115 = arith.subf %107, %114 : vector<16x32xf32>
    %116 = arith.mulf %115, %115 : vector<16x32xf32>
    %cst_41 = arith.constant dense<0.000000e+00> : vector<16xf32>
    %117 = vector.multi_reduction <add>, %116, %cst_41 [1] : vector<16x32xf32> to vector<16xf32>
    %118 = vector.shape_cast %117 : vector<16xf32> to vector<16x1xf32>
    %cst_42 = arith.constant 3.200000e+01 : f32
    %119 = vector.broadcast %cst_42 : f32 to vector<16x1xf32>
    %120 = arith.divf %118, %119 : vector<16x1xf32>
    %121 = vector.broadcast %113 : vector<16x1xf32> to vector<16x32xf32>
    %122 = arith.subf %107, %121 : vector<16x32xf32>
    %cst_43 = arith.constant 9.99999974E-6 : f32
    %123 = vector.broadcast %cst_43 : f32 to vector<16x1xf32>
    %124 = arith.addf %120, %123 : vector<16x1xf32>
    %125 = math.rsqrt %124 : vector<16x1xf32>
    %126 = vector.broadcast %125 : vector<16x1xf32> to vector<16x32xf32>
    %127 = arith.mulf %122, %126 : vector<16x32xf32>
    %128 = vector.broadcast %108 : vector<1x32xf32> to vector<16x32xf32>
    %129 = arith.mulf %127, %128 : vector<16x32xf32>
    %130 = vector.broadcast %109 : vector<1x32xf32> to vector<16x32xf32>
    %131 = arith.addf %129, %130 : vector<16x32xf32>
    %c0_44 = arith.constant 0 : index
    %c0_45 = arith.constant 0 : index
    %132 = vector.load %arg10[%c0_44, %c0_45] : memref<32x64xbf16, #tpu.memory_space<vmem>>, vector<32x64xbf16>
    %133 = arith.truncf %131 : vector<16x32xf32> to vector<16x32xbf16>
    %cst_46 = arith.constant dense<0.000000e+00> : vector<16x64xf32>
    %134 = tpu.matmul %133, %132, %cst_46 {dimension_numbers = #tpu.dot_dimension_numbers<[1], [0], [0], [1], [0, 0, 1, 1], [], []>} : vector<16x32xbf16>, vector<32x64xbf16>, vector<16x64xf32> -> vector<16x64xf32>
    %c0_47 = arith.constant 0 : index
    %c0_48 = arith.constant 0 : index
    %135 = vector.load %arg11[%c0_47, %c0_48] : memref<1x64xf32, #tpu.memory_space<vmem>>, vector<1x64xf32>
    %136 = vector.broadcast %135 : vector<1x64xf32> to vector<16x64xf32>
    %137 = arith.addf %134, %136 : vector<16x64xf32>
    %cst_49 = arith.constant 0.000000e+00 : f32
    %138 = vector.broadcast %cst_49 : f32 to vector<16x64xf32>
    %139 = arith.maximumf %137, %138 : vector<16x64xf32>
    %c0_50 = arith.constant 0 : index
    %c0_51 = arith.constant 0 : index
    %140 = vector.load %arg12[%c0_50, %c0_51] : memref<64x32xbf16, #tpu.memory_space<vmem>>, vector<64x32xbf16>
    %141 = arith.truncf %139 : vector<16x64xf32> to vector<16x64xbf16>
    %cst_52 = arith.constant dense<0.000000e+00> : vector<16x32xf32>
    %142 = tpu.matmul %141, %140, %cst_52 {dimension_numbers = #tpu.dot_dimension_numbers<[1], [0], [0], [1], [0, 0, 1, 1], [], []>} : vector<16x64xbf16>, vector<64x32xbf16>, vector<16x32xf32> -> vector<16x32xf32>
    %c0_53 = arith.constant 0 : index
    %c0_54 = arith.constant 0 : index
    %143 = vector.load %arg13[%c0_53, %c0_54] : memref<1x32xf32, #tpu.memory_space<vmem>>, vector<1x32xf32>
    %144 = vector.broadcast %143 : vector<1x32xf32> to vector<16x32xf32>
    %145 = arith.addf %142, %144 : vector<16x32xf32>
    %146 = arith.addf %131, %145 : vector<16x32xf32>
    %c0_55 = arith.constant 0 : index
    %c0_56 = arith.constant 0 : index
    %147 = vector.load %arg14[%c0_55, %c0_56] : memref<1x32xf32, #tpu.memory_space<vmem>>, vector<1x32xf32>
    %c0_57 = arith.constant 0 : index
    %c0_58 = arith.constant 0 : index
    %148 = vector.load %arg15[%c0_57, %c0_58] : memref<1x32xf32, #tpu.memory_space<vmem>>, vector<1x32xf32>
    %cst_59 = arith.constant dense<0.000000e+00> : vector<16xf32>
    %149 = vector.multi_reduction <add>, %146, %cst_59 [1] : vector<16x32xf32> to vector<16xf32>
    %150 = vector.shape_cast %149 : vector<16xf32> to vector<16x1xf32>
    %cst_60 = arith.constant 3.200000e+01 : f32
    %151 = vector.broadcast %cst_60 : f32 to vector<16x1xf32>
    %152 = arith.divf %150, %151 : vector<16x1xf32>
    %153 = vector.broadcast %152 : vector<16x1xf32> to vector<16x32xf32>
    %154 = arith.subf %146, %153 : vector<16x32xf32>
    %155 = arith.mulf %154, %154 : vector<16x32xf32>
    %cst_61 = arith.constant dense<0.000000e+00> : vector<16xf32>
    %156 = vector.multi_reduction <add>, %155, %cst_61 [1] : vector<16x32xf32> to vector<16xf32>
    %157 = vector.shape_cast %156 : vector<16xf32> to vector<16x1xf32>
    %cst_62 = arith.constant 3.200000e+01 : f32
    %158 = vector.broadcast %cst_62 : f32 to vector<16x1xf32>
    %159 = arith.divf %157, %158 : vector<16x1xf32>
    %160 = vector.broadcast %152 : vector<16x1xf32> to vector<16x32xf32>
    %161 = arith.subf %146, %160 : vector<16x32xf32>
    %cst_63 = arith.constant 9.99999974E-6 : f32
    %162 = vector.broadcast %cst_63 : f32 to vector<16x1xf32>
    %163 = arith.addf %159, %162 : vector<16x1xf32>
    %164 = math.rsqrt %163 : vector<16x1xf32>
    %165 = vector.broadcast %164 : vector<16x1xf32> to vector<16x32xf32>
    %166 = arith.mulf %161, %165 : vector<16x32xf32>
    %167 = vector.broadcast %147 : vector<1x32xf32> to vector<16x32xf32>
    %168 = arith.mulf %166, %167 : vector<16x32xf32>
    %169 = vector.broadcast %148 : vector<1x32xf32> to vector<16x32xf32>
    %170 = arith.addf %168, %169 : vector<16x32xf32>
    %c0_64 = arith.constant 0 : index
    %c0_65 = arith.constant 0 : index
    %c0_66 = arith.constant 0 : index
    %171 = vector.load %arg18[%c0_64, %c0_65, %c0_66] : memref<1x16x32xf32, #tpu.memory_space<vmem>>, vector<1x16x32xf32>
    %172 = vector.shape_cast %171 : vector<1x16x32xf32> to vector<16x32xf32>
    %173 = vector.shape_cast %170 : vector<16x32xf32> to vector<1x16x32xf32>
    tpu.vector_store %arg18[%c0_64, %c0_65, %c0_66], %173 {strides = array<i32>} : memref<1x16x32xf32, #tpu.memory_space<vmem>>, vector<1x16x32xf32>,
    return
  }
  func.func @transform_0(%arg0: i32) -> (i32, i32, i32) {
    %c0_i32 = arith.constant 0 : i32
    %c0_i32_0 = arith.constant 0 : i32
    %c0_i32_1 = arith.constant 0 : i32
    return %arg0, %c0_i32, %c0_i32_0 : i32, i32, i32
  }
  func.func @transform_1(%arg0: i32) -> (i32, i32, i32) {
    %c0_i32 = arith.constant 0 : i32
    %c0_i32_0 = arith.constant 0 : i32
    %c0_i32_1 = arith.constant 0 : i32
    return %arg0, %c0_i32, %c0_i32_0 : i32, i32, i32
  }
  func.func @transform_2(%arg0: i32) -> (i32, i32, i32) {
    %c0_i32 = arith.constant 0 : i32
    %c0_i32_0 = arith.constant 0 : i32
    %c0_i32_1 = arith.constant 0 : i32
    return %arg0, %c0_i32, %c0_i32_0 : i32, i32, i32
  }
  func.func @transform_3(%arg0: i32) -> (i32, i32) {
    %c0_i32 = arith.constant 0 : i32
    %c0_i32_0 = arith.constant 0 : i32
    %c0_i32_1 = arith.constant 0 : i32
    return %c0_i32, %c0_i32_0 : i32, i32
  }
  func.func @transform_4(%arg0: i32) -> (i32, i32) {
    %c0_i32 = arith.constant 0 : i32
    %c0_i32_0 = arith.constant 0 : i32
    %c0_i32_1 = arith.constant 0 : i32
    return %c0_i32, %c0_i32_0 : i32, i32
  }
  func.func @transform_5(%arg0: i32) -> (i32, i32) {
    %c0_i32 = arith.constant 0 : i32
    %c0_i32_0 = arith.constant 0 : i32
    %c0_i32_1 = arith.constant 0 : i32
    return %c0_i32, %c0_i32_0 : i32, i32
  }
  func.func @transform_6(%arg0: i32) -> (i32, i32) {
    %c0_i32 = arith.constant 0 : i32
    %c0_i32_0 = arith.constant 0 : i32
    %c0_i32_1 = arith.constant 0 : i32
    return %c0_i32, %c0_i32_0 : i32, i32
  }
  func.func @transform_7(%arg0: i32) -> (i32, i32) {
    %c0_i32 = arith.constant 0 : i32
    %c0_i32_0 = arith.constant 0 : i32
    %c0_i32_1 = arith.constant 0 : i32
    return %c0_i32, %c0_i32_0 : i32, i32
  }
  func.func @transform_8(%arg0: i32) -> (i32, i32) {
    %c0_i32 = arith.constant 0 : i32
    %c0_i32_0 = arith.constant 0 : i32
    %c0_i32_1 = arith.constant 0 : i32
    return %c0_i32, %c0_i32_0 : i32, i32
  }
  func.func @transform_9(%arg0: i32) -> (i32, i32) {
    %c0_i32 = arith.constant 0 : i32
    %c0_i32_0 = arith.constant 0 : i32
    %c0_i32_1 = arith.constant 0 : i32
    return %c0_i32, %c0_i32_0 : i32, i32
  }
  func.func @transform_10(%arg0: i32) -> (i32, i32) {
    %c0_i32 = arith.constant 0 : i32
    %c0_i32_0 = arith.constant 0 : i32
    %c0_i32_1 = arith.constant 0 : i32
    return %c0_i32, %c0_i32_0 : i32, i32
  }
  func.func @transform_11(%arg0: i32) -> (i32, i32) {
    %c0_i32 = arith.constant 0 : i32
    %c0_i32_0 = arith.constant 0 : i32
    %c0_i32_1 = arith.constant 0 : i32
    return %c0_i32, %c0_i32_0 : i32, i32
  }
  func.func @transform_12(%arg0: i32) -> (i32, i32) {
    %c0_i32 = arith.constant 0 : i32
    %c0_i32_0 = arith.constant 0 : i32
    %c0_i32_1 = arith.constant 0 : i32
    return %c0_i32, %c0_i32_0 : i32, i32
  }
  func.func @transform_13(%arg0: i32) -> (i32, i32) {
    %c0_i32 = arith.constant 0 : i32
    %c0_i32_0 = arith.constant 0 : i32
    %c0_i32_1 = arith.constant 0 : i32
    return %c0_i32, %c0_i32_0 : i32, i32
  }
  func.func @transform_14(%arg0: i32) -> (i32, i32) {
    %c0_i32 = arith.constant 0 : i32
    %c0_i32_0 = arith.constant 0 : i32
    %c0_i32_1 = arith.constant 0 : i32
    return %c0_i32, %c0_i32_0 : i32, i32
  }
  func.func @transform_15(%arg0: i32) -> (i32, i32) {
    %c0_i32 = arith.constant 0 : i32
    %c0_i32_0 = arith.constant 0 : i32
    %c0_i32_1 = arith.constant 0 : i32
    return %c0_i32, %c0_i32_0 : i32, i32
  }
  func.func @transform_16(%arg0: i32) -> (i32, i32) {
    %c0_i32 = arith.constant 0 : i32
    %c0_i32_0 = arith.constant 0 : i32
    %c0_i32_1 = arith.constant 0 : i32
    return %c0_i32, %c0_i32_0 : i32, i32
  }
  func.func @transform_17(%arg0: i32) -> (i32, i32, i32) {
    %c0_i32 = arith.constant 0 : i32
    %c0_i32_0 = arith.constant 0 : i32
    %c0_i32_1 = arith.constant 0 : i32
    return %arg0, %c0_i32, %c0_i32_0 : i32, i32, i32
  }
}

module attributes {stable_mosaic.version = 11 : i64} {
  func.func @_encoder_layer_kernel(%arg0: i32, %arg1: memref<1x16x32xf32, #tpu.memory_space<vmem>>, %arg2: memref<1x16x32xf32, #tpu.memory_space<vmem>>, %arg3: memref<1x1x16xf32, #tpu.memory_space<vmem>>, %arg4: memref<32x96xbf16, #tpu.memory_space<vmem>>, %arg5: memref<1x96xf32, #tpu.memory_space<vmem>>, %arg6: memref<32x32xbf16, #tpu.memory_space<vmem>>, %arg7: memref<1x32xf32, #tpu.memory_space<vmem>>, %arg8: memref<1x32xf32, #tpu.memory_space<vmem>>, %arg9: memref<1x32xf32, #tpu.memory_space<vmem>>, %arg10: memref<32x64xbf16, #tpu.memory_space<vmem>>, %arg11: memref<1x64xf32, #tpu.memory_space<vmem>>, %arg12: memref<64x32xbf16, #tpu.memory_space<vmem>>, %arg13: memref<1x32xf32, #tpu.memory_space<vmem>>, %arg14: memref<1x32xf32, #tpu.memory_space<vmem>>, %arg15: memref<1x32xf32, #tpu.memory_space<vmem>>, %arg16: memref<1x32xf32, #tpu.memory_space<vmem>>, %arg17: memref<1x32xf32, #tpu.memory_space<vmem>>, %arg18: memref<1x16x32xf32, #tpu.memory_space<vmem>>) attributes {dimension_semantics = [#tpu.dimension_semantics<parallel>], iteration_bounds = array<i64: 2>, scalar_prefetch = 0 : i64, scratch_operands = 0 : i64, tpu.core_type = #tpu.core_type<tc>, window_params = [{transform_indices = @transform_0, window_bounds = array<i64: 1, 16, 32>}, {transform_indices = @transform_1, window_bounds = array<i64: 1, 16, 32>}, {transform_indices = @transform_2, window_bounds = array<i64: 1, 1, 16>}, {pipeline_mode = #tpu.pipeline_mode<synchronous>, transform_indices = @transform_3, window_bounds = array<i64: 32, 96>}, {pipeline_mode = #tpu.pipeline_mode<synchronous>, transform_indices = @transform_4, window_bounds = array<i64: 1, 96>}, {pipeline_mode = #tpu.pipeline_mode<synchronous>, transform_indices = @transform_5, window_bounds = array<i64: 32, 32>}, {pipeline_mode = #tpu.pipeline_mode<synchronous>, transform_indices = @transform_6, window_bounds = array<i64: 1, 32>}, {pipeline_mode = #tpu.pipeline_mode<synchronous>, transform_indices = @transform_7, window_bounds = array<i64: 1, 32>}, {pipeline_mode = #tpu.pipeline_mode<synchronous>, transform_indices = @transform_8, window_bounds = array<i64: 1, 32>}, {pipeline_mode = #tpu.pipeline_mode<synchronous>, transform_indices = @transform_9, window_bounds = array<i64: 32, 64>}, {pipeline_mode = #tpu.pipeline_mode<synchronous>, transform_indices = @transform_10, window_bounds = array<i64: 1, 64>}, {pipeline_mode = #tpu.pipeline_mode<synchronous>, transform_indices = @transform_11, window_bounds = array<i64: 64, 32>}, {pipeline_mode = #tpu.pipeline_mode<synchronous>, transform_indices = @transform_12, window_bounds = array<i64: 1, 32>}, {pipeline_mode = #tpu.pipeline_mode<synchronous>, transform_indices = @transform_13, window_bounds = array<i64: 1, 32>}, {pipeline_mode = #tpu.pipeline_mode<synchronous>, transform_indices = @transform_14, window_bounds = array<i64: 1, 32>}, {pipeline_mode = #tpu.pipeline_mode<synchronous>, transform_indices = @transform_15, window_bounds = array<i64: 1, 32>}, {pipeline_mode = #tpu.pipeline_mode<synchronous>, transform_indices = @transform_16, window_bounds = array<i64: 1, 32>}, {transform_indices = @transform_17, window_bounds = array<i64: 1, 16, 32>}]} {
    %c0 = arith.constant 0 : index
    %c0_0 = arith.constant 0 : index
    %c0_1 = arith.constant 0 : index
    %0 = vector.load %arg1[%c0, %c0_0, %c0_1] : memref<1x16x32xf32, #tpu.memory_space<vmem>>, vector<1x16x32xf32>
    %1 = vector.shape_cast %0 : vector<1x16x32xf32> to vector<16x32xf32>
    %c0_2 = arith.constant 0 : index
    %c0_3 = arith.constant 0 : index
    %c0_4 = arith.constant 0 : index
    %2 = vector.load %arg2[%c0_2, %c0_3, %c0_4] : memref<1x16x32xf32, #tpu.memory_space<vmem>>, vector<1x16x32xf32>
    %3 = vector.shape_cast %2 : vector<1x16x32xf32> to vector<16x32xf32>
    %4 = arith.addf %1, %3 : vector<16x32xf32>
    %c0_5 = arith.constant 0 : index
    %c0_6 = arith.constant 0 : index
    %5 = vector.load %arg4[%c0_5, %c0_6] : memref<32x96xbf16, #tpu.memory_space<vmem>>, vector<32x96xbf16>
    %6 = vector.extract_strided_slice %5 {offsets = [0, 0], sizes = [32, 64], strides = [1, 1]} : vector<32x96xbf16> to vector<32x64xbf16>
    %7 = arith.truncf %4 : vector<16x32xf32> to vector<16x32xbf16>
    %cst = arith.constant dense<0.000000e+00> : vector<16x64xf32>
    %8 = tpu.matmul %7, %6, %cst {dimension_numbers = #tpu.dot_dimension_numbers<[1], [0], [0], [1], [0, 0, 1, 1], [], []>} : vector<16x32xbf16>, vector<32x64xbf16>, vector<16x64xf32> -> vector<16x64xf32>
    %c0_7 = arith.constant 0 : index
    %c0_8 = arith.constant 0 : index
    %9 = vector.load %arg5[%c0_7, %c0_8] : memref<1x96xf32, #tpu.memory_space<vmem>>, vector<1x64xf32>
    %10 = vector.broadcast %9 : vector<1x64xf32> to vector<16x64xf32>
    %11 = arith.addf %8, %10 : vector<16x64xf32>
    %12 = vector.extract_strided_slice %5 {offsets = [0, 64], sizes = [32, 32], strides = [1, 1]} : vector<32x96xbf16> to vector<32x32xbf16>
    %13 = arith.truncf %1 : vector<16x32xf32> to vector<16x32xbf16>
    %cst_9 = arith.constant dense<0.000000e+00> : vector<16x32xf32>
    %14 = tpu.matmul %13, %12, %cst_9 {dimension_numbers = #tpu.dot_dimension_numbers<[1], [0], [0], [1], [0, 0, 1, 1], [], []>} : vector<16x32xbf16>, vector<32x32xbf16>, vector<16x32xf32> -> vector<16x32xf32>
    %c0_10 = arith.constant 0 : index
    %c64 = arith.constant 64 : index
    %15 = vector.load %arg5[%c0_10, %c64] : memref<1x96xf32, #tpu.memory_space<vmem>>, vector<1x32xf32>
    %16 = vector.broadcast %15 : vector<1x32xf32> to vector<16x32xf32>
    %17 = arith.addf %14, %16 : vector<16x32xf32>
    %18 = vector.extract_strided_slice %11 {offsets = [0, 0], sizes = [16, 32], strides = [1, 1]} : vector<16x64xf32> to vector<16x32xf32>
    %19 = vector.extract_strided_slice %11 {offsets = [0, 32], sizes = [16, 32], strides = [1, 1]} : vector<16x64xf32> to vector<16x32xf32>
    %c0_11 = arith.constant 0 : index
    %c0_12 = arith.constant 0 : index
    %c0_13 = arith.constant 0 : index
    %20 = vector.load %arg3[%c0_11, %c0_12, %c0_13] : memref<1x1x16xf32, #tpu.memory_space<vmem>>, vector<1x1x16xf32>
    %21 = vector.shape_cast %20 : vector<1x1x16xf32> to vector<1x16xf32>
    %22 = vector.shape_cast %21 : vector<1x16xf32> to vector<1x16xf32>
    %23 = vector.broadcast %22 : vector<1x16xf32> to vector<16x16xf32>
    %24 = vector.extract_strided_slice %18 {offsets = [0, 0], sizes = [16, 8], strides = [1, 1]} : vector<16x32xf32> to vector<16x8xf32>
    %25 = arith.truncf %24 : vector<16x8xf32> to vector<16x8xbf16>
    %26 = vector.extract_strided_slice %19 {offsets = [0, 0], sizes = [16, 8], strides = [1, 1]} : vector<16x32xf32> to vector<16x8xf32>
    %27 = arith.truncf %26 : vector<16x8xf32> to vector<16x8xbf16>
    %cst_14 = arith.constant dense<0.000000e+00> : vector<16x16xf32>
    %28 = tpu.matmul %25, %27, %cst_14 {dimension_numbers = #tpu.dot_dimension_numbers<[1], [1], [0], [0], [0, 0, 1, 0], [], []>} : vector<16x8xbf16>, vector<16x8xbf16>, vector<16x16xf32> -> vector<16x16xf32>
    %29 = arith.addf %28, %23 : vector<16x16xf32>
    %cst_15 = arith.constant dense<0xFF800000> : vector<16xf32>
    %30 = vector.multi_reduction <maximumf>, %29, %cst_15 [1] : vector<16x16xf32> to vector<16xf32>
    %31 = vector.shape_cast %30 : vector<16xf32> to vector<16x1xf32>
    %32 = vector.broadcast %31 : vector<16x1xf32> to vector<16x16xf32>
    %33 = arith.subf %29, %32 : vector<16x16xf32>
    %34 = math.exp %33 : vector<16x16xf32>
    %cst_16 = arith.constant dense<0.000000e+00> : vector<16xf32>
    %35 = vector.multi_reduction <add>, %34, %cst_16 [1] : vector<16x16xf32> to vector<16xf32>
    %36 = vector.shape_cast %35 : vector<16xf32> to vector<16x1xf32>
    %37 = vector.broadcast %36 : vector<16x1xf32> to vector<16x16xf32>
    %38 = arith.divf %34, %37 : vector<16x16xf32>
    %39 = arith.truncf %38 : vector<16x16xf32> to vector<16x16xbf16>
    %40 = vector.extract_strided_slice %17 {offsets = [0, 0], sizes = [16, 8], strides = [1, 1]} : vector<16x32xf32> to vector<16x8xf32>
    %41 = arith.truncf %40 : vector<16x8xf32> to vector<16x8xbf16>
    %cst_17 = arith.constant dense<0.000000e+00> : vector<16x8xf32>
    %42 = tpu.matmul %39, %41, %cst_17 {dimension_numbers = #tpu.dot_dimension_numbers<[1], [0], [0], [1], [0, 0, 1, 1], [], []>} : vector<16x16xbf16>, vector<16x8xbf16>, vector<16x8xf32> -> vector<16x8xf32>
    %43 = vector.extract_strided_slice %18 {offsets = [0, 8], sizes = [16, 8], strides = [1, 1]} : vector<16x32xf32> to vector<16x8xf32>
    %44 = arith.truncf %43 : vector<16x8xf32> to vector<16x8xbf16>
    %45 = vector.extract_strided_slice %19 {offsets = [0, 8], sizes = [16, 8], strides = [1, 1]} : vector<16x32xf32> to vector<16x8xf32>
    %46 = arith.truncf %45 : vector<16x8xf32> to vector<16x8xbf16>
    %cst_18 = arith.constant dense<0.000000e+00> : vector<16x16xf32>
    %47 = tpu.matmul %44, %46, %cst_18 {dimension_numbers = #tpu.dot_dimension_numbers<[1], [1], [0], [0], [0, 0, 1, 0], [], []>} : vector<16x8xbf16>, vector<16x8xbf16>, vector<16x16xf32> -> vector<16x16xf32>
    %48 = arith.addf %47, %23 : vector<16x16xf32>
    %cst_19 = arith.constant dense<0xFF800000> : vector<16xf32>
    %49 = vector.multi_reduction <maximumf>, %48, %cst_19 [1] : vector<16x16xf32> to vector<16xf32>
    %50 = vector.shape_cast %49 : vector<16xf32> to vector<16x1xf32>
    %51 = vector.broadcast %50 : vector<16x1xf32> to vector<16x16xf32>
    %52 = arith.subf %48, %51 : vector<16x16xf32>
    %53 = math.exp %52 : vector<16x16xf32>
    %cst_20 = arith.constant dense<0.000000e+00> : vector<16xf32>
    %54 = vector.multi_reduction <add>, %53, %cst_20 [1] : vector<16x16xf32> to vector<16xf32>
    %55 = vector.shape_cast %54 : vector<16xf32> to vector<16x1xf32>
    %56 = vector.broadcast %55 : vector<16x1xf32> to vector<16x16xf32>
    %57 = arith.divf %53, %56 : vector<16x16xf32>
    %58 = arith.truncf %57 : vector<16x16xf32> to vector<16x16xbf16>
    %59 = vector.extract_strided_slice %17 {offsets = [0, 8], sizes = [16, 8], strides = [1, 1]} : vector<16x32xf32> to vector<16x8xf32>
    %60 = arith.truncf %59 : vector<16x8xf32> to vector<16x8xbf16>
    %cst_21 = arith.constant dense<0.000000e+00> : vector<16x8xf32>
    %61 = tpu.matmul %58, %60, %cst_21 {dimension_numbers = #tpu.dot_dimension_numbers<[1], [0], [0], [1], [0, 0, 1, 1], [], []>} : vector<16x16xbf16>, vector<16x8xbf16>, vector<16x8xf32> -> vector<16x8xf32>
    %62 = vector.extract_strided_slice %18 {offsets = [0, 16], sizes = [16, 8], strides = [1, 1]} : vector<16x32xf32> to vector<16x8xf32>
    %63 = arith.truncf %62 : vector<16x8xf32> to vector<16x8xbf16>
    %64 = vector.extract_strided_slice %19 {offsets = [0, 16], sizes = [16, 8], strides = [1, 1]} : vector<16x32xf32> to vector<16x8xf32>
    %65 = arith.truncf %64 : vector<16x8xf32> to vector<16x8xbf16>
    %cst_22 = arith.constant dense<0.000000e+00> : vector<16x16xf32>
    %66 = tpu.matmul %63, %65, %cst_22 {dimension_numbers = #tpu.dot_dimension_numbers<[1], [1], [0], [0], [0, 0, 1, 0], [], []>} : vector<16x8xbf16>, vector<16x8xbf16>, vector<16x16xf32> -> vector<16x16xf32>
    %67 = arith.addf %66, %23 : vector<16x16xf32>
    %cst_23 = arith.constant dense<0xFF800000> : vector<16xf32>
    %68 = vector.multi_reduction <maximumf>, %67, %cst_23 [1] : vector<16x16xf32> to vector<16xf32>
    %69 = vector.shape_cast %68 : vector<16xf32> to vector<16x1xf32>
    %70 = vector.broadcast %69 : vector<16x1xf32> to vector<16x16xf32>
    %71 = arith.subf %67, %70 : vector<16x16xf32>
    %72 = math.exp %71 : vector<16x16xf32>
    %cst_24 = arith.constant dense<0.000000e+00> : vector<16xf32>
    %73 = vector.multi_reduction <add>, %72, %cst_24 [1] : vector<16x16xf32> to vector<16xf32>
    %74 = vector.shape_cast %73 : vector<16xf32> to vector<16x1xf32>
    %75 = vector.broadcast %74 : vector<16x1xf32> to vector<16x16xf32>
    %76 = arith.divf %72, %75 : vector<16x16xf32>
    %77 = arith.truncf %76 : vector<16x16xf32> to vector<16x16xbf16>
    %78 = vector.extract_strided_slice %17 {offsets = [0, 16], sizes = [16, 8], strides = [1, 1]} : vector<16x32xf32> to vector<16x8xf32>
    %79 = arith.truncf %78 : vector<16x8xf32> to vector<16x8xbf16>
    %cst_25 = arith.constant dense<0.000000e+00> : vector<16x8xf32>
    %80 = tpu.matmul %77, %79, %cst_25 {dimension_numbers = #tpu.dot_dimension_numbers<[1], [0], [0], [1], [0, 0, 1, 1], [], []>} : vector<16x16xbf16>, vector<16x8xbf16>, vector<16x8xf32> -> vector<16x8xf32>
    %81 = vector.extract_strided_slice %18 {offsets = [0, 24], sizes = [16, 8], strides = [1, 1]} : vector<16x32xf32> to vector<16x8xf32>
    %82 = arith.truncf %81 : vector<16x8xf32> to vector<16x8xbf16>
    %83 = vector.extract_strided_slice %19 {offsets = [0, 24], sizes = [16, 8], strides = [1, 1]} : vector<16x32xf32> to vector<16x8xf32>
    %84 = arith.truncf %83 : vector<16x8xf32> to vector<16x8xbf16>
    %cst_26 = arith.constant dense<0.000000e+00> : vector<16x16xf32>
    %85 = tpu.matmul %82, %84, %cst_26 {dimension_numbers = #tpu.dot_dimension_numbers<[1], [1], [0], [0], [0, 0, 1, 0], [], []>} : vector<16x8xbf16>, vector<16x8xbf16>, vector<16x16xf32> -> vector<16x16xf32>
    %86 = arith.addf %85, %23 : vector<16x16xf32>
    %cst_27 = arith.constant dense<0xFF800000> : vector<16xf32>
    %87 = vector.multi_reduction <maximumf>, %86, %cst_27 [1] : vector<16x16xf32> to vector<16xf32>
    %88 = vector.shape_cast %87 : vector<16xf32> to vector<16x1xf32>
    %89 = vector.broadcast %88 : vector<16x1xf32> to vector<16x16xf32>
    %90 = arith.subf %86, %89 : vector<16x16xf32>
    %91 = math.exp %90 : vector<16x16xf32>
    %cst_28 = arith.constant dense<0.000000e+00> : vector<16xf32>
    %92 = vector.multi_reduction <add>, %91, %cst_28 [1] : vector<16x16xf32> to vector<16xf32>
    %93 = vector.shape_cast %92 : vector<16xf32> to vector<16x1xf32>
    %94 = vector.broadcast %93 : vector<16x1xf32> to vector<16x16xf32>
    %95 = arith.divf %91, %94 : vector<16x16xf32>
    %96 = arith.truncf %95 : vector<16x16xf32> to vector<16x16xbf16>
    %97 = vector.extract_strided_slice %17 {offsets = [0, 24], sizes = [16, 8], strides = [1, 1]} : vector<16x32xf32> to vector<16x8xf32>
    %98 = arith.truncf %97 : vector<16x8xf32> to vector<16x8xbf16>
    %cst_29 = arith.constant dense<0.000000e+00> : vector<16x8xf32>
    %99 = tpu.matmul %96, %98, %cst_29 {dimension_numbers = #tpu.dot_dimension_numbers<[1], [0], [0], [1], [0, 0, 1, 1], [], []>} : vector<16x16xbf16>, vector<16x8xbf16>, vector<16x8xf32> -> vector<16x8xf32>
    %100 = tpu.concatenate %42, %61, %80, %99 in 1 : vector<16x8xf32>, vector<16x8xf32>, vector<16x8xf32>, vector<16x8xf32> -> vector<16x32xf32>
    %c0_30 = arith.constant 0 : index
    %c0_31 = arith.constant 0 : index
    %101 = vector.load %arg6[%c0_30, %c0_31] : memref<32x32xbf16, #tpu.memory_space<vmem>>, vector<32x32xbf16>
    %102 = arith.truncf %100 : vector<16x32xf32> to vector<16x32xbf16>
    %cst_32 = arith.constant dense<0.000000e+00> : vector<16x32xf32>
    %103 = tpu.matmul %102, %101, %cst_32 {dimension_numbers = #tpu.dot_dimension_numbers<[1], [0], [0], [1], [0, 0, 1, 1], [], []>} : vector<16x32xbf16>, vector<32x32xbf16>, vector<16x32xf32> -> vector<16x32xf32>
    %c0_33 = arith.constant 0 : index
    %c0_34 = arith.constant 0 : index
    %104 = vector.load %arg7[%c0_33, %c0_34] : memref<1x32xf32, #tpu.memory_space<vmem>>, vector<1x32xf32>
    %105 = vector.broadcast %104 : vector<1x32xf32> to vector<16x32xf32>
    %106 = arith.addf %103, %105 : vector<16x32xf32>
    %107 = arith.addf %1, %106 : vector<16x32xf32>
    %c0_35 = arith.constant 0 : index
    %c0_36 = arith.constant 0 : index
    %108 = vector.load %arg8[%c0_35, %c0_36] : memref<1x32xf32, #tpu.memory_space<vmem>>, vector<1x32xf32>
    %c0_37 = arith.constant 0 : index
    %c0_38 = arith.constant 0 : index
    %109 = vector.load %arg9[%c0_37, %c0_38] : memref<1x32xf32, #tpu.memory_space<vmem>>, vector<1x32xf32>
    %cst_39 = arith.constant dense<0.000000e+00> : vector<16xf32>
    %110 = vector.multi_reduction <add>, %107, %cst_39 [1] : vector<16x32xf32> to vector<16xf32>
    %111 = vector.shape_cast %110 : vector<16xf32> to vector<16x1xf32>
    %cst_40 = arith.constant 3.200000e+01 : f32
    %112 = vector.broadcast %cst_40 : f32 to vector<16x1xf32>
    %113 = arith.divf %111, %112 : vector<16x1xf32>
    %114 = vector.broadcast %113 : vector<16x1xf32> to vector<16x32xf32>
    %115 = arith.subf %107, %114 : vector<16x32xf32>
    %116 = arith.mulf %115, %115 : vector<16x32xf32>
    %cst_41 = arith.constant dense<0.000000e+00> : vector<16xf32>
    %117 = vector.multi_reduction <add>, %116, %cst_41 [1] : vector<16x32xf32> to vector<16xf32>
    %118 = vector.shape_cast %117 : vector<16xf32> to vector<16x1xf32>
    %cst_42 = arith.constant 3.200000e+01 : f32
    %119 = vector.broadcast %cst_42 : f32 to vector<16x1xf32>
    %120 = arith.divf %118, %119 : vector<16x1xf32>
    %121 = vector.broadcast %113 : vector<16x1xf32> to vector<16x32xf32>
    %122 = arith.subf %107, %121 : vector<16x32xf32>
    %cst_43 = arith.constant 9.99999974E-6 : f32
    %123 = vector.broadcast %cst_43 : f32 to vector<16x1xf32>
    %124 = arith.addf %120, %123 : vector<16x1xf32>
    %125 = math.rsqrt %124 : vector<16x1xf32>
    %126 = vector.broadcast %125 : vector<16x1xf32> to vector<16x32xf32>
    %127 = arith.mulf %122, %126 : vector<16x32xf32>
    %128 = vector.broadcast %108 : vector<1x32xf32> to vector<16x32xf32>
    %129 = arith.mulf %127, %128 : vector<16x32xf32>
    %130 = vector.broadcast %109 : vector<1x32xf32> to vector<16x32xf32>
    %131 = arith.addf %129, %130 : vector<16x32xf32>
    %c0_44 = arith.constant 0 : index
    %c0_45 = arith.constant 0 : index
    %132 = vector.load %arg10[%c0_44, %c0_45] : memref<32x64xbf16, #tpu.memory_space<vmem>>, vector<32x64xbf16>
    %133 = arith.truncf %131 : vector<16x32xf32> to vector<16x32xbf16>
    %cst_46 = arith.constant dense<0.000000e+00> : vector<16x64xf32>
    %134 = tpu.matmul %133, %132, %cst_46 {dimension_numbers = #tpu.dot_dimension_numbers<[1], [0], [0], [1], [0, 0, 1, 1], [], []>} : vector<16x32xbf16>, vector<32x64xbf16>, vector<16x64xf32> -> vector<16x64xf32>
    %c0_47 = arith.constant 0 : index
    %c0_48 = arith.constant 0 : index
    %135 = vector.load %arg11[%c0_47, %c0_48] : memref<1x64xf32, #tpu.memory_space<vmem>>, vector<1x64xf32>
    %136 = vector.broadcast %135 : vector<1x64xf32> to vector<16x64xf32>
    %137 = arith.addf %134, %136 : vector<16x64xf32>
    %cst_49 = arith.constant 0.000000e+00 : f32
    %138 = vector.broadcast %cst_49 : f32 to vector<16x64xf32>
    %139 = arith.maximumf %137, %138 : vector<16x64xf32>
    %c0_50 = arith.constant 0 : index
    %c0_51 = arith.constant 0 : index
    %140 = vector.load %arg12[%c0_50, %c0_51] : memref<64x32xbf16, #tpu.memory_space<vmem>>, vector<64x32xbf16>
    %141 = arith.truncf %139 : vector<16x64xf32> to vector<16x64xbf16>
    %cst_52 = arith.constant dense<0.000000e+00> : vector<16x32xf32>
    %142 = tpu.matmul %141, %140, %cst_52 {dimension_numbers = #tpu.dot_dimension_numbers<[1], [0], [0], [1], [0, 0, 1, 1], [], []>} : vector<16x64xbf16>, vector<64x32xbf16>, vector<16x32xf32> -> vector<16x32xf32>
    %c0_53 = arith.constant 0 : index
    %c0_54 = arith.constant 0 : index
    %143 = vector.load %arg13[%c0_53, %c0_54] : memref<1x32xf32, #tpu.memory_space<vmem>>, vector<1x32xf32>
    %144 = vector.broadcast %143 : vector<1x32xf32> to vector<16x32xf32>
    %145 = arith.addf %142, %144 : vector<16x32xf32>
    %146 = arith.addf %131, %145 : vector<16x32xf32>
    %c0_55 = arith.constant 0 : index
    %c0_56 = arith.constant 0 : index
    %147 = vector.load %arg14[%c0_55, %c0_56] : memref<1x32xf32, #tpu.memory_space<vmem>>, vector<1x32xf32>
    %c0_57 = arith.constant 0 : index
    %c0_58 = arith.constant 0 : index
    %148 = vector.load %arg15[%c0_57, %c0_58] : memref<1x32xf32, #tpu.memory_space<vmem>>, vector<1x32xf32>
    %cst_59 = arith.constant dense<0.000000e+00> : vector<16xf32>
    %149 = vector.multi_reduction <add>, %146, %cst_59 [1] : vector<16x32xf32> to vector<16xf32>
    %150 = vector.shape_cast %149 : vector<16xf32> to vector<16x1xf32>
    %cst_60 = arith.constant 3.200000e+01 : f32
    %151 = vector.broadcast %cst_60 : f32 to vector<16x1xf32>
    %152 = arith.divf %150, %151 : vector<16x1xf32>
    %153 = vector.broadcast %152 : vector<16x1xf32> to vector<16x32xf32>
    %154 = arith.subf %146, %153 : vector<16x32xf32>
    %155 = arith.mulf %154, %154 : vector<16x32xf32>
    %cst_61 = arith.constant dense<0.000000e+00> : vector<16xf32>
    %156 = vector.multi_reduction <add>, %155, %cst_61 [1] : vector<16x32xf32> to vector<16xf32>
    %157 = vector.shape_cast %156 : vector<16xf32> to vector<16x1xf32>
    %cst_62 = arith.constant 3.200000e+01 : f32
    %158 = vector.broadcast %cst_62 : f32 to vector<16x1xf32>
    %159 = arith.divf %157, %158 : vector<16x1xf32>
    %160 = vector.broadcast %152 : vector<16x1xf32> to vector<16x32xf32>
    %161 = arith.subf %146, %160 : vector<16x32xf32>
    %cst_63 = arith.constant 9.99999974E-6 : f32
    %162 = vector.broadcast %cst_63 : f32 to vector<16x1xf32>
    %163 = arith.addf %159, %162 : vector<16x1xf32>
    %164 = math.rsqrt %163 : vector<16x1xf32>
    %165 = vector.broadcast %164 : vector<16x1xf32> to vector<16x32xf32>
    %166 = arith.mulf %161, %165 : vector<16x32xf32>
    %167 = vector.broadcast %147 : vector<1x32xf32> to vector<16x32xf32>
    %168 = arith.mulf %166, %167 : vector<16x32xf32>
    %169 = vector.broadcast %148 : vector<1x32xf32> to vector<16x32xf32>
    %170 = arith.addf %168, %169 : vector<16x32xf32>
    %c0_64 = arith.constant 0 : index
    %c0_65 = arith.constant 0 : index
    %171 = vector.load %arg16[%c0_64, %c0_65] : memref<1x32xf32, #tpu.memory_space<vmem>>, vector<1x32xf32>
    %c0_66 = arith.constant 0 : index
    %c0_67 = arith.constant 0 : index
    %172 = vector.load %arg17[%c0_66, %c0_67] : memref<1x32xf32, #tpu.memory_space<vmem>>, vector<1x32xf32>
    %cst_68 = arith.constant dense<0.000000e+00> : vector<16xf32>
    %173 = vector.multi_reduction <add>, %170, %cst_68 [1] : vector<16x32xf32> to vector<16xf32>
    %174 = vector.shape_cast %173 : vector<16xf32> to vector<16x1xf32>
    %cst_69 = arith.constant 3.200000e+01 : f32
    %175 = vector.broadcast %cst_69 : f32 to vector<16x1xf32>
    %176 = arith.divf %174, %175 : vector<16x1xf32>
    %177 = vector.broadcast %176 : vector<16x1xf32> to vector<16x32xf32>
    %178 = arith.subf %170, %177 : vector<16x32xf32>
    %179 = arith.mulf %178, %178 : vector<16x32xf32>
    %cst_70 = arith.constant dense<0.000000e+00> : vector<16xf32>
    %180 = vector.multi_reduction <add>, %179, %cst_70 [1] : vector<16x32xf32> to vector<16xf32>
    %181 = vector.shape_cast %180 : vector<16xf32> to vector<16x1xf32>
    %cst_71 = arith.constant 3.200000e+01 : f32
    %182 = vector.broadcast %cst_71 : f32 to vector<16x1xf32>
    %183 = arith.divf %181, %182 : vector<16x1xf32>
    %184 = vector.broadcast %176 : vector<16x1xf32> to vector<16x32xf32>
    %185 = arith.subf %170, %184 : vector<16x32xf32>
    %cst_72 = arith.constant 9.99999974E-6 : f32
    %186 = vector.broadcast %cst_72 : f32 to vector<16x1xf32>
    %187 = arith.addf %183, %186 : vector<16x1xf32>
    %188 = math.rsqrt %187 : vector<16x1xf32>
    %189 = vector.broadcast %188 : vector<16x1xf32> to vector<16x32xf32>
    %190 = arith.mulf %185, %189 : vector<16x32xf32>
    %191 = vector.broadcast %171 : vector<1x32xf32> to vector<16x32xf32>
    %192 = arith.mulf %190, %191 : vector<16x32xf32>
    %193 = vector.broadcast %172 : vector<1x32xf32> to vector<16x32xf32>
    %194 = arith.addf %192, %193 : vector<16x32xf32>
    %c0_73 = arith.constant 0 : index
    %c0_74 = arith.constant 0 : index
    %c0_75 = arith.constant 0 : index
    %195 = vector.load %arg18[%c0_73, %c0_74, %c0_75] : memref<1x16x32xf32, #tpu.memory_space<vmem>>, vector<1x16x32xf32>
    %196 = vector.shape_cast %195 : vector<1x16x32xf32> to vector<16x32xf32>
    %197 = vector.shape_cast %194 : vector<16x32xf32> to vector<1x16x32xf32>
    tpu.vector_store %arg18[%c0_73, %c0_74, %c0_75], %197 {strides = array<i32>} : memref<1x16x32xf32, #tpu.memory_space<vmem>>, vector<1x16x32xf32>,
    return
  }
  func.func @transform_0(%arg0: i32) -> (i32, i32, i32) {
    %c0_i32 = arith.constant 0 : i32
    %c0_i32_0 = arith.constant 0 : i32
    %c0_i32_1 = arith.constant 0 : i32
    return %arg0, %c0_i32, %c0_i32_0 : i32, i32, i32
  }
  func.func @transform_1(%arg0: i32) -> (i32, i32, i32) {
    %c0_i32 = arith.constant 0 : i32
    %c0_i32_0 = arith.constant 0 : i32
    %c0_i32_1 = arith.constant 0 : i32
    return %arg0, %c0_i32, %c0_i32_0 : i32, i32, i32
  }
  func.func @transform_2(%arg0: i32) -> (i32, i32, i32) {
    %c0_i32 = arith.constant 0 : i32
    %c0_i32_0 = arith.constant 0 : i32
    %c0_i32_1 = arith.constant 0 : i32
    return %arg0, %c0_i32, %c0_i32_0 : i32, i32, i32
  }
  func.func @transform_3(%arg0: i32) -> (i32, i32) {
    %c0_i32 = arith.constant 0 : i32
    %c0_i32_0 = arith.constant 0 : i32
    %c0_i32_1 = arith.constant 0 : i32
    return %c0_i32, %c0_i32_0 : i32, i32
  }
  func.func @transform_4(%arg0: i32) -> (i32, i32) {
    %c0_i32 = arith.constant 0 : i32
    %c0_i32_0 = arith.constant 0 : i32
    %c0_i32_1 = arith.constant 0 : i32
    return %c0_i32, %c0_i32_0 : i32, i32
  }
  func.func @transform_5(%arg0: i32) -> (i32, i32) {
    %c0_i32 = arith.constant 0 : i32
    %c0_i32_0 = arith.constant 0 : i32
    %c0_i32_1 = arith.constant 0 : i32
    return %c0_i32, %c0_i32_0 : i32, i32
  }
  func.func @transform_6(%arg0: i32) -> (i32, i32) {
    %c0_i32 = arith.constant 0 : i32
    %c0_i32_0 = arith.constant 0 : i32
    %c0_i32_1 = arith.constant 0 : i32
    return %c0_i32, %c0_i32_0 : i32, i32
  }
  func.func @transform_7(%arg0: i32) -> (i32, i32) {
    %c0_i32 = arith.constant 0 : i32
    %c0_i32_0 = arith.constant 0 : i32
    %c0_i32_1 = arith.constant 0 : i32
    return %c0_i32, %c0_i32_0 : i32, i32
  }
  func.func @transform_8(%arg0: i32) -> (i32, i32) {
    %c0_i32 = arith.constant 0 : i32
    %c0_i32_0 = arith.constant 0 : i32
    %c0_i32_1 = arith.constant 0 : i32
    return %c0_i32, %c0_i32_0 : i32, i32
  }
  func.func @transform_9(%arg0: i32) -> (i32, i32) {
    %c0_i32 = arith.constant 0 : i32
    %c0_i32_0 = arith.constant 0 : i32
    %c0_i32_1 = arith.constant 0 : i32
    return %c0_i32, %c0_i32_0 : i32, i32
  }
  func.func @transform_10(%arg0: i32) -> (i32, i32) {
    %c0_i32 = arith.constant 0 : i32
    %c0_i32_0 = arith.constant 0 : i32
    %c0_i32_1 = arith.constant 0 : i32
    return %c0_i32, %c0_i32_0 : i32, i32
  }
  func.func @transform_11(%arg0: i32) -> (i32, i32) {
    %c0_i32 = arith.constant 0 : i32
    %c0_i32_0 = arith.constant 0 : i32
    %c0_i32_1 = arith.constant 0 : i32
    return %c0_i32, %c0_i32_0 : i32, i32
  }
  func.func @transform_12(%arg0: i32) -> (i32, i32) {
    %c0_i32 = arith.constant 0 : i32
    %c0_i32_0 = arith.constant 0 : i32
    %c0_i32_1 = arith.constant 0 : i32
    return %c0_i32, %c0_i32_0 : i32, i32
  }
  func.func @transform_13(%arg0: i32) -> (i32, i32) {
    %c0_i32 = arith.constant 0 : i32
    %c0_i32_0 = arith.constant 0 : i32
    %c0_i32_1 = arith.constant 0 : i32
    return %c0_i32, %c0_i32_0 : i32, i32
  }
  func.func @transform_14(%arg0: i32) -> (i32, i32) {
    %c0_i32 = arith.constant 0 : i32
    %c0_i32_0 = arith.constant 0 : i32
    %c0_i32_1 = arith.constant 0 : i32
    return %c0_i32, %c0_i32_0 : i32, i32
  }
  func.func @transform_15(%arg0: i32) -> (i32, i32) {
    %c0_i32 = arith.constant 0 : i32
    %c0_i32_0 = arith.constant 0 : i32
    %c0_i32_1 = arith.constant 0 : i32
    return %c0_i32, %c0_i32_0 : i32, i32
  }
  func.func @transform_16(%arg0: i32) -> (i32, i32) {
    %c0_i32 = arith.constant 0 : i32
    %c0_i32_0 = arith.constant 0 : i32
    %c0_i32_1 = arith.constant 0 : i32
    return %c0_i32, %c0_i32_0 : i32, i32
  }
  func.func @transform_17(%arg0: i32) -> (i32, i32, i32) {
    %c0_i32 = arith.constant 0 : i32
    %c0_i32_0 = arith.constant 0 : i32
    %c0_i32_1 = arith.constant 0 : i32
    return %arg0, %c0_i32, %c0_i32_0 : i32, i32, i32
  }
}

module attributes {stable_mosaic.version = 11 : i64} {
  func.func @_decoder_layer_kernel(%arg0: i32, %arg1: memref<2x8x32xf32, #tpu.memory_space<vmem>>, %arg2: memref<8x32xf32, #tpu.memory_space<vmem>>, %arg3: memref<2x16x32xf32, #tpu.memory_space<vmem>>, %arg4: memref<2x16x32xf32, #tpu.memory_space<vmem>>, %arg5: memref<2x1x16xf32, #tpu.memory_space<vmem>>, %arg6: memref<32x96xbf16, #tpu.memory_space<vmem>>, %arg7: memref<1x96xf32, #tpu.memory_space<vmem>>, %arg8: memref<32x32xbf16, #tpu.memory_space<vmem>>, %arg9: memref<1x32xf32, #tpu.memory_space<vmem>>, %arg10: memref<1x32xf32, #tpu.memory_space<vmem>>, %arg11: memref<1x32xf32, #tpu.memory_space<vmem>>, %arg12: memref<32x96xbf16, #tpu.memory_space<vmem>>, %arg13: memref<1x96xf32, #tpu.memory_space<vmem>>, %arg14: memref<32x32xbf16, #tpu.memory_space<vmem>>, %arg15: memref<1x32xf32, #tpu.memory_space<vmem>>, %arg16: memref<1x32xf32, #tpu.memory_space<vmem>>, %arg17: memref<1x32xf32, #tpu.memory_space<vmem>>, %arg18: memref<32x64xbf16, #tpu.memory_space<vmem>>, %arg19: memref<1x64xf32, #tpu.memory_space<vmem>>, %arg20: memref<64x32xbf16, #tpu.memory_space<vmem>>, %arg21: memref<1x32xf32, #tpu.memory_space<vmem>>, %arg22: memref<1x32xf32, #tpu.memory_space<vmem>>, %arg23: memref<1x32xf32, #tpu.memory_space<vmem>>, %arg24: memref<1x32xf32, #tpu.memory_space<vmem>>, %arg25: memref<1x32xf32, #tpu.memory_space<vmem>>, %arg26: memref<2x8x32xf32, #tpu.memory_space<vmem>>) attributes {dimension_semantics = [#tpu.dimension_semantics<parallel>], iteration_bounds = array<i64: 1>, scalar_prefetch = 0 : i64, scratch_operands = 0 : i64, tpu.core_type = #tpu.core_type<tc>, window_params = [{transform_indices = @transform_0, window_bounds = array<i64: 2, 8, 32>}, {pipeline_mode = #tpu.pipeline_mode<synchronous>, transform_indices = @transform_1, window_bounds = array<i64: 8, 32>}, {transform_indices = @transform_2, window_bounds = array<i64: 2, 16, 32>}, {transform_indices = @transform_3, window_bounds = array<i64: 2, 16, 32>}, {transform_indices = @transform_4, window_bounds = array<i64: 2, 1, 16>}, {pipeline_mode = #tpu.pipeline_mode<synchronous>, transform_indices = @transform_5, window_bounds = array<i64: 32, 96>}, {pipeline_mode = #tpu.pipeline_mode<synchronous>, transform_indices = @transform_6, window_bounds = array<i64: 1, 96>}, {pipeline_mode = #tpu.pipeline_mode<synchronous>, transform_indices = @transform_7, window_bounds = array<i64: 32, 32>}, {pipeline_mode = #tpu.pipeline_mode<synchronous>, transform_indices = @transform_8, window_bounds = array<i64: 1, 32>}, {pipeline_mode = #tpu.pipeline_mode<synchronous>, transform_indices = @transform_9, window_bounds = array<i64: 1, 32>}, {pipeline_mode = #tpu.pipeline_mode<synchronous>, transform_indices = @transform_10, window_bounds = array<i64: 1, 32>}, {pipeline_mode = #tpu.pipeline_mode<synchronous>, transform_indices = @transform_11, window_bounds = array<i64: 32, 96>}, {pipeline_mode = #tpu.pipeline_mode<synchronous>, transform_indices = @transform_12, window_bounds = array<i64: 1, 96>}, {pipeline_mode = #tpu.pipeline_mode<synchronous>, transform_indices = @transform_13, window_bounds = array<i64: 32, 32>}, {pipeline_mode = #tpu.pipeline_mode<synchronous>, transform_indices = @transform_14, window_bounds = array<i64: 1, 32>}, {pipeline_mode = #tpu.pipeline_mode<synchronous>, transform_indices = @transform_15, window_bounds = array<i64: 1, 32>}, {pipeline_mode = #tpu.pipeline_mode<synchronous>, transform_indices = @transform_16, window_bounds = array<i64: 1, 32>}, {pipeline_mode = #tpu.pipeline_mode<synchronous>, transform_indices = @transform_17, window_bounds = array<i64: 32, 64>}, {pipeline_mode = #tpu.pipeline_mode<synchronous>, transform_indices = @transform_18, window_bounds = array<i64: 1, 64>}, {pipeline_mode = #tpu.pipeline_mode<synchronous>, transform_indices = @transform_19, window_bounds = array<i64: 64, 32>}, {pipeline_mode = #tpu.pipeline_mode<synchronous>, transform_indices = @transform_20, window_bounds = array<i64: 1, 32>}, {pipeline_mode = #tpu.pipeline_mode<synchronous>, transform_indices = @transform_21, window_bounds = array<i64: 1, 32>}, {pipeline_mode = #tpu.pipeline_mode<synchronous>, transform_indices = @transform_22, window_bounds = array<i64: 1, 32>}, {pipeline_mode = #tpu.pipeline_mode<synchronous>, transform_indices = @transform_23, window_bounds = array<i64: 1, 32>}, {pipeline_mode = #tpu.pipeline_mode<synchronous>, transform_indices = @transform_24, window_bounds = array<i64: 1, 32>}, {transform_indices = @transform_25, window_bounds = array<i64: 2, 8, 32>}]} {
    %c0 = arith.constant 0 : index
    %c0_0 = arith.constant 0 : index
    %c0_1 = arith.constant 0 : index
    %0 = vector.load %arg1[%c0, %c0_0, %c0_1] : memref<2x8x32xf32, #tpu.memory_space<vmem>>, vector<2x8x32xf32>
    %c0_2 = arith.constant 0 : index
    %c0_3 = arith.constant 0 : index
    %c0_4 = arith.constant 0 : index
    %1 = vector.load %arg3[%c0_2, %c0_3, %c0_4] : memref<2x16x32xf32, #tpu.memory_space<vmem>>, vector<2x16x32xf32>
    %c0_5 = arith.constant 0 : index
    %c0_6 = arith.constant 0 : index
    %2 = vector.load %arg2[%c0_5, %c0_6] : memref<8x32xf32, #tpu.memory_space<vmem>>, vector<8x32xf32>
    %3 = tpu.concatenate %2, %2 in 0 : vector<8x32xf32>, vector<8x32xf32> -> vector<16x32xf32>
    %4 = vector.shape_cast %0 : vector<2x8x32xf32> to vector<16x32xf32>
    %5 = vector.shape_cast %1 : vector<2x16x32xf32> to vector<32x32xf32>
    %c0_7 = arith.constant 0 : index
    %c0_8 = arith.constant 0 : index
    %c0_9 = arith.constant 0 : index
    %6 = vector.load %arg4[%c0_7, %c0_8, %c0_9] : memref<2x16x32xf32, #tpu.memory_space<vmem>>, vector<2x16x32xf32>
    %7 = vector.shape_cast %6 : vector<2x16x32xf32> to vector<32x32xf32>
    %c0_10 = arith.constant 0 : index
    %c0_11 = arith.constant 0 : index
    %8 = vector.load %arg6[%c0_10, %c0_11] : memref<32x96xbf16, #tpu.memory_space<vmem>>, vector<32x96xbf16>
    %9 = arith.addf %4, %3 : vector<16x32xf32>
    %10 = vector.extract_strided_slice %8 {offsets = [0, 0], sizes = [32, 64], strides = [1, 1]} : vector<32x96xbf16> to vector<32x64xbf16>
    %11 = arith.truncf %9 : vector<16x32xf32> to vector<16x32xbf16>
    %cst = arith.constant dense<0.000000e+00> : vector<16x64xf32>
    %12 = tpu.matmul %11, %10, %cst {dimension_numbers = #tpu.dot_dimension_numbers<[1], [0], [0], [1], [0, 0, 1, 1], [], []>} : vector<16x32xbf16>, vector<32x64xbf16>, vector<16x64xf32> -> vector<16x64xf32>
    %c0_12 = arith.constant 0 : index
    %c0_13 = arith.constant 0 : index
    %13 = vector.load %arg7[%c0_12, %c0_13] : memref<1x96xf32, #tpu.memory_space<vmem>>, vector<1x64xf32>
    %14 = vector.broadcast %13 : vector<1x64xf32> to vector<16x64xf32>
    %15 = arith.addf %12, %14 : vector<16x64xf32>
    %16 = vector.extract_strided_slice %8 {offsets = [0, 64], sizes = [32, 32], strides = [1, 1]} : vector<32x96xbf16> to vector<32x32xbf16>
    %17 = arith.truncf %4 : vector<16x32xf32> to vector<16x32xbf16>
    %cst_14 = arith.constant dense<0.000000e+00> : vector<16x32xf32>
    %18 = tpu.matmul %17, %16, %cst_14 {dimension_numbers = #tpu.dot_dimension_numbers<[1], [0], [0], [1], [0, 0, 1, 1], [], []>} : vector<16x32xbf16>, vector<32x32xbf16>, vector<16x32xf32> -> vector<16x32xf32>
    %c0_15 = arith.constant 0 : index
    %c64 = arith.constant 64 : index
    %19 = vector.load %arg7[%c0_15, %c64] : memref<1x96xf32, #tpu.memory_space<vmem>>, vector<1x32xf32>
    %20 = vector.broadcast %19 : vector<1x32xf32> to vector<16x32xf32>
    %21 = arith.addf %18, %20 : vector<16x32xf32>
    %22 = vector.extract_strided_slice %15 {offsets = [0, 0], sizes = [8, 32], strides = [1, 1]} : vector<16x64xf32> to vector<8x32xf32>
    %23 = vector.extract_strided_slice %15 {offsets = [0, 32], sizes = [8, 32], strides = [1, 1]} : vector<16x64xf32> to vector<8x32xf32>
    %24 = vector.extract_strided_slice %21 {offsets = [0, 0], sizes = [8, 32], strides = [1, 1]} : vector<16x32xf32> to vector<8x32xf32>
    %25 = vector.extract_strided_slice %22 {offsets = [0, 0], sizes = [8, 8], strides = [1, 1]} : vector<8x32xf32> to vector<8x8xf32>
    %26 = arith.truncf %25 : vector<8x8xf32> to vector<8x8xbf16>
    %27 = vector.extract_strided_slice %23 {offsets = [0, 0], sizes = [8, 8], strides = [1, 1]} : vector<8x32xf32> to vector<8x8xf32>
    %28 = arith.truncf %27 : vector<8x8xf32> to vector<8x8xbf16>
    %cst_16 = arith.constant dense<0.000000e+00> : vector<8x8xf32>
    %29 = tpu.matmul %26, %28, %cst_16 {dimension_numbers = #tpu.dot_dimension_numbers<[1], [1], [0], [0], [0, 0, 1, 0], [], []>} : vector<8x8xbf16>, vector<8x8xbf16>, vector<8x8xf32> -> vector<8x8xf32>
    %cst_17 = arith.constant dense<0xFF800000> : vector<8xf32>
    %30 = vector.multi_reduction <maximumf>, %29, %cst_17 [1] : vector<8x8xf32> to vector<8xf32>
    %31 = vector.shape_cast %30 : vector<8xf32> to vector<8x1xf32>
    %32 = vector.broadcast %31 : vector<8x1xf32> to vector<8x8xf32>
    %33 = arith.subf %29, %32 : vector<8x8xf32>
    %34 = math.exp %33 : vector<8x8xf32>
    %cst_18 = arith.constant dense<0.000000e+00> : vector<8xf32>
    %35 = vector.multi_reduction <add>, %34, %cst_18 [1] : vector<8x8xf32> to vector<8xf32>
    %36 = vector.shape_cast %35 : vector<8xf32> to vector<8x1xf32>
    %37 = vector.broadcast %36 : vector<8x1xf32> to vector<8x8xf32>
    %38 = arith.divf %34, %37 : vector<8x8xf32>
    %39 = arith.truncf %38 : vector<8x8xf32> to vector<8x8xbf16>
    %40 = vector.extract_strided_slice %24 {offsets = [0, 0], sizes = [8, 8], strides = [1, 1]} : vector<8x32xf32> to vector<8x8xf32>
    %41 = arith.truncf %40 : vector<8x8xf32> to vector<8x8xbf16>
    %cst_19 = arith.constant dense<0.000000e+00> : vector<8x8xf32>
    %42 = tpu.matmul %39, %41, %cst_19 {dimension_numbers = #tpu.dot_dimension_numbers<[1], [0], [0], [1], [0, 0, 1, 1], [], []>} : vector<8x8xbf16>, vector<8x8xbf16>, vector<8x8xf32> -> vector<8x8xf32>
    %43 = vector.extract_strided_slice %22 {offsets = [0, 8], sizes = [8, 8], strides = [1, 1]} : vector<8x32xf32> to vector<8x8xf32>
    %44 = arith.truncf %43 : vector<8x8xf32> to vector<8x8xbf16>
    %45 = vector.extract_strided_slice %23 {offsets = [0, 8], sizes = [8, 8], strides = [1, 1]} : vector<8x32xf32> to vector<8x8xf32>
    %46 = arith.truncf %45 : vector<8x8xf32> to vector<8x8xbf16>
    %cst_20 = arith.constant dense<0.000000e+00> : vector<8x8xf32>
    %47 = tpu.matmul %44, %46, %cst_20 {dimension_numbers = #tpu.dot_dimension_numbers<[1], [1], [0], [0], [0, 0, 1, 0], [], []>} : vector<8x8xbf16>, vector<8x8xbf16>, vector<8x8xf32> -> vector<8x8xf32>
    %cst_21 = arith.constant dense<0xFF800000> : vector<8xf32>
    %48 = vector.multi_reduction <maximumf>, %47, %cst_21 [1] : vector<8x8xf32> to vector<8xf32>
    %49 = vector.shape_cast %48 : vector<8xf32> to vector<8x1xf32>
    %50 = vector.broadcast %49 : vector<8x1xf32> to vector<8x8xf32>
    %51 = arith.subf %47, %50 : vector<8x8xf32>
    %52 = math.exp %51 : vector<8x8xf32>
    %cst_22 = arith.constant dense<0.000000e+00> : vector<8xf32>
    %53 = vector.multi_reduction <add>, %52, %cst_22 [1] : vector<8x8xf32> to vector<8xf32>
    %54 = vector.shape_cast %53 : vector<8xf32> to vector<8x1xf32>
    %55 = vector.broadcast %54 : vector<8x1xf32> to vector<8x8xf32>
    %56 = arith.divf %52, %55 : vector<8x8xf32>
    %57 = arith.truncf %56 : vector<8x8xf32> to vector<8x8xbf16>
    %58 = vector.extract_strided_slice %24 {offsets = [0, 8], sizes = [8, 8], strides = [1, 1]} : vector<8x32xf32> to vector<8x8xf32>
    %59 = arith.truncf %58 : vector<8x8xf32> to vector<8x8xbf16>
    %cst_23 = arith.constant dense<0.000000e+00> : vector<8x8xf32>
    %60 = tpu.matmul %57, %59, %cst_23 {dimension_numbers = #tpu.dot_dimension_numbers<[1], [0], [0], [1], [0, 0, 1, 1], [], []>} : vector<8x8xbf16>, vector<8x8xbf16>, vector<8x8xf32> -> vector<8x8xf32>
    %61 = vector.extract_strided_slice %22 {offsets = [0, 16], sizes = [8, 8], strides = [1, 1]} : vector<8x32xf32> to vector<8x8xf32>
    %62 = arith.truncf %61 : vector<8x8xf32> to vector<8x8xbf16>
    %63 = vector.extract_strided_slice %23 {offsets = [0, 16], sizes = [8, 8], strides = [1, 1]} : vector<8x32xf32> to vector<8x8xf32>
    %64 = arith.truncf %63 : vector<8x8xf32> to vector<8x8xbf16>
    %cst_24 = arith.constant dense<0.000000e+00> : vector<8x8xf32>
    %65 = tpu.matmul %62, %64, %cst_24 {dimension_numbers = #tpu.dot_dimension_numbers<[1], [1], [0], [0], [0, 0, 1, 0], [], []>} : vector<8x8xbf16>, vector<8x8xbf16>, vector<8x8xf32> -> vector<8x8xf32>
    %cst_25 = arith.constant dense<0xFF800000> : vector<8xf32>
    %66 = vector.multi_reduction <maximumf>, %65, %cst_25 [1] : vector<8x8xf32> to vector<8xf32>
    %67 = vector.shape_cast %66 : vector<8xf32> to vector<8x1xf32>
    %68 = vector.broadcast %67 : vector<8x1xf32> to vector<8x8xf32>
    %69 = arith.subf %65, %68 : vector<8x8xf32>
    %70 = math.exp %69 : vector<8x8xf32>
    %cst_26 = arith.constant dense<0.000000e+00> : vector<8xf32>
    %71 = vector.multi_reduction <add>, %70, %cst_26 [1] : vector<8x8xf32> to vector<8xf32>
    %72 = vector.shape_cast %71 : vector<8xf32> to vector<8x1xf32>
    %73 = vector.broadcast %72 : vector<8x1xf32> to vector<8x8xf32>
    %74 = arith.divf %70, %73 : vector<8x8xf32>
    %75 = arith.truncf %74 : vector<8x8xf32> to vector<8x8xbf16>
    %76 = vector.extract_strided_slice %24 {offsets = [0, 16], sizes = [8, 8], strides = [1, 1]} : vector<8x32xf32> to vector<8x8xf32>
    %77 = arith.truncf %76 : vector<8x8xf32> to vector<8x8xbf16>
    %cst_27 = arith.constant dense<0.000000e+00> : vector<8x8xf32>
    %78 = tpu.matmul %75, %77, %cst_27 {dimension_numbers = #tpu.dot_dimension_numbers<[1], [0], [0], [1], [0, 0, 1, 1], [], []>} : vector<8x8xbf16>, vector<8x8xbf16>, vector<8x8xf32> -> vector<8x8xf32>
    %79 = vector.extract_strided_slice %22 {offsets = [0, 24], sizes = [8, 8], strides = [1, 1]} : vector<8x32xf32> to vector<8x8xf32>
    %80 = arith.truncf %79 : vector<8x8xf32> to vector<8x8xbf16>
    %81 = vector.extract_strided_slice %23 {offsets = [0, 24], sizes = [8, 8], strides = [1, 1]} : vector<8x32xf32> to vector<8x8xf32>
    %82 = arith.truncf %81 : vector<8x8xf32> to vector<8x8xbf16>
    %cst_28 = arith.constant dense<0.000000e+00> : vector<8x8xf32>
    %83 = tpu.matmul %80, %82, %cst_28 {dimension_numbers = #tpu.dot_dimension_numbers<[1], [1], [0], [0], [0, 0, 1, 0], [], []>} : vector<8x8xbf16>, vector<8x8xbf16>, vector<8x8xf32> -> vector<8x8xf32>
    %cst_29 = arith.constant dense<0xFF800000> : vector<8xf32>
    %84 = vector.multi_reduction <maximumf>, %83, %cst_29 [1] : vector<8x8xf32> to vector<8xf32>
    %85 = vector.shape_cast %84 : vector<8xf32> to vector<8x1xf32>
    %86 = vector.broadcast %85 : vector<8x1xf32> to vector<8x8xf32>
    %87 = arith.subf %83, %86 : vector<8x8xf32>
    %88 = math.exp %87 : vector<8x8xf32>
    %cst_30 = arith.constant dense<0.000000e+00> : vector<8xf32>
    %89 = vector.multi_reduction <add>, %88, %cst_30 [1] : vector<8x8xf32> to vector<8xf32>
    %90 = vector.shape_cast %89 : vector<8xf32> to vector<8x1xf32>
    %91 = vector.broadcast %90 : vector<8x1xf32> to vector<8x8xf32>
    %92 = arith.divf %88, %91 : vector<8x8xf32>
    %93 = arith.truncf %92 : vector<8x8xf32> to vector<8x8xbf16>
    %94 = vector.extract_strided_slice %24 {offsets = [0, 24], sizes = [8, 8], strides = [1, 1]} : vector<8x32xf32> to vector<8x8xf32>
    %95 = arith.truncf %94 : vector<8x8xf32> to vector<8x8xbf16>
    %cst_31 = arith.constant dense<0.000000e+00> : vector<8x8xf32>
    %96 = tpu.matmul %93, %95, %cst_31 {dimension_numbers = #tpu.dot_dimension_numbers<[1], [0], [0], [1], [0, 0, 1, 1], [], []>} : vector<8x8xbf16>, vector<8x8xbf16>, vector<8x8xf32> -> vector<8x8xf32>
    %97 = tpu.concatenate %42, %60, %78, %96 in 1 : vector<8x8xf32>, vector<8x8xf32>, vector<8x8xf32>, vector<8x8xf32> -> vector<8x32xf32>
    %98 = vector.extract_strided_slice %15 {offsets = [8, 0], sizes = [8, 32], strides = [1, 1]} : vector<16x64xf32> to vector<8x32xf32>
    %99 = vector.extract_strided_slice %15 {offsets = [8, 32], sizes = [8, 32], strides = [1, 1]} : vector<16x64xf32> to vector<8x32xf32>
    %100 = vector.extract_strided_slice %21 {offsets = [8, 0], sizes = [8, 32], strides = [1, 1]} : vector<16x32xf32> to vector<8x32xf32>
    %101 = vector.extract_strided_slice %98 {offsets = [0, 0], sizes = [8, 8], strides = [1, 1]} : vector<8x32xf32> to vector<8x8xf32>
    %102 = arith.truncf %101 : vector<8x8xf32> to vector<8x8xbf16>
    %103 = vector.extract_strided_slice %99 {offsets = [0, 0], sizes = [8, 8], strides = [1, 1]} : vector<8x32xf32> to vector<8x8xf32>
    %104 = arith.truncf %103 : vector<8x8xf32> to vector<8x8xbf16>
    %cst_32 = arith.constant dense<0.000000e+00> : vector<8x8xf32>
    %105 = tpu.matmul %102, %104, %cst_32 {dimension_numbers = #tpu.dot_dimension_numbers<[1], [1], [0], [0], [0, 0, 1, 0], [], []>} : vector<8x8xbf16>, vector<8x8xbf16>, vector<8x8xf32> -> vector<8x8xf32>
    %cst_33 = arith.constant dense<0xFF800000> : vector<8xf32>
    %106 = vector.multi_reduction <maximumf>, %105, %cst_33 [1] : vector<8x8xf32> to vector<8xf32>
    %107 = vector.shape_cast %106 : vector<8xf32> to vector<8x1xf32>
    %108 = vector.broadcast %107 : vector<8x1xf32> to vector<8x8xf32>
    %109 = arith.subf %105, %108 : vector<8x8xf32>
    %110 = math.exp %109 : vector<8x8xf32>
    %cst_34 = arith.constant dense<0.000000e+00> : vector<8xf32>
    %111 = vector.multi_reduction <add>, %110, %cst_34 [1] : vector<8x8xf32> to vector<8xf32>
    %112 = vector.shape_cast %111 : vector<8xf32> to vector<8x1xf32>
    %113 = vector.broadcast %112 : vector<8x1xf32> to vector<8x8xf32>
    %114 = arith.divf %110, %113 : vector<8x8xf32>
    %115 = arith.truncf %114 : vector<8x8xf32> to vector<8x8xbf16>
    %116 = vector.extract_strided_slice %100 {offsets = [0, 0], sizes = [8, 8], strides = [1, 1]} : vector<8x32xf32> to vector<8x8xf32>
    %117 = arith.truncf %116 : vector<8x8xf32> to vector<8x8xbf16>
    %cst_35 = arith.constant dense<0.000000e+00> : vector<8x8xf32>
    %118 = tpu.matmul %115, %117, %cst_35 {dimension_numbers = #tpu.dot_dimension_numbers<[1], [0], [0], [1], [0, 0, 1, 1], [], []>} : vector<8x8xbf16>, vector<8x8xbf16>, vector<8x8xf32> -> vector<8x8xf32>
    %119 = vector.extract_strided_slice %98 {offsets = [0, 8], sizes = [8, 8], strides = [1, 1]} : vector<8x32xf32> to vector<8x8xf32>
    %120 = arith.truncf %119 : vector<8x8xf32> to vector<8x8xbf16>
    %121 = vector.extract_strided_slice %99 {offsets = [0, 8], sizes = [8, 8], strides = [1, 1]} : vector<8x32xf32> to vector<8x8xf32>
    %122 = arith.truncf %121 : vector<8x8xf32> to vector<8x8xbf16>
    %cst_36 = arith.constant dense<0.000000e+00> : vector<8x8xf32>
    %123 = tpu.matmul %120, %122, %cst_36 {dimension_numbers = #tpu.dot_dimension_numbers<[1], [1], [0], [0], [0, 0, 1, 0], [], []>} : vector<8x8xbf16>, vector<8x8xbf16>, vector<8x8xf32> -> vector<8x8xf32>
    %cst_37 = arith.constant dense<0xFF800000> : vector<8xf32>
    %124 = vector.multi_reduction <maximumf>, %123, %cst_37 [1] : vector<8x8xf32> to vector<8xf32>
    %125 = vector.shape_cast %124 : vector<8xf32> to vector<8x1xf32>
    %126 = vector.broadcast %125 : vector<8x1xf32> to vector<8x8xf32>
    %127 = arith.subf %123, %126 : vector<8x8xf32>
    %128 = math.exp %127 : vector<8x8xf32>
    %cst_38 = arith.constant dense<0.000000e+00> : vector<8xf32>
    %129 = vector.multi_reduction <add>, %128, %cst_38 [1] : vector<8x8xf32> to vector<8xf32>
    %130 = vector.shape_cast %129 : vector<8xf32> to vector<8x1xf32>
    %131 = vector.broadcast %130 : vector<8x1xf32> to vector<8x8xf32>
    %132 = arith.divf %128, %131 : vector<8x8xf32>
    %133 = arith.truncf %132 : vector<8x8xf32> to vector<8x8xbf16>
    %134 = vector.extract_strided_slice %100 {offsets = [0, 8], sizes = [8, 8], strides = [1, 1]} : vector<8x32xf32> to vector<8x8xf32>
    %135 = arith.truncf %134 : vector<8x8xf32> to vector<8x8xbf16>
    %cst_39 = arith.constant dense<0.000000e+00> : vector<8x8xf32>
    %136 = tpu.matmul %133, %135, %cst_39 {dimension_numbers = #tpu.dot_dimension_numbers<[1], [0], [0], [1], [0, 0, 1, 1], [], []>} : vector<8x8xbf16>, vector<8x8xbf16>, vector<8x8xf32> -> vector<8x8xf32>
    %137 = vector.extract_strided_slice %98 {offsets = [0, 16], sizes = [8, 8], strides = [1, 1]} : vector<8x32xf32> to vector<8x8xf32>
    %138 = arith.truncf %137 : vector<8x8xf32> to vector<8x8xbf16>
    %139 = vector.extract_strided_slice %99 {offsets = [0, 16], sizes = [8, 8], strides = [1, 1]} : vector<8x32xf32> to vector<8x8xf32>
    %140 = arith.truncf %139 : vector<8x8xf32> to vector<8x8xbf16>
    %cst_40 = arith.constant dense<0.000000e+00> : vector<8x8xf32>
    %141 = tpu.matmul %138, %140, %cst_40 {dimension_numbers = #tpu.dot_dimension_numbers<[1], [1], [0], [0], [0, 0, 1, 0], [], []>} : vector<8x8xbf16>, vector<8x8xbf16>, vector<8x8xf32> -> vector<8x8xf32>
    %cst_41 = arith.constant dense<0xFF800000> : vector<8xf32>
    %142 = vector.multi_reduction <maximumf>, %141, %cst_41 [1] : vector<8x8xf32> to vector<8xf32>
    %143 = vector.shape_cast %142 : vector<8xf32> to vector<8x1xf32>
    %144 = vector.broadcast %143 : vector<8x1xf32> to vector<8x8xf32>
    %145 = arith.subf %141, %144 : vector<8x8xf32>
    %146 = math.exp %145 : vector<8x8xf32>
    %cst_42 = arith.constant dense<0.000000e+00> : vector<8xf32>
    %147 = vector.multi_reduction <add>, %146, %cst_42 [1] : vector<8x8xf32> to vector<8xf32>
    %148 = vector.shape_cast %147 : vector<8xf32> to vector<8x1xf32>
    %149 = vector.broadcast %148 : vector<8x1xf32> to vector<8x8xf32>
    %150 = arith.divf %146, %149 : vector<8x8xf32>
    %151 = arith.truncf %150 : vector<8x8xf32> to vector<8x8xbf16>
    %152 = vector.extract_strided_slice %100 {offsets = [0, 16], sizes = [8, 8], strides = [1, 1]} : vector<8x32xf32> to vector<8x8xf32>
    %153 = arith.truncf %152 : vector<8x8xf32> to vector<8x8xbf16>
    %cst_43 = arith.constant dense<0.000000e+00> : vector<8x8xf32>
    %154 = tpu.matmul %151, %153, %cst_43 {dimension_numbers = #tpu.dot_dimension_numbers<[1], [0], [0], [1], [0, 0, 1, 1], [], []>} : vector<8x8xbf16>, vector<8x8xbf16>, vector<8x8xf32> -> vector<8x8xf32>
    %155 = vector.extract_strided_slice %98 {offsets = [0, 24], sizes = [8, 8], strides = [1, 1]} : vector<8x32xf32> to vector<8x8xf32>
    %156 = arith.truncf %155 : vector<8x8xf32> to vector<8x8xbf16>
    %157 = vector.extract_strided_slice %99 {offsets = [0, 24], sizes = [8, 8], strides = [1, 1]} : vector<8x32xf32> to vector<8x8xf32>
    %158 = arith.truncf %157 : vector<8x8xf32> to vector<8x8xbf16>
    %cst_44 = arith.constant dense<0.000000e+00> : vector<8x8xf32>
    %159 = tpu.matmul %156, %158, %cst_44 {dimension_numbers = #tpu.dot_dimension_numbers<[1], [1], [0], [0], [0, 0, 1, 0], [], []>} : vector<8x8xbf16>, vector<8x8xbf16>, vector<8x8xf32> -> vector<8x8xf32>
    %cst_45 = arith.constant dense<0xFF800000> : vector<8xf32>
    %160 = vector.multi_reduction <maximumf>, %159, %cst_45 [1] : vector<8x8xf32> to vector<8xf32>
    %161 = vector.shape_cast %160 : vector<8xf32> to vector<8x1xf32>
    %162 = vector.broadcast %161 : vector<8x1xf32> to vector<8x8xf32>
    %163 = arith.subf %159, %162 : vector<8x8xf32>
    %164 = math.exp %163 : vector<8x8xf32>
    %cst_46 = arith.constant dense<0.000000e+00> : vector<8xf32>
    %165 = vector.multi_reduction <add>, %164, %cst_46 [1] : vector<8x8xf32> to vector<8xf32>
    %166 = vector.shape_cast %165 : vector<8xf32> to vector<8x1xf32>
    %167 = vector.broadcast %166 : vector<8x1xf32> to vector<8x8xf32>
    %168 = arith.divf %164, %167 : vector<8x8xf32>
    %169 = arith.truncf %168 : vector<8x8xf32> to vector<8x8xbf16>
    %170 = vector.extract_strided_slice %100 {offsets = [0, 24], sizes = [8, 8], strides = [1, 1]} : vector<8x32xf32> to vector<8x8xf32>
    %171 = arith.truncf %170 : vector<8x8xf32> to vector<8x8xbf16>
    %cst_47 = arith.constant dense<0.000000e+00> : vector<8x8xf32>
    %172 = tpu.matmul %169, %171, %cst_47 {dimension_numbers = #tpu.dot_dimension_numbers<[1], [0], [0], [1], [0, 0, 1, 1], [], []>} : vector<8x8xbf16>, vector<8x8xbf16>, vector<8x8xf32> -> vector<8x8xf32>
    %173 = tpu.concatenate %118, %136, %154, %172 in 1 : vector<8x8xf32>, vector<8x8xf32>, vector<8x8xf32>, vector<8x8xf32> -> vector<8x32xf32>
    %174 = tpu.concatenate %97, %173 in 0 : vector<8x32xf32>, vector<8x32xf32> -> vector<16x32xf32>
    %c0_48 = arith.constant 0 : index
    %c0_49 = arith.constant 0 : index
    %175 = vector.load %arg8[%c0_48, %c0_49] : memref<32x32xbf16, #tpu.memory_space<vmem>>, vector<32x32xbf16>
    %176 = arith.truncf %174 : vector<16x32xf32> to vector<16x32xbf16>
    %cst_50 = arith.constant dense<0.000000e+00> : vector<16x32xf32>
    %177 = tpu.matmul %176, %175, %cst_50 {dimension_numbers = #tpu.dot_dimension_numbers<[1], [0], [0], [1], [0, 0, 1, 1], [], []>} : vector<16x32xbf16>, vector<32x32xbf16>, vector<16x32xf32> -> vector<16x32xf32>
    %c0_51 = arith.constant 0 : index
    %c0_52 = arith.constant 0 : index
    %178 = vector.load %arg9[%c0_51, %c0_52] : memref<1x32xf32, #tpu.memory_space<vmem>>, vector<1x32xf32>
    %179 = vector.broadcast %178 : vector<1x32xf32> to vector<16x32xf32>
    %180 = arith.addf %177, %179 : vector<16x32xf32>
    %181 = arith.addf %4, %180 : vector<16x32xf32>
    %c0_53 = arith.constant 0 : index
    %c0_54 = arith.constant 0 : index
    %182 = vector.load %arg10[%c0_53, %c0_54] : memref<1x32xf32, #tpu.memory_space<vmem>>, vector<1x32xf32>
    %c0_55 = arith.constant 0 : index
    %c0_56 = arith.constant 0 : index
    %183 = vector.load %arg11[%c0_55, %c0_56] : memref<1x32xf32, #tpu.memory_space<vmem>>, vector<1x32xf32>
    %cst_57 = arith.constant dense<0.000000e+00> : vector<16xf32>
    %184 = vector.multi_reduction <add>, %181, %cst_57 [1] : vector<16x32xf32> to vector<16xf32>
    %185 = vector.shape_cast %184 : vector<16xf32> to vector<16x1xf32>
    %cst_58 = arith.constant 3.200000e+01 : f32
    %186 = vector.broadcast %cst_58 : f32 to vector<16x1xf32>
    %187 = arith.divf %185, %186 : vector<16x1xf32>
    %188 = vector.broadcast %187 : vector<16x1xf32> to vector<16x32xf32>
    %189 = arith.subf %181, %188 : vector<16x32xf32>
    %190 = arith.mulf %189, %189 : vector<16x32xf32>
    %cst_59 = arith.constant dense<0.000000e+00> : vector<16xf32>
    %191 = vector.multi_reduction <add>, %190, %cst_59 [1] : vector<16x32xf32> to vector<16xf32>
    %192 = vector.shape_cast %191 : vector<16xf32> to vector<16x1xf32>
    %cst_60 = arith.constant 3.200000e+01 : f32
    %193 = vector.broadcast %cst_60 : f32 to vector<16x1xf32>
    %194 = arith.divf %192, %193 : vector<16x1xf32>
    %195 = vector.broadcast %187 : vector<16x1xf32> to vector<16x32xf32>
    %196 = arith.subf %181, %195 : vector<16x32xf32>
    %cst_61 = arith.constant 9.99999974E-6 : f32
    %197 = vector.broadcast %cst_61 : f32 to vector<16x1xf32>
    %198 = arith.addf %194, %197 : vector<16x1xf32>
    %199 = math.rsqrt %198 : vector<16x1xf32>
    %200 = vector.broadcast %199 : vector<16x1xf32> to vector<16x32xf32>
    %201 = arith.mulf %196, %200 : vector<16x32xf32>
    %202 = vector.broadcast %182 : vector<1x32xf32> to vector<16x32xf32>
    %203 = arith.mulf %201, %202 : vector<16x32xf32>
    %204 = vector.broadcast %183 : vector<1x32xf32> to vector<16x32xf32>
    %205 = arith.addf %203, %204 : vector<16x32xf32>
    %c0_62 = arith.constant 0 : index
    %c0_63 = arith.constant 0 : index
    %206 = vector.load %arg12[%c0_62, %c0_63] : memref<32x96xbf16, #tpu.memory_space<vmem>>, vector<32x96xbf16>
    %207 = arith.addf %205, %3 : vector<16x32xf32>
    %208 = vector.extract_strided_slice %206 {offsets = [0, 0], sizes = [32, 32], strides = [1, 1]} : vector<32x96xbf16> to vector<32x32xbf16>
    %209 = arith.truncf %207 : vector<16x32xf32> to vector<16x32xbf16>
    %cst_64 = arith.constant dense<0.000000e+00> : vector<16x32xf32>
    %210 = tpu.matmul %209, %208, %cst_64 {dimension_numbers = #tpu.dot_dimension_numbers<[1], [0], [0], [1], [0, 0, 1, 1], [], []>} : vector<16x32xbf16>, vector<32x32xbf16>, vector<16x32xf32> -> vector<16x32xf32>
    %c0_65 = arith.constant 0 : index
    %c0_66 = arith.constant 0 : index
    %211 = vector.load %arg13[%c0_65, %c0_66] : memref<1x96xf32, #tpu.memory_space<vmem>>, vector<1x32xf32>
    %212 = vector.broadcast %211 : vector<1x32xf32> to vector<16x32xf32>
    %213 = arith.addf %210, %212 : vector<16x32xf32>
    %214 = arith.addf %5, %7 : vector<32x32xf32>
    %215 = vector.extract_strided_slice %206 {offsets = [0, 32], sizes = [32, 32], strides = [1, 1]} : vector<32x96xbf16> to vector<32x32xbf16>
    %216 = arith.truncf %214 : vector<32x32xf32> to vector<32x32xbf16>
    %cst_67 = arith.constant dense<0.000000e+00> : vector<32x32xf32>
    %217 = tpu.matmul %216, %215, %cst_67 {dimension_numbers = #tpu.dot_dimension_numbers<[1], [0], [0], [1], [0, 0, 1, 1], [], []>} : vector<32x32xbf16>, vector<32x32xbf16>, vector<32x32xf32> -> vector<32x32xf32>
    %c0_68 = arith.constant 0 : index
    %c32 = arith.constant 32 : index
    %218 = vector.load %arg13[%c0_68, %c32] : memref<1x96xf32, #tpu.memory_space<vmem>>, vector<1x32xf32>
    %219 = vector.broadcast %218 : vector<1x32xf32> to vector<32x32xf32>
    %220 = arith.addf %217, %219 : vector<32x32xf32>
    %221 = vector.extract_strided_slice %206 {offsets = [0, 64], sizes = [32, 32], strides = [1, 1]} : vector<32x96xbf16> to vector<32x32xbf16>
    %222 = arith.truncf %5 : vector<32x32xf32> to vector<32x32xbf16>
    %cst_69 = arith.constant dense<0.000000e+00> : vector<32x32xf32>
    %223 = tpu.matmul %222, %221, %cst_69 {dimension_numbers = #tpu.dot_dimension_numbers<[1], [0], [0], [1], [0, 0, 1, 1], [], []>} : vector<32x32xbf16>, vector<32x32xbf16>, vector<32x32xf32> -> vector<32x32xf32>
    %c0_70 = arith.constant 0 : index
    %c64_71 = arith.constant 64 : index
    %224 = vector.load %arg13[%c0_70, %c64_71] : memref<1x96xf32, #tpu.memory_space<vmem>>, vector<1x32xf32>
    %225 = vector.broadcast %224 : vector<1x32xf32> to vector<32x32xf32>
    %226 = arith.addf %223, %225 : vector<32x32xf32>
    %227 = vector.extract_strided_slice %213 {offsets = [0, 0], sizes = [8, 32], strides = [1, 1]} : vector<16x32xf32> to vector<8x32xf32>
    %228 = vector.extract_strided_slice %220 {offsets = [0, 0], sizes = [16, 32], strides = [1, 1]} : vector<32x32xf32> to vector<16x32xf32>
    %229 = vector.extract_strided_slice %226 {offsets = [0, 0], sizes = [16, 32], strides = [1, 1]} : vector<32x32xf32> to vector<16x32xf32>
    %c0_72 = arith.constant 0 : index
    %c0_73 = arith.constant 0 : index
    %c0_74 = arith.constant 0 : index
    %230 = vector.load %arg5[%c0_72, %c0_73, %c0_74] : memref<2x1x16xf32, #tpu.memory_space<vmem>>, vector<1x1x16xf32>
    %231 = vector.shape_cast %230 : vector<1x1x16xf32> to vector<1x16xf32>
    %232 = vector.shape_cast %231 : vector<1x16xf32> to vector<1x16xf32>
    %233 = vector.broadcast %232 : vector<1x16xf32> to vector<8x16xf32>
    %234 = vector.extract_strided_slice %227 {offsets = [0, 0], sizes = [8, 8], strides = [1, 1]} : vector<8x32xf32> to vector<8x8xf32>
    %235 = arith.truncf %234 : vector<8x8xf32> to vector<8x8xbf16>
    %236 = vector.extract_strided_slice %228 {offsets = [0, 0], sizes = [16, 8], strides = [1, 1]} : vector<16x32xf32> to vector<16x8xf32>
    %237 = arith.truncf %236 : vector<16x8xf32> to vector<16x8xbf16>
    %cst_75 = arith.constant dense<0.000000e+00> : vector<8x16xf32>
    %238 = tpu.matmul %235, %237, %cst_75 {dimension_numbers = #tpu.dot_dimension_numbers<[1], [1], [0], [0], [0, 0, 1, 0], [], []>} : vector<8x8xbf16>, vector<16x8xbf16>, vector<8x16xf32> -> vector<8x16xf32>
    %239 = arith.addf %238, %233 : vector<8x16xf32>
    %cst_76 = arith.constant dense<0xFF800000> : vector<8xf32>
    %240 = vector.multi_reduction <maximumf>, %239, %cst_76 [1] : vector<8x16xf32> to vector<8xf32>
    %241 = vector.shape_cast %240 : vector<8xf32> to vector<8x1xf32>
    %242 = vector.broadcast %241 : vector<8x1xf32> to vector<8x16xf32>
    %243 = arith.subf %239, %242 : vector<8x16xf32>
    %244 = math.exp %243 : vector<8x16xf32>
    %cst_77 = arith.constant dense<0.000000e+00> : vector<8xf32>
    %245 = vector.multi_reduction <add>, %244, %cst_77 [1] : vector<8x16xf32> to vector<8xf32>
    %246 = vector.shape_cast %245 : vector<8xf32> to vector<8x1xf32>
    %247 = vector.broadcast %246 : vector<8x1xf32> to vector<8x16xf32>
    %248 = arith.divf %244, %247 : vector<8x16xf32>
    %249 = arith.truncf %248 : vector<8x16xf32> to vector<8x16xbf16>
    %250 = vector.extract_strided_slice %229 {offsets = [0, 0], sizes = [16, 8], strides = [1, 1]} : vector<16x32xf32> to vector<16x8xf32>
    %251 = arith.truncf %250 : vector<16x8xf32> to vector<16x8xbf16>
    %cst_78 = arith.constant dense<0.000000e+00> : vector<8x8xf32>
    %252 = tpu.matmul %249, %251, %cst_78 {dimension_numbers = #tpu.dot_dimension_numbers<[1], [0], [0], [1], [0, 0, 1, 1], [], []>} : vector<8x16xbf16>, vector<16x8xbf16>, vector<8x8xf32> -> vector<8x8xf32>
    %253 = vector.extract_strided_slice %227 {offsets = [0, 8], sizes = [8, 8], strides = [1, 1]} : vector<8x32xf32> to vector<8x8xf32>
    %254 = arith.truncf %253 : vector<8x8xf32> to vector<8x8xbf16>
    %255 = vector.extract_strided_slice %228 {offsets = [0, 8], sizes = [16, 8], strides = [1, 1]} : vector<16x32xf32> to vector<16x8xf32>
    %256 = arith.truncf %255 : vector<16x8xf32> to vector<16x8xbf16>
    %cst_79 = arith.constant dense<0.000000e+00> : vector<8x16xf32>
    %257 = tpu.matmul %254, %256, %cst_79 {dimension_numbers = #tpu.dot_dimension_numbers<[1], [1], [0], [0], [0, 0, 1, 0], [], []>} : vector<8x8xbf16>, vector<16x8xbf16>, vector<8x16xf32> -> vector<8x16xf32>
    %258 = arith.addf %257, %233 : vector<8x16xf32>
    %cst_80 = arith.constant dense<0xFF800000> : vector<8xf32>
    %259 = vector.multi_reduction <maximumf>, %258, %cst_80 [1] : vector<8x16xf32> to vector<8xf32>
    %260 = vector.shape_cast %259 : vector<8xf32> to vector<8x1xf32>
    %261 = vector.broadcast %260 : vector<8x1xf32> to vector<8x16xf32>
    %262 = arith.subf %258, %261 : vector<8x16xf32>
    %263 = math.exp %262 : vector<8x16xf32>
    %cst_81 = arith.constant dense<0.000000e+00> : vector<8xf32>
    %264 = vector.multi_reduction <add>, %263, %cst_81 [1] : vector<8x16xf32> to vector<8xf32>
    %265 = vector.shape_cast %264 : vector<8xf32> to vector<8x1xf32>
    %266 = vector.broadcast %265 : vector<8x1xf32> to vector<8x16xf32>
    %267 = arith.divf %263, %266 : vector<8x16xf32>
    %268 = arith.truncf %267 : vector<8x16xf32> to vector<8x16xbf16>
    %269 = vector.extract_strided_slice %229 {offsets = [0, 8], sizes = [16, 8], strides = [1, 1]} : vector<16x32xf32> to vector<16x8xf32>
    %270 = arith.truncf %269 : vector<16x8xf32> to vector<16x8xbf16>
    %cst_82 = arith.constant dense<0.000000e+00> : vector<8x8xf32>
    %271 = tpu.matmul %268, %270, %cst_82 {dimension_numbers = #tpu.dot_dimension_numbers<[1], [0], [0], [1], [0, 0, 1, 1], [], []>} : vector<8x16xbf16>, vector<16x8xbf16>, vector<8x8xf32> -> vector<8x8xf32>
    %272 = vector.extract_strided_slice %227 {offsets = [0, 16], sizes = [8, 8], strides = [1, 1]} : vector<8x32xf32> to vector<8x8xf32>
    %273 = arith.truncf %272 : vector<8x8xf32> to vector<8x8xbf16>
    %274 = vector.extract_strided_slice %228 {offsets = [0, 16], sizes = [16, 8], strides = [1, 1]} : vector<16x32xf32> to vector<16x8xf32>
    %275 = arith.truncf %274 : vector<16x8xf32> to vector<16x8xbf16>
    %cst_83 = arith.constant dense<0.000000e+00> : vector<8x16xf32>
    %276 = tpu.matmul %273, %275, %cst_83 {dimension_numbers = #tpu.dot_dimension_numbers<[1], [1], [0], [0], [0, 0, 1, 0], [], []>} : vector<8x8xbf16>, vector<16x8xbf16>, vector<8x16xf32> -> vector<8x16xf32>
    %277 = arith.addf %276, %233 : vector<8x16xf32>
    %cst_84 = arith.constant dense<0xFF800000> : vector<8xf32>
    %278 = vector.multi_reduction <maximumf>, %277, %cst_84 [1] : vector<8x16xf32> to vector<8xf32>
    %279 = vector.shape_cast %278 : vector<8xf32> to vector<8x1xf32>
    %280 = vector.broadcast %279 : vector<8x1xf32> to vector<8x16xf32>
    %281 = arith.subf %277, %280 : vector<8x16xf32>
    %282 = math.exp %281 : vector<8x16xf32>
    %cst_85 = arith.constant dense<0.000000e+00> : vector<8xf32>
    %283 = vector.multi_reduction <add>, %282, %cst_85 [1] : vector<8x16xf32> to vector<8xf32>
    %284 = vector.shape_cast %283 : vector<8xf32> to vector<8x1xf32>
    %285 = vector.broadcast %284 : vector<8x1xf32> to vector<8x16xf32>
    %286 = arith.divf %282, %285 : vector<8x16xf32>
    %287 = arith.truncf %286 : vector<8x16xf32> to vector<8x16xbf16>
    %288 = vector.extract_strided_slice %229 {offsets = [0, 16], sizes = [16, 8], strides = [1, 1]} : vector<16x32xf32> to vector<16x8xf32>
    %289 = arith.truncf %288 : vector<16x8xf32> to vector<16x8xbf16>
    %cst_86 = arith.constant dense<0.000000e+00> : vector<8x8xf32>
    %290 = tpu.matmul %287, %289, %cst_86 {dimension_numbers = #tpu.dot_dimension_numbers<[1], [0], [0], [1], [0, 0, 1, 1], [], []>} : vector<8x16xbf16>, vector<16x8xbf16>, vector<8x8xf32> -> vector<8x8xf32>
    %291 = vector.extract_strided_slice %227 {offsets = [0, 24], sizes = [8, 8], strides = [1, 1]} : vector<8x32xf32> to vector<8x8xf32>
    %292 = arith.truncf %291 : vector<8x8xf32> to vector<8x8xbf16>
    %293 = vector.extract_strided_slice %228 {offsets = [0, 24], sizes = [16, 8], strides = [1, 1]} : vector<16x32xf32> to vector<16x8xf32>
    %294 = arith.truncf %293 : vector<16x8xf32> to vector<16x8xbf16>
    %cst_87 = arith.constant dense<0.000000e+00> : vector<8x16xf32>
    %295 = tpu.matmul %292, %294, %cst_87 {dimension_numbers = #tpu.dot_dimension_numbers<[1], [1], [0], [0], [0, 0, 1, 0], [], []>} : vector<8x8xbf16>, vector<16x8xbf16>, vector<8x16xf32> -> vector<8x16xf32>
    %296 = arith.addf %295, %233 : vector<8x16xf32>
    %cst_88 = arith.constant dense<0xFF800000> : vector<8xf32>
    %297 = vector.multi_reduction <maximumf>, %296, %cst_88 [1] : vector<8x16xf32> to vector<8xf32>
    %298 = vector.shape_cast %297 : vector<8xf32> to vector<8x1xf32>
    %299 = vector.broadcast %298 : vector<8x1xf32> to vector<8x16xf32>
    %300 = arith.subf %296, %299 : vector<8x16xf32>
    %301 = math.exp %300 : vector<8x16xf32>
    %cst_89 = arith.constant dense<0.000000e+00> : vector<8xf32>
    %302 = vector.multi_reduction <add>, %301, %cst_89 [1] : vector<8x16xf32> to vector<8xf32>
    %303 = vector.shape_cast %302 : vector<8xf32> to vector<8x1xf32>
    %304 = vector.broadcast %303 : vector<8x1xf32> to vector<8x16xf32>
    %305 = arith.divf %301, %304 : vector<8x16xf32>
    %306 = arith.truncf %305 : vector<8x16xf32> to vector<8x16xbf16>
    %307 = vector.extract_strided_slice %229 {offsets = [0, 24], sizes = [16, 8], strides = [1, 1]} : vector<16x32xf32> to vector<16x8xf32>
    %308 = arith.truncf %307 : vector<16x8xf32> to vector<16x8xbf16>
    %cst_90 = arith.constant dense<0.000000e+00> : vector<8x8xf32>
    %309 = tpu.matmul %306, %308, %cst_90 {dimension_numbers = #tpu.dot_dimension_numbers<[1], [0], [0], [1], [0, 0, 1, 1], [], []>} : vector<8x16xbf16>, vector<16x8xbf16>, vector<8x8xf32> -> vector<8x8xf32>
    %310 = tpu.concatenate %252, %271, %290, %309 in 1 : vector<8x8xf32>, vector<8x8xf32>, vector<8x8xf32>, vector<8x8xf32> -> vector<8x32xf32>
    %311 = vector.extract_strided_slice %213 {offsets = [8, 0], sizes = [8, 32], strides = [1, 1]} : vector<16x32xf32> to vector<8x32xf32>
    %312 = vector.extract_strided_slice %220 {offsets = [16, 0], sizes = [16, 32], strides = [1, 1]} : vector<32x32xf32> to vector<16x32xf32>
    %313 = vector.extract_strided_slice %226 {offsets = [16, 0], sizes = [16, 32], strides = [1, 1]} : vector<32x32xf32> to vector<16x32xf32>
    %c1 = arith.constant 1 : index
    %c0_91 = arith.constant 0 : index
    %c0_92 = arith.constant 0 : index
    %314 = vector.load %arg5[%c1, %c0_91, %c0_92] : memref<2x1x16xf32, #tpu.memory_space<vmem>>, vector<1x1x16xf32>
    %315 = vector.shape_cast %314 : vector<1x1x16xf32> to vector<1x16xf32>
    %316 = vector.shape_cast %315 : vector<1x16xf32> to vector<1x16xf32>
    %317 = vector.broadcast %316 : vector<1x16xf32> to vector<8x16xf32>
    %318 = vector.extract_strided_slice %311 {offsets = [0, 0], sizes = [8, 8], strides = [1, 1]} : vector<8x32xf32> to vector<8x8xf32>
    %319 = arith.truncf %318 : vector<8x8xf32> to vector<8x8xbf16>
    %320 = vector.extract_strided_slice %312 {offsets = [0, 0], sizes = [16, 8], strides = [1, 1]} : vector<16x32xf32> to vector<16x8xf32>
    %321 = arith.truncf %320 : vector<16x8xf32> to vector<16x8xbf16>
    %cst_93 = arith.constant dense<0.000000e+00> : vector<8x16xf32>
    %322 = tpu.matmul %319, %321, %cst_93 {dimension_numbers = #tpu.dot_dimension_numbers<[1], [1], [0], [0], [0, 0, 1, 0], [], []>} : vector<8x8xbf16>, vector<16x8xbf16>, vector<8x16xf32> -> vector<8x16xf32>
    %323 = arith.addf %322, %317 : vector<8x16xf32>
    %cst_94 = arith.constant dense<0xFF800000> : vector<8xf32>
    %324 = vector.multi_reduction <maximumf>, %323, %cst_94 [1] : vector<8x16xf32> to vector<8xf32>
    %325 = vector.shape_cast %324 : vector<8xf32> to vector<8x1xf32>
    %326 = vector.broadcast %325 : vector<8x1xf32> to vector<8x16xf32>
    %327 = arith.subf %323, %326 : vector<8x16xf32>
    %328 = math.exp %327 : vector<8x16xf32>
    %cst_95 = arith.constant dense<0.000000e+00> : vector<8xf32>
    %329 = vector.multi_reduction <add>, %328, %cst_95 [1] : vector<8x16xf32> to vector<8xf32>
    %330 = vector.shape_cast %329 : vector<8xf32> to vector<8x1xf32>
    %331 = vector.broadcast %330 : vector<8x1xf32> to vector<8x16xf32>
    %332 = arith.divf %328, %331 : vector<8x16xf32>
    %333 = arith.truncf %332 : vector<8x16xf32> to vector<8x16xbf16>
    %334 = vector.extract_strided_slice %313 {offsets = [0, 0], sizes = [16, 8], strides = [1, 1]} : vector<16x32xf32> to vector<16x8xf32>
    %335 = arith.truncf %334 : vector<16x8xf32> to vector<16x8xbf16>
    %cst_96 = arith.constant dense<0.000000e+00> : vector<8x8xf32>
    %336 = tpu.matmul %333, %335, %cst_96 {dimension_numbers = #tpu.dot_dimension_numbers<[1], [0], [0], [1], [0, 0, 1, 1], [], []>} : vector<8x16xbf16>, vector<16x8xbf16>, vector<8x8xf32> -> vector<8x8xf32>
    %337 = vector.extract_strided_slice %311 {offsets = [0, 8], sizes = [8, 8], strides = [1, 1]} : vector<8x32xf32> to vector<8x8xf32>
    %338 = arith.truncf %337 : vector<8x8xf32> to vector<8x8xbf16>
    %339 = vector.extract_strided_slice %312 {offsets = [0, 8], sizes = [16, 8], strides = [1, 1]} : vector<16x32xf32> to vector<16x8xf32>
    %340 = arith.truncf %339 : vector<16x8xf32> to vector<16x8xbf16>
    %cst_97 = arith.constant dense<0.000000e+00> : vector<8x16xf32>
    %341 = tpu.matmul %338, %340, %cst_97 {dimension_numbers = #tpu.dot_dimension_numbers<[1], [1], [0], [0], [0, 0, 1, 0], [], []>} : vector<8x8xbf16>, vector<16x8xbf16>, vector<8x16xf32> -> vector<8x16xf32>
    %342 = arith.addf %341, %317 : vector<8x16xf32>
    %cst_98 = arith.constant dense<0xFF800000> : vector<8xf32>
    %343 = vector.multi_reduction <maximumf>, %342, %cst_98 [1] : vector<8x16xf32> to vector<8xf32>
    %344 = vector.shape_cast %343 : vector<8xf32> to vector<8x1xf32>
    %345 = vector.broadcast %344 : vector<8x1xf32> to vector<8x16xf32>
    %346 = arith.subf %342, %345 : vector<8x16xf32>
    %347 = math.exp %346 : vector<8x16xf32>
    %cst_99 = arith.constant dense<0.000000e+00> : vector<8xf32>
    %348 = vector.multi_reduction <add>, %347, %cst_99 [1] : vector<8x16xf32> to vector<8xf32>
    %349 = vector.shape_cast %348 : vector<8xf32> to vector<8x1xf32>
    %350 = vector.broadcast %349 : vector<8x1xf32> to vector<8x16xf32>
    %351 = arith.divf %347, %350 : vector<8x16xf32>
    %352 = arith.truncf %351 : vector<8x16xf32> to vector<8x16xbf16>
    %353 = vector.extract_strided_slice %313 {offsets = [0, 8], sizes = [16, 8], strides = [1, 1]} : vector<16x32xf32> to vector<16x8xf32>
    %354 = arith.truncf %353 : vector<16x8xf32> to vector<16x8xbf16>
    %cst_100 = arith.constant dense<0.000000e+00> : vector<8x8xf32>
    %355 = tpu.matmul %352, %354, %cst_100 {dimension_numbers = #tpu.dot_dimension_numbers<[1], [0], [0], [1], [0, 0, 1, 1], [], []>} : vector<8x16xbf16>, vector<16x8xbf16>, vector<8x8xf32> -> vector<8x8xf32>
    %356 = vector.extract_strided_slice %311 {offsets = [0, 16], sizes = [8, 8], strides = [1, 1]} : vector<8x32xf32> to vector<8x8xf32>
    %357 = arith.truncf %356 : vector<8x8xf32> to vector<8x8xbf16>
    %358 = vector.extract_strided_slice %312 {offsets = [0, 16], sizes = [16, 8], strides = [1, 1]} : vector<16x32xf32> to vector<16x8xf32>
    %359 = arith.truncf %358 : vector<16x8xf32> to vector<16x8xbf16>
    %cst_101 = arith.constant dense<0.000000e+00> : vector<8x16xf32>
    %360 = tpu.matmul %357, %359, %cst_101 {dimension_numbers = #tpu.dot_dimension_numbers<[1], [1], [0], [0], [0, 0, 1, 0], [], []>} : vector<8x8xbf16>, vector<16x8xbf16>, vector<8x16xf32> -> vector<8x16xf32>
    %361 = arith.addf %360, %317 : vector<8x16xf32>
    %cst_102 = arith.constant dense<0xFF800000> : vector<8xf32>
    %362 = vector.multi_reduction <maximumf>, %361, %cst_102 [1] : vector<8x16xf32> to vector<8xf32>
    %363 = vector.shape_cast %362 : vector<8xf32> to vector<8x1xf32>
    %364 = vector.broadcast %363 : vector<8x1xf32> to vector<8x16xf32>
    %365 = arith.subf %361, %364 : vector<8x16xf32>
    %366 = math.exp %365 : vector<8x16xf32>
    %cst_103 = arith.constant dense<0.000000e+00> : vector<8xf32>
    %367 = vector.multi_reduction <add>, %366, %cst_103 [1] : vector<8x16xf32> to vector<8xf32>
    %368 = vector.shape_cast %367 : vector<8xf32> to vector<8x1xf32>
    %369 = vector.broadcast %368 : vector<8x1xf32> to vector<8x16xf32>
    %370 = arith.divf %366, %369 : vector<8x16xf32>
    %371 = arith.truncf %370 : vector<8x16xf32> to vector<8x16xbf16>
    %372 = vector.extract_strided_slice %313 {offsets = [0, 16], sizes = [16, 8], strides = [1, 1]} : vector<16x32xf32> to vector<16x8xf32>
    %373 = arith.truncf %372 : vector<16x8xf32> to vector<16x8xbf16>
    %cst_104 = arith.constant dense<0.000000e+00> : vector<8x8xf32>
    %374 = tpu.matmul %371, %373, %cst_104 {dimension_numbers = #tpu.dot_dimension_numbers<[1], [0], [0], [1], [0, 0, 1, 1], [], []>} : vector<8x16xbf16>, vector<16x8xbf16>, vector<8x8xf32> -> vector<8x8xf32>
    %375 = vector.extract_strided_slice %311 {offsets = [0, 24], sizes = [8, 8], strides = [1, 1]} : vector<8x32xf32> to vector<8x8xf32>
    %376 = arith.truncf %375 : vector<8x8xf32> to vector<8x8xbf16>
    %377 = vector.extract_strided_slice %312 {offsets = [0, 24], sizes = [16, 8], strides = [1, 1]} : vector<16x32xf32> to vector<16x8xf32>
    %378 = arith.truncf %377 : vector<16x8xf32> to vector<16x8xbf16>
    %cst_105 = arith.constant dense<0.000000e+00> : vector<8x16xf32>
    %379 = tpu.matmul %376, %378, %cst_105 {dimension_numbers = #tpu.dot_dimension_numbers<[1], [1], [0], [0], [0, 0, 1, 0], [], []>} : vector<8x8xbf16>, vector<16x8xbf16>, vector<8x16xf32> -> vector<8x16xf32>
    %380 = arith.addf %379, %317 : vector<8x16xf32>
    %cst_106 = arith.constant dense<0xFF800000> : vector<8xf32>
    %381 = vector.multi_reduction <maximumf>, %380, %cst_106 [1] : vector<8x16xf32> to vector<8xf32>
    %382 = vector.shape_cast %381 : vector<8xf32> to vector<8x1xf32>
    %383 = vector.broadcast %382 : vector<8x1xf32> to vector<8x16xf32>
    %384 = arith.subf %380, %383 : vector<8x16xf32>
    %385 = math.exp %384 : vector<8x16xf32>
    %cst_107 = arith.constant dense<0.000000e+00> : vector<8xf32>
    %386 = vector.multi_reduction <add>, %385, %cst_107 [1] : vector<8x16xf32> to vector<8xf32>
    %387 = vector.shape_cast %386 : vector<8xf32> to vector<8x1xf32>
    %388 = vector.broadcast %387 : vector<8x1xf32> to vector<8x16xf32>
    %389 = arith.divf %385, %388 : vector<8x16xf32>
    %390 = arith.truncf %389 : vector<8x16xf32> to vector<8x16xbf16>
    %391 = vector.extract_strided_slice %313 {offsets = [0, 24], sizes = [16, 8], strides = [1, 1]} : vector<16x32xf32> to vector<16x8xf32>
    %392 = arith.truncf %391 : vector<16x8xf32> to vector<16x8xbf16>
    %cst_108 = arith.constant dense<0.000000e+00> : vector<8x8xf32>
    %393 = tpu.matmul %390, %392, %cst_108 {dimension_numbers = #tpu.dot_dimension_numbers<[1], [0], [0], [1], [0, 0, 1, 1], [], []>} : vector<8x16xbf16>, vector<16x8xbf16>, vector<8x8xf32> -> vector<8x8xf32>
    %394 = tpu.concatenate %336, %355, %374, %393 in 1 : vector<8x8xf32>, vector<8x8xf32>, vector<8x8xf32>, vector<8x8xf32> -> vector<8x32xf32>
    %395 = tpu.concatenate %310, %394 in 0 : vector<8x32xf32>, vector<8x32xf32> -> vector<16x32xf32>
    %c0_109 = arith.constant 0 : index
    %c0_110 = arith.constant 0 : index
    %396 = vector.load %arg14[%c0_109, %c0_110] : memref<32x32xbf16, #tpu.memory_space<vmem>>, vector<32x32xbf16>
    %397 = arith.truncf %395 : vector<16x32xf32> to vector<16x32xbf16>
    %cst_111 = arith.constant dense<0.000000e+00> : vector<16x32xf32>
    %398 = tpu.matmul %397, %396, %cst_111 {dimension_numbers = #tpu.dot_dimension_numbers<[1], [0], [0], [1], [0, 0, 1, 1], [], []>} : vector<16x32xbf16>, vector<32x32xbf16>, vector<16x32xf32> -> vector<16x32xf32>
    %c0_112 = arith.constant 0 : index
    %c0_113 = arith.constant 0 : index
    %399 = vector.load %arg15[%c0_112, %c0_113] : memref<1x32xf32, #tpu.memory_space<vmem>>, vector<1x32xf32>
    %400 = vector.broadcast %399 : vector<1x32xf32> to vector<16x32xf32>
    %401 = arith.addf %398, %400 : vector<16x32xf32>
    %402 = arith.addf %205, %401 : vector<16x32xf32>
    %c0_114 = arith.constant 0 : index
    %c0_115 = arith.constant 0 : index
    %403 = vector.load %arg16[%c0_114, %c0_115] : memref<1x32xf32, #tpu.memory_space<vmem>>, vector<1x32xf32>
    %c0_116 = arith.constant 0 : index
    %c0_117 = arith.constant 0 : index
    %404 = vector.load %arg17[%c0_116, %c0_117] : memref<1x32xf32, #tpu.memory_space<vmem>>, vector<1x32xf32>
    %cst_118 = arith.constant dense<0.000000e+00> : vector<16xf32>
    %405 = vector.multi_reduction <add>, %402, %cst_118 [1] : vector<16x32xf32> to vector<16xf32>
    %406 = vector.shape_cast %405 : vector<16xf32> to vector<16x1xf32>
    %cst_119 = arith.constant 3.200000e+01 : f32
    %407 = vector.broadcast %cst_119 : f32 to vector<16x1xf32>
    %408 = arith.divf %406, %407 : vector<16x1xf32>
    %409 = vector.broadcast %408 : vector<16x1xf32> to vector<16x32xf32>
    %410 = arith.subf %402, %409 : vector<16x32xf32>
    %411 = arith.mulf %410, %410 : vector<16x32xf32>
    %cst_120 = arith.constant dense<0.000000e+00> : vector<16xf32>
    %412 = vector.multi_reduction <add>, %411, %cst_120 [1] : vector<16x32xf32> to vector<16xf32>
    %413 = vector.shape_cast %412 : vector<16xf32> to vector<16x1xf32>
    %cst_121 = arith.constant 3.200000e+01 : f32
    %414 = vector.broadcast %cst_121 : f32 to vector<16x1xf32>
    %415 = arith.divf %413, %414 : vector<16x1xf32>
    %416 = vector.broadcast %408 : vector<16x1xf32> to vector<16x32xf32>
    %417 = arith.subf %402, %416 : vector<16x32xf32>
    %cst_122 = arith.constant 9.99999974E-6 : f32
    %418 = vector.broadcast %cst_122 : f32 to vector<16x1xf32>
    %419 = arith.addf %415, %418 : vector<16x1xf32>
    %420 = math.rsqrt %419 : vector<16x1xf32>
    %421 = vector.broadcast %420 : vector<16x1xf32> to vector<16x32xf32>
    %422 = arith.mulf %417, %421 : vector<16x32xf32>
    %423 = vector.broadcast %403 : vector<1x32xf32> to vector<16x32xf32>
    %424 = arith.mulf %422, %423 : vector<16x32xf32>
    %425 = vector.broadcast %404 : vector<1x32xf32> to vector<16x32xf32>
    %426 = arith.addf %424, %425 : vector<16x32xf32>
    %c0_123 = arith.constant 0 : index
    %c0_124 = arith.constant 0 : index
    %427 = vector.load %arg18[%c0_123, %c0_124] : memref<32x64xbf16, #tpu.memory_space<vmem>>, vector<32x64xbf16>
    %428 = arith.truncf %426 : vector<16x32xf32> to vector<16x32xbf16>
    %cst_125 = arith.constant dense<0.000000e+00> : vector<16x64xf32>
    %429 = tpu.matmul %428, %427, %cst_125 {dimension_numbers = #tpu.dot_dimension_numbers<[1], [0], [0], [1], [0, 0, 1, 1], [], []>} : vector<16x32xbf16>, vector<32x64xbf16>, vector<16x64xf32> -> vector<16x64xf32>
    %c0_126 = arith.constant 0 : index
    %c0_127 = arith.constant 0 : index
    %430 = vector.load %arg19[%c0_126, %c0_127] : memref<1x64xf32, #tpu.memory_space<vmem>>, vector<1x64xf32>
    %431 = vector.broadcast %430 : vector<1x64xf32> to vector<16x64xf32>
    %432 = arith.addf %429, %431 : vector<16x64xf32>
    %cst_128 = arith.constant 0.000000e+00 : f32
    %433 = vector.broadcast %cst_128 : f32 to vector<16x64xf32>
    %434 = arith.maximumf %432, %433 : vector<16x64xf32>
    %c0_129 = arith.constant 0 : index
    %c0_130 = arith.constant 0 : index
    %435 = vector.load %arg20[%c0_129, %c0_130] : memref<64x32xbf16, #tpu.memory_space<vmem>>, vector<64x32xbf16>
    %436 = arith.truncf %434 : vector<16x64xf32> to vector<16x64xbf16>
    %cst_131 = arith.constant dense<0.000000e+00> : vector<16x32xf32>
    %437 = tpu.matmul %436, %435, %cst_131 {dimension_numbers = #tpu.dot_dimension_numbers<[1], [0], [0], [1], [0, 0, 1, 1], [], []>} : vector<16x64xbf16>, vector<64x32xbf16>, vector<16x32xf32> -> vector<16x32xf32>
    %c0_132 = arith.constant 0 : index
    %c0_133 = arith.constant 0 : index
    %438 = vector.load %arg21[%c0_132, %c0_133] : memref<1x32xf32, #tpu.memory_space<vmem>>, vector<1x32xf32>
    %439 = vector.broadcast %438 : vector<1x32xf32> to vector<16x32xf32>
    %440 = arith.addf %437, %439 : vector<16x32xf32>
    %441 = arith.addf %426, %440 : vector<16x32xf32>
    %c0_134 = arith.constant 0 : index
    %c0_135 = arith.constant 0 : index
    %442 = vector.load %arg22[%c0_134, %c0_135] : memref<1x32xf32, #tpu.memory_space<vmem>>, vector<1x32xf32>
    %c0_136 = arith.constant 0 : index
    %c0_137 = arith.constant 0 : index
    %443 = vector.load %arg23[%c0_136, %c0_137] : memref<1x32xf32, #tpu.memory_space<vmem>>, vector<1x32xf32>
    %cst_138 = arith.constant dense<0.000000e+00> : vector<16xf32>
    %444 = vector.multi_reduction <add>, %441, %cst_138 [1] : vector<16x32xf32> to vector<16xf32>
    %445 = vector.shape_cast %444 : vector<16xf32> to vector<16x1xf32>
    %cst_139 = arith.constant 3.200000e+01 : f32
    %446 = vector.broadcast %cst_139 : f32 to vector<16x1xf32>
    %447 = arith.divf %445, %446 : vector<16x1xf32>
    %448 = vector.broadcast %447 : vector<16x1xf32> to vector<16x32xf32>
    %449 = arith.subf %441, %448 : vector<16x32xf32>
    %450 = arith.mulf %449, %449 : vector<16x32xf32>
    %cst_140 = arith.constant dense<0.000000e+00> : vector<16xf32>
    %451 = vector.multi_reduction <add>, %450, %cst_140 [1] : vector<16x32xf32> to vector<16xf32>
    %452 = vector.shape_cast %451 : vector<16xf32> to vector<16x1xf32>
    %cst_141 = arith.constant 3.200000e+01 : f32
    %453 = vector.broadcast %cst_141 : f32 to vector<16x1xf32>
    %454 = arith.divf %452, %453 : vector<16x1xf32>
    %455 = vector.broadcast %447 : vector<16x1xf32> to vector<16x32xf32>
    %456 = arith.subf %441, %455 : vector<16x32xf32>
    %cst_142 = arith.constant 9.99999974E-6 : f32
    %457 = vector.broadcast %cst_142 : f32 to vector<16x1xf32>
    %458 = arith.addf %454, %457 : vector<16x1xf32>
    %459 = math.rsqrt %458 : vector<16x1xf32>
    %460 = vector.broadcast %459 : vector<16x1xf32> to vector<16x32xf32>
    %461 = arith.mulf %456, %460 : vector<16x32xf32>
    %462 = vector.broadcast %442 : vector<1x32xf32> to vector<16x32xf32>
    %463 = arith.mulf %461, %462 : vector<16x32xf32>
    %464 = vector.broadcast %443 : vector<1x32xf32> to vector<16x32xf32>
    %465 = arith.addf %463, %464 : vector<16x32xf32>
    %466 = vector.shape_cast %465 : vector<16x32xf32> to vector<2x8x32xf32>
    %c0_143 = arith.constant 0 : index
    %c0_144 = arith.constant 0 : index
    %c0_145 = arith.constant 0 : index
    %467 = vector.load %arg26[%c0_143, %c0_144, %c0_145] : memref<2x8x32xf32, #tpu.memory_space<vmem>>, vector<2x8x32xf32>
    tpu.vector_store %arg26[%c0_143, %c0_144, %c0_145], %466 {strides = array<i32>} : memref<2x8x32xf32, #tpu.memory_space<vmem>>, vector<2x8x32xf32>,
    return
  }
  func.func @transform_0(%arg0: i32) -> (i32, i32, i32) {
    %c0_i32 = arith.constant 0 : i32
    %c0_i32_0 = arith.constant 0 : i32
    %c0_i32_1 = arith.constant 0 : i32
    return %arg0, %c0_i32, %c0_i32_0 : i32, i32, i32
  }
  func.func @transform_1(%arg0: i32) -> (i32, i32) {
    %c0_i32 = arith.constant 0 : i32
    %c0_i32_0 = arith.constant 0 : i32
    %c0_i32_1 = arith.constant 0 : i32
    return %c0_i32, %c0_i32_0 : i32, i32
  }
  func.func @transform_2(%arg0: i32) -> (i32, i32, i32) {
    %c0_i32 = arith.constant 0 : i32
    %c0_i32_0 = arith.constant 0 : i32
    %c0_i32_1 = arith.constant 0 : i32
    return %arg0, %c0_i32, %c0_i32_0 : i32, i32, i32
  }
  func.func @transform_3(%arg0: i32) -> (i32, i32, i32) {
    %c0_i32 = arith.constant 0 : i32
    %c0_i32_0 = arith.constant 0 : i32
    %c0_i32_1 = arith.constant 0 : i32
    return %arg0, %c0_i32, %c0_i32_0 : i32, i32, i32
  }
  func.func @transform_4(%arg0: i32) -> (i32, i32, i32) {
    %c0_i32 = arith.constant 0 : i32
    %c0_i32_0 = arith.constant 0 : i32
    %c0_i32_1 = arith.constant 0 : i32
    return %arg0, %c0_i32, %c0_i32_0 : i32, i32, i32
  }
  func.func @transform_5(%arg0: i32) -> (i32, i32) {
    %c0_i32 = arith.constant 0 : i32
    %c0_i32_0 = arith.constant 0 : i32
    %c0_i32_1 = arith.constant 0 : i32
    return %c0_i32, %c0_i32_0 : i32, i32
  }
  func.func @transform_6(%arg0: i32) -> (i32, i32) {
    %c0_i32 = arith.constant 0 : i32
    %c0_i32_0 = arith.constant 0 : i32
    %c0_i32_1 = arith.constant 0 : i32
    return %c0_i32, %c0_i32_0 : i32, i32
  }
  func.func @transform_7(%arg0: i32) -> (i32, i32) {
    %c0_i32 = arith.constant 0 : i32
    %c0_i32_0 = arith.constant 0 : i32
    %c0_i32_1 = arith.constant 0 : i32
    return %c0_i32, %c0_i32_0 : i32, i32
  }
  func.func @transform_8(%arg0: i32) -> (i32, i32) {
    %c0_i32 = arith.constant 0 : i32
    %c0_i32_0 = arith.constant 0 : i32
    %c0_i32_1 = arith.constant 0 : i32
    return %c0_i32, %c0_i32_0 : i32, i32
  }
  func.func @transform_9(%arg0: i32) -> (i32, i32) {
    %c0_i32 = arith.constant 0 : i32
    %c0_i32_0 = arith.constant 0 : i32
    %c0_i32_1 = arith.constant 0 : i32
    return %c0_i32, %c0_i32_0 : i32, i32
  }
  func.func @transform_10(%arg0: i32) -> (i32, i32) {
    %c0_i32 = arith.constant 0 : i32
    %c0_i32_0 = arith.constant 0 : i32
    %c0_i32_1 = arith.constant 0 : i32
    return %c0_i32, %c0_i32_0 : i32, i32
  }
  func.func @transform_11(%arg0: i32) -> (i32, i32) {
    %c0_i32 = arith.constant 0 : i32
    %c0_i32_0 = arith.constant 0 : i32
    %c0_i32_1 = arith.constant 0 : i32
    return %c0_i32, %c0_i32_0 : i32, i32
  }
  func.func @transform_12(%arg0: i32) -> (i32, i32) {
    %c0_i32 = arith.constant 0 : i32
    %c0_i32_0 = arith.constant 0 : i32
    %c0_i32_1 = arith.constant 0 : i32
    return %c0_i32, %c0_i32_0 : i32, i32
  }
  func.func @transform_13(%arg0: i32) -> (i32, i32) {
    %c0_i32 = arith.constant 0 : i32
    %c0_i32_0 = arith.constant 0 : i32
    %c0_i32_1 = arith.constant 0 : i32
    return %c0_i32, %c0_i32_0 : i32, i32
  }
  func.func @transform_14(%arg0: i32) -> (i32, i32) {
    %c0_i32 = arith.constant 0 : i32
    %c0_i32_0 = arith.constant 0 : i32
    %c0_i32_1 = arith.constant 0 : i32
    return %c0_i32, %c0_i32_0 : i32, i32
  }
  func.func @transform_15(%arg0: i32) -> (i32, i32) {
    %c0_i32 = arith.constant 0 : i32
    %c0_i32_0 = arith.constant 0 : i32
    %c0_i32_1 = arith.constant 0 : i32
    return %c0_i32, %c0_i32_0 : i32, i32
  }
  func.func @transform_16(%arg0: i32) -> (i32, i32) {
    %c0_i32 = arith.constant 0 : i32
    %c0_i32_0 = arith.constant 0 : i32
    %c0_i32_1 = arith.constant 0 : i32
    return %c0_i32, %c0_i32_0 : i32, i32
  }
  func.func @transform_17(%arg0: i32) -> (i32, i32) {
    %c0_i32 = arith.constant 0 : i32
    %c0_i32_0 = arith.constant 0 : i32
    %c0_i32_1 = arith.constant 0 : i32
    return %c0_i32, %c0_i32_0 : i32, i32
  }
  func.func @transform_18(%arg0: i32) -> (i32, i32) {
    %c0_i32 = arith.constant 0 : i32
    %c0_i32_0 = arith.constant 0 : i32
    %c0_i32_1 = arith.constant 0 : i32
    return %c0_i32, %c0_i32_0 : i32, i32
  }
  func.func @transform_19(%arg0: i32) -> (i32, i32) {
    %c0_i32 = arith.constant 0 : i32
    %c0_i32_0 = arith.constant 0 : i32
    %c0_i32_1 = arith.constant 0 : i32
    return %c0_i32, %c0_i32_0 : i32, i32
  }
  func.func @transform_20(%arg0: i32) -> (i32, i32) {
    %c0_i32 = arith.constant 0 : i32
    %c0_i32_0 = arith.constant 0 : i32
    %c0_i32_1 = arith.constant 0 : i32
    return %c0_i32, %c0_i32_0 : i32, i32
  }
  func.func @transform_21(%arg0: i32) -> (i32, i32) {
    %c0_i32 = arith.constant 0 : i32
    %c0_i32_0 = arith.constant 0 : i32
    %c0_i32_1 = arith.constant 0 : i32
    return %c0_i32, %c0_i32_0 : i32, i32
  }
  func.func @transform_22(%arg0: i32) -> (i32, i32) {
    %c0_i32 = arith.constant 0 : i32
    %c0_i32_0 = arith.constant 0 : i32
    %c0_i32_1 = arith.constant 0 : i32
    return %c0_i32, %c0_i32_0 : i32, i32
  }
  func.func @transform_23(%arg0: i32) -> (i32, i32) {
    %c0_i32 = arith.constant 0 : i32
    %c0_i32_0 = arith.constant 0 : i32
    %c0_i32_1 = arith.constant 0 : i32
    return %c0_i32, %c0_i32_0 : i32, i32
  }
  func.func @transform_24(%arg0: i32) -> (i32, i32) {
    %c0_i32 = arith.constant 0 : i32
    %c0_i32_0 = arith.constant 0 : i32
    %c0_i32_1 = arith.constant 0 : i32
    return %c0_i32, %c0_i32_0 : i32, i32
  }
  func.func @transform_25(%arg0: i32) -> (i32, i32, i32) {
    %c0_i32 = arith.constant 0 : i32
    %c0_i32_0 = arith.constant 0 : i32
    %c0_i32_1 = arith.constant 0 : i32
    return %arg0, %c0_i32, %c0_i32_0 : i32, i32, i32
  }
}

module attributes {stable_mosaic.version = 11 : i64} {
  func.func @_decoder_layer_kernel(%arg0: i32, %arg1: memref<2x8x32xf32, #tpu.memory_space<vmem>>, %arg2: memref<8x32xf32, #tpu.memory_space<vmem>>, %arg3: memref<2x16x32xf32, #tpu.memory_space<vmem>>, %arg4: memref<2x16x32xf32, #tpu.memory_space<vmem>>, %arg5: memref<2x1x16xf32, #tpu.memory_space<vmem>>, %arg6: memref<32x96xbf16, #tpu.memory_space<vmem>>, %arg7: memref<1x96xf32, #tpu.memory_space<vmem>>, %arg8: memref<32x32xbf16, #tpu.memory_space<vmem>>, %arg9: memref<1x32xf32, #tpu.memory_space<vmem>>, %arg10: memref<1x32xf32, #tpu.memory_space<vmem>>, %arg11: memref<1x32xf32, #tpu.memory_space<vmem>>, %arg12: memref<32x96xbf16, #tpu.memory_space<vmem>>, %arg13: memref<1x96xf32, #tpu.memory_space<vmem>>, %arg14: memref<32x32xbf16, #tpu.memory_space<vmem>>, %arg15: memref<1x32xf32, #tpu.memory_space<vmem>>, %arg16: memref<1x32xf32, #tpu.memory_space<vmem>>, %arg17: memref<1x32xf32, #tpu.memory_space<vmem>>, %arg18: memref<32x64xbf16, #tpu.memory_space<vmem>>, %arg19: memref<1x64xf32, #tpu.memory_space<vmem>>, %arg20: memref<64x32xbf16, #tpu.memory_space<vmem>>, %arg21: memref<1x32xf32, #tpu.memory_space<vmem>>, %arg22: memref<1x32xf32, #tpu.memory_space<vmem>>, %arg23: memref<1x32xf32, #tpu.memory_space<vmem>>, %arg24: memref<1x32xf32, #tpu.memory_space<vmem>>, %arg25: memref<1x32xf32, #tpu.memory_space<vmem>>, %arg26: memref<2x8x32xf32, #tpu.memory_space<vmem>>) attributes {dimension_semantics = [#tpu.dimension_semantics<parallel>], iteration_bounds = array<i64: 1>, scalar_prefetch = 0 : i64, scratch_operands = 0 : i64, tpu.core_type = #tpu.core_type<tc>, window_params = [{transform_indices = @transform_0, window_bounds = array<i64: 2, 8, 32>}, {pipeline_mode = #tpu.pipeline_mode<synchronous>, transform_indices = @transform_1, window_bounds = array<i64: 8, 32>}, {transform_indices = @transform_2, window_bounds = array<i64: 2, 16, 32>}, {transform_indices = @transform_3, window_bounds = array<i64: 2, 16, 32>}, {transform_indices = @transform_4, window_bounds = array<i64: 2, 1, 16>}, {pipeline_mode = #tpu.pipeline_mode<synchronous>, transform_indices = @transform_5, window_bounds = array<i64: 32, 96>}, {pipeline_mode = #tpu.pipeline_mode<synchronous>, transform_indices = @transform_6, window_bounds = array<i64: 1, 96>}, {pipeline_mode = #tpu.pipeline_mode<synchronous>, transform_indices = @transform_7, window_bounds = array<i64: 32, 32>}, {pipeline_mode = #tpu.pipeline_mode<synchronous>, transform_indices = @transform_8, window_bounds = array<i64: 1, 32>}, {pipeline_mode = #tpu.pipeline_mode<synchronous>, transform_indices = @transform_9, window_bounds = array<i64: 1, 32>}, {pipeline_mode = #tpu.pipeline_mode<synchronous>, transform_indices = @transform_10, window_bounds = array<i64: 1, 32>}, {pipeline_mode = #tpu.pipeline_mode<synchronous>, transform_indices = @transform_11, window_bounds = array<i64: 32, 96>}, {pipeline_mode = #tpu.pipeline_mode<synchronous>, transform_indices = @transform_12, window_bounds = array<i64: 1, 96>}, {pipeline_mode = #tpu.pipeline_mode<synchronous>, transform_indices = @transform_13, window_bounds = array<i64: 32, 32>}, {pipeline_mode = #tpu.pipeline_mode<synchronous>, transform_indices = @transform_14, window_bounds = array<i64: 1, 32>}, {pipeline_mode = #tpu.pipeline_mode<synchronous>, transform_indices = @transform_15, window_bounds = array<i64: 1, 32>}, {pipeline_mode = #tpu.pipeline_mode<synchronous>, transform_indices = @transform_16, window_bounds = array<i64: 1, 32>}, {pipeline_mode = #tpu.pipeline_mode<synchronous>, transform_indices = @transform_17, window_bounds = array<i64: 32, 64>}, {pipeline_mode = #tpu.pipeline_mode<synchronous>, transform_indices = @transform_18, window_bounds = array<i64: 1, 64>}, {pipeline_mode = #tpu.pipeline_mode<synchronous>, transform_indices = @transform_19, window_bounds = array<i64: 64, 32>}, {pipeline_mode = #tpu.pipeline_mode<synchronous>, transform_indices = @transform_20, window_bounds = array<i64: 1, 32>}, {pipeline_mode = #tpu.pipeline_mode<synchronous>, transform_indices = @transform_21, window_bounds = array<i64: 1, 32>}, {pipeline_mode = #tpu.pipeline_mode<synchronous>, transform_indices = @transform_22, window_bounds = array<i64: 1, 32>}, {pipeline_mode = #tpu.pipeline_mode<synchronous>, transform_indices = @transform_23, window_bounds = array<i64: 1, 32>}, {pipeline_mode = #tpu.pipeline_mode<synchronous>, transform_indices = @transform_24, window_bounds = array<i64: 1, 32>}, {transform_indices = @transform_25, window_bounds = array<i64: 2, 8, 32>}]} {
    %c0 = arith.constant 0 : index
    %c0_0 = arith.constant 0 : index
    %c0_1 = arith.constant 0 : index
    %0 = vector.load %arg1[%c0, %c0_0, %c0_1] : memref<2x8x32xf32, #tpu.memory_space<vmem>>, vector<2x8x32xf32>
    %c0_2 = arith.constant 0 : index
    %c0_3 = arith.constant 0 : index
    %c0_4 = arith.constant 0 : index
    %1 = vector.load %arg3[%c0_2, %c0_3, %c0_4] : memref<2x16x32xf32, #tpu.memory_space<vmem>>, vector<2x16x32xf32>
    %c0_5 = arith.constant 0 : index
    %c0_6 = arith.constant 0 : index
    %2 = vector.load %arg2[%c0_5, %c0_6] : memref<8x32xf32, #tpu.memory_space<vmem>>, vector<8x32xf32>
    %3 = tpu.concatenate %2, %2 in 0 : vector<8x32xf32>, vector<8x32xf32> -> vector<16x32xf32>
    %4 = vector.shape_cast %0 : vector<2x8x32xf32> to vector<16x32xf32>
    %5 = vector.shape_cast %1 : vector<2x16x32xf32> to vector<32x32xf32>
    %c0_7 = arith.constant 0 : index
    %c0_8 = arith.constant 0 : index
    %c0_9 = arith.constant 0 : index
    %6 = vector.load %arg4[%c0_7, %c0_8, %c0_9] : memref<2x16x32xf32, #tpu.memory_space<vmem>>, vector<2x16x32xf32>
    %7 = vector.shape_cast %6 : vector<2x16x32xf32> to vector<32x32xf32>
    %c0_10 = arith.constant 0 : index
    %c0_11 = arith.constant 0 : index
    %8 = vector.load %arg6[%c0_10, %c0_11] : memref<32x96xbf16, #tpu.memory_space<vmem>>, vector<32x96xbf16>
    %9 = arith.addf %4, %3 : vector<16x32xf32>
    %10 = vector.extract_strided_slice %8 {offsets = [0, 0], sizes = [32, 64], strides = [1, 1]} : vector<32x96xbf16> to vector<32x64xbf16>
    %11 = arith.truncf %9 : vector<16x32xf32> to vector<16x32xbf16>
    %cst = arith.constant dense<0.000000e+00> : vector<16x64xf32>
    %12 = tpu.matmul %11, %10, %cst {dimension_numbers = #tpu.dot_dimension_numbers<[1], [0], [0], [1], [0, 0, 1, 1], [], []>} : vector<16x32xbf16>, vector<32x64xbf16>, vector<16x64xf32> -> vector<16x64xf32>
    %c0_12 = arith.constant 0 : index
    %c0_13 = arith.constant 0 : index
    %13 = vector.load %arg7[%c0_12, %c0_13] : memref<1x96xf32, #tpu.memory_space<vmem>>, vector<1x64xf32>
    %14 = vector.broadcast %13 : vector<1x64xf32> to vector<16x64xf32>
    %15 = arith.addf %12, %14 : vector<16x64xf32>
    %16 = vector.extract_strided_slice %8 {offsets = [0, 64], sizes = [32, 32], strides = [1, 1]} : vector<32x96xbf16> to vector<32x32xbf16>
    %17 = arith.truncf %4 : vector<16x32xf32> to vector<16x32xbf16>
    %cst_14 = arith.constant dense<0.000000e+00> : vector<16x32xf32>
    %18 = tpu.matmul %17, %16, %cst_14 {dimension_numbers = #tpu.dot_dimension_numbers<[1], [0], [0], [1], [0, 0, 1, 1], [], []>} : vector<16x32xbf16>, vector<32x32xbf16>, vector<16x32xf32> -> vector<16x32xf32>
    %c0_15 = arith.constant 0 : index
    %c64 = arith.constant 64 : index
    %19 = vector.load %arg7[%c0_15, %c64] : memref<1x96xf32, #tpu.memory_space<vmem>>, vector<1x32xf32>
    %20 = vector.broadcast %19 : vector<1x32xf32> to vector<16x32xf32>
    %21 = arith.addf %18, %20 : vector<16x32xf32>
    %22 = vector.extract_strided_slice %15 {offsets = [0, 0], sizes = [8, 32], strides = [1, 1]} : vector<16x64xf32> to vector<8x32xf32>
    %23 = vector.extract_strided_slice %15 {offsets = [0, 32], sizes = [8, 32], strides = [1, 1]} : vector<16x64xf32> to vector<8x32xf32>
    %24 = vector.extract_strided_slice %21 {offsets = [0, 0], sizes = [8, 32], strides = [1, 1]} : vector<16x32xf32> to vector<8x32xf32>
    %25 = vector.extract_strided_slice %22 {offsets = [0, 0], sizes = [8, 8], strides = [1, 1]} : vector<8x32xf32> to vector<8x8xf32>
    %26 = arith.truncf %25 : vector<8x8xf32> to vector<8x8xbf16>
    %27 = vector.extract_strided_slice %23 {offsets = [0, 0], sizes = [8, 8], strides = [1, 1]} : vector<8x32xf32> to vector<8x8xf32>
    %28 = arith.truncf %27 : vector<8x8xf32> to vector<8x8xbf16>
    %cst_16 = arith.constant dense<0.000000e+00> : vector<8x8xf32>
    %29 = tpu.matmul %26, %28, %cst_16 {dimension_numbers = #tpu.dot_dimension_numbers<[1], [1], [0], [0], [0, 0, 1, 0], [], []>} : vector<8x8xbf16>, vector<8x8xbf16>, vector<8x8xf32> -> vector<8x8xf32>
    %cst_17 = arith.constant dense<0xFF800000> : vector<8xf32>
    %30 = vector.multi_reduction <maximumf>, %29, %cst_17 [1] : vector<8x8xf32> to vector<8xf32>
    %31 = vector.shape_cast %30 : vector<8xf32> to vector<8x1xf32>
    %32 = vector.broadcast %31 : vector<8x1xf32> to vector<8x8xf32>
    %33 = arith.subf %29, %32 : vector<8x8xf32>
    %34 = math.exp %33 : vector<8x8xf32>
    %cst_18 = arith.constant dense<0.000000e+00> : vector<8xf32>
    %35 = vector.multi_reduction <add>, %34, %cst_18 [1] : vector<8x8xf32> to vector<8xf32>
    %36 = vector.shape_cast %35 : vector<8xf32> to vector<8x1xf32>
    %37 = vector.broadcast %36 : vector<8x1xf32> to vector<8x8xf32>
    %38 = arith.divf %34, %37 : vector<8x8xf32>
    %39 = arith.truncf %38 : vector<8x8xf32> to vector<8x8xbf16>
    %40 = vector.extract_strided_slice %24 {offsets = [0, 0], sizes = [8, 8], strides = [1, 1]} : vector<8x32xf32> to vector<8x8xf32>
    %41 = arith.truncf %40 : vector<8x8xf32> to vector<8x8xbf16>
    %cst_19 = arith.constant dense<0.000000e+00> : vector<8x8xf32>
    %42 = tpu.matmul %39, %41, %cst_19 {dimension_numbers = #tpu.dot_dimension_numbers<[1], [0], [0], [1], [0, 0, 1, 1], [], []>} : vector<8x8xbf16>, vector<8x8xbf16>, vector<8x8xf32> -> vector<8x8xf32>
    %43 = vector.extract_strided_slice %22 {offsets = [0, 8], sizes = [8, 8], strides = [1, 1]} : vector<8x32xf32> to vector<8x8xf32>
    %44 = arith.truncf %43 : vector<8x8xf32> to vector<8x8xbf16>
    %45 = vector.extract_strided_slice %23 {offsets = [0, 8], sizes = [8, 8], strides = [1, 1]} : vector<8x32xf32> to vector<8x8xf32>
    %46 = arith.truncf %45 : vector<8x8xf32> to vector<8x8xbf16>
    %cst_20 = arith.constant dense<0.000000e+00> : vector<8x8xf32>
    %47 = tpu.matmul %44, %46, %cst_20 {dimension_numbers = #tpu.dot_dimension_numbers<[1], [1], [0], [0], [0, 0, 1, 0], [], []>} : vector<8x8xbf16>, vector<8x8xbf16>, vector<8x8xf32> -> vector<8x8xf32>
    %cst_21 = arith.constant dense<0xFF800000> : vector<8xf32>
    %48 = vector.multi_reduction <maximumf>, %47, %cst_21 [1] : vector<8x8xf32> to vector<8xf32>
    %49 = vector.shape_cast %48 : vector<8xf32> to vector<8x1xf32>
    %50 = vector.broadcast %49 : vector<8x1xf32> to vector<8x8xf32>
    %51 = arith.subf %47, %50 : vector<8x8xf32>
    %52 = math.exp %51 : vector<8x8xf32>
    %cst_22 = arith.constant dense<0.000000e+00> : vector<8xf32>
    %53 = vector.multi_reduction <add>, %52, %cst_22 [1] : vector<8x8xf32> to vector<8xf32>
    %54 = vector.shape_cast %53 : vector<8xf32> to vector<8x1xf32>
    %55 = vector.broadcast %54 : vector<8x1xf32> to vector<8x8xf32>
    %56 = arith.divf %52, %55 : vector<8x8xf32>
    %57 = arith.truncf %56 : vector<8x8xf32> to vector<8x8xbf16>
    %58 = vector.extract_strided_slice %24 {offsets = [0, 8], sizes = [8, 8], strides = [1, 1]} : vector<8x32xf32> to vector<8x8xf32>
    %59 = arith.truncf %58 : vector<8x8xf32> to vector<8x8xbf16>
    %cst_23 = arith.constant dense<0.000000e+00> : vector<8x8xf32>
    %60 = tpu.matmul %57, %59, %cst_23 {dimension_numbers = #tpu.dot_dimension_numbers<[1], [0], [0], [1], [0, 0, 1, 1], [], []>} : vector<8x8xbf16>, vector<8x8xbf16>, vector<8x8xf32> -> vector<8x8xf32>
    %61 = vector.extract_strided_slice %22 {offsets = [0, 16], sizes = [8, 8], strides = [1, 1]} : vector<8x32xf32> to vector<8x8xf32>
    %62 = arith.truncf %61 : vector<8x8xf32> to vector<8x8xbf16>
    %63 = vector.extract_strided_slice %23 {offsets = [0, 16], sizes = [8, 8], strides = [1, 1]} : vector<8x32xf32> to vector<8x8xf32>
    %64 = arith.truncf %63 : vector<8x8xf32> to vector<8x8xbf16>
    %cst_24 = arith.constant dense<0.000000e+00> : vector<8x8xf32>
    %65 = tpu.matmul %62, %64, %cst_24 {dimension_numbers = #tpu.dot_dimension_numbers<[1], [1], [0], [0], [0, 0, 1, 0], [], []>} : vector<8x8xbf16>, vector<8x8xbf16>, vector<8x8xf32> -> vector<8x8xf32>
    %cst_25 = arith.constant dense<0xFF800000> : vector<8xf32>
    %66 = vector.multi_reduction <maximumf>, %65, %cst_25 [1] : vector<8x8xf32> to vector<8xf32>
    %67 = vector.shape_cast %66 : vector<8xf32> to vector<8x1xf32>
    %68 = vector.broadcast %67 : vector<8x1xf32> to vector<8x8xf32>
    %69 = arith.subf %65, %68 : vector<8x8xf32>
    %70 = math.exp %69 : vector<8x8xf32>
    %cst_26 = arith.constant dense<0.000000e+00> : vector<8xf32>
    %71 = vector.multi_reduction <add>, %70, %cst_26 [1] : vector<8x8xf32> to vector<8xf32>
    %72 = vector.shape_cast %71 : vector<8xf32> to vector<8x1xf32>
    %73 = vector.broadcast %72 : vector<8x1xf32> to vector<8x8xf32>
    %74 = arith.divf %70, %73 : vector<8x8xf32>
    %75 = arith.truncf %74 : vector<8x8xf32> to vector<8x8xbf16>
    %76 = vector.extract_strided_slice %24 {offsets = [0, 16], sizes = [8, 8], strides = [1, 1]} : vector<8x32xf32> to vector<8x8xf32>
    %77 = arith.truncf %76 : vector<8x8xf32> to vector<8x8xbf16>
    %cst_27 = arith.constant dense<0.000000e+00> : vector<8x8xf32>
    %78 = tpu.matmul %75, %77, %cst_27 {dimension_numbers = #tpu.dot_dimension_numbers<[1], [0], [0], [1], [0, 0, 1, 1], [], []>} : vector<8x8xbf16>, vector<8x8xbf16>, vector<8x8xf32> -> vector<8x8xf32>
    %79 = vector.extract_strided_slice %22 {offsets = [0, 24], sizes = [8, 8], strides = [1, 1]} : vector<8x32xf32> to vector<8x8xf32>
    %80 = arith.truncf %79 : vector<8x8xf32> to vector<8x8xbf16>
    %81 = vector.extract_strided_slice %23 {offsets = [0, 24], sizes = [8, 8], strides = [1, 1]} : vector<8x32xf32> to vector<8x8xf32>
    %82 = arith.truncf %81 : vector<8x8xf32> to vector<8x8xbf16>
    %cst_28 = arith.constant dense<0.000000e+00> : vector<8x8xf32>
    %83 = tpu.matmul %80, %82, %cst_28 {dimension_numbers = #tpu.dot_dimension_numbers<[1], [1], [0], [0], [0, 0, 1, 0], [], []>} : vector<8x8xbf16>, vector<8x8xbf16>, vector<8x8xf32> -> vector<8x8xf32>
    %cst_29 = arith.constant dense<0xFF800000> : vector<8xf32>
    %84 = vector.multi_reduction <maximumf>, %83, %cst_29 [1] : vector<8x8xf32> to vector<8xf32>
    %85 = vector.shape_cast %84 : vector<8xf32> to vector<8x1xf32>
    %86 = vector.broadcast %85 : vector<8x1xf32> to vector<8x8xf32>
    %87 = arith.subf %83, %86 : vector<8x8xf32>
    %88 = math.exp %87 : vector<8x8xf32>
    %cst_30 = arith.constant dense<0.000000e+00> : vector<8xf32>
    %89 = vector.multi_reduction <add>, %88, %cst_30 [1] : vector<8x8xf32> to vector<8xf32>
    %90 = vector.shape_cast %89 : vector<8xf32> to vector<8x1xf32>
    %91 = vector.broadcast %90 : vector<8x1xf32> to vector<8x8xf32>
    %92 = arith.divf %88, %91 : vector<8x8xf32>
    %93 = arith.truncf %92 : vector<8x8xf32> to vector<8x8xbf16>
    %94 = vector.extract_strided_slice %24 {offsets = [0, 24], sizes = [8, 8], strides = [1, 1]} : vector<8x32xf32> to vector<8x8xf32>
    %95 = arith.truncf %94 : vector<8x8xf32> to vector<8x8xbf16>
    %cst_31 = arith.constant dense<0.000000e+00> : vector<8x8xf32>
    %96 = tpu.matmul %93, %95, %cst_31 {dimension_numbers = #tpu.dot_dimension_numbers<[1], [0], [0], [1], [0, 0, 1, 1], [], []>} : vector<8x8xbf16>, vector<8x8xbf16>, vector<8x8xf32> -> vector<8x8xf32>
    %97 = tpu.concatenate %42, %60, %78, %96 in 1 : vector<8x8xf32>, vector<8x8xf32>, vector<8x8xf32>, vector<8x8xf32> -> vector<8x32xf32>
    %98 = vector.extract_strided_slice %15 {offsets = [8, 0], sizes = [8, 32], strides = [1, 1]} : vector<16x64xf32> to vector<8x32xf32>
    %99 = vector.extract_strided_slice %15 {offsets = [8, 32], sizes = [8, 32], strides = [1, 1]} : vector<16x64xf32> to vector<8x32xf32>
    %100 = vector.extract_strided_slice %21 {offsets = [8, 0], sizes = [8, 32], strides = [1, 1]} : vector<16x32xf32> to vector<8x32xf32>
    %101 = vector.extract_strided_slice %98 {offsets = [0, 0], sizes = [8, 8], strides = [1, 1]} : vector<8x32xf32> to vector<8x8xf32>
    %102 = arith.truncf %101 : vector<8x8xf32> to vector<8x8xbf16>
    %103 = vector.extract_strided_slice %99 {offsets = [0, 0], sizes = [8, 8], strides = [1, 1]} : vector<8x32xf32> to vector<8x8xf32>
    %104 = arith.truncf %103 : vector<8x8xf32> to vector<8x8xbf16>
    %cst_32 = arith.constant dense<0.000000e+00> : vector<8x8xf32>
    %105 = tpu.matmul %102, %104, %cst_32 {dimension_numbers = #tpu.dot_dimension_numbers<[1], [1], [0], [0], [0, 0, 1, 0], [], []>} : vector<8x8xbf16>, vector<8x8xbf16>, vector<8x8xf32> -> vector<8x8xf32>
    %cst_33 = arith.constant dense<0xFF800000> : vector<8xf32>
    %106 = vector.multi_reduction <maximumf>, %105, %cst_33 [1] : vector<8x8xf32> to vector<8xf32>
    %107 = vector.shape_cast %106 : vector<8xf32> to vector<8x1xf32>
    %108 = vector.broadcast %107 : vector<8x1xf32> to vector<8x8xf32>
    %109 = arith.subf %105, %108 : vector<8x8xf32>
    %110 = math.exp %109 : vector<8x8xf32>
    %cst_34 = arith.constant dense<0.000000e+00> : vector<8xf32>
    %111 = vector.multi_reduction <add>, %110, %cst_34 [1] : vector<8x8xf32> to vector<8xf32>
    %112 = vector.shape_cast %111 : vector<8xf32> to vector<8x1xf32>
    %113 = vector.broadcast %112 : vector<8x1xf32> to vector<8x8xf32>
    %114 = arith.divf %110, %113 : vector<8x8xf32>
    %115 = arith.truncf %114 : vector<8x8xf32> to vector<8x8xbf16>
    %116 = vector.extract_strided_slice %100 {offsets = [0, 0], sizes = [8, 8], strides = [1, 1]} : vector<8x32xf32> to vector<8x8xf32>
    %117 = arith.truncf %116 : vector<8x8xf32> to vector<8x8xbf16>
    %cst_35 = arith.constant dense<0.000000e+00> : vector<8x8xf32>
    %118 = tpu.matmul %115, %117, %cst_35 {dimension_numbers = #tpu.dot_dimension_numbers<[1], [0], [0], [1], [0, 0, 1, 1], [], []>} : vector<8x8xbf16>, vector<8x8xbf16>, vector<8x8xf32> -> vector<8x8xf32>
    %119 = vector.extract_strided_slice %98 {offsets = [0, 8], sizes = [8, 8], strides = [1, 1]} : vector<8x32xf32> to vector<8x8xf32>
    %120 = arith.truncf %119 : vector<8x8xf32> to vector<8x8xbf16>
    %121 = vector.extract_strided_slice %99 {offsets = [0, 8], sizes = [8, 8], strides = [1, 1]} : vector<8x32xf32> to vector<8x8xf32>
    %122 = arith.truncf %121 : vector<8x8xf32> to vector<8x8xbf16>
    %cst_36 = arith.constant dense<0.000000e+00> : vector<8x8xf32>
    %123 = tpu.matmul %120, %122, %cst_36 {dimension_numbers = #tpu.dot_dimension_numbers<[1], [1], [0], [0], [0, 0, 1, 0], [], []>} : vector<8x8xbf16>, vector<8x8xbf16>, vector<8x8xf32> -> vector<8x8xf32>
    %cst_37 = arith.constant dense<0xFF800000> : vector<8xf32>
    %124 = vector.multi_reduction <maximumf>, %123, %cst_37 [1] : vector<8x8xf32> to vector<8xf32>
    %125 = vector.shape_cast %124 : vector<8xf32> to vector<8x1xf32>
    %126 = vector.broadcast %125 : vector<8x1xf32> to vector<8x8xf32>
    %127 = arith.subf %123, %126 : vector<8x8xf32>
    %128 = math.exp %127 : vector<8x8xf32>
    %cst_38 = arith.constant dense<0.000000e+00> : vector<8xf32>
    %129 = vector.multi_reduction <add>, %128, %cst_38 [1] : vector<8x8xf32> to vector<8xf32>
    %130 = vector.shape_cast %129 : vector<8xf32> to vector<8x1xf32>
    %131 = vector.broadcast %130 : vector<8x1xf32> to vector<8x8xf32>
    %132 = arith.divf %128, %131 : vector<8x8xf32>
    %133 = arith.truncf %132 : vector<8x8xf32> to vector<8x8xbf16>
    %134 = vector.extract_strided_slice %100 {offsets = [0, 8], sizes = [8, 8], strides = [1, 1]} : vector<8x32xf32> to vector<8x8xf32>
    %135 = arith.truncf %134 : vector<8x8xf32> to vector<8x8xbf16>
    %cst_39 = arith.constant dense<0.000000e+00> : vector<8x8xf32>
    %136 = tpu.matmul %133, %135, %cst_39 {dimension_numbers = #tpu.dot_dimension_numbers<[1], [0], [0], [1], [0, 0, 1, 1], [], []>} : vector<8x8xbf16>, vector<8x8xbf16>, vector<8x8xf32> -> vector<8x8xf32>
    %137 = vector.extract_strided_slice %98 {offsets = [0, 16], sizes = [8, 8], strides = [1, 1]} : vector<8x32xf32> to vector<8x8xf32>
    %138 = arith.truncf %137 : vector<8x8xf32> to vector<8x8xbf16>
    %139 = vector.extract_strided_slice %99 {offsets = [0, 16], sizes = [8, 8], strides = [1, 1]} : vector<8x32xf32> to vector<8x8xf32>
    %140 = arith.truncf %139 : vector<8x8xf32> to vector<8x8xbf16>
    %cst_40 = arith.constant dense<0.000000e+00> : vector<8x8xf32>
    %141 = tpu.matmul %138, %140, %cst_40 {dimension_numbers = #tpu.dot_dimension_numbers<[1], [1], [0], [0], [0, 0, 1, 0], [], []>} : vector<8x8xbf16>, vector<8x8xbf16>, vector<8x8xf32> -> vector<8x8xf32>
    %cst_41 = arith.constant dense<0xFF800000> : vector<8xf32>
    %142 = vector.multi_reduction <maximumf>, %141, %cst_41 [1] : vector<8x8xf32> to vector<8xf32>
    %143 = vector.shape_cast %142 : vector<8xf32> to vector<8x1xf32>
    %144 = vector.broadcast %143 : vector<8x1xf32> to vector<8x8xf32>
    %145 = arith.subf %141, %144 : vector<8x8xf32>
    %146 = math.exp %145 : vector<8x8xf32>
    %cst_42 = arith.constant dense<0.000000e+00> : vector<8xf32>
    %147 = vector.multi_reduction <add>, %146, %cst_42 [1] : vector<8x8xf32> to vector<8xf32>
    %148 = vector.shape_cast %147 : vector<8xf32> to vector<8x1xf32>
    %149 = vector.broadcast %148 : vector<8x1xf32> to vector<8x8xf32>
    %150 = arith.divf %146, %149 : vector<8x8xf32>
    %151 = arith.truncf %150 : vector<8x8xf32> to vector<8x8xbf16>
    %152 = vector.extract_strided_slice %100 {offsets = [0, 16], sizes = [8, 8], strides = [1, 1]} : vector<8x32xf32> to vector<8x8xf32>
    %153 = arith.truncf %152 : vector<8x8xf32> to vector<8x8xbf16>
    %cst_43 = arith.constant dense<0.000000e+00> : vector<8x8xf32>
    %154 = tpu.matmul %151, %153, %cst_43 {dimension_numbers = #tpu.dot_dimension_numbers<[1], [0], [0], [1], [0, 0, 1, 1], [], []>} : vector<8x8xbf16>, vector<8x8xbf16>, vector<8x8xf32> -> vector<8x8xf32>
    %155 = vector.extract_strided_slice %98 {offsets = [0, 24], sizes = [8, 8], strides = [1, 1]} : vector<8x32xf32> to vector<8x8xf32>
    %156 = arith.truncf %155 : vector<8x8xf32> to vector<8x8xbf16>
    %157 = vector.extract_strided_slice %99 {offsets = [0, 24], sizes = [8, 8], strides = [1, 1]} : vector<8x32xf32> to vector<8x8xf32>
    %158 = arith.truncf %157 : vector<8x8xf32> to vector<8x8xbf16>
    %cst_44 = arith.constant dense<0.000000e+00> : vector<8x8xf32>
    %159 = tpu.matmul %156, %158, %cst_44 {dimension_numbers = #tpu.dot_dimension_numbers<[1], [1], [0], [0], [0, 0, 1, 0], [], []>} : vector<8x8xbf16>, vector<8x8xbf16>, vector<8x8xf32> -> vector<8x8xf32>
    %cst_45 = arith.constant dense<0xFF800000> : vector<8xf32>
    %160 = vector.multi_reduction <maximumf>, %159, %cst_45 [1] : vector<8x8xf32> to vector<8xf32>
    %161 = vector.shape_cast %160 : vector<8xf32> to vector<8x1xf32>
    %162 = vector.broadcast %161 : vector<8x1xf32> to vector<8x8xf32>
    %163 = arith.subf %159, %162 : vector<8x8xf32>
    %164 = math.exp %163 : vector<8x8xf32>
    %cst_46 = arith.constant dense<0.000000e+00> : vector<8xf32>
    %165 = vector.multi_reduction <add>, %164, %cst_46 [1] : vector<8x8xf32> to vector<8xf32>
    %166 = vector.shape_cast %165 : vector<8xf32> to vector<8x1xf32>
    %167 = vector.broadcast %166 : vector<8x1xf32> to vector<8x8xf32>
    %168 = arith.divf %164, %167 : vector<8x8xf32>
    %169 = arith.truncf %168 : vector<8x8xf32> to vector<8x8xbf16>
    %170 = vector.extract_strided_slice %100 {offsets = [0, 24], sizes = [8, 8], strides = [1, 1]} : vector<8x32xf32> to vector<8x8xf32>
    %171 = arith.truncf %170 : vector<8x8xf32> to vector<8x8xbf16>
    %cst_47 = arith.constant dense<0.000000e+00> : vector<8x8xf32>
    %172 = tpu.matmul %169, %171, %cst_47 {dimension_numbers = #tpu.dot_dimension_numbers<[1], [0], [0], [1], [0, 0, 1, 1], [], []>} : vector<8x8xbf16>, vector<8x8xbf16>, vector<8x8xf32> -> vector<8x8xf32>
    %173 = tpu.concatenate %118, %136, %154, %172 in 1 : vector<8x8xf32>, vector<8x8xf32>, vector<8x8xf32>, vector<8x8xf32> -> vector<8x32xf32>
    %174 = tpu.concatenate %97, %173 in 0 : vector<8x32xf32>, vector<8x32xf32> -> vector<16x32xf32>
    %c0_48 = arith.constant 0 : index
    %c0_49 = arith.constant 0 : index
    %175 = vector.load %arg8[%c0_48, %c0_49] : memref<32x32xbf16, #tpu.memory_space<vmem>>, vector<32x32xbf16>
    %176 = arith.truncf %174 : vector<16x32xf32> to vector<16x32xbf16>
    %cst_50 = arith.constant dense<0.000000e+00> : vector<16x32xf32>
    %177 = tpu.matmul %176, %175, %cst_50 {dimension_numbers = #tpu.dot_dimension_numbers<[1], [0], [0], [1], [0, 0, 1, 1], [], []>} : vector<16x32xbf16>, vector<32x32xbf16>, vector<16x32xf32> -> vector<16x32xf32>
    %c0_51 = arith.constant 0 : index
    %c0_52 = arith.constant 0 : index
    %178 = vector.load %arg9[%c0_51, %c0_52] : memref<1x32xf32, #tpu.memory_space<vmem>>, vector<1x32xf32>
    %179 = vector.broadcast %178 : vector<1x32xf32> to vector<16x32xf32>
    %180 = arith.addf %177, %179 : vector<16x32xf32>
    %181 = arith.addf %4, %180 : vector<16x32xf32>
    %c0_53 = arith.constant 0 : index
    %c0_54 = arith.constant 0 : index
    %182 = vector.load %arg10[%c0_53, %c0_54] : memref<1x32xf32, #tpu.memory_space<vmem>>, vector<1x32xf32>
    %c0_55 = arith.constant 0 : index
    %c0_56 = arith.constant 0 : index
    %183 = vector.load %arg11[%c0_55, %c0_56] : memref<1x32xf32, #tpu.memory_space<vmem>>, vector<1x32xf32>
    %cst_57 = arith.constant dense<0.000000e+00> : vector<16xf32>
    %184 = vector.multi_reduction <add>, %181, %cst_57 [1] : vector<16x32xf32> to vector<16xf32>
    %185 = vector.shape_cast %184 : vector<16xf32> to vector<16x1xf32>
    %cst_58 = arith.constant 3.200000e+01 : f32
    %186 = vector.broadcast %cst_58 : f32 to vector<16x1xf32>
    %187 = arith.divf %185, %186 : vector<16x1xf32>
    %188 = vector.broadcast %187 : vector<16x1xf32> to vector<16x32xf32>
    %189 = arith.subf %181, %188 : vector<16x32xf32>
    %190 = arith.mulf %189, %189 : vector<16x32xf32>
    %cst_59 = arith.constant dense<0.000000e+00> : vector<16xf32>
    %191 = vector.multi_reduction <add>, %190, %cst_59 [1] : vector<16x32xf32> to vector<16xf32>
    %192 = vector.shape_cast %191 : vector<16xf32> to vector<16x1xf32>
    %cst_60 = arith.constant 3.200000e+01 : f32
    %193 = vector.broadcast %cst_60 : f32 to vector<16x1xf32>
    %194 = arith.divf %192, %193 : vector<16x1xf32>
    %195 = vector.broadcast %187 : vector<16x1xf32> to vector<16x32xf32>
    %196 = arith.subf %181, %195 : vector<16x32xf32>
    %cst_61 = arith.constant 9.99999974E-6 : f32
    %197 = vector.broadcast %cst_61 : f32 to vector<16x1xf32>
    %198 = arith.addf %194, %197 : vector<16x1xf32>
    %199 = math.rsqrt %198 : vector<16x1xf32>
    %200 = vector.broadcast %199 : vector<16x1xf32> to vector<16x32xf32>
    %201 = arith.mulf %196, %200 : vector<16x32xf32>
    %202 = vector.broadcast %182 : vector<1x32xf32> to vector<16x32xf32>
    %203 = arith.mulf %201, %202 : vector<16x32xf32>
    %204 = vector.broadcast %183 : vector<1x32xf32> to vector<16x32xf32>
    %205 = arith.addf %203, %204 : vector<16x32xf32>
    %c0_62 = arith.constant 0 : index
    %c0_63 = arith.constant 0 : index
    %206 = vector.load %arg12[%c0_62, %c0_63] : memref<32x96xbf16, #tpu.memory_space<vmem>>, vector<32x96xbf16>
    %207 = arith.addf %205, %3 : vector<16x32xf32>
    %208 = vector.extract_strided_slice %206 {offsets = [0, 0], sizes = [32, 32], strides = [1, 1]} : vector<32x96xbf16> to vector<32x32xbf16>
    %209 = arith.truncf %207 : vector<16x32xf32> to vector<16x32xbf16>
    %cst_64 = arith.constant dense<0.000000e+00> : vector<16x32xf32>
    %210 = tpu.matmul %209, %208, %cst_64 {dimension_numbers = #tpu.dot_dimension_numbers<[1], [0], [0], [1], [0, 0, 1, 1], [], []>} : vector<16x32xbf16>, vector<32x32xbf16>, vector<16x32xf32> -> vector<16x32xf32>
    %c0_65 = arith.constant 0 : index
    %c0_66 = arith.constant 0 : index
    %211 = vector.load %arg13[%c0_65, %c0_66] : memref<1x96xf32, #tpu.memory_space<vmem>>, vector<1x32xf32>
    %212 = vector.broadcast %211 : vector<1x32xf32> to vector<16x32xf32>
    %213 = arith.addf %210, %212 : vector<16x32xf32>
    %214 = arith.addf %5, %7 : vector<32x32xf32>
    %215 = vector.extract_strided_slice %206 {offsets = [0, 32], sizes = [32, 32], strides = [1, 1]} : vector<32x96xbf16> to vector<32x32xbf16>
    %216 = arith.truncf %214 : vector<32x32xf32> to vector<32x32xbf16>
    %cst_67 = arith.constant dense<0.000000e+00> : vector<32x32xf32>
    %217 = tpu.matmul %216, %215, %cst_67 {dimension_numbers = #tpu.dot_dimension_numbers<[1], [0], [0], [1], [0, 0, 1, 1], [], []>} : vector<32x32xbf16>, vector<32x32xbf16>, vector<32x32xf32> -> vector<32x32xf32>
    %c0_68 = arith.constant 0 : index
    %c32 = arith.constant 32 : index
    %218 = vector.load %arg13[%c0_68, %c32] : memref<1x96xf32, #tpu.memory_space<vmem>>, vector<1x32xf32>
    %219 = vector.broadcast %218 : vector<1x32xf32> to vector<32x32xf32>
    %220 = arith.addf %217, %219 : vector<32x32xf32>
    %221 = vector.extract_strided_slice %206 {offsets = [0, 64], sizes = [32, 32], strides = [1, 1]} : vector<32x96xbf16> to vector<32x32xbf16>
    %222 = arith.truncf %5 : vector<32x32xf32> to vector<32x32xbf16>
    %cst_69 = arith.constant dense<0.000000e+00> : vector<32x32xf32>
    %223 = tpu.matmul %222, %221, %cst_69 {dimension_numbers = #tpu.dot_dimension_numbers<[1], [0], [0], [1], [0, 0, 1, 1], [], []>} : vector<32x32xbf16>, vector<32x32xbf16>, vector<32x32xf32> -> vector<32x32xf32>
    %c0_70 = arith.constant 0 : index
    %c64_71 = arith.constant 64 : index
    %224 = vector.load %arg13[%c0_70, %c64_71] : memref<1x96xf32, #tpu.memory_space<vmem>>, vector<1x32xf32>
    %225 = vector.broadcast %224 : vector<1x32xf32> to vector<32x32xf32>
    %226 = arith.addf %223, %225 : vector<32x32xf32>
    %227 = vector.extract_strided_slice %213 {offsets = [0, 0], sizes = [8, 32], strides = [1, 1]} : vector<16x32xf32> to vector<8x32xf32>
    %228 = vector.extract_strided_slice %220 {offsets = [0, 0], sizes = [16, 32], strides = [1, 1]} : vector<32x32xf32> to vector<16x32xf32>
    %229 = vector.extract_strided_slice %226 {offsets = [0, 0], sizes = [16, 32], strides = [1, 1]} : vector<32x32xf32> to vector<16x32xf32>
    %c0_72 = arith.constant 0 : index
    %c0_73 = arith.constant 0 : index
    %c0_74 = arith.constant 0 : index
    %230 = vector.load %arg5[%c0_72, %c0_73, %c0_74] : memref<2x1x16xf32, #tpu.memory_space<vmem>>, vector<1x1x16xf32>
    %231 = vector.shape_cast %230 : vector<1x1x16xf32> to vector<1x16xf32>
    %232 = vector.shape_cast %231 : vector<1x16xf32> to vector<1x16xf32>
    %233 = vector.broadcast %232 : vector<1x16xf32> to vector<8x16xf32>
    %234 = vector.extract_strided_slice %227 {offsets = [0, 0], sizes = [8, 8], strides = [1, 1]} : vector<8x32xf32> to vector<8x8xf32>
    %235 = arith.truncf %234 : vector<8x8xf32> to vector<8x8xbf16>
    %236 = vector.extract_strided_slice %228 {offsets = [0, 0], sizes = [16, 8], strides = [1, 1]} : vector<16x32xf32> to vector<16x8xf32>
    %237 = arith.truncf %236 : vector<16x8xf32> to vector<16x8xbf16>
    %cst_75 = arith.constant dense<0.000000e+00> : vector<8x16xf32>
    %238 = tpu.matmul %235, %237, %cst_75 {dimension_numbers = #tpu.dot_dimension_numbers<[1], [1], [0], [0], [0, 0, 1, 0], [], []>} : vector<8x8xbf16>, vector<16x8xbf16>, vector<8x16xf32> -> vector<8x16xf32>
    %239 = arith.addf %238, %233 : vector<8x16xf32>
    %cst_76 = arith.constant dense<0xFF800000> : vector<8xf32>
    %240 = vector.multi_reduction <maximumf>, %239, %cst_76 [1] : vector<8x16xf32> to vector<8xf32>
    %241 = vector.shape_cast %240 : vector<8xf32> to vector<8x1xf32>
    %242 = vector.broadcast %241 : vector<8x1xf32> to vector<8x16xf32>
    %243 = arith.subf %239, %242 : vector<8x16xf32>
    %244 = math.exp %243 : vector<8x16xf32>
    %cst_77 = arith.constant dense<0.000000e+00> : vector<8xf32>
    %245 = vector.multi_reduction <add>, %244, %cst_77 [1] : vector<8x16xf32> to vector<8xf32>
    %246 = vector.shape_cast %245 : vector<8xf32> to vector<8x1xf32>
    %247 = vector.broadcast %246 : vector<8x1xf32> to vector<8x16xf32>
    %248 = arith.divf %244, %247 : vector<8x16xf32>
    %249 = arith.truncf %248 : vector<8x16xf32> to vector<8x16xbf16>
    %250 = vector.extract_strided_slice %229 {offsets = [0, 0], sizes = [16, 8], strides = [1, 1]} : vector<16x32xf32> to vector<16x8xf32>
    %251 = arith.truncf %250 : vector<16x8xf32> to vector<16x8xbf16>
    %cst_78 = arith.constant dense<0.000000e+00> : vector<8x8xf32>
    %252 = tpu.matmul %249, %251, %cst_78 {dimension_numbers = #tpu.dot_dimension_numbers<[1], [0], [0], [1], [0, 0, 1, 1], [], []>} : vector<8x16xbf16>, vector<16x8xbf16>, vector<8x8xf32> -> vector<8x8xf32>
    %253 = vector.extract_strided_slice %227 {offsets = [0, 8], sizes = [8, 8], strides = [1, 1]} : vector<8x32xf32> to vector<8x8xf32>
    %254 = arith.truncf %253 : vector<8x8xf32> to vector<8x8xbf16>
    %255 = vector.extract_strided_slice %228 {offsets = [0, 8], sizes = [16, 8], strides = [1, 1]} : vector<16x32xf32> to vector<16x8xf32>
    %256 = arith.truncf %255 : vector<16x8xf32> to vector<16x8xbf16>
    %cst_79 = arith.constant dense<0.000000e+00> : vector<8x16xf32>
    %257 = tpu.matmul %254, %256, %cst_79 {dimension_numbers = #tpu.dot_dimension_numbers<[1], [1], [0], [0], [0, 0, 1, 0], [], []>} : vector<8x8xbf16>, vector<16x8xbf16>, vector<8x16xf32> -> vector<8x16xf32>
    %258 = arith.addf %257, %233 : vector<8x16xf32>
    %cst_80 = arith.constant dense<0xFF800000> : vector<8xf32>
    %259 = vector.multi_reduction <maximumf>, %258, %cst_80 [1] : vector<8x16xf32> to vector<8xf32>
    %260 = vector.shape_cast %259 : vector<8xf32> to vector<8x1xf32>
    %261 = vector.broadcast %260 : vector<8x1xf32> to vector<8x16xf32>
    %262 = arith.subf %258, %261 : vector<8x16xf32>
    %263 = math.exp %262 : vector<8x16xf32>
    %cst_81 = arith.constant dense<0.000000e+00> : vector<8xf32>
    %264 = vector.multi_reduction <add>, %263, %cst_81 [1] : vector<8x16xf32> to vector<8xf32>
    %265 = vector.shape_cast %264 : vector<8xf32> to vector<8x1xf32>
    %266 = vector.broadcast %265 : vector<8x1xf32> to vector<8x16xf32>
    %267 = arith.divf %263, %266 : vector<8x16xf32>
    %268 = arith.truncf %267 : vector<8x16xf32> to vector<8x16xbf16>
    %269 = vector.extract_strided_slice %229 {offsets = [0, 8], sizes = [16, 8], strides = [1, 1]} : vector<16x32xf32> to vector<16x8xf32>
    %270 = arith.truncf %269 : vector<16x8xf32> to vector<16x8xbf16>
    %cst_82 = arith.constant dense<0.000000e+00> : vector<8x8xf32>
    %271 = tpu.matmul %268, %270, %cst_82 {dimension_numbers = #tpu.dot_dimension_numbers<[1], [0], [0], [1], [0, 0, 1, 1], [], []>} : vector<8x16xbf16>, vector<16x8xbf16>, vector<8x8xf32> -> vector<8x8xf32>
    %272 = vector.extract_strided_slice %227 {offsets = [0, 16], sizes = [8, 8], strides = [1, 1]} : vector<8x32xf32> to vector<8x8xf32>
    %273 = arith.truncf %272 : vector<8x8xf32> to vector<8x8xbf16>
    %274 = vector.extract_strided_slice %228 {offsets = [0, 16], sizes = [16, 8], strides = [1, 1]} : vector<16x32xf32> to vector<16x8xf32>
    %275 = arith.truncf %274 : vector<16x8xf32> to vector<16x8xbf16>
    %cst_83 = arith.constant dense<0.000000e+00> : vector<8x16xf32>
    %276 = tpu.matmul %273, %275, %cst_83 {dimension_numbers = #tpu.dot_dimension_numbers<[1], [1], [0], [0], [0, 0, 1, 0], [], []>} : vector<8x8xbf16>, vector<16x8xbf16>, vector<8x16xf32> -> vector<8x16xf32>
    %277 = arith.addf %276, %233 : vector<8x16xf32>
    %cst_84 = arith.constant dense<0xFF800000> : vector<8xf32>
    %278 = vector.multi_reduction <maximumf>, %277, %cst_84 [1] : vector<8x16xf32> to vector<8xf32>
    %279 = vector.shape_cast %278 : vector<8xf32> to vector<8x1xf32>
    %280 = vector.broadcast %279 : vector<8x1xf32> to vector<8x16xf32>
    %281 = arith.subf %277, %280 : vector<8x16xf32>
    %282 = math.exp %281 : vector<8x16xf32>
    %cst_85 = arith.constant dense<0.000000e+00> : vector<8xf32>
    %283 = vector.multi_reduction <add>, %282, %cst_85 [1] : vector<8x16xf32> to vector<8xf32>
    %284 = vector.shape_cast %283 : vector<8xf32> to vector<8x1xf32>
    %285 = vector.broadcast %284 : vector<8x1xf32> to vector<8x16xf32>
    %286 = arith.divf %282, %285 : vector<8x16xf32>
    %287 = arith.truncf %286 : vector<8x16xf32> to vector<8x16xbf16>
    %288 = vector.extract_strided_slice %229 {offsets = [0, 16], sizes = [16, 8], strides = [1, 1]} : vector<16x32xf32> to vector<16x8xf32>
    %289 = arith.truncf %288 : vector<16x8xf32> to vector<16x8xbf16>
    %cst_86 = arith.constant dense<0.000000e+00> : vector<8x8xf32>
    %290 = tpu.matmul %287, %289, %cst_86 {dimension_numbers = #tpu.dot_dimension_numbers<[1], [0], [0], [1], [0, 0, 1, 1], [], []>} : vector<8x16xbf16>, vector<16x8xbf16>, vector<8x8xf32> -> vector<8x8xf32>
    %291 = vector.extract_strided_slice %227 {offsets = [0, 24], sizes = [8, 8], strides = [1, 1]} : vector<8x32xf32> to vector<8x8xf32>
    %292 = arith.truncf %291 : vector<8x8xf32> to vector<8x8xbf16>
    %293 = vector.extract_strided_slice %228 {offsets = [0, 24], sizes = [16, 8], strides = [1, 1]} : vector<16x32xf32> to vector<16x8xf32>
    %294 = arith.truncf %293 : vector<16x8xf32> to vector<16x8xbf16>
    %cst_87 = arith.constant dense<0.000000e+00> : vector<8x16xf32>
    %295 = tpu.matmul %292, %294, %cst_87 {dimension_numbers = #tpu.dot_dimension_numbers<[1], [1], [0], [0], [0, 0, 1, 0], [], []>} : vector<8x8xbf16>, vector<16x8xbf16>, vector<8x16xf32> -> vector<8x16xf32>
    %296 = arith.addf %295, %233 : vector<8x16xf32>
    %cst_88 = arith.constant dense<0xFF800000> : vector<8xf32>
    %297 = vector.multi_reduction <maximumf>, %296, %cst_88 [1] : vector<8x16xf32> to vector<8xf32>
    %298 = vector.shape_cast %297 : vector<8xf32> to vector<8x1xf32>
    %299 = vector.broadcast %298 : vector<8x1xf32> to vector<8x16xf32>
    %300 = arith.subf %296, %299 : vector<8x16xf32>
    %301 = math.exp %300 : vector<8x16xf32>
    %cst_89 = arith.constant dense<0.000000e+00> : vector<8xf32>
    %302 = vector.multi_reduction <add>, %301, %cst_89 [1] : vector<8x16xf32> to vector<8xf32>
    %303 = vector.shape_cast %302 : vector<8xf32> to vector<8x1xf32>
    %304 = vector.broadcast %303 : vector<8x1xf32> to vector<8x16xf32>
    %305 = arith.divf %301, %304 : vector<8x16xf32>
    %306 = arith.truncf %305 : vector<8x16xf32> to vector<8x16xbf16>
    %307 = vector.extract_strided_slice %229 {offsets = [0, 24], sizes = [16, 8], strides = [1, 1]} : vector<16x32xf32> to vector<16x8xf32>
    %308 = arith.truncf %307 : vector<16x8xf32> to vector<16x8xbf16>
    %cst_90 = arith.constant dense<0.000000e+00> : vector<8x8xf32>
    %309 = tpu.matmul %306, %308, %cst_90 {dimension_numbers = #tpu.dot_dimension_numbers<[1], [0], [0], [1], [0, 0, 1, 1], [], []>} : vector<8x16xbf16>, vector<16x8xbf16>, vector<8x8xf32> -> vector<8x8xf32>
    %310 = tpu.concatenate %252, %271, %290, %309 in 1 : vector<8x8xf32>, vector<8x8xf32>, vector<8x8xf32>, vector<8x8xf32> -> vector<8x32xf32>
    %311 = vector.extract_strided_slice %213 {offsets = [8, 0], sizes = [8, 32], strides = [1, 1]} : vector<16x32xf32> to vector<8x32xf32>
    %312 = vector.extract_strided_slice %220 {offsets = [16, 0], sizes = [16, 32], strides = [1, 1]} : vector<32x32xf32> to vector<16x32xf32>
    %313 = vector.extract_strided_slice %226 {offsets = [16, 0], sizes = [16, 32], strides = [1, 1]} : vector<32x32xf32> to vector<16x32xf32>
    %c1 = arith.constant 1 : index
    %c0_91 = arith.constant 0 : index
    %c0_92 = arith.constant 0 : index
    %314 = vector.load %arg5[%c1, %c0_91, %c0_92] : memref<2x1x16xf32, #tpu.memory_space<vmem>>, vector<1x1x16xf32>
    %315 = vector.shape_cast %314 : vector<1x1x16xf32> to vector<1x16xf32>
    %316 = vector.shape_cast %315 : vector<1x16xf32> to vector<1x16xf32>
    %317 = vector.broadcast %316 : vector<1x16xf32> to vector<8x16xf32>
    %318 = vector.extract_strided_slice %311 {offsets = [0, 0], sizes = [8, 8], strides = [1, 1]} : vector<8x32xf32> to vector<8x8xf32>
    %319 = arith.truncf %318 : vector<8x8xf32> to vector<8x8xbf16>
    %320 = vector.extract_strided_slice %312 {offsets = [0, 0], sizes = [16, 8], strides = [1, 1]} : vector<16x32xf32> to vector<16x8xf32>
    %321 = arith.truncf %320 : vector<16x8xf32> to vector<16x8xbf16>
    %cst_93 = arith.constant dense<0.000000e+00> : vector<8x16xf32>
    %322 = tpu.matmul %319, %321, %cst_93 {dimension_numbers = #tpu.dot_dimension_numbers<[1], [1], [0], [0], [0, 0, 1, 0], [], []>} : vector<8x8xbf16>, vector<16x8xbf16>, vector<8x16xf32> -> vector<8x16xf32>
    %323 = arith.addf %322, %317 : vector<8x16xf32>
    %cst_94 = arith.constant dense<0xFF800000> : vector<8xf32>
    %324 = vector.multi_reduction <maximumf>, %323, %cst_94 [1] : vector<8x16xf32> to vector<8xf32>
    %325 = vector.shape_cast %324 : vector<8xf32> to vector<8x1xf32>
    %326 = vector.broadcast %325 : vector<8x1xf32> to vector<8x16xf32>
    %327 = arith.subf %323, %326 : vector<8x16xf32>
    %328 = math.exp %327 : vector<8x16xf32>
    %cst_95 = arith.constant dense<0.000000e+00> : vector<8xf32>
    %329 = vector.multi_reduction <add>, %328, %cst_95 [1] : vector<8x16xf32> to vector<8xf32>
    %330 = vector.shape_cast %329 : vector<8xf32> to vector<8x1xf32>
    %331 = vector.broadcast %330 : vector<8x1xf32> to vector<8x16xf32>
    %332 = arith.divf %328, %331 : vector<8x16xf32>
    %333 = arith.truncf %332 : vector<8x16xf32> to vector<8x16xbf16>
    %334 = vector.extract_strided_slice %313 {offsets = [0, 0], sizes = [16, 8], strides = [1, 1]} : vector<16x32xf32> to vector<16x8xf32>
    %335 = arith.truncf %334 : vector<16x8xf32> to vector<16x8xbf16>
    %cst_96 = arith.constant dense<0.000000e+00> : vector<8x8xf32>
    %336 = tpu.matmul %333, %335, %cst_96 {dimension_numbers = #tpu.dot_dimension_numbers<[1], [0], [0], [1], [0, 0, 1, 1], [], []>} : vector<8x16xbf16>, vector<16x8xbf16>, vector<8x8xf32> -> vector<8x8xf32>
    %337 = vector.extract_strided_slice %311 {offsets = [0, 8], sizes = [8, 8], strides = [1, 1]} : vector<8x32xf32> to vector<8x8xf32>
    %338 = arith.truncf %337 : vector<8x8xf32> to vector<8x8xbf16>
    %339 = vector.extract_strided_slice %312 {offsets = [0, 8], sizes = [16, 8], strides = [1, 1]} : vector<16x32xf32> to vector<16x8xf32>
    %340 = arith.truncf %339 : vector<16x8xf32> to vector<16x8xbf16>
    %cst_97 = arith.constant dense<0.000000e+00> : vector<8x16xf32>
    %341 = tpu.matmul %338, %340, %cst_97 {dimension_numbers = #tpu.dot_dimension_numbers<[1], [1], [0], [0], [0, 0, 1, 0], [], []>} : vector<8x8xbf16>, vector<16x8xbf16>, vector<8x16xf32> -> vector<8x16xf32>
    %342 = arith.addf %341, %317 : vector<8x16xf32>
    %cst_98 = arith.constant dense<0xFF800000> : vector<8xf32>
    %343 = vector.multi_reduction <maximumf>, %342, %cst_98 [1] : vector<8x16xf32> to vector<8xf32>
    %344 = vector.shape_cast %343 : vector<8xf32> to vector<8x1xf32>
    %345 = vector.broadcast %344 : vector<8x1xf32> to vector<8x16xf32>
    %346 = arith.subf %342, %345 : vector<8x16xf32>
    %347 = math.exp %346 : vector<8x16xf32>
    %cst_99 = arith.constant dense<0.000000e+00> : vector<8xf32>
    %348 = vector.multi_reduction <add>, %347, %cst_99 [1] : vector<8x16xf32> to vector<8xf32>
    %349 = vector.shape_cast %348 : vector<8xf32> to vector<8x1xf32>
    %350 = vector.broadcast %349 : vector<8x1xf32> to vector<8x16xf32>
    %351 = arith.divf %347, %350 : vector<8x16xf32>
    %352 = arith.truncf %351 : vector<8x16xf32> to vector<8x16xbf16>
    %353 = vector.extract_strided_slice %313 {offsets = [0, 8], sizes = [16, 8], strides = [1, 1]} : vector<16x32xf32> to vector<16x8xf32>
    %354 = arith.truncf %353 : vector<16x8xf32> to vector<16x8xbf16>
    %cst_100 = arith.constant dense<0.000000e+00> : vector<8x8xf32>
    %355 = tpu.matmul %352, %354, %cst_100 {dimension_numbers = #tpu.dot_dimension_numbers<[1], [0], [0], [1], [0, 0, 1, 1], [], []>} : vector<8x16xbf16>, vector<16x8xbf16>, vector<8x8xf32> -> vector<8x8xf32>
    %356 = vector.extract_strided_slice %311 {offsets = [0, 16], sizes = [8, 8], strides = [1, 1]} : vector<8x32xf32> to vector<8x8xf32>
    %357 = arith.truncf %356 : vector<8x8xf32> to vector<8x8xbf16>
    %358 = vector.extract_strided_slice %312 {offsets = [0, 16], sizes = [16, 8], strides = [1, 1]} : vector<16x32xf32> to vector<16x8xf32>
    %359 = arith.truncf %358 : vector<16x8xf32> to vector<16x8xbf16>
    %cst_101 = arith.constant dense<0.000000e+00> : vector<8x16xf32>
    %360 = tpu.matmul %357, %359, %cst_101 {dimension_numbers = #tpu.dot_dimension_numbers<[1], [1], [0], [0], [0, 0, 1, 0], [], []>} : vector<8x8xbf16>, vector<16x8xbf16>, vector<8x16xf32> -> vector<8x16xf32>
    %361 = arith.addf %360, %317 : vector<8x16xf32>
    %cst_102 = arith.constant dense<0xFF800000> : vector<8xf32>
    %362 = vector.multi_reduction <maximumf>, %361, %cst_102 [1] : vector<8x16xf32> to vector<8xf32>
    %363 = vector.shape_cast %362 : vector<8xf32> to vector<8x1xf32>
    %364 = vector.broadcast %363 : vector<8x1xf32> to vector<8x16xf32>
    %365 = arith.subf %361, %364 : vector<8x16xf32>
    %366 = math.exp %365 : vector<8x16xf32>
    %cst_103 = arith.constant dense<0.000000e+00> : vector<8xf32>
    %367 = vector.multi_reduction <add>, %366, %cst_103 [1] : vector<8x16xf32> to vector<8xf32>
    %368 = vector.shape_cast %367 : vector<8xf32> to vector<8x1xf32>
    %369 = vector.broadcast %368 : vector<8x1xf32> to vector<8x16xf32>
    %370 = arith.divf %366, %369 : vector<8x16xf32>
    %371 = arith.truncf %370 : vector<8x16xf32> to vector<8x16xbf16>
    %372 = vector.extract_strided_slice %313 {offsets = [0, 16], sizes = [16, 8], strides = [1, 1]} : vector<16x32xf32> to vector<16x8xf32>
    %373 = arith.truncf %372 : vector<16x8xf32> to vector<16x8xbf16>
    %cst_104 = arith.constant dense<0.000000e+00> : vector<8x8xf32>
    %374 = tpu.matmul %371, %373, %cst_104 {dimension_numbers = #tpu.dot_dimension_numbers<[1], [0], [0], [1], [0, 0, 1, 1], [], []>} : vector<8x16xbf16>, vector<16x8xbf16>, vector<8x8xf32> -> vector<8x8xf32>
    %375 = vector.extract_strided_slice %311 {offsets = [0, 24], sizes = [8, 8], strides = [1, 1]} : vector<8x32xf32> to vector<8x8xf32>
    %376 = arith.truncf %375 : vector<8x8xf32> to vector<8x8xbf16>
    %377 = vector.extract_strided_slice %312 {offsets = [0, 24], sizes = [16, 8], strides = [1, 1]} : vector<16x32xf32> to vector<16x8xf32>
    %378 = arith.truncf %377 : vector<16x8xf32> to vector<16x8xbf16>
    %cst_105 = arith.constant dense<0.000000e+00> : vector<8x16xf32>
    %379 = tpu.matmul %376, %378, %cst_105 {dimension_numbers = #tpu.dot_dimension_numbers<[1], [1], [0], [0], [0, 0, 1, 0], [], []>} : vector<8x8xbf16>, vector<16x8xbf16>, vector<8x16xf32> -> vector<8x16xf32>
    %380 = arith.addf %379, %317 : vector<8x16xf32>
    %cst_106 = arith.constant dense<0xFF800000> : vector<8xf32>
    %381 = vector.multi_reduction <maximumf>, %380, %cst_106 [1] : vector<8x16xf32> to vector<8xf32>
    %382 = vector.shape_cast %381 : vector<8xf32> to vector<8x1xf32>
    %383 = vector.broadcast %382 : vector<8x1xf32> to vector<8x16xf32>
    %384 = arith.subf %380, %383 : vector<8x16xf32>
    %385 = math.exp %384 : vector<8x16xf32>
    %cst_107 = arith.constant dense<0.000000e+00> : vector<8xf32>
    %386 = vector.multi_reduction <add>, %385, %cst_107 [1] : vector<8x16xf32> to vector<8xf32>
    %387 = vector.shape_cast %386 : vector<8xf32> to vector<8x1xf32>
    %388 = vector.broadcast %387 : vector<8x1xf32> to vector<8x16xf32>
    %389 = arith.divf %385, %388 : vector<8x16xf32>
    %390 = arith.truncf %389 : vector<8x16xf32> to vector<8x16xbf16>
    %391 = vector.extract_strided_slice %313 {offsets = [0, 24], sizes = [16, 8], strides = [1, 1]} : vector<16x32xf32> to vector<16x8xf32>
    %392 = arith.truncf %391 : vector<16x8xf32> to vector<16x8xbf16>
    %cst_108 = arith.constant dense<0.000000e+00> : vector<8x8xf32>
    %393 = tpu.matmul %390, %392, %cst_108 {dimension_numbers = #tpu.dot_dimension_numbers<[1], [0], [0], [1], [0, 0, 1, 1], [], []>} : vector<8x16xbf16>, vector<16x8xbf16>, vector<8x8xf32> -> vector<8x8xf32>
    %394 = tpu.concatenate %336, %355, %374, %393 in 1 : vector<8x8xf32>, vector<8x8xf32>, vector<8x8xf32>, vector<8x8xf32> -> vector<8x32xf32>
    %395 = tpu.concatenate %310, %394 in 0 : vector<8x32xf32>, vector<8x32xf32> -> vector<16x32xf32>
    %c0_109 = arith.constant 0 : index
    %c0_110 = arith.constant 0 : index
    %396 = vector.load %arg14[%c0_109, %c0_110] : memref<32x32xbf16, #tpu.memory_space<vmem>>, vector<32x32xbf16>
    %397 = arith.truncf %395 : vector<16x32xf32> to vector<16x32xbf16>
    %cst_111 = arith.constant dense<0.000000e+00> : vector<16x32xf32>
    %398 = tpu.matmul %397, %396, %cst_111 {dimension_numbers = #tpu.dot_dimension_numbers<[1], [0], [0], [1], [0, 0, 1, 1], [], []>} : vector<16x32xbf16>, vector<32x32xbf16>, vector<16x32xf32> -> vector<16x32xf32>
    %c0_112 = arith.constant 0 : index
    %c0_113 = arith.constant 0 : index
    %399 = vector.load %arg15[%c0_112, %c0_113] : memref<1x32xf32, #tpu.memory_space<vmem>>, vector<1x32xf32>
    %400 = vector.broadcast %399 : vector<1x32xf32> to vector<16x32xf32>
    %401 = arith.addf %398, %400 : vector<16x32xf32>
    %402 = arith.addf %205, %401 : vector<16x32xf32>
    %c0_114 = arith.constant 0 : index
    %c0_115 = arith.constant 0 : index
    %403 = vector.load %arg16[%c0_114, %c0_115] : memref<1x32xf32, #tpu.memory_space<vmem>>, vector<1x32xf32>
    %c0_116 = arith.constant 0 : index
    %c0_117 = arith.constant 0 : index
    %404 = vector.load %arg17[%c0_116, %c0_117] : memref<1x32xf32, #tpu.memory_space<vmem>>, vector<1x32xf32>
    %cst_118 = arith.constant dense<0.000000e+00> : vector<16xf32>
    %405 = vector.multi_reduction <add>, %402, %cst_118 [1] : vector<16x32xf32> to vector<16xf32>
    %406 = vector.shape_cast %405 : vector<16xf32> to vector<16x1xf32>
    %cst_119 = arith.constant 3.200000e+01 : f32
    %407 = vector.broadcast %cst_119 : f32 to vector<16x1xf32>
    %408 = arith.divf %406, %407 : vector<16x1xf32>
    %409 = vector.broadcast %408 : vector<16x1xf32> to vector<16x32xf32>
    %410 = arith.subf %402, %409 : vector<16x32xf32>
    %411 = arith.mulf %410, %410 : vector<16x32xf32>
    %cst_120 = arith.constant dense<0.000000e+00> : vector<16xf32>
    %412 = vector.multi_reduction <add>, %411, %cst_120 [1] : vector<16x32xf32> to vector<16xf32>
    %413 = vector.shape_cast %412 : vector<16xf32> to vector<16x1xf32>
    %cst_121 = arith.constant 3.200000e+01 : f32
    %414 = vector.broadcast %cst_121 : f32 to vector<16x1xf32>
    %415 = arith.divf %413, %414 : vector<16x1xf32>
    %416 = vector.broadcast %408 : vector<16x1xf32> to vector<16x32xf32>
    %417 = arith.subf %402, %416 : vector<16x32xf32>
    %cst_122 = arith.constant 9.99999974E-6 : f32
    %418 = vector.broadcast %cst_122 : f32 to vector<16x1xf32>
    %419 = arith.addf %415, %418 : vector<16x1xf32>
    %420 = math.rsqrt %419 : vector<16x1xf32>
    %421 = vector.broadcast %420 : vector<16x1xf32> to vector<16x32xf32>
    %422 = arith.mulf %417, %421 : vector<16x32xf32>
    %423 = vector.broadcast %403 : vector<1x32xf32> to vector<16x32xf32>
    %424 = arith.mulf %422, %423 : vector<16x32xf32>
    %425 = vector.broadcast %404 : vector<1x32xf32> to vector<16x32xf32>
    %426 = arith.addf %424, %425 : vector<16x32xf32>
    %c0_123 = arith.constant 0 : index
    %c0_124 = arith.constant 0 : index
    %427 = vector.load %arg18[%c0_123, %c0_124] : memref<32x64xbf16, #tpu.memory_space<vmem>>, vector<32x64xbf16>
    %428 = arith.truncf %426 : vector<16x32xf32> to vector<16x32xbf16>
    %cst_125 = arith.constant dense<0.000000e+00> : vector<16x64xf32>
    %429 = tpu.matmul %428, %427, %cst_125 {dimension_numbers = #tpu.dot_dimension_numbers<[1], [0], [0], [1], [0, 0, 1, 1], [], []>} : vector<16x32xbf16>, vector<32x64xbf16>, vector<16x64xf32> -> vector<16x64xf32>
    %c0_126 = arith.constant 0 : index
    %c0_127 = arith.constant 0 : index
    %430 = vector.load %arg19[%c0_126, %c0_127] : memref<1x64xf32, #tpu.memory_space<vmem>>, vector<1x64xf32>
    %431 = vector.broadcast %430 : vector<1x64xf32> to vector<16x64xf32>
    %432 = arith.addf %429, %431 : vector<16x64xf32>
    %cst_128 = arith.constant 0.000000e+00 : f32
    %433 = vector.broadcast %cst_128 : f32 to vector<16x64xf32>
    %434 = arith.maximumf %432, %433 : vector<16x64xf32>
    %c0_129 = arith.constant 0 : index
    %c0_130 = arith.constant 0 : index
    %435 = vector.load %arg20[%c0_129, %c0_130] : memref<64x32xbf16, #tpu.memory_space<vmem>>, vector<64x32xbf16>
    %436 = arith.truncf %434 : vector<16x64xf32> to vector<16x64xbf16>
    %cst_131 = arith.constant dense<0.000000e+00> : vector<16x32xf32>
    %437 = tpu.matmul %436, %435, %cst_131 {dimension_numbers = #tpu.dot_dimension_numbers<[1], [0], [0], [1], [0, 0, 1, 1], [], []>} : vector<16x64xbf16>, vector<64x32xbf16>, vector<16x32xf32> -> vector<16x32xf32>
    %c0_132 = arith.constant 0 : index
    %c0_133 = arith.constant 0 : index
    %438 = vector.load %arg21[%c0_132, %c0_133] : memref<1x32xf32, #tpu.memory_space<vmem>>, vector<1x32xf32>
    %439 = vector.broadcast %438 : vector<1x32xf32> to vector<16x32xf32>
    %440 = arith.addf %437, %439 : vector<16x32xf32>
    %441 = arith.addf %426, %440 : vector<16x32xf32>
    %c0_134 = arith.constant 0 : index
    %c0_135 = arith.constant 0 : index
    %442 = vector.load %arg22[%c0_134, %c0_135] : memref<1x32xf32, #tpu.memory_space<vmem>>, vector<1x32xf32>
    %c0_136 = arith.constant 0 : index
    %c0_137 = arith.constant 0 : index
    %443 = vector.load %arg23[%c0_136, %c0_137] : memref<1x32xf32, #tpu.memory_space<vmem>>, vector<1x32xf32>
    %cst_138 = arith.constant dense<0.000000e+00> : vector<16xf32>
    %444 = vector.multi_reduction <add>, %441, %cst_138 [1] : vector<16x32xf32> to vector<16xf32>
    %445 = vector.shape_cast %444 : vector<16xf32> to vector<16x1xf32>
    %cst_139 = arith.constant 3.200000e+01 : f32
    %446 = vector.broadcast %cst_139 : f32 to vector<16x1xf32>
    %447 = arith.divf %445, %446 : vector<16x1xf32>
    %448 = vector.broadcast %447 : vector<16x1xf32> to vector<16x32xf32>
    %449 = arith.subf %441, %448 : vector<16x32xf32>
    %450 = arith.mulf %449, %449 : vector<16x32xf32>
    %cst_140 = arith.constant dense<0.000000e+00> : vector<16xf32>
    %451 = vector.multi_reduction <add>, %450, %cst_140 [1] : vector<16x32xf32> to vector<16xf32>
    %452 = vector.shape_cast %451 : vector<16xf32> to vector<16x1xf32>
    %cst_141 = arith.constant 3.200000e+01 : f32
    %453 = vector.broadcast %cst_141 : f32 to vector<16x1xf32>
    %454 = arith.divf %452, %453 : vector<16x1xf32>
    %455 = vector.broadcast %447 : vector<16x1xf32> to vector<16x32xf32>
    %456 = arith.subf %441, %455 : vector<16x32xf32>
    %cst_142 = arith.constant 9.99999974E-6 : f32
    %457 = vector.broadcast %cst_142 : f32 to vector<16x1xf32>
    %458 = arith.addf %454, %457 : vector<16x1xf32>
    %459 = math.rsqrt %458 : vector<16x1xf32>
    %460 = vector.broadcast %459 : vector<16x1xf32> to vector<16x32xf32>
    %461 = arith.mulf %456, %460 : vector<16x32xf32>
    %462 = vector.broadcast %442 : vector<1x32xf32> to vector<16x32xf32>
    %463 = arith.mulf %461, %462 : vector<16x32xf32>
    %464 = vector.broadcast %443 : vector<1x32xf32> to vector<16x32xf32>
    %465 = arith.addf %463, %464 : vector<16x32xf32>
    %c0_143 = arith.constant 0 : index
    %c0_144 = arith.constant 0 : index
    %466 = vector.load %arg24[%c0_143, %c0_144] : memref<1x32xf32, #tpu.memory_space<vmem>>, vector<1x32xf32>
    %c0_145 = arith.constant 0 : index
    %c0_146 = arith.constant 0 : index
    %467 = vector.load %arg25[%c0_145, %c0_146] : memref<1x32xf32, #tpu.memory_space<vmem>>, vector<1x32xf32>
    %cst_147 = arith.constant dense<0.000000e+00> : vector<16xf32>
    %468 = vector.multi_reduction <add>, %465, %cst_147 [1] : vector<16x32xf32> to vector<16xf32>
    %469 = vector.shape_cast %468 : vector<16xf32> to vector<16x1xf32>
    %cst_148 = arith.constant 3.200000e+01 : f32
    %470 = vector.broadcast %cst_148 : f32 to vector<16x1xf32>
    %471 = arith.divf %469, %470 : vector<16x1xf32>
    %472 = vector.broadcast %471 : vector<16x1xf32> to vector<16x32xf32>
    %473 = arith.subf %465, %472 : vector<16x32xf32>
    %474 = arith.mulf %473, %473 : vector<16x32xf32>
    %cst_149 = arith.constant dense<0.000000e+00> : vector<16xf32>
    %475 = vector.multi_reduction <add>, %474, %cst_149 [1] : vector<16x32xf32> to vector<16xf32>
    %476 = vector.shape_cast %475 : vector<16xf32> to vector<16x1xf32>
    %cst_150 = arith.constant 3.200000e+01 : f32
    %477 = vector.broadcast %cst_150 : f32 to vector<16x1xf32>
    %478 = arith.divf %476, %477 : vector<16x1xf32>
    %479 = vector.broadcast %471 : vector<16x1xf32> to vector<16x32xf32>
    %480 = arith.subf %465, %479 : vector<16x32xf32>
    %cst_151 = arith.constant 9.99999974E-6 : f32
    %481 = vector.broadcast %cst_151 : f32 to vector<16x1xf32>
    %482 = arith.addf %478, %481 : vector<16x1xf32>
    %483 = math.rsqrt %482 : vector<16x1xf32>
    %484 = vector.broadcast %483 : vector<16x1xf32> to vector<16x32xf32>
    %485 = arith.mulf %480, %484 : vector<16x32xf32>
    %486 = vector.broadcast %466 : vector<1x32xf32> to vector<16x32xf32>
    %487 = arith.mulf %485, %486 : vector<16x32xf32>
    %488 = vector.broadcast %467 : vector<1x32xf32> to vector<16x32xf32>
    %489 = arith.addf %487, %488 : vector<16x32xf32>
    %490 = vector.shape_cast %489 : vector<16x32xf32> to vector<2x8x32xf32>
    %c0_152 = arith.constant 0 : index
    %c0_153 = arith.constant 0 : index
    %c0_154 = arith.constant 0 : index
    %491 = vector.load %arg26[%c0_152, %c0_153, %c0_154] : memref<2x8x32xf32, #tpu.memory_space<vmem>>, vector<2x8x32xf32>
    tpu.vector_store %arg26[%c0_152, %c0_153, %c0_154], %490 {strides = array<i32>} : memref<2x8x32xf32, #tpu.memory_space<vmem>>, vector<2x8x32xf32>,
    return
  }
  func.func @transform_0(%arg0: i32) -> (i32, i32, i32) {
    %c0_i32 = arith.constant 0 : i32
    %c0_i32_0 = arith.constant 0 : i32
    %c0_i32_1 = arith.constant 0 : i32
    return %arg0, %c0_i32, %c0_i32_0 : i32, i32, i32
  }
  func.func @transform_1(%arg0: i32) -> (i32, i32) {
    %c0_i32 = arith.constant 0 : i32
    %c0_i32_0 = arith.constant 0 : i32
    %c0_i32_1 = arith.constant 0 : i32
    return %c0_i32, %c0_i32_0 : i32, i32
  }
  func.func @transform_2(%arg0: i32) -> (i32, i32, i32) {
    %c0_i32 = arith.constant 0 : i32
    %c0_i32_0 = arith.constant 0 : i32
    %c0_i32_1 = arith.constant 0 : i32
    return %arg0, %c0_i32, %c0_i32_0 : i32, i32, i32
  }
  func.func @transform_3(%arg0: i32) -> (i32, i32, i32) {
    %c0_i32 = arith.constant 0 : i32
    %c0_i32_0 = arith.constant 0 : i32
    %c0_i32_1 = arith.constant 0 : i32
    return %arg0, %c0_i32, %c0_i32_0 : i32, i32, i32
  }
  func.func @transform_4(%arg0: i32) -> (i32, i32, i32) {
    %c0_i32 = arith.constant 0 : i32
    %c0_i32_0 = arith.constant 0 : i32
    %c0_i32_1 = arith.constant 0 : i32
    return %arg0, %c0_i32, %c0_i32_0 : i32, i32, i32
  }
  func.func @transform_5(%arg0: i32) -> (i32, i32) {
    %c0_i32 = arith.constant 0 : i32
    %c0_i32_0 = arith.constant 0 : i32
    %c0_i32_1 = arith.constant 0 : i32
    return %c0_i32, %c0_i32_0 : i32, i32
  }
  func.func @transform_6(%arg0: i32) -> (i32, i32) {
    %c0_i32 = arith.constant 0 : i32
    %c0_i32_0 = arith.constant 0 : i32
    %c0_i32_1 = arith.constant 0 : i32
    return %c0_i32, %c0_i32_0 : i32, i32
  }
  func.func @transform_7(%arg0: i32) -> (i32, i32) {
    %c0_i32 = arith.constant 0 : i32
    %c0_i32_0 = arith.constant 0 : i32
    %c0_i32_1 = arith.constant 0 : i32
    return %c0_i32, %c0_i32_0 : i32, i32
  }
  func.func @transform_8(%arg0: i32) -> (i32, i32) {
    %c0_i32 = arith.constant 0 : i32
    %c0_i32_0 = arith.constant 0 : i32
    %c0_i32_1 = arith.constant 0 : i32
    return %c0_i32, %c0_i32_0 : i32, i32
  }
  func.func @transform_9(%arg0: i32) -> (i32, i32) {
    %c0_i32 = arith.constant 0 : i32
    %c0_i32_0 = arith.constant 0 : i32
    %c0_i32_1 = arith.constant 0 : i32
    return %c0_i32, %c0_i32_0 : i32, i32
  }
  func.func @transform_10(%arg0: i32) -> (i32, i32) {
    %c0_i32 = arith.constant 0 : i32
    %c0_i32_0 = arith.constant 0 : i32
    %c0_i32_1 = arith.constant 0 : i32
    return %c0_i32, %c0_i32_0 : i32, i32
  }
  func.func @transform_11(%arg0: i32) -> (i32, i32) {
    %c0_i32 = arith.constant 0 : i32
    %c0_i32_0 = arith.constant 0 : i32
    %c0_i32_1 = arith.constant 0 : i32
    return %c0_i32, %c0_i32_0 : i32, i32
  }
  func.func @transform_12(%arg0: i32) -> (i32, i32) {
    %c0_i32 = arith.constant 0 : i32
    %c0_i32_0 = arith.constant 0 : i32
    %c0_i32_1 = arith.constant 0 : i32
    return %c0_i32, %c0_i32_0 : i32, i32
  }
  func.func @transform_13(%arg0: i32) -> (i32, i32) {
    %c0_i32 = arith.constant 0 : i32
    %c0_i32_0 = arith.constant 0 : i32
    %c0_i32_1 = arith.constant 0 : i32
    return %c0_i32, %c0_i32_0 : i32, i32
  }
  func.func @transform_14(%arg0: i32) -> (i32, i32) {
    %c0_i32 = arith.constant 0 : i32
    %c0_i32_0 = arith.constant 0 : i32
    %c0_i32_1 = arith.constant 0 : i32
    return %c0_i32, %c0_i32_0 : i32, i32
  }
  func.func @transform_15(%arg0: i32) -> (i32, i32) {
    %c0_i32 = arith.constant 0 : i32
    %c0_i32_0 = arith.constant 0 : i32
    %c0_i32_1 = arith.constant 0 : i32
    return %c0_i32, %c0_i32_0 : i32, i32
  }
  func.func @transform_16(%arg0: i32) -> (i32, i32) {
    %c0_i32 = arith.constant 0 : i32
    %c0_i32_0 = arith.constant 0 : i32
    %c0_i32_1 = arith.constant 0 : i32
    return %c0_i32, %c0_i32_0 : i32, i32
  }
  func.func @transform_17(%arg0: i32) -> (i32, i32) {
    %c0_i32 = arith.constant 0 : i32
    %c0_i32_0 = arith.constant 0 : i32
    %c0_i32_1 = arith.constant 0 : i32
    return %c0_i32, %c0_i32_0 : i32, i32
  }
  func.func @transform_18(%arg0: i32) -> (i32, i32) {
    %c0_i32 = arith.constant 0 : i32
    %c0_i32_0 = arith.constant 0 : i32
    %c0_i32_1 = arith.constant 0 : i32
    return %c0_i32, %c0_i32_0 : i32, i32
  }
  func.func @transform_19(%arg0: i32) -> (i32, i32) {
    %c0_i32 = arith.constant 0 : i32
    %c0_i32_0 = arith.constant 0 : i32
    %c0_i32_1 = arith.constant 0 : i32
    return %c0_i32, %c0_i32_0 : i32, i32
  }
  func.func @transform_20(%arg0: i32) -> (i32, i32) {
    %c0_i32 = arith.constant 0 : i32
    %c0_i32_0 = arith.constant 0 : i32
    %c0_i32_1 = arith.constant 0 : i32
    return %c0_i32, %c0_i32_0 : i32, i32
  }
  func.func @transform_21(%arg0: i32) -> (i32, i32) {
    %c0_i32 = arith.constant 0 : i32
    %c0_i32_0 = arith.constant 0 : i32
    %c0_i32_1 = arith.constant 0 : i32
    return %c0_i32, %c0_i32_0 : i32, i32
  }
  func.func @transform_22(%arg0: i32) -> (i32, i32) {
    %c0_i32 = arith.constant 0 : i32
    %c0_i32_0 = arith.constant 0 : i32
    %c0_i32_1 = arith.constant 0 : i32
    return %c0_i32, %c0_i32_0 : i32, i32
  }
  func.func @transform_23(%arg0: i32) -> (i32, i32) {
    %c0_i32 = arith.constant 0 : i32
    %c0_i32_0 = arith.constant 0 : i32
    %c0_i32_1 = arith.constant 0 : i32
    return %c0_i32, %c0_i32_0 : i32, i32
  }
  func.func @transform_24(%arg0: i32) -> (i32, i32) {
    %c0_i32 = arith.constant 0 : i32
    %c0_i32_0 = arith.constant 0 : i32
    %c0_i32_1 = arith.constant 0 : i32
    return %c0_i32, %c0_i32_0 : i32, i32
  }
  func.func @transform_25(%arg0: i32) -> (i32, i32, i32) {
    %c0_i32 = arith.constant 0 : i32
    %c0_i32_0 = arith.constant 0 : i32
    %c0_i32_1 = arith.constant 0 : i32
    return %arg0, %c0_i32, %c0_i32_0 : i32, i32, i32
  }
}

</mosaic_0001>

<llo_original>
// kernel: transformer_forward.5
$region0: #{transformer_forward.5}
  #allocation0 [shape = 'u32[]', space=smem, size = 0x4, offset = 0x4, fixed_abs, tag = 'smem constant byte address 0x4 - core index']
  #allocation1 [shape = 'u32[72,128]{1,0:T(1,128)}', space=vmem, size = 0x9000, scoped, tag = 'internal scratch']
  %s0 = inlined_call_operand.vmem [shape: f32[2,16,32], index: 0, kind: input, shape index: {}]
  %s1 = inlined_call_operand.vmem [shape: f32[2,16,32], index: 1, kind: input, shape index: {}]
  %s2 = inlined_call_operand.vmem [shape: f32[2,1,16], index: 2, kind: input, shape index: {}]
  %s3 = inlined_call_operand.vmem [shape: bf16[32,96], index: 3, kind: input, shape index: {}]
  %s4 = inlined_call_operand.vmem [shape: f32[1,96], index: 4, kind: input, shape index: {}]
  %s5 = inlined_call_operand.vmem [shape: bf16[32,32], index: 5, kind: input, shape index: {}]
  %s6 = inlined_call_operand.vmem [shape: f32[1,32], index: 6, kind: input, shape index: {}]
  %s7 = inlined_call_operand.vmem [shape: f32[1,32], index: 7, kind: input, shape index: {}]
  %s8 = inlined_call_operand.vmem [shape: f32[1,32], index: 8, kind: input, shape index: {}]
  %s9 = inlined_call_operand.vmem [shape: bf16[32,64], index: 9, kind: input, shape index: {}]
  %s10 = inlined_call_operand.vmem [shape: f32[1,64], index: 10, kind: input, shape index: {}]
  %s11 = inlined_call_operand.vmem [shape: bf16[64,32], index: 11, kind: input, shape index: {}]
  %s12 = inlined_call_operand.vmem [shape: f32[1,32], index: 12, kind: input, shape index: {}]
  %s13 = inlined_call_operand.vmem [shape: f32[1,32], index: 13, kind: input, shape index: {}]
  %s14 = inlined_call_operand.vmem [shape: f32[1,32], index: 14, kind: input, shape index: {}]
  %s15 = inlined_call_operand.vmem [shape: f32[1,32], index: 15, kind: input, shape index: {}]
  %s16 = inlined_call_operand.vmem [shape: f32[1,32], index: 16, kind: input, shape index: {}]
  %s17 = inlined_call_operand.vmem [shape: f32[2,16,32], index: 17, kind: output, shape index: {}]
  %s18 = sld [smem:[#allocation0]]
  $region101: #{transformer_forward.5} parent=0
    _
  %s20 = ssub.s32 1, %s18
  %s21 = scalar_select 0, %s20, %s18
  loop: start=0, step=1, limit=4
  $region2: #{transformer_forward.5} parent=0 // loop_pre_header
    _
  $region3: #{transformer_forward.5} parent=0 // loop_header
    %s23 = sphi 0, %s27
    %p24 = scmp.ge.s32.totalorder %s23, 4
    %s33 = sphi 0, %s35
    %s36 = sphi 0, %s33
    %s37 = sphi 0, %s36
    %s53 = sphi 0, %s37
    %s59 = sphi 0, %s61
    %s62 = sphi 0, %s59
    %s63 = sphi 0, %s62
    %s79 = sphi 0, %s63
    %s85 = sphi 0, %s87
    %s88 = sphi 0, %s85
    %s89 = sphi 0, %s88
    %s105 = sphi 0, %s89
    %s109 = sphi 0, %s109
    %s111 = sphi 0, %s109
    %s112 = sphi 0, %s111
    %s126 = sphi 0, %s112
    %s130 = sphi 0, %s130
    %s132 = sphi 0, %s130
    %s133 = sphi 0, %s132
    %s147 = sphi 0, %s133
    %s151 = sphi 0, %s151
    %s153 = sphi 0, %s151
    %s154 = sphi 0, %s153
    %s168 = sphi 0, %s154
    %s172 = sphi 0, %s172
    %s174 = sphi 0, %s172
    %s175 = sphi 0, %s174
    %s189 = sphi 0, %s175
    %s193 = sphi 0, %s193
    %s195 = sphi 0, %s193
    %s196 = sphi 0, %s195
    %s210 = sphi 0, %s196
    %s214 = sphi 0, %s214
    %s216 = sphi 0, %s214
    %s217 = sphi 0, %s216
    %s231 = sphi 0, %s217
    %s235 = sphi 0, %s235
    %s237 = sphi 0, %s235
    %s238 = sphi 0, %s237
    %s252 = sphi 0, %s238
    %s256 = sphi 0, %s256
    %s258 = sphi 0, %s256
    %s259 = sphi 0, %s258
    %s273 = sphi 0, %s259
    %s277 = sphi 0, %s277
    %s279 = sphi 0, %s277
    %s280 = sphi 0, %s279
    %s294 = sphi 0, %s280
    %s298 = sphi 0, %s298
    %s300 = sphi 0, %s298
    %s301 = sphi 0, %s300
    %s315 = sphi 0, %s301
    %s319 = sphi 0, %s319
    %s321 = sphi 0, %s319
    %s322 = sphi 0, %s321
    %s336 = sphi 0, %s322
    %s340 = sphi 0, %s340
    %s342 = sphi 0, %s340
    %s343 = sphi 0, %s342
    %s357 = sphi 0, %s343
    %s361 = sphi 0, %s361
    %s363 = sphi 0, %s361
    %s364 = sphi 0, %s363
    %s378 = sphi 0, %s364
    %s382 = sphi 0, %s382
    %s384 = sphi 0, %s382
    %s385 = sphi 0, %s384
    %s399 = sphi 0, %s385
    %s405 = sphi 0, %s407
    %s408 = sphi 0, %s405
    %s409 = sphi 0, %s408
    %s425 = sphi 0, %s409
  $region4: #{transformer_forward.5} parent=0 // loop_header_branch
    %26 = sbr.rel (%p24) target = $region8
  $region5: #{transformer_forward.5} parent=0 // loop_body
    %s28 = ssub.s32 %s23, 1
    %s29 = ssub.s32 %s23, 2
    %s30 = sadd.s32 %s23, 1
    %s31 = ssub.s32 %s23, %s30
    %p32 = scmp.eq.s32.totalorder %s31, 0
    %s34 = sadd.s32 %s33, 1
    %s35 = scalar_select %p32, %s33, %s34
    %p38 = pneg %p32
    %p39 = scmp.eq.s32.totalorder %s23, 1
    %p40 = por %p38, %p39
    %p41 = scmp.ne.s32.totalorder %s33, %s36
    %p42 = scmp.eq.s32.totalorder %s23, 0
    %p43 = por %p41, %p42
    %p44 = scmp.ne.s32.totalorder %s33, %s36
    %p45 = scmp.eq.s32.totalorder %s28, 1
    %p46 = por %p44, %p45
    %p47 = scmp.ne.s32.totalorder %s36, %s37
    %p48 = scmp.eq.s32.totalorder %s28, 0
    %p49 = por %p47, %p48
    %p50 = scmp.ne.s32.totalorder %s36, %s37
    %p51 = scmp.eq.s32.totalorder %s29, 1
    %p52 = por %p50, %p51
    %p54 = scmp.ne.s32.totalorder %s37, %s53
    %p55 = scmp.eq.s32.totalorder %s29, 0
    %p56 = por %p54, %p55
    %s57 = ssub.s32 %s23, %s30
    %p58 = scmp.eq.s32.totalorder %s57, 0
    %s60 = sadd.s32 %s59, 1
    %s61 = scalar_select %p58, %s59, %s60
    %p64 = pneg %p58
    %p65 = scmp.eq.s32.totalorder %s23, 1
    %p66 = por %p64, %p65
    %p67 = scmp.ne.s32.totalorder %s59, %s62
    %p68 = scmp.eq.s32.totalorder %s23, 0
    %p69 = por %p67, %p68
    %p70 = scmp.ne.s32.totalorder %s59, %s62
    %p71 = scmp.eq.s32.totalorder %s28, 1
    %p72 = por %p70, %p71
    %p73 = scmp.ne.s32.totalorder %s62, %s63
    %p74 = scmp.eq.s32.totalorder %s28, 0
    %p75 = por %p73, %p74
    %p76 = scmp.ne.s32.totalorder %s62, %s63
    %p77 = scmp.eq.s32.totalorder %s29, 1
    %p78 = por %p76, %p77
    %p80 = scmp.ne.s32.totalorder %s63, %s79
    %p81 = scmp.eq.s32.totalorder %s29, 0
    %p82 = por %p80, %p81
    %s83 = ssub.s32 %s23, %s30
    %p84 = scmp.eq.s32.totalorder %s83, 0
    %s86 = sadd.s32 %s85, 1
    %s87 = scalar_select %p84, %s85, %s86
    %p90 = pneg %p84
    %p91 = scmp.eq.s32.totalorder %s23, 1
    %p92 = por %p90, %p91
    %p93 = scmp.ne.s32.totalorder %s85, %s88
    %p94 = scmp.eq.s32.totalorder %s23, 0
    %p95 = por %p93, %p94
    %p96 = scmp.ne.s32.totalorder %s85, %s88
    %p97 = scmp.eq.s32.totalorder %s28, 1
    %p98 = por %p96, %p97
    %p99 = scmp.ne.s32.totalorder %s88, %s89
    %p100 = scmp.eq.s32.totalorder %s28, 0
    %p101 = por %p99, %p100
    %p102 = scmp.ne.s32.totalorder %s88, %s89
    %p103 = scmp.eq.s32.totalorder %s29, 1
    %p104 = por %p102, %p103
    %p106 = scmp.ne.s32.totalorder %s89, %s105
    %p107 = scmp.eq.s32.totalorder %s29, 0
    %p108 = por %p106, %p107
    %s110 = sadd.s32 %s109, 1
    %p113 = scmp.eq.s32.totalorder %s23, 1
    %p114 = scmp.ne.s32.totalorder %s109, %s111
    %p115 = scmp.eq.s32.totalorder %s23, 0
    %p116 = por %p114, %p115
    %p117 = scmp.ne.s32.totalorder %s109, %s111
    %p118 = scmp.eq.s32.totalorder %s28, 1
    %p119 = por %p117, %p118
    %p120 = scmp.ne.s32.totalorder %s111, %s112
    %p121 = scmp.eq.s32.totalorder %s28, 0
    %p122 = por %p120, %p121
    %p123 = scmp.ne.s32.totalorder %s111, %s112
    %p124 = scmp.eq.s32.totalorder %s29, 1
    %p125 = por %p123, %p124
    %p127 = scmp.ne.s32.totalorder %s112, %s126
    %p128 = scmp.eq.s32.totalorder %s29, 0
    %p129 = por %p127, %p128
    %s131 = sadd.s32 %s130, 1
    %p134 = scmp.eq.s32.totalorder %s23, 1
    %p135 = scmp.ne.s32.totalorder %s130, %s132
    %p136 = scmp.eq.s32.totalorder %s23, 0
    %p137 = por %p135, %p136
    %p138 = scmp.ne.s32.totalorder %s130, %s132
    %p139 = scmp.eq.s32.totalorder %s28, 1
    %p140 = por %p138, %p139
    %p141 = scmp.ne.s32.totalorder %s132, %s133
    %p142 = scmp.eq.s32.totalorder %s28, 0
    %p143 = por %p141, %p142
    %p144 = scmp.ne.s32.totalorder %s132, %s133
    %p145 = scmp.eq.s32.totalorder %s29, 1
    %p146 = por %p144, %p145
    %p148 = scmp.ne.s32.totalorder %s133, %s147
    %p149 = scmp.eq.s32.totalorder %s29, 0
    %p150 = por %p148, %p149
    %s152 = sadd.s32 %s151, 1
    %p155 = scmp.eq.s32.totalorder %s23, 1
    %p156 = scmp.ne.s32.totalorder %s151, %s153
    %p157 = scmp.eq.s32.totalorder %s23, 0
    %p158 = por %p156, %p157
    %p159 = scmp.ne.s32.totalorder %s151, %s153
    %p160 = scmp.eq.s32.totalorder %s28, 1
    %p161 = por %p159, %p160
    %p162 = scmp.ne.s32.totalorder %s153, %s154
    %p163 = scmp.eq.s32.totalorder %s28, 0
    %p164 = por %p162, %p163
    %p165 = scmp.ne.s32.totalorder %s153, %s154
    %p166 = scmp.eq.s32.totalorder %s29, 1
    %p167 = por %p165, %p166
    %p169 = scmp.ne.s32.totalorder %s154, %s168
    %p170 = scmp.eq.s32.totalorder %s29, 0
    %p171 = por %p169, %p170
    %s173 = sadd.s32 %s172, 1
    %p176 = scmp.eq.s32.totalorder %s23, 1
    %p177 = scmp.ne.s32.totalorder %s172, %s174
    %p178 = scmp.eq.s32.totalorder %s23, 0
    %p179 = por %p177, %p178
    %p180 = scmp.ne.s32.totalorder %s172, %s174
    %p181 = scmp.eq.s32.totalorder %s28, 1
    %p182 = por %p180, %p181
    %p183 = scmp.ne.s32.totalorder %s174, %s175
    %p184 = scmp.eq.s32.totalorder %s28, 0
    %p185 = por %p183, %p184
    %p186 = scmp.ne.s32.totalorder %s174, %s175
    %p187 = scmp.eq.s32.totalorder %s29, 1
    %p188 = por %p186, %p187
    %p190 = scmp.ne.s32.totalorder %s175, %s189
    %p191 = scmp.eq.s32.totalorder %s29, 0
    %p192 = por %p190, %p191
    %s194 = sadd.s32 %s193, 1
    %p197 = scmp.eq.s32.totalorder %s23, 1
    %p198 = scmp.ne.s32.totalorder %s193, %s195
    %p199 = scmp.eq.s32.totalorder %s23, 0
    %p200 = por %p198, %p199
    %p201 = scmp.ne.s32.totalorder %s193, %s195
    %p202 = scmp.eq.s32.totalorder %s28, 1
    %p203 = por %p201, %p202
    %p204 = scmp.ne.s32.totalorder %s195, %s196
    %p205 = scmp.eq.s32.totalorder %s28, 0
    %p206 = por %p204, %p205
    %p207 = scmp.ne.s32.totalorder %s195, %s196
    %p208 = scmp.eq.s32.totalorder %s29, 1
    %p209 = por %p207, %p208
    %p211 = scmp.ne.s32.totalorder %s196, %s210
    %p212 = scmp.eq.s32.totalorder %s29, 0
    %p213 = por %p211, %p212
    %s215 = sadd.s32 %s214, 1
    %p218 = scmp.eq.s32.totalorder %s23, 1
    %p219 = scmp.ne.s32.totalorder %s214, %s216
    %p220 = scmp.eq.s32.totalorder %s23, 0
    %p221 = por %p219, %p220
    %p222 = scmp.ne.s32.totalorder %s214, %s216
    %p223 = scmp.eq.s32.totalorder %s28, 1
    %p224 = por %p222, %p223
    %p225 = scmp.ne.s32.totalorder %s216, %s217
    %p226 = scmp.eq.s32.totalorder %s28, 0
    %p227 = por %p225, %p226
    %p228 = scmp.ne.s32.totalorder %s216, %s217
    %p229 = scmp.eq.s32.totalorder %s29, 1
    %p230 = por %p228, %p229
    %p232 = scmp.ne.s32.totalorder %s217, %s231
    %p233 = scmp.eq.s32.totalorder %s29, 0
    %p234 = por %p232, %p233
    %s236 = sadd.s32 %s235, 1
    %p239 = scmp.eq.s32.totalorder %s23, 1
    %p240 = scmp.ne.s32.totalorder %s235, %s237
    %p241 = scmp.eq.s32.totalorder %s23, 0
    %p242 = por %p240, %p241
    %p243 = scmp.ne.s32.totalorder %s235, %s237
    %p244 = scmp.eq.s32.totalorder %s28, 1
    %p245 = por %p243, %p244
    %p246 = scmp.ne.s32.totalorder %s237, %s238
    %p247 = scmp.eq.s32.totalorder %s28, 0
    %p248 = por %p246, %p247
    %p249 = scmp.ne.s32.totalorder %s237, %s238
    %p250 = scmp.eq.s32.totalorder %s29, 1
    %p251 = por %p249, %p250
    %p253 = scmp.ne.s32.totalorder %s238, %s252
    %p254 = scmp.eq.s32.totalorder %s29, 0
    %p255 = por %p253, %p254
    %s257 = sadd.s32 %s256, 1
    %p260 = scmp.eq.s32.totalorder %s23, 1
    %p261 = scmp.ne.s32.totalorder %s256, %s258
    %p262 = scmp.eq.s32.totalorder %s23, 0
    %p263 = por %p261, %p262
    %p264 = scmp.ne.s32.totalorder %s256, %s258
    %p265 = scmp.eq.s32.totalorder %s28, 1
    %p266 = por %p264, %p265
    %p267 = scmp.ne.s32.totalorder %s258, %s259
    %p268 = scmp.eq.s32.totalorder %s28, 0
    %p269 = por %p267, %p268
    %p270 = scmp.ne.s32.totalorder %s258, %s259
    %p271 = scmp.eq.s32.totalorder %s29, 1
    %p272 = por %p270, %p271
    %p274 = scmp.ne.s32.totalorder %s259, %s273
    %p275 = scmp.eq.s32.totalorder %s29, 0
    %p276 = por %p274, %p275
    %s278 = sadd.s32 %s277, 1
    %p281 = scmp.eq.s32.totalorder %s23, 1
    %p282 = scmp.ne.s32.totalorder %s277, %s279
    %p283 = scmp.eq.s32.totalorder %s23, 0
    %p284 = por %p282, %p283
    %p285 = scmp.ne.s32.totalorder %s277, %s279
    %p286 = scmp.eq.s32.totalorder %s28, 1
    %p287 = por %p285, %p286
    %p288 = scmp.ne.s32.totalorder %s279, %s280
    %p289 = scmp.eq.s32.totalorder %s28, 0
    %p290 = por %p288, %p289
    %p291 = scmp.ne.s32.totalorder %s279, %s280
    %p292 = scmp.eq.s32.totalorder %s29, 1
    %p293 = por %p291, %p292
    %p295 = scmp.ne.s32.totalorder %s280, %s294
    %p296 = scmp.eq.s32.totalorder %s29, 0
    %p297 = por %p295, %p296
    %s299 = sadd.s32 %s298, 1
    %p302 = scmp.eq.s32.totalorder %s23, 1
    %p303 = scmp.ne.s32.totalorder %s298, %s300
    %p304 = scmp.eq.s32.totalorder %s23, 0
    %p305 = por %p303, %p304
    %p306 = scmp.ne.s32.totalorder %s298, %s300
    %p307 = scmp.eq.s32.totalorder %s28, 1
    %p308 = por %p306, %p307
    %p309 = scmp.ne.s32.totalorder %s300, %s301
    %p310 = scmp.eq.s32.totalorder %s28, 0
    %p311 = por %p309, %p310
    %p312 = scmp.ne.s32.totalorder %s300, %s301
    %p313 = scmp.eq.s32.totalorder %s29, 1
    %p314 = por %p312, %p313
    %p316 = scmp.ne.s32.totalorder %s301, %s315
    %p317 = scmp.eq.s32.totalorder %s29, 0
    %p318 = por %p316, %p317
    %s320 = sadd.s32 %s319, 1
    %p323 = scmp.eq.s32.totalorder %s23, 1
    %p324 = scmp.ne.s32.totalorder %s319, %s321
    %p325 = scmp.eq.s32.totalorder %s23, 0
    %p326 = por %p324, %p325
    %p327 = scmp.ne.s32.totalorder %s319, %s321
    %p328 = scmp.eq.s32.totalorder %s28, 1
    %p329 = por %p327, %p328
    %p330 = scmp.ne.s32.totalorder %s321, %s322
    %p331 = scmp.eq.s32.totalorder %s28, 0
    %p332 = por %p330, %p331
    %p333 = scmp.ne.s32.totalorder %s321, %s322
    %p334 = scmp.eq.s32.totalorder %s29, 1
    %p335 = por %p333, %p334
    %p337 = scmp.ne.s32.totalorder %s322, %s336
    %p338 = scmp.eq.s32.totalorder %s29, 0
    %p339 = por %p337, %p338
    %s341 = sadd.s32 %s340, 1
    %p344 = scmp.eq.s32.totalorder %s23, 1
    %p345 = scmp.ne.s32.totalorder %s340, %s342
    %p346 = scmp.eq.s32.totalorder %s23, 0
    %p347 = por %p345, %p346
    %p348 = scmp.ne.s32.totalorder %s340, %s342
    %p349 = scmp.eq.s32.totalorder %s28, 1
    %p350 = por %p348, %p349
    %p351 = scmp.ne.s32.totalorder %s342, %s343
    %p352 = scmp.eq.s32.totalorder %s28, 0
    %p353 = por %p351, %p352
    %p354 = scmp.ne.s32.totalorder %s342, %s343
    %p355 = scmp.eq.s32.totalorder %s29, 1
    %p356 = por %p354, %p355
    %p358 = scmp.ne.s32.totalorder %s343, %s357
    %p359 = scmp.eq.s32.totalorder %s29, 0
    %p360 = por %p358, %p359
    %s362 = sadd.s32 %s361, 1
    %p365 = scmp.eq.s32.totalorder %s23, 1
    %p366 = scmp.ne.s32.totalorder %s361, %s363
    %p367 = scmp.eq.s32.totalorder %s23, 0
    %p368 = por %p366, %p367
    %p369 = scmp.ne.s32.totalorder %s361, %s363
    %p370 = scmp.eq.s32.totalorder %s28, 1
    %p371 = por %p369, %p370
    %p372 = scmp.ne.s32.totalorder %s363, %s364
    %p373 = scmp.eq.s32.totalorder %s28, 0
    %p374 = por %p372, %p373
    %p375 = scmp.ne.s32.totalorder %s363, %s364
    %p376 = scmp.eq.s32.totalorder %s29, 1
    %p377 = por %p375, %p376
    %p379 = scmp.ne.s32.totalorder %s364, %s378
    %p380 = scmp.eq.s32.totalorder %s29, 0
    %p381 = por %p379, %p380
    %s383 = sadd.s32 %s382, 1
    %p386 = scmp.eq.s32.totalorder %s23, 1
    %p387 = scmp.ne.s32.totalorder %s382, %s384
    %p388 = scmp.eq.s32.totalorder %s23, 0
    %p389 = por %p387, %p388
    %p390 = scmp.ne.s32.totalorder %s382, %s384
    %p391 = scmp.eq.s32.totalorder %s28, 1
    %p392 = por %p390, %p391
    %p393 = scmp.ne.s32.totalorder %s384, %s385
    %p394 = scmp.eq.s32.totalorder %s28, 0
    %p395 = por %p393, %p394
    %p396 = scmp.ne.s32.totalorder %s384, %s385
    %p397 = scmp.eq.s32.totalorder %s29, 1
    %p398 = por %p396, %p397
    %p400 = scmp.ne.s32.totalorder %s385, %s399
    %p401 = scmp.eq.s32.totalorder %s29, 0
    %p402 = por %p400, %p401
    %s403 = ssub.s32 %s23, %s30
    %p404 = scmp.eq.s32.totalorder %s403, 0
    %s406 = sadd.s32 %s405, 1
    %s407 = scalar_select %p404, %s405, %s406
    %p410 = pneg %p404
    %p411 = scmp.eq.s32.totalorder %s23, 1
    %p412 = por %p410, %p411
    %p413 = scmp.ne.s32.totalorder %s405, %s408
    %p414 = scmp.eq.s32.totalorder %s23, 0
    %p415 = por %p413, %p414
    %p416 = scmp.ne.s32.totalorder %s405, %s408
    %p417 = scmp.eq.s32.totalorder %s28, 1
    %p418 = por %p416, %p417
    %p419 = scmp.ne.s32.totalorder %s408, %s409
    %p420 = scmp.eq.s32.totalorder %s28, 0
    %p421 = por %p419, %p420
    %p422 = scmp.ne.s32.totalorder %s408, %s409
    %p423 = scmp.eq.s32.totalorder %s29, 1
    %p424 = por %p422, %p423
    %p426 = scmp.ne.s32.totalorder %s409, %s425
    %p427 = scmp.eq.s32.totalorder %s29, 0
    %p428 = por %p426, %p427
    %p429 = scmp.le.s32.totalorder 1, %s23
    %p430 = scmp.lt.s32.totalorder %s23, 3
    %p431 = pnand %p429, %p430
    %p432 = pneg %p431
    // Predicated region
    $region9: #{transformer_forward.5} parent=5 // pred_check
      _
    $region10: #{transformer_forward.5} parent=5 // pred_check_branch
      %434 = sbr.rel (%p431) target = $region12
    $region11: #{transformer_forward.5} parent=5 // pred_region
      %s435 = ssub.s32 %s23, 1
      // Predicated region
      $region13: #{transformer_forward.5} parent=11 // pred_check
        %p436 = pneg %p122
      $region14: #{transformer_forward.5} parent=11 // pred_check_branch
        %438 = sbr.rel (%p436) target = $region16
      $region15: #{transformer_forward.5} parent=11 // pred_region
        _
      $region16: #{transformer_forward.5} parent=11 // pred_fallthru
        _
      // Predicated region
      $region17: #{transformer_forward.5} parent=11 // pred_check
        %p439 = pneg %p143
      $region18: #{transformer_forward.5} parent=11 // pred_check_branch
        %441 = sbr.rel (%p439) target = $region20
      $region19: #{transformer_forward.5} parent=11 // pred_region
        _
      $region20: #{transformer_forward.5} parent=11 // pred_fallthru
        _
      // Predicated region
      $region21: #{transformer_forward.5} parent=11 // pred_check
        %p442 = pneg %p164
      $region22: #{transformer_forward.5} parent=11 // pred_check_branch
        %444 = sbr.rel (%p442) target = $region24
      $region23: #{transformer_forward.5} parent=11 // pred_region
        _
      $region24: #{transformer_forward.5} parent=11 // pred_fallthru
        _
      // Predicated region
      $region25: #{transformer_forward.5} parent=11 // pred_check
        %p445 = pneg %p185
      $region26: #{transformer_forward.5} parent=11 // pred_check_branch
        %447 = sbr.rel (%p445) target = $region28
      $region27: #{transformer_forward.5} parent=11 // pred_region
        _
      $region28: #{transformer_forward.5} parent=11 // pred_fallthru
        _
      // Predicated region
      $region29: #{transformer_forward.5} parent=11 // pred_check
        %p448 = pneg %p206
      $region30: #{transformer_forward.5} parent=11 // pred_check_branch
        %450 = sbr.rel (%p448) target = $region32
      $region31: #{transformer_forward.5} parent=11 // pred_region
        _
      $region32: #{transformer_forward.5} parent=11 // pred_fallthru
        _
      // Predicated region
      $region33: #{transformer_forward.5} parent=11 // pred_check
        %p451 = pneg %p227
      $region34: #{transformer_forward.5} parent=11 // pred_check_branch
        %453 = sbr.rel (%p451) target = $region36
      $region35: #{transformer_forward.5} parent=11 // pred_region
        _
      $region36: #{transformer_forward.5} parent=11 // pred_fallthru
        _
      // Predicated region
      $region37: #{transformer_forward.5} parent=11 // pred_check
        %p454 = pneg %p248
      $region38: #{transformer_forward.5} parent=11 // pred_check_branch
        %456 = sbr.rel (%p454) target = $region40
      $region39: #{transformer_forward.5} parent=11 // pred_region
        _
      $region40: #{transformer_forward.5} parent=11 // pred_fallthru
        _
      // Predicated region
      $region41: #{transformer_forward.5} parent=11 // pred_check
        %p457 = pneg %p269
      $region42: #{transformer_forward.5} parent=11 // pred_check_branch
        %459 = sbr.rel (%p457) target = $region44
      $region43: #{transformer_forward.5} parent=11 // pred_region
        _
      $region44: #{transformer_forward.5} parent=11 // pred_fallthru
        _
      // Predicated region
      $region45: #{transformer_forward.5} parent=11 // pred_check
        %p460 = pneg %p290
      $region46: #{transformer_forward.5} parent=11 // pred_check_branch
        %462 = sbr.rel (%p460) target = $region48
      $region47: #{transformer_forward.5} parent=11 // pred_region
        _
      $region48: #{transformer_forward.5} parent=11 // pred_fallthru
        _
      // Predicated region
      $region49: #{transformer_forward.5} parent=11 // pred_check
        %p463 = pneg %p311
      $region50: #{transformer_forward.5} parent=11 // pred_check_branch
        %465 = sbr.rel (%p463) target = $region52
      $region51: #{transformer_forward.5} parent=11 // pred_region
        _
      $region52: #{transformer_forward.5} parent=11 // pred_fallthru
        _
      // Predicated region
      $region53: #{transformer_forward.5} parent=11 // pred_check
        %p466 = pneg %p332
      $region54: #{transformer_forward.5} parent=11 // pred_check_branch
        %468 = sbr.rel (%p466) target = $region56
      $region55: #{transformer_forward.5} parent=11 // pred_region
        _
      $region56: #{transformer_forward.5} parent=11 // pred_fallthru
        _
      // Predicated region
      $region57: #{transformer_forward.5} parent=11 // pred_check
        %p469 = pneg %p353
      $region58: #{transformer_forward.5} parent=11 // pred_check_branch
        %471 = sbr.rel (%p469) target = $region60
      $region59: #{transformer_forward.5} parent=11 // pred_region
        _
      $region60: #{transformer_forward.5} parent=11 // pred_fallthru
        _
      // Predicated region
      $region61: #{transformer_forward.5} parent=11 // pred_check
        %p472 = pneg %p374
      $region62: #{transformer_forward.5} parent=11 // pred_check_branch
        %474 = sbr.rel (%p472) target = $region64
      $region63: #{transformer_forward.5} parent=11 // pred_region
        _
      $region64: #{transformer_forward.5} parent=11 // pred_fallthru
        _
      // Predicated region
      $region65: #{transformer_forward.5} parent=11 // pred_check
        %p475 = pneg %p395
      $region66: #{transformer_forward.5} parent=11 // pred_check_branch
        %477 = sbr.rel (%p475) target = $region68
      $region67: #{transformer_forward.5} parent=11 // pred_region
        _
      $region68: #{transformer_forward.5} parent=11 // pred_fallthru
        _
    $region12: #{transformer_forward.5} parent=5 // pred_fallthru
      _
    %p478 = scmp.lt.s32.totalorder %s23, 2
    // Predicated region
    $region69: #{transformer_forward.5} parent=5 // pred_check
      %p479 = pneg %p478
    $region70: #{transformer_forward.5} parent=5 // pred_check_branch
      %481 = sbr.rel (%p479) target = $region72
    $region71: #{transformer_forward.5} parent=5 // pred_region
      // Predicated region
      $region73: #{transformer_forward.5} parent=71 // pred_check
        %p482 = pneg %p43
      $region74: #{transformer_forward.5} parent=71 // pred_check_branch
        %484 = sbr.rel (%p482) target = $region76
      $region75: #{transformer_forward.5} parent=71 // pred_region
        %p485 = scmp.lt.s32.totalorder %s23, 1
        %s486 = scalar_select %p485, %s23, 1
        %s487 = smul.addr %s486, 2
        %s488 = smul.addr %s487, 8
        %s489 = scalar_lea.vmem %s0, %s488
      $region76: #{transformer_forward.5} parent=71 // pred_fallthru
        _
      // Predicated region
      $region77: #{transformer_forward.5} parent=71 // pred_check
        %p490 = pneg %p69
      $region78: #{transformer_forward.5} parent=71 // pred_check_branch
        %492 = sbr.rel (%p490) target = $region80
      $region79: #{transformer_forward.5} parent=71 // pred_region
        %p493 = scmp.lt.s32.totalorder %s23, 1
        %s494 = scalar_select %p493, %s23, 1
        %s495 = smul.addr %s494, 2
        %s496 = smul.addr %s495, 8
        %s497 = scalar_lea.vmem %s1, %s496
      $region80: #{transformer_forward.5} parent=71 // pred_fallthru
        _
      // Predicated region
      $region81: #{transformer_forward.5} parent=71 // pred_check
        %p498 = pneg %p95
      $region82: #{transformer_forward.5} parent=71 // pred_check_branch
        %500 = sbr.rel (%p498) target = $region84
      $region83: #{transformer_forward.5} parent=71 // pred_region
        %p501 = scmp.lt.s32.totalorder %s23, 1
        %s502 = scalar_select %p501, %s23, 1
        %s503 = scalar_lea.vmem %s2, %s502
      $region84: #{transformer_forward.5} parent=71 // pred_fallthru
        _
    $region72: #{transformer_forward.5} parent=5 // pred_fallthru
      _
    %p504 = scmp.le.s32.totalorder 1, %s23
    %p505 = scmp.lt.s32.totalorder %s23, 3
    %p506 = pnand %p504, %p505
    %p507 = pneg %p506
    // Predicated region
    $region85: #{transformer_forward.5} parent=5 // pred_check
      _
    $region86: #{transformer_forward.5} parent=5 // pred_check_branch
      %509 = sbr.rel (%p506) target = $region88
    $region87: #{transformer_forward.5} parent=5 // pred_region
      %s510 = ssub.s32 %s23, 1
      %p511 = scmp.lt.s32.totalorder %s28, 1
      %s512 = scalar_select %p511, %s28, 1
      %s513 = smul.addr %s512, 2
      %s514 = smul.addr %s513, 8
      %s515 = scalar_lea.vmem %s0, %s514
      %p516 = pneg %p49
      %p517 = pneg %p46
      %p518 = scmp.lt.s32.totalorder %s28, 1
      %s519 = scalar_select %p518, %s28, 1
      %s520 = smul.addr %s519, 2
      %s521 = smul.addr %s520, 8
      %s522 = scalar_lea.vmem %s1, %s521
      %p523 = pneg %p75
      %p524 = pneg %p72
      %p525 = scmp.lt.s32.totalorder %s28, 1
      %s526 = scalar_select %p525, %s28, 1
      %s527 = scalar_lea.vmem %s2, %s526
      %p528 = pneg %p101
      %p529 = pneg %p98
      %p530 = pneg %p122
      %p531 = pneg %p119
      %p532 = pneg %p143
      %p533 = pneg %p140
      %p534 = pneg %p164
      %p535 = pneg %p161
      %p536 = pneg %p185
      %p537 = pneg %p182
      %p538 = pneg %p206
      %p539 = pneg %p203
      %p540 = pneg %p227
      %p541 = pneg %p224
      %p542 = pneg %p248
      %p543 = pneg %p245
      %p544 = pneg %p269
      %p545 = pneg %p266
      %p546 = pneg %p290
      %p547 = pneg %p287
      %p548 = pneg %p311
      %p549 = pneg %p308
      %p550 = pneg %p332
      %p551 = pneg %p329
      %p552 = pneg %p353
      %p553 = pneg %p350
      %p554 = pneg %p374
      %p555 = pneg %p371
      %p556 = pneg %p395
      %p557 = pneg %p392
      %p558 = pneg %p421
      %p559 = pneg %p418
      %p560 = scmp.lt.s32.totalorder %s28, 1
      %s561 = scalar_select %p560, %s28, 1
      %s562 = smul.addr %s561, 2
      %s563 = smul.addr %s562, 8
      %s564 = scalar_lea.vmem %s17, %s563
      %p565 = scmp.lt.s32.totalorder %s28, 1
      %s566 = scalar_select %p565, %s28, 1
      %s567 = smul.addr %s566, 2
      %s568 = smul.addr %s567, 8
      %s569 = scalar_lea.vmem %s0, %s568
      %p570 = scmp.lt.s32.totalorder %s28, 1
      %s571 = scalar_select %p570, %s28, 1
      %s572 = smul.addr %s571, 2
      %s573 = smul.addr %s572, 8
      %s574 = scalar_lea.vmem %s1, %s573
      %p575 = scmp.lt.s32.totalorder %s28, 1
      %s576 = scalar_select %p575, %s28, 1
      %s577 = scalar_lea.vmem %s2, %s576
      %p578 = scmp.lt.s32.totalorder %s28, 1
      %s579 = scalar_select %p578, %s28, 1
      %s580 = smul.addr %s579, 2
      %s581 = smul.addr %s580, 8
      %s582 = scalar_lea.vmem %s17, %s581
      %v584 = vld [vmem:[%s569] sm:$0xff]
      %v585 = vld [vmem:[%s569 + $0x8] sm:$0xff]
      %v586 = vld [vmem:[%s574] sm:$0xff]
      %v587 = vld [vmem:[%s574 + $0x8] sm:$0xff]
      %v588 = vadd.f32 %v584, %v586
      %v589 = vadd.f32 %v585, %v587
      %v590 = vld [vmem:[%s3] sm:$0xf]
      %v591 = vld [vmem:[%s3 + $0x4] sm:$0xf]
      %v592 = vld [vmem:[%s3 + $0x8] sm:$0xf]
      %v593 = vld [vmem:[%s3 + $0xc] sm:$0xf]
      %v594 = vpack.c.bf16 %v589, %v588
      %v595 = vld [vmem:[%s4] sm:$0x1]
      %v597 = vperm.slane %v595, 0
      %v603 = vunpack.c.l.b16 %v590
      %v604 = vunpack.c.l.b16 %v591
      %v605 = vunpack.c.l.b16 %v592
      %v606 = vunpack.c.l.b16 %v593
      %v607 = vpack.c.b16 %v604, %v603
      %v608 = vpack.c.b16 %v606, %v605
      %vm611 = vcmask 261120
      %v613 = vsel %vm611, %v594, 0
      %615 = vmatpush.bf16.msra.mxu0 0
      %616 = vmatpush.bf16.msra.mxu0 0
      %617 = vmatpush.bf16.msra.mxu0 0
      %618 = vmatpush.bf16.msra.mxu0 0
      %619 = vmatpush.bf16.msra.mxu0 0
      %620 = vmatpush.bf16.msra.mxu0 0
      %621 = vmatpush.bf16.msra.mxu0 %v608
      %622 = vmatpush.bf16.msra.mxu0 %v607
      %623 = vmatmul.bf16.gmra.mxu0 %v613
      %v624 = vpop.f32.mrf.mxu0
      %v625 = vadd.f32 %v597, %v624
      %v626 = vpop.f32.mrf.mxu0
      %v627 = vadd.f32 %v597, %v626
      %628 = vdwg.mxu0
      %v629 = vpack.c.bf16 %v585, %v584
      %630 = vrot.lane.b32.xlu0 %v607, 64
      %v631 = vpop.permute.xlu0 %630
      %632 = vrot.lane.b32.xlu0 %v608, 64
      %v633 = vpop.permute.xlu0 %632
      %636 = vrot.lane.b32.xlu0 %v597, 64
      %v637 = vpop.permute.xlu0 %636
      %v640 = vsel %vm611, %v629, 0
      %642 = vmatpush.bf16.msra.mxu0 0
      %643 = vmatpush.bf16.msra.mxu0 0
      %644 = vmatpush.bf16.msra.mxu0 0
      %645 = vmatpush.bf16.msra.mxu0 0
      %646 = vmatpush.bf16.msra.mxu0 0
      %647 = vmatpush.bf16.msra.mxu0 0
      %648 = vmatpush.bf16.msra.mxu0 %v633
      %649 = vmatpush.bf16.msra.mxu0 %v631
      %650 = vmatmul.bf16.gmra.mxu0 %v640
      %v651 = vpop.f32.mrf.mxu0
      %v652 = vadd.f32 %v637, %v651
      %v653 = vpop.f32.mrf.mxu0
      %v654 = vadd.f32 %v637, %v653
      %655 = vdwg.mxu0
      %v656 = vld [vmem:[%s577] sm:$0x1]
      %v658 = vperm.slane %v656, 0
      %v660 = vpack.c.bf16 %v627, %v625
      %662 = vrot.lane.b32.xlu0 %v660, 96
      %v663 = vpop.permute.xlu0 %662
      %vm664 = vcmask 64512
      %v666 = vsel %vm664, %v660, 0
      %v669 = vsel %vm664, %v663, 0
      %671 = vmatpush.bf16.xpose.msra.mxu0 0
      %672 = vmatpush.bf16.xpose.msra.mxu0 0
      %673 = vmatpush.bf16.xpose.msra.mxu0 0
      %674 = vmatpush.bf16.xpose.msra.mxu0 0
      %675 = vmatpush.bf16.xpose.msra.mxu0 0
      %676 = vmatpush.bf16.xpose.msra.mxu0 0
      %677 = vmatpush.bf16.xpose.msra.mxu0 0
      %678 = vmatpush.bf16.xpose.msra.mxu0 %v669
      %679 = vmatmul.bf16.gmra.mxu0 %v666
      %v680 = vpop.f32.mrf.mxu0
      %v681 = vadd.f32 %v658, %v680
      %v682 = vpop.f32.mrf.mxu0
      %v683 = vadd.f32 %v658, %v682
      %684 = vdwg.mxu0
      %vm685 = vcmask 130048
      %v686 = vsel %vm685, %v681, -inf
      %687 = vmax.xlane.f32.xlu0 %v686
      %v688 = vpop.xlane.xlu0 %687
      %v689 = vsel %vm685, %v683, -inf
      %690 = vmax.xlane.f32.xlu0 %v689
      %v691 = vpop.xlane.xlu0 %690
      %v692 = vsub.f32 %v681, %v688
      %v693 = vsub.f32 %v683, %v691
      %v694 = vmul.f32 %v692, 1.442695
      %v695 = vpow.pop %v694
      %v696 = vmul.f32 %v693, 1.442695
      %v697 = vpow.pop %v696
      %v698 = vsel %vm685, %v695, 0.0
      %699 = vadd.xlane.f32.xlu0 %v698
      %v700 = vpop.xlane.xlu0 %699
      %v701 = vsel %vm685, %v697, 0.0
      %702 = vadd.xlane.f32.xlu0 %v701
      %v703 = vpop.xlane.xlu0 %702
      %v704 = vrcp.pop %v700
      %v705 = vmul.f32 %v700, %v704
      %v706 = vsub.f32 1.0, %v705
      %v707 = vmul.f32 %v704, %v706
      %v708 = vadd.f32 %v704, %v707
      %vm709 = vweird.f32 %v700
      %vm710 = vweird.f32 %v704
      %vm711 = vmor %vm709, %vm710
      %v712 = vsel %vm711, %v704, %v708
      %v713 = vand.u32 2147483647, %v700
      %vm714 = vcmp.eq.f32.partialorder %v713, 8.507059e+37
      %v715 = vand.u32 %v700, 2147483648
      %v716 = vor.u32 1.1754944e-38, %v715
      %v717 = vsel %vm714, %v716, %v712
      %v718 = vmul.f32 %v695, %v717
      %v719 = vrcp.pop %v703
      %v720 = vmul.f32 %v703, %v719
      %v721 = vsub.f32 1.0, %v720
      %v722 = vmul.f32 %v719, %v721
      %v723 = vadd.f32 %v719, %v722
      %vm724 = vweird.f32 %v703
      %vm725 = vweird.f32 %v719
      %vm726 = vmor %vm724, %vm725
      %v727 = vsel %vm726, %v719, %v723
      %v728 = vand.u32 2147483647, %v703
      %vm729 = vcmp.eq.f32.partialorder %v728, 8.507059e+37
      %v730 = vand.u32 %v703, 2147483648
      %v731 = vor.u32 1.1754944e-38, %v730
      %v732 = vsel %vm729, %v731, %v727
      %v733 = vmul.f32 %v697, %v732
      %v734 = vpack.c.bf16 %v733, %v718
      %v735 = vpack.c.bf16 %v654, %v652
      %v737 = vsel %vm685, %v734, 0
      %739 = vmatpush.bf16.msra.mxu0 0
      %740 = vmatpush.bf16.msra.mxu0 0
      %741 = vmatpush.bf16.msra.mxu0 0
      %742 = vmatpush.bf16.msra.mxu0 0
      %743 = vmatpush.bf16.msra.mxu0 0
      %744 = vmatpush.bf16.msra.mxu0 0
      %745 = vmatpush.bf16.msra.mxu0 0
      %746 = vmatpush.bf16.msra.mxu0 %v735
      %747 = vmatmul.bf16.gmra.mxu0 %v737
      %v748 = vpop.f32.mrf.mxu0
      %v749 = vadd.f32 0.0, %v748
      %v750 = vpop.f32.mrf.mxu0
      %v751 = vadd.f32 0.0, %v750
      %752 = vdwg.mxu0
      %753 = vrot.lane.b32.xlu0 %v660, 120
      %v754 = vpop.permute.xlu0 %753
      %755 = vrot.lane.b32.xlu0 %v660, 88
      %v756 = vpop.permute.xlu0 %755
      %v758 = vsel %vm664, %v754, 0
      %v761 = vsel %vm664, %v756, 0
      %763 = vmatpush.bf16.xpose.msra.mxu0 0
      %764 = vmatpush.bf16.xpose.msra.mxu0 0
      %765 = vmatpush.bf16.xpose.msra.mxu0 0
      %766 = vmatpush.bf16.xpose.msra.mxu0 0
      %767 = vmatpush.bf16.xpose.msra.mxu0 0
      %768 = vmatpush.bf16.xpose.msra.mxu0 0
      %769 = vmatpush.bf16.xpose.msra.mxu0 0
      %770 = vmatpush.bf16.xpose.msra.mxu0 %v761
      %771 = vmatmul.bf16.gmra.mxu0 %v758
      %v772 = vpop.f32.mrf.mxu0
      %v773 = vadd.f32 %v658, %v772
      %v774 = vpop.f32.mrf.mxu0
      %v775 = vadd.f32 %v658, %v774
      %776 = vdwg.mxu0
      %v777 = vsel %vm685, %v773, -inf
      %778 = vmax.xlane.f32.xlu0 %v777
      %v779 = vpop.xlane.xlu0 %778
      %v780 = vsel %vm685, %v775, -inf
      %781 = vmax.xlane.f32.xlu0 %v780
      %v782 = vpop.xlane.xlu0 %781
      %v783 = vsub.f32 %v773, %v779
      %v784 = vsub.f32 %v775, %v782
      %v785 = vmul.f32 %v783, 1.442695
      %v786 = vpow.pop %v785
      %v787 = vmul.f32 %v784, 1.442695
      %v788 = vpow.pop %v787
      %v789 = vsel %vm685, %v786, 0.0
      %790 = vadd.xlane.f32.xlu0 %v789
      %v791 = vpop.xlane.xlu0 %790
      %v792 = vsel %vm685, %v788, 0.0
      %793 = vadd.xlane.f32.xlu0 %v792
      %v794 = vpop.xlane.xlu0 %793
      %v795 = vrcp.pop %v791
      %v796 = vmul.f32 %v791, %v795
      %v797 = vsub.f32 1.0, %v796
      %v798 = vmul.f32 %v795, %v797
      %v799 = vadd.f32 %v795, %v798
      %vm800 = vweird.f32 %v791
      %vm801 = vweird.f32 %v795
      %vm802 = vmor %vm800, %vm801
      %v803 = vsel %vm802, %v795, %v799
      %v804 = vand.u32 2147483647, %v791
      %vm805 = vcmp.eq.f32.partialorder %v804, 8.507059e+37
      %v806 = vand.u32 %v791, 2147483648
      %v807 = vor.u32 1.1754944e-38, %v806
      %v808 = vsel %vm805, %v807, %v803
      %v809 = vmul.f32 %v786, %v808
      %v810 = vrcp.pop %v794
      %v811 = vmul.f32 %v794, %v810
      %v812 = vsub.f32 1.0, %v811
      %v813 = vmul.f32 %v810, %v812
      %v814 = vadd.f32 %v810, %v813
      %vm815 = vweird.f32 %v794
      %vm816 = vweird.f32 %v810
      %vm817 = vmor %vm815, %vm816
      %v818 = vsel %vm817, %v810, %v814
      %v819 = vand.u32 2147483647, %v794
      %vm820 = vcmp.eq.f32.partialorder %v819, 8.507059e+37
      %v821 = vand.u32 %v794, 2147483648
      %v822 = vor.u32 1.1754944e-38, %v821
      %v823 = vsel %vm820, %v822, %v818
      %v824 = vmul.f32 %v788, %v823
      %v825 = vpack.c.bf16 %v824, %v809
      %827 = vrot.lane.b32.xlu0 %v735, 120
      %v828 = vpop.permute.xlu0 %827
      %v831 = vsel %vm685, %v825, 0
      %833 = vmatpush.bf16.msra.mxu0 0
      %834 = vmatpush.bf16.msra.mxu0 0
      %835 = vmatpush.bf16.msra.mxu0 0
      %836 = vmatpush.bf16.msra.mxu0 0
      %837 = vmatpush.bf16.msra.mxu0 0
      %838 = vmatpush.bf16.msra.mxu0 0
      %839 = vmatpush.bf16.msra.mxu0 0
      %840 = vmatpush.bf16.msra.mxu0 %v828
      %841 = vmatmul.bf16.gmra.mxu0 %v831
      %v842 = vpop.f32.mrf.mxu0
      %v843 = vadd.f32 0.0, %v842
      %v844 = vpop.f32.mrf.mxu0
      %v845 = vadd.f32 0.0, %v844
      %846 = vdwg.mxu0
      %847 = vrot.lane.b32.xlu0 %v660, 112
      %v848 = vpop.permute.xlu0 %847
      %849 = vrot.lane.b32.xlu0 %v660, 80
      %v850 = vpop.permute.xlu0 %849
      %v852 = vsel %vm664, %v848, 0
      %v855 = vsel %vm664, %v850, 0
      %857 = vmatpush.bf16.xpose.msra.mxu0 0
      %858 = vmatpush.bf16.xpose.msra.mxu0 0
      %859 = vmatpush.bf16.xpose.msra.mxu0 0
      %860 = vmatpush.bf16.xpose.msra.mxu0 0
      %861 = vmatpush.bf16.xpose.msra.mxu0 0
      %862 = vmatpush.bf16.xpose.msra.mxu0 0
      %863 = vmatpush.bf16.xpose.msra.mxu0 0
      %864 = vmatpush.bf16.xpose.msra.mxu0 %v855
      %865 = vmatmul.bf16.gmra.mxu0 %v852
      %v866 = vpop.f32.mrf.mxu0
      %v867 = vadd.f32 %v658, %v866
      %v868 = vpop.f32.mrf.mxu0
      %v869 = vadd.f32 %v658, %v868
      %870 = vdwg.mxu0
      %v871 = vsel %vm685, %v867, -inf
      %872 = vmax.xlane.f32.xlu0 %v871
      %v873 = vpop.xlane.xlu0 %872
      %v874 = vsel %vm685, %v869, -inf
      %875 = vmax.xlane.f32.xlu0 %v874
      %v876 = vpop.xlane.xlu0 %875
      %v877 = vsub.f32 %v867, %v873
      %v878 = vsub.f32 %v869, %v876
      %v879 = vmul.f32 %v877, 1.442695
      %v880 = vpow.pop %v879
      %v881 = vmul.f32 %v878, 1.442695
      %v882 = vpow.pop %v881
      %v883 = vsel %vm685, %v880, 0.0
      %884 = vadd.xlane.f32.xlu0 %v883
      %v885 = vpop.xlane.xlu0 %884
      %v886 = vsel %vm685, %v882, 0.0
      %887 = vadd.xlane.f32.xlu0 %v886
      %v888 = vpop.xlane.xlu0 %887
      %v889 = vrcp.pop %v885
      %v890 = vmul.f32 %v885, %v889
      %v891 = vsub.f32 1.0, %v890
      %v892 = vmul.f32 %v889, %v891
      %v893 = vadd.f32 %v889, %v892
      %vm894 = vweird.f32 %v885
      %vm895 = vweird.f32 %v889
      %vm896 = vmor %vm894, %vm895
      %v897 = vsel %vm896, %v889, %v893
      %v898 = vand.u32 2147483647, %v885
      %vm899 = vcmp.eq.f32.partialorder %v898, 8.507059e+37
      %v900 = vand.u32 %v885, 2147483648
      %v901 = vor.u32 1.1754944e-38, %v900
      %v902 = vsel %vm899, %v901, %v897
      %v903 = vmul.f32 %v880, %v902
      %v904 = vrcp.pop %v888
      %v905 = vmul.f32 %v888, %v904
      %v906 = vsub.f32 1.0, %v905
      %v907 = vmul.f32 %v904, %v906
      %v908 = vadd.f32 %v904, %v907
      %vm909 = vweird.f32 %v888
      %vm910 = vweird.f32 %v904
      %vm911 = vmor %vm909, %vm910
      %v912 = vsel %vm911, %v904, %v908
      %v913 = vand.u32 2147483647, %v888
      %vm914 = vcmp.eq.f32.partialorder %v913, 8.507059e+37
      %v915 = vand.u32 %v888, 2147483648
      %v916 = vor.u32 1.1754944e-38, %v915
      %v917 = vsel %vm914, %v916, %v912
      %v918 = vmul.f32 %v882, %v917
      %v919 = vpack.c.bf16 %v918, %v903
      %920 = vrot.lane.b32.xlu0 %v735, 112
      %v921 = vpop.permute.xlu0 %920
      %v924 = vsel %vm685, %v919, 0
      %926 = vmatpush.bf16.msra.mxu0 0
      %927 = vmatpush.bf16.msra.mxu0 0
      %928 = vmatpush.bf16.msra.mxu0 0
      %929 = vmatpush.bf16.msra.mxu0 0
      %930 = vmatpush.bf16.msra.mxu0 0
      %931 = vmatpush.bf16.msra.mxu0 0
      %932 = vmatpush.bf16.msra.mxu0 0
      %933 = vmatpush.bf16.msra.mxu0 %v921
      %934 = vmatmul.bf16.gmra.mxu0 %v924
      %v935 = vpop.f32.mrf.mxu0
      %v936 = vadd.f32 0.0, %v935
      %v937 = vpop.f32.mrf.mxu0
      %v938 = vadd.f32 0.0, %v937
      %939 = vdwg.mxu0
      %940 = vrot.lane.b32.xlu0 %v660, 104
      %v941 = vpop.permute.xlu0 %940
      %942 = vrot.lane.b32.xlu0 %v660, 72
      %v943 = vpop.permute.xlu0 %942
      %v945 = vsel %vm664, %v941, 0
      %v948 = vsel %vm664, %v943, 0
      %950 = vmatpush.bf16.xpose.msra.mxu0 0
      %951 = vmatpush.bf16.xpose.msra.mxu0 0
      %952 = vmatpush.bf16.xpose.msra.mxu0 0
      %953 = vmatpush.bf16.xpose.msra.mxu0 0
      %954 = vmatpush.bf16.xpose.msra.mxu0 0
      %955 = vmatpush.bf16.xpose.msra.mxu0 0
      %956 = vmatpush.bf16.xpose.msra.mxu0 0
      %957 = vmatpush.bf16.xpose.msra.mxu0 %v948
      %958 = vmatmul.bf16.gmra.mxu0 %v945
      %v959 = vpop.f32.mrf.mxu0
      %v960 = vadd.f32 %v658, %v959
      %v961 = vpop.f32.mrf.mxu0
      %v962 = vadd.f32 %v658, %v961
      %963 = vdwg.mxu0
      %v964 = vsel %vm685, %v960, -inf
      %965 = vmax.xlane.f32.xlu0 %v964
      %v966 = vpop.xlane.xlu0 %965
      %v967 = vsel %vm685, %v962, -inf
      %968 = vmax.xlane.f32.xlu0 %v967
      %v969 = vpop.xlane.xlu0 %968
      %v970 = vsub.f32 %v960, %v966
      %v971 = vsub.f32 %v962, %v969
      %v972 = vmul.f32 %v970, 1.442695
      %v973 = vpow.pop %v972
      %v974 = vmul.f32 %v971, 1.442695
      %v975 = vpow.pop %v974
      %v976 = vsel %vm685, %v973, 0.0
      %977 = vadd.xlane.f32.xlu0 %v976
      %v978 = vpop.xlane.xlu0 %977
      %v979 = vsel %vm685, %v975, 0.0
      %980 = vadd.xlane.f32.xlu0 %v979
      %v981 = vpop.xlane.xlu0 %980
      %v982 = vrcp.pop %v978
      %v983 = vmul.f32 %v978, %v982
      %v984 = vsub.f32 1.0, %v983
      %v985 = vmul.f32 %v982, %v984
      %v986 = vadd.f32 %v982, %v985
      %vm987 = vweird.f32 %v978
      %vm988 = vweird.f32 %v982
      %vm989 = vmor %vm987, %vm988
      %v990 = vsel %vm989, %v982, %v986
      %v991 = vand.u32 2147483647, %v978
      %vm992 = vcmp.eq.f32.partialorder %v991, 8.507059e+37
      %v993 = vand.u32 %v978, 2147483648
      %v994 = vor.u32 1.1754944e-38, %v993
      %v995 = vsel %vm992, %v994, %v990
      %v996 = vmul.f32 %v973, %v995
      %v997 = vrcp.pop %v981
      %v998 = vmul.f32 %v981, %v997
      %v999 = vsub.f32 1.0, %v998
      %v1000 = vmul.f32 %v997, %v999
      %v1001 = vadd.f32 %v997, %v1000
      %vm1002 = vweird.f32 %v981
      %vm1003 = vweird.f32 %v997
      %vm1004 = vmor %vm1002, %vm1003
      %v1005 = vsel %vm1004, %v997, %v1001
      %v1006 = vand.u32 2147483647, %v981
      %vm1007 = vcmp.eq.f32.partialorder %v1006, 8.507059e+37
      %v1008 = vand.u32 %v981, 2147483648
      %v1009 = vor.u32 1.1754944e-38, %v1008
      %v1010 = vsel %vm1007, %v1009, %v1005
      %v1011 = vmul.f32 %v975, %v1010
      %v1012 = vpack.c.bf16 %v1011, %v996
      %1013 = vrot.lane.b32.xlu0 %v735, 104
      %v1014 = vpop.permute.xlu0 %1013
      %v1017 = vsel %vm685, %v1012, 0
      %1019 = vmatpush.bf16.msra.mxu0 0
      %1020 = vmatpush.bf16.msra.mxu0 0
      %1021 = vmatpush.bf16.msra.mxu0 0
      %1022 = vmatpush.bf16.msra.mxu0 0
      %1023 = vmatpush.bf16.msra.mxu0 0
      %1024 = vmatpush.bf16.msra.mxu0 0
      %1025 = vmatpush.bf16.msra.mxu0 0
      %1026 = vmatpush.bf16.msra.mxu0 %v1014
      %1027 = vmatmul.bf16.gmra.mxu0 %v1017
      %v1028 = vpop.f32.mrf.mxu0
      %v1029 = vadd.f32 0.0, %v1028
      %v1030 = vpop.f32.mrf.mxu0
      %v1031 = vadd.f32 0.0, %v1030
      %1032 = vdwg.mxu0
      %1035 = vrot.lane.b32.xlu0 %v843, 8
      %v1036 = vpop.permute.xlu0 %1035
      %1037 = vrot.lane.b32.xlu0 %v845, 8
      %v1038 = vpop.permute.xlu0 %1037
      %1043 = vrot.lane.b32.xlu0 %v936, 16
      %v1044 = vpop.permute.xlu0 %1043
      %1045 = vrot.lane.b32.xlu0 %v938, 16
      %v1046 = vpop.permute.xlu0 %1045
      %1051 = vrot.lane.b32.xlu0 %v1029, 24
      %v1052 = vpop.permute.xlu0 %1051
      %1053 = vrot.lane.b32.xlu0 %v1031, 24
      %v1054 = vpop.permute.xlu0 %1053
      %v1057 = vsel %vm664, %v749, %v1036
      %v1058 = vsel %vm664, %v751, %v1038
      %v1059 = vsel %vm685, %v1057, %v1044
      %v1060 = vsel %vm685, %v1058, %v1046
      %vm1061 = vcmask 195584
      %v1062 = vsel %vm1061, %v1059, %v1052
      %v1063 = vsel %vm1061, %v1060, %v1054
      %v1064 = vld [vmem:[%s5] sm:$0xf]
      %v1065 = vld [vmem:[%s5 + $0x4] sm:$0xf]
      %v1066 = vld [vmem:[%s5 + $0x8] sm:$0xf]
      %v1067 = vld [vmem:[%s5 + $0xc] sm:$0xf]
      %v1068 = vpack.c.bf16 %v1063, %v1062
      %v1069 = vld [vmem:[%s6] sm:$0x1]
      %v1071 = vperm.slane %v1069, 0
      %v1077 = vunpack.c.l.b16 %v1064
      %v1078 = vunpack.c.l.b16 %v1065
      %v1079 = vunpack.c.l.b16 %v1066
      %v1080 = vunpack.c.l.b16 %v1067
      %v1081 = vpack.c.b16 %v1078, %v1077
      %v1082 = vpack.c.b16 %v1080, %v1079
      %v1086 = vsel %vm611, %v1068, 0
      %1088 = vmatpush.bf16.msra.mxu0 0
      %1089 = vmatpush.bf16.msra.mxu0 0
      %1090 = vmatpush.bf16.msra.mxu0 0
      %1091 = vmatpush.bf16.msra.mxu0 0
      %1092 = vmatpush.bf16.msra.mxu0 0
      %1093 = vmatpush.bf16.msra.mxu0 0
      %1094 = vmatpush.bf16.msra.mxu0 %v1082
      %1095 = vmatpush.bf16.msra.mxu0 %v1081
      %1096 = vmatmul.bf16.gmra.mxu0 %v1086
      %v1097 = vpop.f32.mrf.mxu0
      %v1098 = vadd.f32 %v1071, %v1097
      %v1099 = vpop.f32.mrf.mxu0
      %v1100 = vadd.f32 %v1071, %v1099
      %1101 = vdwg.mxu0
      %v1102 = vadd.f32 %v584, %v1098
      %v1103 = vadd.f32 %v585, %v1100
      %v1104 = vld [vmem:[%s7] sm:$0x1]
      %v1105 = vld [vmem:[%s8] sm:$0x1]
      %v1106 = vsel %vm611, %v1102, 0.0
      %1107 = vadd.xlane.f32.xlu0 %v1106
      %v1108 = vpop.xlane.xlu0 %1107
      %v1109 = vsel %vm611, %v1103, 0.0
      %1110 = vadd.xlane.f32.xlu0 %v1109
      %v1111 = vpop.xlane.xlu0 %1110
      %v1112 = vrcp.pop 32.0
      %v1113 = vmul.f32 32.0, %v1112
      %v1114 = vsub.f32 1.0, %v1113
      %v1115 = vmul.f32 %v1112, %v1114
      %v1116 = vadd.f32 %v1112, %v1115
      %vm1117 = vweird.f32 %v1112
      %v1118 = vsel %vm1117, %v1112, %v1116
      %v1119 = vmul.f32 %v1108, %v1118
      %v1120 = vmul.f32 %v1111, %v1118
      %v1121 = vsub.f32 %v1102, %v1119
      %v1122 = vsub.f32 %v1103, %v1120
      %v1123 = vmul.f32 %v1121, %v1121
      %v1124 = vmul.f32 %v1122, %v1122
      %v1125 = vsel %vm611, %v1123, 0.0
      %1126 = vadd.xlane.f32.xlu0 %v1125
      %v1127 = vpop.xlane.xlu0 %1126
      %v1128 = vsel %vm611, %v1124, 0.0
      %1129 = vadd.xlane.f32.xlu0 %v1128
      %v1130 = vpop.xlane.xlu0 %1129
      %v1131 = vmul.f32 %v1127, %v1118
      %v1132 = vmul.f32 %v1130, %v1118
      %v1133 = vadd.f32 %v1131, 1e-05
      %v1134 = vadd.f32 %v1132, 1e-05
      %v1135 = vrsqrt.pop %v1133
      %v1136 = vmul.f32 %v1135, %v1133
      %v1137 = vmul.f32 %v1136, %v1135
      %v1138 = vmul.f32 0.5, %v1137
      %v1139 = vsub.f32 1.5, %v1138
      %v1140 = vmul.f32 %v1135, %v1139
      %vm1141 = vweird.f32 %v1133
      %vm1142 = vweird.f32 %v1135
      %vm1143 = vmor %vm1141, %vm1142
      %v1144 = vsel %vm1143, %v1135, %v1140
      %v1145 = vrsqrt.pop %v1134
      %v1146 = vmul.f32 %v1145, %v1134
      %v1147 = vmul.f32 %v1146, %v1145
      %v1148 = vmul.f32 0.5, %v1147
      %v1149 = vsub.f32 1.5, %v1148
      %v1150 = vmul.f32 %v1145, %v1149
      %vm1151 = vweird.f32 %v1134
      %vm1152 = vweird.f32 %v1145
      %vm1153 = vmor %vm1151, %vm1152
      %v1154 = vsel %vm1153, %v1145, %v1150
      %v1155 = vmul.f32 %v1121, %v1144
      %v1156 = vmul.f32 %v1122, %v1154
      %v1158 = vperm.slane %v1104, 0
      %v1160 = vmul.f32 %v1155, %v1158
      %v1161 = vmul.f32 %v1156, %v1158
      %v1163 = vperm.slane %v1105, 0
      %v1165 = vadd.f32 %v1160, %v1163
      %v1166 = vadd.f32 %v1161, %v1163
      %v1167 = vld [vmem:[%s9] sm:$0xf]
      %v1168 = vld [vmem:[%s9 + $0x4] sm:$0xf]
      %v1169 = vld [vmem:[%s9 + $0x8] sm:$0xf]
      %v1170 = vld [vmem:[%s9 + $0xc] sm:$0xf]
      %v1171 = vpack.c.bf16 %v1166, %v1165
      %v1172 = vld [vmem:[%s10] sm:$0x1]
      %v1174 = vperm.slane %v1172, 0
      %v1180 = vunpack.c.l.b16 %v1167
      %v1181 = vunpack.c.l.b16 %v1168
      %v1182 = vunpack.c.l.b16 %v1169
      %v1183 = vunpack.c.l.b16 %v1170
      %v1184 = vpack.c.b16 %v1181, %v1180
      %v1185 = vpack.c.b16 %v1183, %v1182
      %v1189 = vsel %vm611, %v1171, 0
      %1191 = vmatpush.bf16.msra.mxu0 0
      %1192 = vmatpush.bf16.msra.mxu0 0
      %1193 = vmatpush.bf16.msra.mxu0 0
      %1194 = vmatpush.bf16.msra.mxu0 0
      %1195 = vmatpush.bf16.msra.mxu0 0
      %1196 = vmatpush.bf16.msra.mxu0 0
      %1197 = vmatpush.bf16.msra.mxu0 %v1185
      %1198 = vmatpush.bf16.msra.mxu0 %v1184
      %1199 = vmatmul.bf16.gmra.mxu0 %v1189
      %v1200 = vpop.f32.mrf.mxu0
      %v1201 = vadd.f32 %v1174, %v1200
      %v1202 = vpop.f32.mrf.mxu0
      %v1203 = vadd.f32 %v1174, %v1202
      %1204 = vdwg.mxu0
      %v1205 = vmax.f32 %v1201, 0.0
      %v1206 = vmax.f32 %v1203, 0.0
      %v1207 = vld [vmem:[%s11] sm:$0xf]
      %v1208 = vld [vmem:[%s11 + $0x4] sm:$0xf]
      %v1209 = vld [vmem:[%s11 + $0x8] sm:$0xf]
      %v1210 = vld [vmem:[%s11 + $0xc] sm:$0xf]
      %v1211 = vld [vmem:[%s11 + $0x10] sm:$0xf]
      %v1212 = vld [vmem:[%s11 + $0x14] sm:$0xf]
      %v1213 = vld [vmem:[%s11 + $0x18] sm:$0xf]
      %v1214 = vld [vmem:[%s11 + $0x1c] sm:$0xf]
      %v1215 = vpack.c.bf16 %v1206, %v1205
      %v1216 = vld [vmem:[%s12] sm:$0x1]
      %v1218 = vperm.slane %v1216, 0
      %v1228 = vunpack.c.l.b16 %v1207
      %v1229 = vunpack.c.l.b16 %v1208
      %v1230 = vunpack.c.l.b16 %v1209
      %v1231 = vunpack.c.l.b16 %v1210
      %v1232 = vunpack.c.l.b16 %v1211
      %v1233 = vunpack.c.l.b16 %v1212
      %v1234 = vunpack.c.l.b16 %v1213
      %v1235 = vunpack.c.l.b16 %v1214
      %v1236 = vpack.c.b16 %v1229, %v1228
      %v1237 = vpack.c.b16 %v1231, %v1230
      %v1238 = vpack.c.b16 %v1233, %v1232
      %v1239 = vpack.c.b16 %v1235, %v1234
      %vm1244 = vcmask 523264
      %v1246 = vsel %vm1244, %v1215, 0
      %1248 = vmatpush.bf16.msra.mxu0 0
      %1249 = vmatpush.bf16.msra.mxu0 0
      %1250 = vmatpush.bf16.msra.mxu0 0
      %1251 = vmatpush.bf16.msra.mxu0 0
      %1252 = vmatpush.bf16.msra.mxu0 %v1239
      %1253 = vmatpush.bf16.msra.mxu0 %v1238
      %1254 = vmatpush.bf16.msra.mxu0 %v1237
      %1255 = vmatpush.bf16.msra.mxu0 %v1236
      %1256 = vmatmul.bf16.gmra.mxu0 %v1246
      %v1257 = vpop.f32.mrf.mxu0
      %v1258 = vadd.f32 %v1218, %v1257
      %v1259 = vpop.f32.mrf.mxu0
      %v1260 = vadd.f32 %v1218, %v1259
      %1261 = vdwg.mxu0
      %v1262 = vadd.f32 %v1165, %v1258
      %v1263 = vadd.f32 %v1166, %v1260
      %v1264 = vld [vmem:[%s13] sm:$0x1]
      %v1265 = vld [vmem:[%s14] sm:$0x1]
      %v1266 = vsel %vm611, %v1262, 0.0
      %1267 = vadd.xlane.f32.xlu0 %v1266
      %v1268 = vpop.xlane.xlu0 %1267
      %v1269 = vsel %vm611, %v1263, 0.0
      %1270 = vadd.xlane.f32.xlu0 %v1269
      %v1271 = vpop.xlane.xlu0 %1270
      %v1272 = vmul.f32 %v1268, %v1118
      %v1273 = vmul.f32 %v1271, %v1118
      %v1274 = vsub.f32 %v1262, %v1272
      %v1275 = vsub.f32 %v1263, %v1273
      %v1276 = vmul.f32 %v1274, %v1274
      %v1277 = vmul.f32 %v1275, %v1275
      %v1278 = vsel %vm611, %v1276, 0.0
      %1279 = vadd.xlane.f32.xlu0 %v1278
      %v1280 = vpop.xlane.xlu0 %1279
      %v1281 = vsel %vm611, %v1277, 0.0
      %1282 = vadd.xlane.f32.xlu0 %v1281
      %v1283 = vpop.xlane.xlu0 %1282
      %v1284 = vmul.f32 %v1280, %v1118
      %v1285 = vmul.f32 %v1283, %v1118
      %v1286 = vadd.f32 %v1284, 1e-05
      %v1287 = vadd.f32 %v1285, 1e-05
      %v1288 = vrsqrt.pop %v1286
      %v1289 = vmul.f32 %v1288, %v1286
      %v1290 = vmul.f32 %v1289, %v1288
      %v1291 = vmul.f32 0.5, %v1290
      %v1292 = vsub.f32 1.5, %v1291
      %v1293 = vmul.f32 %v1288, %v1292
      %vm1294 = vweird.f32 %v1286
      %vm1295 = vweird.f32 %v1288
      %vm1296 = vmor %vm1294, %vm1295
      %v1297 = vsel %vm1296, %v1288, %v1293
      %v1298 = vrsqrt.pop %v1287
      %v1299 = vmul.f32 %v1298, %v1287
      %v1300 = vmul.f32 %v1299, %v1298
      %v1301 = vmul.f32 0.5, %v1300
      %v1302 = vsub.f32 1.5, %v1301
      %v1303 = vmul.f32 %v1298, %v1302
      %vm1304 = vweird.f32 %v1287
      %vm1305 = vweird.f32 %v1298
      %vm1306 = vmor %vm1304, %vm1305
      %v1307 = vsel %vm1306, %v1298, %v1303
      %v1308 = vmul.f32 %v1274, %v1297
      %v1309 = vmul.f32 %v1275, %v1307
      %v1311 = vperm.slane %v1264, 0
      %v1313 = vmul.f32 %v1308, %v1311
      %v1314 = vmul.f32 %v1309, %v1311
      %v1316 = vperm.slane %v1265, 0
      %v1318 = vadd.f32 %v1313, %v1316
      %v1319 = vadd.f32 %v1314, %v1316
      %v1320 = vld [vmem:[%s15] sm:$0x1]
      %v1321 = vld [vmem:[%s16] sm:$0x1]
      %v1322 = vsel %vm611, %v1318, 0.0
      %1323 = vadd.xlane.f32.xlu0 %v1322
      %v1324 = vpop.xlane.xlu0 %1323
      %v1325 = vsel %vm611, %v1319, 0.0
      %1326 = vadd.xlane.f32.xlu0 %v1325
      %v1327 = vpop.xlane.xlu0 %1326
      %v1328 = vmul.f32 %v1324, %v1118
      %v1329 = vmul.f32 %v1327, %v1118
      %v1330 = vsub.f32 %v1318, %v1328
      %v1331 = vsub.f32 %v1319, %v1329
      %v1332 = vmul.f32 %v1330, %v1330
      %v1333 = vmul.f32 %v1331, %v1331
      %v1334 = vsel %vm611, %v1332, 0.0
      %1335 = vadd.xlane.f32.xlu0 %v1334
      %v1336 = vpop.xlane.xlu0 %1335
      %v1337 = vsel %vm611, %v1333, 0.0
      %1338 = vadd.xlane.f32.xlu0 %v1337
      %v1339 = vpop.xlane.xlu0 %1338
      %v1340 = vmul.f32 %v1336, %v1118
      %v1341 = vmul.f32 %v1339, %v1118
      %v1342 = vadd.f32 %v1340, 1e-05
      %v1343 = vadd.f32 %v1341, 1e-05
      %v1344 = vrsqrt.pop %v1342
      %v1345 = vmul.f32 %v1344, %v1342
      %v1346 = vmul.f32 %v1345, %v1344
      %v1347 = vmul.f32 0.5, %v1346
      %v1348 = vsub.f32 1.5, %v1347
      %v1349 = vmul.f32 %v1344, %v1348
      %vm1350 = vweird.f32 %v1342
      %vm1351 = vweird.f32 %v1344
      %vm1352 = vmor %vm1350, %vm1351
      %v1353 = vsel %vm1352, %v1344, %v1349
      %v1354 = vrsqrt.pop %v1343
      %v1355 = vmul.f32 %v1354, %v1343
      %v1356 = vmul.f32 %v1355, %v1354
      %v1357 = vmul.f32 0.5, %v1356
      %v1358 = vsub.f32 1.5, %v1357
      %v1359 = vmul.f32 %v1354, %v1358
      %vm1360 = vweird.f32 %v1343
      %vm1361 = vweird.f32 %v1354
      %vm1362 = vmor %vm1360, %vm1361
      %v1363 = vsel %vm1362, %v1354, %v1359
      %v1364 = vmul.f32 %v1330, %v1353
      %v1365 = vmul.f32 %v1331, %v1363
      %v1367 = vperm.slane %v1320, 0
      %v1369 = vmul.f32 %v1364, %v1367
      %v1370 = vmul.f32 %v1365, %v1367
      %v1372 = vperm.slane %v1321, 0
      %v1374 = vadd.f32 %v1369, %v1372
      %v1375 = vadd.f32 %v1370, %v1372
      %1376 = vst.msk [vmem:[%s582] sm:$0xff] %vm611, %v1374
      %1377 = vst.msk [vmem:[%s582 + $0x8] sm:$0xff] %vm611, %v1375
      %p1378 = scmp.lt.s32.totalorder %s28, 1
      %s1379 = scalar_select %p1378, %s28, 1
      %s1380 = smul.addr %s1379, 2
      %s1381 = smul.addr %s1380, 8
      %s1382 = scalar_lea.vmem %s17, %s1381
      // Predicated region
      $region89: #{transformer_forward.5} parent=87 // pred_check
        %p1383 = pneg %p418
      $region90: #{transformer_forward.5} parent=87 // pred_check_branch
        %1385 = sbr.rel (%p1383) target = $region92
      $region91: #{transformer_forward.5} parent=87 // pred_region
        _
      $region92: #{transformer_forward.5} parent=87 // pred_fallthru
        _
    $region88: #{transformer_forward.5} parent=5 // pred_fallthru
      _
    %p1386 = scmp.le.s32.totalorder 2, %s23
    // Predicated region
    $region93: #{transformer_forward.5} parent=5 // pred_check
      %p1387 = pneg %p1386
    $region94: #{transformer_forward.5} parent=5 // pred_check_branch
      %1389 = sbr.rel (%p1387) target = $region96
    $region95: #{transformer_forward.5} parent=5 // pred_region
      %s1390 = ssub.s32 %s23, 2
      // Predicated region
      $region97: #{transformer_forward.5} parent=95 // pred_check
        %p1391 = pneg %p424
      $region98: #{transformer_forward.5} parent=95 // pred_check_branch
        %1393 = sbr.rel (%p1391) target = $region100
      $region99: #{transformer_forward.5} parent=95 // pred_region
        %p1394 = scmp.lt.s32.totalorder %s29, 1
        %s1395 = scalar_select %p1394, %s29, 1
        %s1396 = smul.addr %s1395, 2
        %s1397 = smul.addr %s1396, 8
        %s1398 = scalar_lea.vmem %s17, %s1397
      $region100: #{transformer_forward.5} parent=95 // pred_fallthru
        _
    $region96: #{transformer_forward.5} parent=5 // pred_fallthru
      _
  $region6: #{transformer_forward.5} parent=0 // loop_footer
    %s27 = sadd.s32 1, %s23
  $region7: #{transformer_forward.5} parent=0 // loop_footer_branch
    %22 = sbr.rel target = $region3
  $region8: #{transformer_forward.5} parent=0 // loop_exit
    _

// kernel: transformer_forward.4
$region0: #{transformer_forward.4}
  #allocation0 [shape = 'u32[]', space=smem, size = 0x4, offset = 0x4, fixed_abs, tag = 'smem constant byte address 0x4 - core index']
  #allocation1 [shape = 'u32[72,128]{1,0:T(1,128)}', space=vmem, size = 0x9000, scoped, tag = 'internal scratch']
  %s0 = inlined_call_operand.vmem [shape: f32[2,16,32], index: 0, kind: input, shape index: {}]
  %s1 = inlined_call_operand.vmem [shape: f32[2,16,32], index: 1, kind: input, shape index: {}]
  %s2 = inlined_call_operand.vmem [shape: f32[2,1,16], index: 2, kind: input, shape index: {}]
  %s3 = inlined_call_operand.vmem [shape: bf16[32,96], index: 3, kind: input, shape index: {}]
  %s4 = inlined_call_operand.vmem [shape: f32[1,96], index: 4, kind: input, shape index: {}]
  %s5 = inlined_call_operand.vmem [shape: bf16[32,32], index: 5, kind: input, shape index: {}]
  %s6 = inlined_call_operand.vmem [shape: f32[1,32], index: 6, kind: input, shape index: {}]
  %s7 = inlined_call_operand.vmem [shape: f32[1,32], index: 7, kind: input, shape index: {}]
  %s8 = inlined_call_operand.vmem [shape: f32[1,32], index: 8, kind: input, shape index: {}]
  %s9 = inlined_call_operand.vmem [shape: bf16[32,64], index: 9, kind: input, shape index: {}]
  %s10 = inlined_call_operand.vmem [shape: f32[1,64], index: 10, kind: input, shape index: {}]
  %s11 = inlined_call_operand.vmem [shape: bf16[64,32], index: 11, kind: input, shape index: {}]
  %s12 = inlined_call_operand.vmem [shape: f32[1,32], index: 12, kind: input, shape index: {}]
  %s13 = inlined_call_operand.vmem [shape: f32[1,32], index: 13, kind: input, shape index: {}]
  %s14 = inlined_call_operand.vmem [shape: f32[1,32], index: 14, kind: input, shape index: {}]
  %s15 = inlined_call_operand.vmem [shape: f32[1,32], index: 15, kind: input, shape index: {}]
  %s16 = inlined_call_operand.vmem [shape: f32[1,32], index: 16, kind: input, shape index: {}]
  %s17 = inlined_call_operand.vmem [shape: f32[2,16,32], index: 17, kind: output, shape index: {}]
  %s18 = sld [smem:[#allocation0]]
  $region101: #{transformer_forward.4} parent=0
    _
  %s20 = ssub.s32 1, %s18
  %s21 = scalar_select 0, %s20, %s18
  loop: start=0, step=1, limit=4
  $region2: #{transformer_forward.4} parent=0 // loop_pre_header
    _
  $region3: #{transformer_forward.4} parent=0 // loop_header
    %s23 = sphi 0, %s27
    %p24 = scmp.ge.s32.totalorder %s23, 4
    %s33 = sphi 0, %s35
    %s36 = sphi 0, %s33
    %s37 = sphi 0, %s36
    %s53 = sphi 0, %s37
    %s59 = sphi 0, %s61
    %s62 = sphi 0, %s59
    %s63 = sphi 0, %s62
    %s79 = sphi 0, %s63
    %s85 = sphi 0, %s87
    %s88 = sphi 0, %s85
    %s89 = sphi 0, %s88
    %s105 = sphi 0, %s89
    %s109 = sphi 0, %s109
    %s111 = sphi 0, %s109
    %s112 = sphi 0, %s111
    %s126 = sphi 0, %s112
    %s130 = sphi 0, %s130
    %s132 = sphi 0, %s130
    %s133 = sphi 0, %s132
    %s147 = sphi 0, %s133
    %s151 = sphi 0, %s151
    %s153 = sphi 0, %s151
    %s154 = sphi 0, %s153
    %s168 = sphi 0, %s154
    %s172 = sphi 0, %s172
    %s174 = sphi 0, %s172
    %s175 = sphi 0, %s174
    %s189 = sphi 0, %s175
    %s193 = sphi 0, %s193
    %s195 = sphi 0, %s193
    %s196 = sphi 0, %s195
    %s210 = sphi 0, %s196
    %s214 = sphi 0, %s214
    %s216 = sphi 0, %s214
    %s217 = sphi 0, %s216
    %s231 = sphi 0, %s217
    %s235 = sphi 0, %s235
    %s237 = sphi 0, %s235
    %s238 = sphi 0, %s237
    %s252 = sphi 0, %s238
    %s256 = sphi 0, %s256
    %s258 = sphi 0, %s256
    %s259 = sphi 0, %s258
    %s273 = sphi 0, %s259
    %s277 = sphi 0, %s277
    %s279 = sphi 0, %s277
    %s280 = sphi 0, %s279
    %s294 = sphi 0, %s280
    %s298 = sphi 0, %s298
    %s300 = sphi 0, %s298
    %s301 = sphi 0, %s300
    %s315 = sphi 0, %s301
    %s319 = sphi 0, %s319
    %s321 = sphi 0, %s319
    %s322 = sphi 0, %s321
    %s336 = sphi 0, %s322
    %s340 = sphi 0, %s340
    %s342 = sphi 0, %s340
    %s343 = sphi 0, %s342
    %s357 = sphi 0, %s343
    %s361 = sphi 0, %s361
    %s363 = sphi 0, %s361
    %s364 = sphi 0, %s363
    %s378 = sphi 0, %s364
    %s382 = sphi 0, %s382
    %s384 = sphi 0, %s382
    %s385 = sphi 0, %s384
    %s399 = sphi 0, %s385
    %s405 = sphi 0, %s407
    %s408 = sphi 0, %s405
    %s409 = sphi 0, %s408
    %s425 = sphi 0, %s409
  $region4: #{transformer_forward.4} parent=0 // loop_header_branch
    %26 = sbr.rel (%p24) target = $region8
  $region5: #{transformer_forward.4} parent=0 // loop_body
    %s28 = ssub.s32 %s23, 1
    %s29 = ssub.s32 %s23, 2
    %s30 = sadd.s32 %s23, 1
    %s31 = ssub.s32 %s23, %s30
    %p32 = scmp.eq.s32.totalorder %s31, 0
    %s34 = sadd.s32 %s33, 1
    %s35 = scalar_select %p32, %s33, %s34
    %p38 = pneg %p32
    %p39 = scmp.eq.s32.totalorder %s23, 1
    %p40 = por %p38, %p39
    %p41 = scmp.ne.s32.totalorder %s33, %s36
    %p42 = scmp.eq.s32.totalorder %s23, 0
    %p43 = por %p41, %p42
    %p44 = scmp.ne.s32.totalorder %s33, %s36
    %p45 = scmp.eq.s32.totalorder %s28, 1
    %p46 = por %p44, %p45
    %p47 = scmp.ne.s32.totalorder %s36, %s37
    %p48 = scmp.eq.s32.totalorder %s28, 0
    %p49 = por %p47, %p48
    %p50 = scmp.ne.s32.totalorder %s36, %s37
    %p51 = scmp.eq.s32.totalorder %s29, 1
    %p52 = por %p50, %p51
    %p54 = scmp.ne.s32.totalorder %s37, %s53
    %p55 = scmp.eq.s32.totalorder %s29, 0
    %p56 = por %p54, %p55
    %s57 = ssub.s32 %s23, %s30
    %p58 = scmp.eq.s32.totalorder %s57, 0
    %s60 = sadd.s32 %s59, 1
    %s61 = scalar_select %p58, %s59, %s60
    %p64 = pneg %p58
    %p65 = scmp.eq.s32.totalorder %s23, 1
    %p66 = por %p64, %p65
    %p67 = scmp.ne.s32.totalorder %s59, %s62
    %p68 = scmp.eq.s32.totalorder %s23, 0
    %p69 = por %p67, %p68
    %p70 = scmp.ne.s32.totalorder %s59, %s62
    %p71 = scmp.eq.s32.totalorder %s28, 1
    %p72 = por %p70, %p71
    %p73 = scmp.ne.s32.totalorder %s62, %s63
    %p74 = scmp.eq.s32.totalorder %s28, 0
    %p75 = por %p73, %p74
    %p76 = scmp.ne.s32.totalorder %s62, %s63
    %p77 = scmp.eq.s32.totalorder %s29, 1
    %p78 = por %p76, %p77
    %p80 = scmp.ne.s32.totalorder %s63, %s79
    %p81 = scmp.eq.s32.totalorder %s29, 0
    %p82 = por %p80, %p81
    %s83 = ssub.s32 %s23, %s30
    %p84 = scmp.eq.s32.totalorder %s83, 0
    %s86 = sadd.s32 %s85, 1
    %s87 = scalar_select %p84, %s85, %s86
    %p90 = pneg %p84
    %p91 = scmp.eq.s32.totalorder %s23, 1
    %p92 = por %p90, %p91
    %p93 = scmp.ne.s32.totalorder %s85, %s88
    %p94 = scmp.eq.s32.totalorder %s23, 0
    %p95 = por %p93, %p94
    %p96 = scmp.ne.s32.totalorder %s85, %s88
    %p97 = scmp.eq.s32.totalorder %s28, 1
    %p98 = por %p96, %p97
    %p99 = scmp.ne.s32.totalorder %s88, %s89
    %p100 = scmp.eq.s32.totalorder %s28, 0
    %p101 = por %p99, %p100
    %p102 = scmp.ne.s32.totalorder %s88, %s89
    %p103 = scmp.eq.s32.totalorder %s29, 1
    %p104 = por %p102, %p103
    %p106 = scmp.ne.s32.totalorder %s89, %s105
    %p107 = scmp.eq.s32.totalorder %s29, 0
    %p108 = por %p106, %p107
    %s110 = sadd.s32 %s109, 1
    %p113 = scmp.eq.s32.totalorder %s23, 1
    %p114 = scmp.ne.s32.totalorder %s109, %s111
    %p115 = scmp.eq.s32.totalorder %s23, 0
    %p116 = por %p114, %p115
    %p117 = scmp.ne.s32.totalorder %s109, %s111
    %p118 = scmp.eq.s32.totalorder %s28, 1
    %p119 = por %p117, %p118
    %p120 = scmp.ne.s32.totalorder %s111, %s112
    %p121 = scmp.eq.s32.totalorder %s28, 0
    %p122 = por %p120, %p121
    %p123 = scmp.ne.s32.totalorder %s111, %s112
    %p124 = scmp.eq.s32.totalorder %s29, 1
    %p125 = por %p123, %p124
    %p127 = scmp.ne.s32.totalorder %s112, %s126
    %p128 = scmp.eq.s32.totalorder %s29, 0
    %p129 = por %p127, %p128
    %s131 = sadd.s32 %s130, 1
    %p134 = scmp.eq.s32.totalorder %s23, 1
    %p135 = scmp.ne.s32.totalorder %s130, %s132
    %p136 = scmp.eq.s32.totalorder %s23, 0
    %p137 = por %p135, %p136
    %p138 = scmp.ne.s32.totalorder %s130, %s132
    %p139 = scmp.eq.s32.totalorder %s28, 1
    %p140 = por %p138, %p139
    %p141 = scmp.ne.s32.totalorder %s132, %s133
    %p142 = scmp.eq.s32.totalorder %s28, 0
    %p143 = por %p141, %p142
    %p144 = scmp.ne.s32.totalorder %s132, %s133
    %p145 = scmp.eq.s32.totalorder %s29, 1
    %p146 = por %p144, %p145
    %p148 = scmp.ne.s32.totalorder %s133, %s147
    %p149 = scmp.eq.s32.totalorder %s29, 0
    %p150 = por %p148, %p149
    %s152 = sadd.s32 %s151, 1
    %p155 = scmp.eq.s32.totalorder %s23, 1
    %p156 = scmp.ne.s32.totalorder %s151, %s153
    %p157 = scmp.eq.s32.totalorder %s23, 0
    %p158 = por %p156, %p157
    %p159 = scmp.ne.s32.totalorder %s151, %s153
    %p160 = scmp.eq.s32.totalorder %s28, 1
    %p161 = por %p159, %p160
    %p162 = scmp.ne.s32.totalorder %s153, %s154
    %p163 = scmp.eq.s32.totalorder %s28, 0
    %p164 = por %p162, %p163
    %p165 = scmp.ne.s32.totalorder %s153, %s154
    %p166 = scmp.eq.s32.totalorder %s29, 1
    %p167 = por %p165, %p166
    %p169 = scmp.ne.s32.totalorder %s154, %s168
    %p170 = scmp.eq.s32.totalorder %s29, 0
    %p171 = por %p169, %p170
    %s173 = sadd.s32 %s172, 1
    %p176 = scmp.eq.s32.totalorder %s23, 1
    %p177 = scmp.ne.s32.totalorder %s172, %s174
    %p178 = scmp.eq.s32.totalorder %s23, 0
    %p179 = por %p177, %p178
    %p180 = scmp.ne.s32.totalorder %s172, %s174
    %p181 = scmp.eq.s32.totalorder %s28, 1
    %p182 = por %p180, %p181
    %p183 = scmp.ne.s32.totalorder %s174, %s175
    %p184 = scmp.eq.s32.totalorder %s28, 0
    %p185 = por %p183, %p184
    %p186 = scmp.ne.s32.totalorder %s174, %s175
    %p187 = scmp.eq.s32.totalorder %s29, 1
    %p188 = por %p186, %p187
    %p190 = scmp.ne.s32.totalorder %s175, %s189
    %p191 = scmp.eq.s32.totalorder %s29, 0
    %p192 = por %p190, %p191
    %s194 = sadd.s32 %s193, 1
    %p197 = scmp.eq.s32.totalorder %s23, 1
    %p198 = scmp.ne.s32.totalorder %s193, %s195
    %p199 = scmp.eq.s32.totalorder %s23, 0
    %p200 = por %p198, %p199
    %p201 = scmp.ne.s32.totalorder %s193, %s195
    %p202 = scmp.eq.s32.totalorder %s28, 1
    %p203 = por %p201, %p202
    %p204 = scmp.ne.s32.totalorder %s195, %s196
    %p205 = scmp.eq.s32.totalorder %s28, 0
    %p206 = por %p204, %p205
    %p207 = scmp.ne.s32.totalorder %s195, %s196
    %p208 = scmp.eq.s32.totalorder %s29, 1
    %p209 = por %p207, %p208
    %p211 = scmp.ne.s32.totalorder %s196, %s210
    %p212 = scmp.eq.s32.totalorder %s29, 0
    %p213 = por %p211, %p212
    %s215 = sadd.s32 %s214, 1
    %p218 = scmp.eq.s32.totalorder %s23, 1
    %p219 = scmp.ne.s32.totalorder %s214, %s216
    %p220 = scmp.eq.s32.totalorder %s23, 0
    %p221 = por %p219, %p220
    %p222 = scmp.ne.s32.totalorder %s214, %s216
    %p223 = scmp.eq.s32.totalorder %s28, 1
    %p224 = por %p222, %p223
    %p225 = scmp.ne.s32.totalorder %s216, %s217
    %p226 = scmp.eq.s32.totalorder %s28, 0
    %p227 = por %p225, %p226
    %p228 = scmp.ne.s32.totalorder %s216, %s217
    %p229 = scmp.eq.s32.totalorder %s29, 1
    %p230 = por %p228, %p229
    %p232 = scmp.ne.s32.totalorder %s217, %s231
    %p233 = scmp.eq.s32.totalorder %s29, 0
    %p234 = por %p232, %p233
    %s236 = sadd.s32 %s235, 1
    %p239 = scmp.eq.s32.totalorder %s23, 1
    %p240 = scmp.ne.s32.totalorder %s235, %s237
    %p241 = scmp.eq.s32.totalorder %s23, 0
    %p242 = por %p240, %p241
    %p243 = scmp.ne.s32.totalorder %s235, %s237
    %p244 = scmp.eq.s32.totalorder %s28, 1
    %p245 = por %p243, %p244
    %p246 = scmp.ne.s32.totalorder %s237, %s238
    %p247 = scmp.eq.s32.totalorder %s28, 0
    %p248 = por %p246, %p247
    %p249 = scmp.ne.s32.totalorder %s237, %s238
    %p250 = scmp.eq.s32.totalorder %s29, 1
    %p251 = por %p249, %p250
    %p253 = scmp.ne.s32.totalorder %s238, %s252
    %p254 = scmp.eq.s32.totalorder %s29, 0
    %p255 = por %p253, %p254
    %s257 = sadd.s32 %s256, 1
    %p260 = scmp.eq.s32.totalorder %s23, 1
    %p261 = scmp.ne.s32.totalorder %s256, %s258
    %p262 = scmp.eq.s32.totalorder %s23, 0
    %p263 = por %p261, %p262
    %p264 = scmp.ne.s32.totalorder %s256, %s258
    %p265 = scmp.eq.s32.totalorder %s28, 1
    %p266 = por %p264, %p265
    %p267 = scmp.ne.s32.totalorder %s258, %s259
    %p268 = scmp.eq.s32.totalorder %s28, 0
    %p269 = por %p267, %p268
    %p270 = scmp.ne.s32.totalorder %s258, %s259
    %p271 = scmp.eq.s32.totalorder %s29, 1
    %p272 = por %p270, %p271
    %p274 = scmp.ne.s32.totalorder %s259, %s273
    %p275 = scmp.eq.s32.totalorder %s29, 0
    %p276 = por %p274, %p275
    %s278 = sadd.s32 %s277, 1
    %p281 = scmp.eq.s32.totalorder %s23, 1
    %p282 = scmp.ne.s32.totalorder %s277, %s279
    %p283 = scmp.eq.s32.totalorder %s23, 0
    %p284 = por %p282, %p283
    %p285 = scmp.ne.s32.totalorder %s277, %s279
    %p286 = scmp.eq.s32.totalorder %s28, 1
    %p287 = por %p285, %p286
    %p288 = scmp.ne.s32.totalorder %s279, %s280
    %p289 = scmp.eq.s32.totalorder %s28, 0
    %p290 = por %p288, %p289
    %p291 = scmp.ne.s32.totalorder %s279, %s280
    %p292 = scmp.eq.s32.totalorder %s29, 1
    %p293 = por %p291, %p292
    %p295 = scmp.ne.s32.totalorder %s280, %s294
    %p296 = scmp.eq.s32.totalorder %s29, 0
    %p297 = por %p295, %p296
    %s299 = sadd.s32 %s298, 1
    %p302 = scmp.eq.s32.totalorder %s23, 1
    %p303 = scmp.ne.s32.totalorder %s298, %s300
    %p304 = scmp.eq.s32.totalorder %s23, 0
    %p305 = por %p303, %p304
    %p306 = scmp.ne.s32.totalorder %s298, %s300
    %p307 = scmp.eq.s32.totalorder %s28, 1
    %p308 = por %p306, %p307
    %p309 = scmp.ne.s32.totalorder %s300, %s301
    %p310 = scmp.eq.s32.totalorder %s28, 0
    %p311 = por %p309, %p310
    %p312 = scmp.ne.s32.totalorder %s300, %s301
    %p313 = scmp.eq.s32.totalorder %s29, 1
    %p314 = por %p312, %p313
    %p316 = scmp.ne.s32.totalorder %s301, %s315
    %p317 = scmp.eq.s32.totalorder %s29, 0
    %p318 = por %p316, %p317
    %s320 = sadd.s32 %s319, 1
    %p323 = scmp.eq.s32.totalorder %s23, 1
    %p324 = scmp.ne.s32.totalorder %s319, %s321
    %p325 = scmp.eq.s32.totalorder %s23, 0
    %p326 = por %p324, %p325
    %p327 = scmp.ne.s32.totalorder %s319, %s321
    %p328 = scmp.eq.s32.totalorder %s28, 1
    %p329 = por %p327, %p328
    %p330 = scmp.ne.s32.totalorder %s321, %s322
    %p331 = scmp.eq.s32.totalorder %s28, 0
    %p332 = por %p330, %p331
    %p333 = scmp.ne.s32.totalorder %s321, %s322
    %p334 = scmp.eq.s32.totalorder %s29, 1
    %p335 = por %p333, %p334
    %p337 = scmp.ne.s32.totalorder %s322, %s336
    %p338 = scmp.eq.s32.totalorder %s29, 0
    %p339 = por %p337, %p338
    %s341 = sadd.s32 %s340, 1
    %p344 = scmp.eq.s32.totalorder %s23, 1
    %p345 = scmp.ne.s32.totalorder %s340, %s342
    %p346 = scmp.eq.s32.totalorder %s23, 0
    %p347 = por %p345, %p346
    %p348 = scmp.ne.s32.totalorder %s340, %s342
    %p349 = scmp.eq.s32.totalorder %s28, 1
    %p350 = por %p348, %p349
    %p351 = scmp.ne.s32.totalorder %s342, %s343
    %p352 = scmp.eq.s32.totalorder %s28, 0
    %p353 = por %p351, %p352
    %p354 = scmp.ne.s32.totalorder %s342, %s343
    %p355 = scmp.eq.s32.totalorder %s29, 1
    %p356 = por %p354, %p355
    %p358 = scmp.ne.s32.totalorder %s343, %s357
    %p359 = scmp.eq.s32.totalorder %s29, 0
    %p360 = por %p358, %p359
    %s362 = sadd.s32 %s361, 1
    %p365 = scmp.eq.s32.totalorder %s23, 1
    %p366 = scmp.ne.s32.totalorder %s361, %s363
    %p367 = scmp.eq.s32.totalorder %s23, 0
    %p368 = por %p366, %p367
    %p369 = scmp.ne.s32.totalorder %s361, %s363
    %p370 = scmp.eq.s32.totalorder %s28, 1
    %p371 = por %p369, %p370
    %p372 = scmp.ne.s32.totalorder %s363, %s364
    %p373 = scmp.eq.s32.totalorder %s28, 0
    %p374 = por %p372, %p373
    %p375 = scmp.ne.s32.totalorder %s363, %s364
    %p376 = scmp.eq.s32.totalorder %s29, 1
    %p377 = por %p375, %p376
    %p379 = scmp.ne.s32.totalorder %s364, %s378
    %p380 = scmp.eq.s32.totalorder %s29, 0
    %p381 = por %p379, %p380
    %s383 = sadd.s32 %s382, 1
    %p386 = scmp.eq.s32.totalorder %s23, 1
    %p387 = scmp.ne.s32.totalorder %s382, %s384
    %p388 = scmp.eq.s32.totalorder %s23, 0
    %p389 = por %p387, %p388
    %p390 = scmp.ne.s32.totalorder %s382, %s384
    %p391 = scmp.eq.s32.totalorder %s28, 1
    %p392 = por %p390, %p391
    %p393 = scmp.ne.s32.totalorder %s384, %s385
    %p394 = scmp.eq.s32.totalorder %s28, 0
    %p395 = por %p393, %p394
    %p396 = scmp.ne.s32.totalorder %s384, %s385
    %p397 = scmp.eq.s32.totalorder %s29, 1
    %p398 = por %p396, %p397
    %p400 = scmp.ne.s32.totalorder %s385, %s399
    %p401 = scmp.eq.s32.totalorder %s29, 0
    %p402 = por %p400, %p401
    %s403 = ssub.s32 %s23, %s30
    %p404 = scmp.eq.s32.totalorder %s403, 0
    %s406 = sadd.s32 %s405, 1
    %s407 = scalar_select %p404, %s405, %s406
    %p410 = pneg %p404
    %p411 = scmp.eq.s32.totalorder %s23, 1
    %p412 = por %p410, %p411
    %p413 = scmp.ne.s32.totalorder %s405, %s408
    %p414 = scmp.eq.s32.totalorder %s23, 0
    %p415 = por %p413, %p414
    %p416 = scmp.ne.s32.totalorder %s405, %s408
    %p417 = scmp.eq.s32.totalorder %s28, 1
    %p418 = por %p416, %p417
    %p419 = scmp.ne.s32.totalorder %s408, %s409
    %p420 = scmp.eq.s32.totalorder %s28, 0
    %p421 = por %p419, %p420
    %p422 = scmp.ne.s32.totalorder %s408, %s409
    %p423 = scmp.eq.s32.totalorder %s29, 1
    %p424 = por %p422, %p423
    %p426 = scmp.ne.s32.totalorder %s409, %s425
    %p427 = scmp.eq.s32.totalorder %s29, 0
    %p428 = por %p426, %p427
    %p429 = scmp.le.s32.totalorder 1, %s23
    %p430 = scmp.lt.s32.totalorder %s23, 3
    %p431 = pnand %p429, %p430
    %p432 = pneg %p431
    // Predicated region
    $region9: #{transformer_forward.4} parent=5 // pred_check
      _
    $region10: #{transformer_forward.4} parent=5 // pred_check_branch
      %434 = sbr.rel (%p431) target = $region12
    $region11: #{transformer_forward.4} parent=5 // pred_region
      %s435 = ssub.s32 %s23, 1
      // Predicated region
      $region13: #{transformer_forward.4} parent=11 // pred_check
        %p436 = pneg %p122
      $region14: #{transformer_forward.4} parent=11 // pred_check_branch
        %438 = sbr.rel (%p436) target = $region16
      $region15: #{transformer_forward.4} parent=11 // pred_region
        _
      $region16: #{transformer_forward.4} parent=11 // pred_fallthru
        _
      // Predicated region
      $region17: #{transformer_forward.4} parent=11 // pred_check
        %p439 = pneg %p143
      $region18: #{transformer_forward.4} parent=11 // pred_check_branch
        %441 = sbr.rel (%p439) target = $region20
      $region19: #{transformer_forward.4} parent=11 // pred_region
        _
      $region20: #{transformer_forward.4} parent=11 // pred_fallthru
        _
      // Predicated region
      $region21: #{transformer_forward.4} parent=11 // pred_check
        %p442 = pneg %p164
      $region22: #{transformer_forward.4} parent=11 // pred_check_branch
        %444 = sbr.rel (%p442) target = $region24
      $region23: #{transformer_forward.4} parent=11 // pred_region
        _
      $region24: #{transformer_forward.4} parent=11 // pred_fallthru
        _
      // Predicated region
      $region25: #{transformer_forward.4} parent=11 // pred_check
        %p445 = pneg %p185
      $region26: #{transformer_forward.4} parent=11 // pred_check_branch
        %447 = sbr.rel (%p445) target = $region28
      $region27: #{transformer_forward.4} parent=11 // pred_region
        _
      $region28: #{transformer_forward.4} parent=11 // pred_fallthru
        _
      // Predicated region
      $region29: #{transformer_forward.4} parent=11 // pred_check
        %p448 = pneg %p206
      $region30: #{transformer_forward.4} parent=11 // pred_check_branch
        %450 = sbr.rel (%p448) target = $region32
      $region31: #{transformer_forward.4} parent=11 // pred_region
        _
      $region32: #{transformer_forward.4} parent=11 // pred_fallthru
        _
      // Predicated region
      $region33: #{transformer_forward.4} parent=11 // pred_check
        %p451 = pneg %p227
      $region34: #{transformer_forward.4} parent=11 // pred_check_branch
        %453 = sbr.rel (%p451) target = $region36
      $region35: #{transformer_forward.4} parent=11 // pred_region
        _
      $region36: #{transformer_forward.4} parent=11 // pred_fallthru
        _
      // Predicated region
      $region37: #{transformer_forward.4} parent=11 // pred_check
        %p454 = pneg %p248
      $region38: #{transformer_forward.4} parent=11 // pred_check_branch
        %456 = sbr.rel (%p454) target = $region40
      $region39: #{transformer_forward.4} parent=11 // pred_region
        _
      $region40: #{transformer_forward.4} parent=11 // pred_fallthru
        _
      // Predicated region
      $region41: #{transformer_forward.4} parent=11 // pred_check
        %p457 = pneg %p269
      $region42: #{transformer_forward.4} parent=11 // pred_check_branch
        %459 = sbr.rel (%p457) target = $region44
      $region43: #{transformer_forward.4} parent=11 // pred_region
        _
      $region44: #{transformer_forward.4} parent=11 // pred_fallthru
        _
      // Predicated region
      $region45: #{transformer_forward.4} parent=11 // pred_check
        %p460 = pneg %p290
      $region46: #{transformer_forward.4} parent=11 // pred_check_branch
        %462 = sbr.rel (%p460) target = $region48
      $region47: #{transformer_forward.4} parent=11 // pred_region
        _
      $region48: #{transformer_forward.4} parent=11 // pred_fallthru
        _
      // Predicated region
      $region49: #{transformer_forward.4} parent=11 // pred_check
        %p463 = pneg %p311
      $region50: #{transformer_forward.4} parent=11 // pred_check_branch
        %465 = sbr.rel (%p463) target = $region52
      $region51: #{transformer_forward.4} parent=11 // pred_region
        _
      $region52: #{transformer_forward.4} parent=11 // pred_fallthru
        _
      // Predicated region
      $region53: #{transformer_forward.4} parent=11 // pred_check
        %p466 = pneg %p332
      $region54: #{transformer_forward.4} parent=11 // pred_check_branch
        %468 = sbr.rel (%p466) target = $region56
      $region55: #{transformer_forward.4} parent=11 // pred_region
        _
      $region56: #{transformer_forward.4} parent=11 // pred_fallthru
        _
      // Predicated region
      $region57: #{transformer_forward.4} parent=11 // pred_check
        %p469 = pneg %p353
      $region58: #{transformer_forward.4} parent=11 // pred_check_branch
        %471 = sbr.rel (%p469) target = $region60
      $region59: #{transformer_forward.4} parent=11 // pred_region
        _
      $region60: #{transformer_forward.4} parent=11 // pred_fallthru
        _
      // Predicated region
      $region61: #{transformer_forward.4} parent=11 // pred_check
        %p472 = pneg %p374
      $region62: #{transformer_forward.4} parent=11 // pred_check_branch
        %474 = sbr.rel (%p472) target = $region64
      $region63: #{transformer_forward.4} parent=11 // pred_region
        _
      $region64: #{transformer_forward.4} parent=11 // pred_fallthru
        _
      // Predicated region
      $region65: #{transformer_forward.4} parent=11 // pred_check
        %p475 = pneg %p395
      $region66: #{transformer_forward.4} parent=11 // pred_check_branch
        %477 = sbr.rel (%p475) target = $region68
      $region67: #{transformer_forward.4} parent=11 // pred_region
        _
      $region68: #{transformer_forward.4} parent=11 // pred_fallthru
        _
    $region12: #{transformer_forward.4} parent=5 // pred_fallthru
      _
    %p478 = scmp.lt.s32.totalorder %s23, 2
    // Predicated region
    $region69: #{transformer_forward.4} parent=5 // pred_check
      %p479 = pneg %p478
    $region70: #{transformer_forward.4} parent=5 // pred_check_branch
      %481 = sbr.rel (%p479) target = $region72
    $region71: #{transformer_forward.4} parent=5 // pred_region
      // Predicated region
      $region73: #{transformer_forward.4} parent=71 // pred_check
        %p482 = pneg %p43
      $region74: #{transformer_forward.4} parent=71 // pred_check_branch
        %484 = sbr.rel (%p482) target = $region76
      $region75: #{transformer_forward.4} parent=71 // pred_region
        %p485 = scmp.lt.s32.totalorder %s23, 1
        %s486 = scalar_select %p485, %s23, 1
        %s487 = smul.addr %s486, 2
        %s488 = smul.addr %s487, 8
        %s489 = scalar_lea.vmem %s0, %s488
      $region76: #{transformer_forward.4} parent=71 // pred_fallthru
        _
      // Predicated region
      $region77: #{transformer_forward.4} parent=71 // pred_check
        %p490 = pneg %p69
      $region78: #{transformer_forward.4} parent=71 // pred_check_branch
        %492 = sbr.rel (%p490) target = $region80
      $region79: #{transformer_forward.4} parent=71 // pred_region
        %p493 = scmp.lt.s32.totalorder %s23, 1
        %s494 = scalar_select %p493, %s23, 1
        %s495 = smul.addr %s494, 2
        %s496 = smul.addr %s495, 8
        %s497 = scalar_lea.vmem %s1, %s496
      $region80: #{transformer_forward.4} parent=71 // pred_fallthru
        _
      // Predicated region
      $region81: #{transformer_forward.4} parent=71 // pred_check
        %p498 = pneg %p95
      $region82: #{transformer_forward.4} parent=71 // pred_check_branch
        %500 = sbr.rel (%p498) target = $region84
      $region83: #{transformer_forward.4} parent=71 // pred_region
        %p501 = scmp.lt.s32.totalorder %s23, 1
        %s502 = scalar_select %p501, %s23, 1
        %s503 = scalar_lea.vmem %s2, %s502
      $region84: #{transformer_forward.4} parent=71 // pred_fallthru
        _
    $region72: #{transformer_forward.4} parent=5 // pred_fallthru
      _
    %p504 = scmp.le.s32.totalorder 1, %s23
    %p505 = scmp.lt.s32.totalorder %s23, 3
    %p506 = pnand %p504, %p505
    %p507 = pneg %p506
    // Predicated region
    $region85: #{transformer_forward.4} parent=5 // pred_check
      _
    $region86: #{transformer_forward.4} parent=5 // pred_check_branch
      %509 = sbr.rel (%p506) target = $region88
    $region87: #{transformer_forward.4} parent=5 // pred_region
      %s510 = ssub.s32 %s23, 1
      %p511 = scmp.lt.s32.totalorder %s28, 1
      %s512 = scalar_select %p511, %s28, 1
      %s513 = smul.addr %s512, 2
      %s514 = smul.addr %s513, 8
      %s515 = scalar_lea.vmem %s0, %s514
      %p516 = pneg %p49
      %p517 = pneg %p46
      %p518 = scmp.lt.s32.totalorder %s28, 1
      %s519 = scalar_select %p518, %s28, 1
      %s520 = smul.addr %s519, 2
      %s521 = smul.addr %s520, 8
      %s522 = scalar_lea.vmem %s1, %s521
      %p523 = pneg %p75
      %p524 = pneg %p72
      %p525 = scmp.lt.s32.totalorder %s28, 1
      %s526 = scalar_select %p525, %s28, 1
      %s527 = scalar_lea.vmem %s2, %s526
      %p528 = pneg %p101
      %p529 = pneg %p98
      %p530 = pneg %p122
      %p531 = pneg %p119
      %p532 = pneg %p143
      %p533 = pneg %p140
      %p534 = pneg %p164
      %p535 = pneg %p161
      %p536 = pneg %p185
      %p537 = pneg %p182
      %p538 = pneg %p206
      %p539 = pneg %p203
      %p540 = pneg %p227
      %p541 = pneg %p224
      %p542 = pneg %p248
      %p543 = pneg %p245
      %p544 = pneg %p269
      %p545 = pneg %p266
      %p546 = pneg %p290
      %p547 = pneg %p287
      %p548 = pneg %p311
      %p549 = pneg %p308
      %p550 = pneg %p332
      %p551 = pneg %p329
      %p552 = pneg %p353
      %p553 = pneg %p350
      %p554 = pneg %p374
      %p555 = pneg %p371
      %p556 = pneg %p395
      %p557 = pneg %p392
      %p558 = pneg %p421
      %p559 = pneg %p418
      %p560 = scmp.lt.s32.totalorder %s28, 1
      %s561 = scalar_select %p560, %s28, 1
      %s562 = smul.addr %s561, 2
      %s563 = smul.addr %s562, 8
      %s564 = scalar_lea.vmem %s17, %s563
      %p565 = scmp.lt.s32.totalorder %s28, 1
      %s566 = scalar_select %p565, %s28, 1
      %s567 = smul.addr %s566, 2
      %s568 = smul.addr %s567, 8
      %s569 = scalar_lea.vmem %s0, %s568
      %p570 = scmp.lt.s32.totalorder %s28, 1
      %s571 = scalar_select %p570, %s28, 1
      %s572 = smul.addr %s571, 2
      %s573 = smul.addr %s572, 8
      %s574 = scalar_lea.vmem %s1, %s573
      %p575 = scmp.lt.s32.totalorder %s28, 1
      %s576 = scalar_select %p575, %s28, 1
      %s577 = scalar_lea.vmem %s2, %s576
      %p578 = scmp.lt.s32.totalorder %s28, 1
      %s579 = scalar_select %p578, %s28, 1
      %s580 = smul.addr %s579, 2
      %s581 = smul.addr %s580, 8
      %s582 = scalar_lea.vmem %s17, %s581
      %v584 = vld [vmem:[%s569] sm:$0xff]
      %v585 = vld [vmem:[%s569 + $0x8] sm:$0xff]
      %v586 = vld [vmem:[%s574] sm:$0xff]
      %v587 = vld [vmem:[%s574 + $0x8] sm:$0xff]
      %v588 = vadd.f32 %v584, %v586
      %v589 = vadd.f32 %v585, %v587
      %v590 = vld [vmem:[%s3] sm:$0xf]
      %v591 = vld [vmem:[%s3 + $0x4] sm:$0xf]
      %v592 = vld [vmem:[%s3 + $0x8] sm:$0xf]
      %v593 = vld [vmem:[%s3 + $0xc] sm:$0xf]
      %v594 = vpack.c.bf16 %v589, %v588
      %v595 = vld [vmem:[%s4] sm:$0x1]
      %v597 = vperm.slane %v595, 0
      %v603 = vunpack.c.l.b16 %v590
      %v604 = vunpack.c.l.b16 %v591
      %v605 = vunpack.c.l.b16 %v592
      %v606 = vunpack.c.l.b16 %v593
      %v607 = vpack.c.b16 %v604, %v603
      %v608 = vpack.c.b16 %v606, %v605
      %vm611 = vcmask 261120
      %v613 = vsel %vm611, %v594, 0
      %615 = vmatpush.bf16.msra.mxu0 0
      %616 = vmatpush.bf16.msra.mxu0 0
      %617 = vmatpush.bf16.msra.mxu0 0
      %618 = vmatpush.bf16.msra.mxu0 0
      %619 = vmatpush.bf16.msra.mxu0 0
      %620 = vmatpush.bf16.msra.mxu0 0
      %621 = vmatpush.bf16.msra.mxu0 %v608
      %622 = vmatpush.bf16.msra.mxu0 %v607
      %623 = vmatmul.bf16.gmra.mxu0 %v613
      %v624 = vpop.f32.mrf.mxu0
      %v625 = vadd.f32 %v597, %v624
      %v626 = vpop.f32.mrf.mxu0
      %v627 = vadd.f32 %v597, %v626
      %628 = vdwg.mxu0
      %v629 = vpack.c.bf16 %v585, %v584
      %630 = vrot.lane.b32.xlu0 %v607, 64
      %v631 = vpop.permute.xlu0 %630
      %632 = vrot.lane.b32.xlu0 %v608, 64
      %v633 = vpop.permute.xlu0 %632
      %636 = vrot.lane.b32.xlu0 %v597, 64
      %v637 = vpop.permute.xlu0 %636
      %v640 = vsel %vm611, %v629, 0
      %642 = vmatpush.bf16.msra.mxu0 0
      %643 = vmatpush.bf16.msra.mxu0 0
      %644 = vmatpush.bf16.msra.mxu0 0
      %645 = vmatpush.bf16.msra.mxu0 0
      %646 = vmatpush.bf16.msra.mxu0 0
      %647 = vmatpush.bf16.msra.mxu0 0
      %648 = vmatpush.bf16.msra.mxu0 %v633
      %649 = vmatpush.bf16.msra.mxu0 %v631
      %650 = vmatmul.bf16.gmra.mxu0 %v640
      %v651 = vpop.f32.mrf.mxu0
      %v652 = vadd.f32 %v637, %v651
      %v653 = vpop.f32.mrf.mxu0
      %v654 = vadd.f32 %v637, %v653
      %655 = vdwg.mxu0
      %v656 = vld [vmem:[%s577] sm:$0x1]
      %v658 = vperm.slane %v656, 0
      %v660 = vpack.c.bf16 %v627, %v625
      %662 = vrot.lane.b32.xlu0 %v660, 96
      %v663 = vpop.permute.xlu0 %662
      %vm664 = vcmask 64512
      %v666 = vsel %vm664, %v660, 0
      %v669 = vsel %vm664, %v663, 0
      %671 = vmatpush.bf16.xpose.msra.mxu0 0
      %672 = vmatpush.bf16.xpose.msra.mxu0 0
      %673 = vmatpush.bf16.xpose.msra.mxu0 0
      %674 = vmatpush.bf16.xpose.msra.mxu0 0
      %675 = vmatpush.bf16.xpose.msra.mxu0 0
      %676 = vmatpush.bf16.xpose.msra.mxu0 0
      %677 = vmatpush.bf16.xpose.msra.mxu0 0
      %678 = vmatpush.bf16.xpose.msra.mxu0 %v669
      %679 = vmatmul.bf16.gmra.mxu0 %v666
      %v680 = vpop.f32.mrf.mxu0
      %v681 = vadd.f32 %v658, %v680
      %v682 = vpop.f32.mrf.mxu0
      %v683 = vadd.f32 %v658, %v682
      %684 = vdwg.mxu0
      %vm685 = vcmask 130048
      %v686 = vsel %vm685, %v681, -inf
      %687 = vmax.xlane.f32.xlu0 %v686
      %v688 = vpop.xlane.xlu0 %687
      %v689 = vsel %vm685, %v683, -inf
      %690 = vmax.xlane.f32.xlu0 %v689
      %v691 = vpop.xlane.xlu0 %690
      %v692 = vsub.f32 %v681, %v688
      %v693 = vsub.f32 %v683, %v691
      %v694 = vmul.f32 %v692, 1.442695
      %v695 = vpow.pop %v694
      %v696 = vmul.f32 %v693, 1.442695
      %v697 = vpow.pop %v696
      %v698 = vsel %vm685, %v695, 0.0
      %699 = vadd.xlane.f32.xlu0 %v698
      %v700 = vpop.xlane.xlu0 %699
      %v701 = vsel %vm685, %v697, 0.0
      %702 = vadd.xlane.f32.xlu0 %v701
      %v703 = vpop.xlane.xlu0 %702
      %v704 = vrcp.pop %v700
      %v705 = vmul.f32 %v700, %v704
      %v706 = vsub.f32 1.0, %v705
      %v707 = vmul.f32 %v704, %v706
      %v708 = vadd.f32 %v704, %v707
      %vm709 = vweird.f32 %v700
      %vm710 = vweird.f32 %v704
      %vm711 = vmor %vm709, %vm710
      %v712 = vsel %vm711, %v704, %v708
      %v713 = vand.u32 2147483647, %v700
      %vm714 = vcmp.eq.f32.partialorder %v713, 8.507059e+37
      %v715 = vand.u32 %v700, 2147483648
      %v716 = vor.u32 1.1754944e-38, %v715
      %v717 = vsel %vm714, %v716, %v712
      %v718 = vmul.f32 %v695, %v717
      %v719 = vrcp.pop %v703
      %v720 = vmul.f32 %v703, %v719
      %v721 = vsub.f32 1.0, %v720
      %v722 = vmul.f32 %v719, %v721
      %v723 = vadd.f32 %v719, %v722
      %vm724 = vweird.f32 %v703
      %vm725 = vweird.f32 %v719
      %vm726 = vmor %vm724, %vm725
      %v727 = vsel %vm726, %v719, %v723
      %v728 = vand.u32 2147483647, %v703
      %vm729 = vcmp.eq.f32.partialorder %v728, 8.507059e+37
      %v730 = vand.u32 %v703, 2147483648
      %v731 = vor.u32 1.1754944e-38, %v730
      %v732 = vsel %vm729, %v731, %v727
      %v733 = vmul.f32 %v697, %v732
      %v734 = vpack.c.bf16 %v733, %v718
      %v735 = vpack.c.bf16 %v654, %v652
      %v737 = vsel %vm685, %v734, 0
      %739 = vmatpush.bf16.msra.mxu0 0
      %740 = vmatpush.bf16.msra.mxu0 0
      %741 = vmatpush.bf16.msra.mxu0 0
      %742 = vmatpush.bf16.msra.mxu0 0
      %743 = vmatpush.bf16.msra.mxu0 0
      %744 = vmatpush.bf16.msra.mxu0 0
      %745 = vmatpush.bf16.msra.mxu0 0
      %746 = vmatpush.bf16.msra.mxu0 %v735
      %747 = vmatmul.bf16.gmra.mxu0 %v737
      %v748 = vpop.f32.mrf.mxu0
      %v749 = vadd.f32 0.0, %v748
      %v750 = vpop.f32.mrf.mxu0
      %v751 = vadd.f32 0.0, %v750
      %752 = vdwg.mxu0
      %753 = vrot.lane.b32.xlu0 %v660, 120
      %v754 = vpop.permute.xlu0 %753
      %755 = vrot.lane.b32.xlu0 %v660, 88
      %v756 = vpop.permute.xlu0 %755
      %v758 = vsel %vm664, %v754, 0
      %v761 = vsel %vm664, %v756, 0
      %763 = vmatpush.bf16.xpose.msra.mxu0 0
      %764 = vmatpush.bf16.xpose.msra.mxu0 0
      %765 = vmatpush.bf16.xpose.msra.mxu0 0
      %766 = vmatpush.bf16.xpose.msra.mxu0 0
      %767 = vmatpush.bf16.xpose.msra.mxu0 0
      %768 = vmatpush.bf16.xpose.msra.mxu0 0
      %769 = vmatpush.bf16.xpose.msra.mxu0 0
      %770 = vmatpush.bf16.xpose.msra.mxu0 %v761
      %771 = vmatmul.bf16.gmra.mxu0 %v758
      %v772 = vpop.f32.mrf.mxu0
      %v773 = vadd.f32 %v658, %v772
      %v774 = vpop.f32.mrf.mxu0
      %v775 = vadd.f32 %v658, %v774
      %776 = vdwg.mxu0
      %v777 = vsel %vm685, %v773, -inf
      %778 = vmax.xlane.f32.xlu0 %v777
      %v779 = vpop.xlane.xlu0 %778
      %v780 = vsel %vm685, %v775, -inf
      %781 = vmax.xlane.f32.xlu0 %v780
      %v782 = vpop.xlane.xlu0 %781
      %v783 = vsub.f32 %v773, %v779
      %v784 = vsub.f32 %v775, %v782
      %v785 = vmul.f32 %v783, 1.442695
      %v786 = vpow.pop %v785
      %v787 = vmul.f32 %v784, 1.442695
      %v788 = vpow.pop %v787
      %v789 = vsel %vm685, %v786, 0.0
      %790 = vadd.xlane.f32.xlu0 %v789
      %v791 = vpop.xlane.xlu0 %790
      %v792 = vsel %vm685, %v788, 0.0
      %793 = vadd.xlane.f32.xlu0 %v792
      %v794 = vpop.xlane.xlu0 %793
      %v795 = vrcp.pop %v791
      %v796 = vmul.f32 %v791, %v795
      %v797 = vsub.f32 1.0, %v796
      %v798 = vmul.f32 %v795, %v797
      %v799 = vadd.f32 %v795, %v798
      %vm800 = vweird.f32 %v791
      %vm801 = vweird.f32 %v795
      %vm802 = vmor %vm800, %vm801
      %v803 = vsel %vm802, %v795, %v799
      %v804 = vand.u32 2147483647, %v791
      %vm805 = vcmp.eq.f32.partialorder %v804, 8.507059e+37
      %v806 = vand.u32 %v791, 2147483648
      %v807 = vor.u32 1.1754944e-38, %v806
      %v808 = vsel %vm805, %v807, %v803
      %v809 = vmul.f32 %v786, %v808
      %v810 = vrcp.pop %v794
      %v811 = vmul.f32 %v794, %v810
      %v812 = vsub.f32 1.0, %v811
      %v813 = vmul.f32 %v810, %v812
      %v814 = vadd.f32 %v810, %v813
      %vm815 = vweird.f32 %v794
      %vm816 = vweird.f32 %v810
      %vm817 = vmor %vm815, %vm816
      %v818 = vsel %vm817, %v810, %v814
      %v819 = vand.u32 2147483647, %v794
      %vm820 = vcmp.eq.f32.partialorder %v819, 8.507059e+37
      %v821 = vand.u32 %v794, 2147483648
      %v822 = vor.u32 1.1754944e-38, %v821
      %v823 = vsel %vm820, %v822, %v818
      %v824 = vmul.f32 %v788, %v823
      %v825 = vpack.c.bf16 %v824, %v809
      %827 = vrot.lane.b32.xlu0 %v735, 120
      %v828 = vpop.permute.xlu0 %827
      %v831 = vsel %vm685, %v825, 0
      %833 = vmatpush.bf16.msra.mxu0 0
      %834 = vmatpush.bf16.msra.mxu0 0
      %835 = vmatpush.bf16.msra.mxu0 0
      %836 = vmatpush.bf16.msra.mxu0 0
      %837 = vmatpush.bf16.msra.mxu0 0
      %838 = vmatpush.bf16.msra.mxu0 0
      %839 = vmatpush.bf16.msra.mxu0 0
      %840 = vmatpush.bf16.msra.mxu0 %v828
      %841 = vmatmul.bf16.gmra.mxu0 %v831
      %v842 = vpop.f32.mrf.mxu0
      %v843 = vadd.f32 0.0, %v842
      %v844 = vpop.f32.mrf.mxu0
      %v845 = vadd.f32 0.0, %v844
      %846 = vdwg.mxu0
      %847 = vrot.lane.b32.xlu0 %v660, 112
      %v848 = vpop.permute.xlu0 %847
      %849 = vrot.lane.b32.xlu0 %v660, 80
      %v850 = vpop.permute.xlu0 %849
      %v852 = vsel %vm664, %v848, 0
      %v855 = vsel %vm664, %v850, 0
      %857 = vmatpush.bf16.xpose.msra.mxu0 0
      %858 = vmatpush.bf16.xpose.msra.mxu0 0
      %859 = vmatpush.bf16.xpose.msra.mxu0 0
      %860 = vmatpush.bf16.xpose.msra.mxu0 0
      %861 = vmatpush.bf16.xpose.msra.mxu0 0
      %862 = vmatpush.bf16.xpose.msra.mxu0 0
      %863 = vmatpush.bf16.xpose.msra.mxu0 0
      %864 = vmatpush.bf16.xpose.msra.mxu0 %v855
      %865 = vmatmul.bf16.gmra.mxu0 %v852
      %v866 = vpop.f32.mrf.mxu0
      %v867 = vadd.f32 %v658, %v866
      %v868 = vpop.f32.mrf.mxu0
      %v869 = vadd.f32 %v658, %v868
      %870 = vdwg.mxu0
      %v871 = vsel %vm685, %v867, -inf
      %872 = vmax.xlane.f32.xlu0 %v871
      %v873 = vpop.xlane.xlu0 %872
      %v874 = vsel %vm685, %v869, -inf
      %875 = vmax.xlane.f32.xlu0 %v874
      %v876 = vpop.xlane.xlu0 %875
      %v877 = vsub.f32 %v867, %v873
      %v878 = vsub.f32 %v869, %v876
      %v879 = vmul.f32 %v877, 1.442695
      %v880 = vpow.pop %v879
      %v881 = vmul.f32 %v878, 1.442695
      %v882 = vpow.pop %v881
      %v883 = vsel %vm685, %v880, 0.0
      %884 = vadd.xlane.f32.xlu0 %v883
      %v885 = vpop.xlane.xlu0 %884
      %v886 = vsel %vm685, %v882, 0.0
      %887 = vadd.xlane.f32.xlu0 %v886
      %v888 = vpop.xlane.xlu0 %887
      %v889 = vrcp.pop %v885
      %v890 = vmul.f32 %v885, %v889
      %v891 = vsub.f32 1.0, %v890
      %v892 = vmul.f32 %v889, %v891
      %v893 = vadd.f32 %v889, %v892
      %vm894 = vweird.f32 %v885
      %vm895 = vweird.f32 %v889
      %vm896 = vmor %vm894, %vm895
      %v897 = vsel %vm896, %v889, %v893
      %v898 = vand.u32 2147483647, %v885
      %vm899 = vcmp.eq.f32.partialorder %v898, 8.507059e+37
      %v900 = vand.u32 %v885, 2147483648
      %v901 = vor.u32 1.1754944e-38, %v900
      %v902 = vsel %vm899, %v901, %v897
      %v903 = vmul.f32 %v880, %v902
      %v904 = vrcp.pop %v888
      %v905 = vmul.f32 %v888, %v904
      %v906 = vsub.f32 1.0, %v905
      %v907 = vmul.f32 %v904, %v906
      %v908 = vadd.f32 %v904, %v907
      %vm909 = vweird.f32 %v888
      %vm910 = vweird.f32 %v904
      %vm911 = vmor %vm909, %vm910
      %v912 = vsel %vm911, %v904, %v908
      %v913 = vand.u32 2147483647, %v888
      %vm914 = vcmp.eq.f32.partialorder %v913, 8.507059e+37
      %v915 = vand.u32 %v888, 2147483648
      %v916 = vor.u32 1.1754944e-38, %v915
      %v917 = vsel %vm914, %v916, %v912
      %v918 = vmul.f32 %v882, %v917
      %v919 = vpack.c.bf16 %v918, %v903
      %920 = vrot.lane.b32.xlu0 %v735, 112
      %v921 = vpop.permute.xlu0 %920
      %v924 = vsel %vm685, %v919, 0
      %926 = vmatpush.bf16.msra.mxu0 0
      %927 = vmatpush.bf16.msra.mxu0 0
      %928 = vmatpush.bf16.msra.mxu0 0
      %929 = vmatpush.bf16.msra.mxu0 0
      %930 = vmatpush.bf16.msra.mxu0 0
      %931 = vmatpush.bf16.msra.mxu0 0
      %932 = vmatpush.bf16.msra.mxu0 0
      %933 = vmatpush.bf16.msra.mxu0 %v921
      %934 = vmatmul.bf16.gmra.mxu0 %v924
      %v935 = vpop.f32.mrf.mxu0
      %v936 = vadd.f32 0.0, %v935
      %v937 = vpop.f32.mrf.mxu0
      %v938 = vadd.f32 0.0, %v937
      %939 = vdwg.mxu0
      %940 = vrot.lane.b32.xlu0 %v660, 104
      %v941 = vpop.permute.xlu0 %940
      %942 = vrot.lane.b32.xlu0 %v660, 72
      %v943 = vpop.permute.xlu0 %942
      %v945 = vsel %vm664, %v941, 0
      %v948 = vsel %vm664, %v943, 0
      %950 = vmatpush.bf16.xpose.msra.mxu0 0
      %951 = vmatpush.bf16.xpose.msra.mxu0 0
      %952 = vmatpush.bf16.xpose.msra.mxu0 0
      %953 = vmatpush.bf16.xpose.msra.mxu0 0
      %954 = vmatpush.bf16.xpose.msra.mxu0 0
      %955 = vmatpush.bf16.xpose.msra.mxu0 0
      %956 = vmatpush.bf16.xpose.msra.mxu0 0
      %957 = vmatpush.bf16.xpose.msra.mxu0 %v948
      %958 = vmatmul.bf16.gmra.mxu0 %v945
      %v959 = vpop.f32.mrf.mxu0
      %v960 = vadd.f32 %v658, %v959
      %v961 = vpop.f32.mrf.mxu0
      %v962 = vadd.f32 %v658, %v961
      %963 = vdwg.mxu0
      %v964 = vsel %vm685, %v960, -inf
      %965 = vmax.xlane.f32.xlu0 %v964
      %v966 = vpop.xlane.xlu0 %965
      %v967 = vsel %vm685, %v962, -inf
      %968 = vmax.xlane.f32.xlu0 %v967
      %v969 = vpop.xlane.xlu0 %968
      %v970 = vsub.f32 %v960, %v966
      %v971 = vsub.f32 %v962, %v969
      %v972 = vmul.f32 %v970, 1.442695
      %v973 = vpow.pop %v972
      %v974 = vmul.f32 %v971, 1.442695
      %v975 = vpow.pop %v974
      %v976 = vsel %vm685, %v973, 0.0
      %977 = vadd.xlane.f32.xlu0 %v976
      %v978 = vpop.xlane.xlu0 %977
      %v979 = vsel %vm685, %v975, 0.0
      %980 = vadd.xlane.f32.xlu0 %v979
      %v981 = vpop.xlane.xlu0 %980
      %v982 = vrcp.pop %v978
      %v983 = vmul.f32 %v978, %v982
      %v984 = vsub.f32 1.0, %v983
      %v985 = vmul.f32 %v982, %v984
      %v986 = vadd.f32 %v982, %v985
      %vm987 = vweird.f32 %v978
      %vm988 = vweird.f32 %v982
      %vm989 = vmor %vm987, %vm988
      %v990 = vsel %vm989, %v982, %v986
      %v991 = vand.u32 2147483647, %v978
      %vm992 = vcmp.eq.f32.partialorder %v991, 8.507059e+37
      %v993 = vand.u32 %v978, 2147483648
      %v994 = vor.u32 1.1754944e-38, %v993
      %v995 = vsel %vm992, %v994, %v990
      %v996 = vmul.f32 %v973, %v995
      %v997 = vrcp.pop %v981
      %v998 = vmul.f32 %v981, %v997
      %v999 = vsub.f32 1.0, %v998
      %v1000 = vmul.f32 %v997, %v999
      %v1001 = vadd.f32 %v997, %v1000
      %vm1002 = vweird.f32 %v981
      %vm1003 = vweird.f32 %v997
      %vm1004 = vmor %vm1002, %vm1003
      %v1005 = vsel %vm1004, %v997, %v1001
      %v1006 = vand.u32 2147483647, %v981
      %vm1007 = vcmp.eq.f32.partialorder %v1006, 8.507059e+37
      %v1008 = vand.u32 %v981, 2147483648
      %v1009 = vor.u32 1.1754944e-38, %v1008
      %v1010 = vsel %vm1007, %v1009, %v1005
      %v1011 = vmul.f32 %v975, %v1010
      %v1012 = vpack.c.bf16 %v1011, %v996
      %1013 = vrot.lane.b32.xlu0 %v735, 104
      %v1014 = vpop.permute.xlu0 %1013
      %v1017 = vsel %vm685, %v1012, 0
      %1019 = vmatpush.bf16.msra.mxu0 0
      %1020 = vmatpush.bf16.msra.mxu0 0
      %1021 = vmatpush.bf16.msra.mxu0 0
      %1022 = vmatpush.bf16.msra.mxu0 0
      %1023 = vmatpush.bf16.msra.mxu0 0
      %1024 = vmatpush.bf16.msra.mxu0 0
      %1025 = vmatpush.bf16.msra.mxu0 0
      %1026 = vmatpush.bf16.msra.mxu0 %v1014
      %1027 = vmatmul.bf16.gmra.mxu0 %v1017
      %v1028 = vpop.f32.mrf.mxu0
      %v1029 = vadd.f32 0.0, %v1028
      %v1030 = vpop.f32.mrf.mxu0
      %v1031 = vadd.f32 0.0, %v1030
      %1032 = vdwg.mxu0
      %1035 = vrot.lane.b32.xlu0 %v843, 8
      %v1036 = vpop.permute.xlu0 %1035
      %1037 = vrot.lane.b32.xlu0 %v845, 8
      %v1038 = vpop.permute.xlu0 %1037
      %1043 = vrot.lane.b32.xlu0 %v936, 16
      %v1044 = vpop.permute.xlu0 %1043
      %1045 = vrot.lane.b32.xlu0 %v938, 16
      %v1046 = vpop.permute.xlu0 %1045
      %1051 = vrot.lane.b32.xlu0 %v1029, 24
      %v1052 = vpop.permute.xlu0 %1051
      %1053 = vrot.lane.b32.xlu0 %v1031, 24
      %v1054 = vpop.permute.xlu0 %1053
      %v1057 = vsel %vm664, %v749, %v1036
      %v1058 = vsel %vm664, %v751, %v1038
      %v1059 = vsel %vm685, %v1057, %v1044
      %v1060 = vsel %vm685, %v1058, %v1046
      %vm1061 = vcmask 195584
      %v1062 = vsel %vm1061, %v1059, %v1052
      %v1063 = vsel %vm1061, %v1060, %v1054
      %v1064 = vld [vmem:[%s5] sm:$0xf]
      %v1065 = vld [vmem:[%s5 + $0x4] sm:$0xf]
      %v1066 = vld [vmem:[%s5 + $0x8] sm:$0xf]
      %v1067 = vld [vmem:[%s5 + $0xc] sm:$0xf]
      %v1068 = vpack.c.bf16 %v1063, %v1062
      %v1069 = vld [vmem:[%s6] sm:$0x1]
      %v1071 = vperm.slane %v1069, 0
      %v1077 = vunpack.c.l.b16 %v1064
      %v1078 = vunpack.c.l.b16 %v1065
      %v1079 = vunpack.c.l.b16 %v1066
      %v1080 = vunpack.c.l.b16 %v1067
      %v1081 = vpack.c.b16 %v1078, %v1077
      %v1082 = vpack.c.b16 %v1080, %v1079
      %v1086 = vsel %vm611, %v1068, 0
      %1088 = vmatpush.bf16.msra.mxu0 0
      %1089 = vmatpush.bf16.msra.mxu0 0
      %1090 = vmatpush.bf16.msra.mxu0 0
      %1091 = vmatpush.bf16.msra.mxu0 0
      %1092 = vmatpush.bf16.msra.mxu0 0
      %1093 = vmatpush.bf16.msra.mxu0 0
      %1094 = vmatpush.bf16.msra.mxu0 %v1082
      %1095 = vmatpush.bf16.msra.mxu0 %v1081
      %1096 = vmatmul.bf16.gmra.mxu0 %v1086
      %v1097 = vpop.f32.mrf.mxu0
      %v1098 = vadd.f32 %v1071, %v1097
      %v1099 = vpop.f32.mrf.mxu0
      %v1100 = vadd.f32 %v1071, %v1099
      %1101 = vdwg.mxu0
      %v1102 = vadd.f32 %v584, %v1098
      %v1103 = vadd.f32 %v585, %v1100
      %v1104 = vld [vmem:[%s7] sm:$0x1]
      %v1105 = vld [vmem:[%s8] sm:$0x1]
      %v1106 = vsel %vm611, %v1102, 0.0
      %1107 = vadd.xlane.f32.xlu0 %v1106
      %v1108 = vpop.xlane.xlu0 %1107
      %v1109 = vsel %vm611, %v1103, 0.0
      %1110 = vadd.xlane.f32.xlu0 %v1109
      %v1111 = vpop.xlane.xlu0 %1110
      %v1112 = vrcp.pop 32.0
      %v1113 = vmul.f32 32.0, %v1112
      %v1114 = vsub.f32 1.0, %v1113
      %v1115 = vmul.f32 %v1112, %v1114
      %v1116 = vadd.f32 %v1112, %v1115
      %vm1117 = vweird.f32 %v1112
      %v1118 = vsel %vm1117, %v1112, %v1116
      %v1119 = vmul.f32 %v1108, %v1118
      %v1120 = vmul.f32 %v1111, %v1118
      %v1121 = vsub.f32 %v1102, %v1119
      %v1122 = vsub.f32 %v1103, %v1120
      %v1123 = vmul.f32 %v1121, %v1121
      %v1124 = vmul.f32 %v1122, %v1122
      %v1125 = vsel %vm611, %v1123, 0.0
      %1126 = vadd.xlane.f32.xlu0 %v1125
      %v1127 = vpop.xlane.xlu0 %1126
      %v1128 = vsel %vm611, %v1124, 0.0
      %1129 = vadd.xlane.f32.xlu0 %v1128
      %v1130 = vpop.xlane.xlu0 %1129
      %v1131 = vmul.f32 %v1127, %v1118
      %v1132 = vmul.f32 %v1130, %v1118
      %v1133 = vadd.f32 %v1131, 1e-05
      %v1134 = vadd.f32 %v1132, 1e-05
      %v1135 = vrsqrt.pop %v1133
      %v1136 = vmul.f32 %v1135, %v1133
      %v1137 = vmul.f32 %v1136, %v1135
      %v1138 = vmul.f32 0.5, %v1137
      %v1139 = vsub.f32 1.5, %v1138
      %v1140 = vmul.f32 %v1135, %v1139
      %vm1141 = vweird.f32 %v1133
      %vm1142 = vweird.f32 %v1135
      %vm1143 = vmor %vm1141, %vm1142
      %v1144 = vsel %vm1143, %v1135, %v1140
      %v1145 = vrsqrt.pop %v1134
      %v1146 = vmul.f32 %v1145, %v1134
      %v1147 = vmul.f32 %v1146, %v1145
      %v1148 = vmul.f32 0.5, %v1147
      %v1149 = vsub.f32 1.5, %v1148
      %v1150 = vmul.f32 %v1145, %v1149
      %vm1151 = vweird.f32 %v1134
      %vm1152 = vweird.f32 %v1145
      %vm1153 = vmor %vm1151, %vm1152
      %v1154 = vsel %vm1153, %v1145, %v1150
      %v1155 = vmul.f32 %v1121, %v1144
      %v1156 = vmul.f32 %v1122, %v1154
      %v1158 = vperm.slane %v1104, 0
      %v1160 = vmul.f32 %v1155, %v1158
      %v1161 = vmul.f32 %v1156, %v1158
      %v1163 = vperm.slane %v1105, 0
      %v1165 = vadd.f32 %v1160, %v1163
      %v1166 = vadd.f32 %v1161, %v1163
      %v1167 = vld [vmem:[%s9] sm:$0xf]
      %v1168 = vld [vmem:[%s9 + $0x4] sm:$0xf]
      %v1169 = vld [vmem:[%s9 + $0x8] sm:$0xf]
      %v1170 = vld [vmem:[%s9 + $0xc] sm:$0xf]
      %v1171 = vpack.c.bf16 %v1166, %v1165
      %v1172 = vld [vmem:[%s10] sm:$0x1]
      %v1174 = vperm.slane %v1172, 0
      %v1180 = vunpack.c.l.b16 %v1167
      %v1181 = vunpack.c.l.b16 %v1168
      %v1182 = vunpack.c.l.b16 %v1169
      %v1183 = vunpack.c.l.b16 %v1170
      %v1184 = vpack.c.b16 %v1181, %v1180
      %v1185 = vpack.c.b16 %v1183, %v1182
      %v1189 = vsel %vm611, %v1171, 0
      %1191 = vmatpush.bf16.msra.mxu0 0
      %1192 = vmatpush.bf16.msra.mxu0 0
      %1193 = vmatpush.bf16.msra.mxu0 0
      %1194 = vmatpush.bf16.msra.mxu0 0
      %1195 = vmatpush.bf16.msra.mxu0 0
      %1196 = vmatpush.bf16.msra.mxu0 0
      %1197 = vmatpush.bf16.msra.mxu0 %v1185
      %1198 = vmatpush.bf16.msra.mxu0 %v1184
      %1199 = vmatmul.bf16.gmra.mxu0 %v1189
      %v1200 = vpop.f32.mrf.mxu0
      %v1201 = vadd.f32 %v1174, %v1200
      %v1202 = vpop.f32.mrf.mxu0
      %v1203 = vadd.f32 %v1174, %v1202
      %1204 = vdwg.mxu0
      %v1205 = vmax.f32 %v1201, 0.0
      %v1206 = vmax.f32 %v1203, 0.0
      %v1207 = vld [vmem:[%s11] sm:$0xf]
      %v1208 = vld [vmem:[%s11 + $0x4] sm:$0xf]
      %v1209 = vld [vmem:[%s11 + $0x8] sm:$0xf]
      %v1210 = vld [vmem:[%s11 + $0xc] sm:$0xf]
      %v1211 = vld [vmem:[%s11 + $0x10] sm:$0xf]
      %v1212 = vld [vmem:[%s11 + $0x14] sm:$0xf]
      %v1213 = vld [vmem:[%s11 + $0x18] sm:$0xf]
      %v1214 = vld [vmem:[%s11 + $0x1c] sm:$0xf]
      %v1215 = vpack.c.bf16 %v1206, %v1205
      %v1216 = vld [vmem:[%s12] sm:$0x1]
      %v1218 = vperm.slane %v1216, 0
      %v1228 = vunpack.c.l.b16 %v1207
      %v1229 = vunpack.c.l.b16 %v1208
      %v1230 = vunpack.c.l.b16 %v1209
      %v1231 = vunpack.c.l.b16 %v1210
      %v1232 = vunpack.c.l.b16 %v1211
      %v1233 = vunpack.c.l.b16 %v1212
      %v1234 = vunpack.c.l.b16 %v1213
      %v1235 = vunpack.c.l.b16 %v1214
      %v1236 = vpack.c.b16 %v1229, %v1228
      %v1237 = vpack.c.b16 %v1231, %v1230
      %v1238 = vpack.c.b16 %v1233, %v1232
      %v1239 = vpack.c.b16 %v1235, %v1234
      %vm1244 = vcmask 523264
      %v1246 = vsel %vm1244, %v1215, 0
      %1248 = vmatpush.bf16.msra.mxu0 0
      %1249 = vmatpush.bf16.msra.mxu0 0
      %1250 = vmatpush.bf16.msra.mxu0 0
      %1251 = vmatpush.bf16.msra.mxu0 0
      %1252 = vmatpush.bf16.msra.mxu0 %v1239
      %1253 = vmatpush.bf16.msra.mxu0 %v1238
      %1254 = vmatpush.bf16.msra.mxu0 %v1237
      %1255 = vmatpush.bf16.msra.mxu0 %v1236
      %1256 = vmatmul.bf16.gmra.mxu0 %v1246
      %v1257 = vpop.f32.mrf.mxu0
      %v1258 = vadd.f32 %v1218, %v1257
      %v1259 = vpop.f32.mrf.mxu0
      %v1260 = vadd.f32 %v1218, %v1259
      %1261 = vdwg.mxu0
      %v1262 = vadd.f32 %v1165, %v1258
      %v1263 = vadd.f32 %v1166, %v1260
      %v1264 = vld [vmem:[%s13] sm:$0x1]
      %v1265 = vld [vmem:[%s14] sm:$0x1]
      %v1266 = vsel %vm611, %v1262, 0.0
      %1267 = vadd.xlane.f32.xlu0 %v1266
      %v1268 = vpop.xlane.xlu0 %1267
      %v1269 = vsel %vm611, %v1263, 0.0
      %1270 = vadd.xlane.f32.xlu0 %v1269
      %v1271 = vpop.xlane.xlu0 %1270
      %v1272 = vmul.f32 %v1268, %v1118
      %v1273 = vmul.f32 %v1271, %v1118
      %v1274 = vsub.f32 %v1262, %v1272
      %v1275 = vsub.f32 %v1263, %v1273
      %v1276 = vmul.f32 %v1274, %v1274
      %v1277 = vmul.f32 %v1275, %v1275
      %v1278 = vsel %vm611, %v1276, 0.0
      %1279 = vadd.xlane.f32.xlu0 %v1278
      %v1280 = vpop.xlane.xlu0 %1279
      %v1281 = vsel %vm611, %v1277, 0.0
      %1282 = vadd.xlane.f32.xlu0 %v1281
      %v1283 = vpop.xlane.xlu0 %1282
      %v1284 = vmul.f32 %v1280, %v1118
      %v1285 = vmul.f32 %v1283, %v1118
      %v1286 = vadd.f32 %v1284, 1e-05
      %v1287 = vadd.f32 %v1285, 1e-05
      %v1288 = vrsqrt.pop %v1286
      %v1289 = vmul.f32 %v1288, %v1286
      %v1290 = vmul.f32 %v1289, %v1288
      %v1291 = vmul.f32 0.5, %v1290
      %v1292 = vsub.f32 1.5, %v1291
      %v1293 = vmul.f32 %v1288, %v1292
      %vm1294 = vweird.f32 %v1286
      %vm1295 = vweird.f32 %v1288
      %vm1296 = vmor %vm1294, %vm1295
      %v1297 = vsel %vm1296, %v1288, %v1293
      %v1298 = vrsqrt.pop %v1287
      %v1299 = vmul.f32 %v1298, %v1287
      %v1300 = vmul.f32 %v1299, %v1298
      %v1301 = vmul.f32 0.5, %v1300
      %v1302 = vsub.f32 1.5, %v1301
      %v1303 = vmul.f32 %v1298, %v1302
      %vm1304 = vweird.f32 %v1287
      %vm1305 = vweird.f32 %v1298
      %vm1306 = vmor %vm1304, %vm1305
      %v1307 = vsel %vm1306, %v1298, %v1303
      %v1308 = vmul.f32 %v1274, %v1297
      %v1309 = vmul.f32 %v1275, %v1307
      %v1311 = vperm.slane %v1264, 0
      %v1313 = vmul.f32 %v1308, %v1311
      %v1314 = vmul.f32 %v1309, %v1311
      %v1316 = vperm.slane %v1265, 0
      %v1318 = vadd.f32 %v1313, %v1316
      %v1319 = vadd.f32 %v1314, %v1316
      %1320 = vst.msk [vmem:[%s582] sm:$0xff] %vm611, %v1318
      %1321 = vst.msk [vmem:[%s582 + $0x8] sm:$0xff] %vm611, %v1319
      %p1322 = scmp.lt.s32.totalorder %s28, 1
      %s1323 = scalar_select %p1322, %s28, 1
      %s1324 = smul.addr %s1323, 2
      %s1325 = smul.addr %s1324, 8
      %s1326 = scalar_lea.vmem %s17, %s1325
      // Predicated region
      $region89: #{transformer_forward.4} parent=87 // pred_check
        %p1327 = pneg %p418
      $region90: #{transformer_forward.4} parent=87 // pred_check_branch
        %1329 = sbr.rel (%p1327) target = $region92
      $region91: #{transformer_forward.4} parent=87 // pred_region
        _
      $region92: #{transformer_forward.4} parent=87 // pred_fallthru
        _
    $region88: #{transformer_forward.4} parent=5 // pred_fallthru
      _
    %p1330 = scmp.le.s32.totalorder 2, %s23
    // Predicated region
    $region93: #{transformer_forward.4} parent=5 // pred_check
      %p1331 = pneg %p1330
    $region94: #{transformer_forward.4} parent=5 // pred_check_branch
      %1333 = sbr.rel (%p1331) target = $region96
    $region95: #{transformer_forward.4} parent=5 // pred_region
      %s1334 = ssub.s32 %s23, 2
      // Predicated region
      $region97: #{transformer_forward.4} parent=95 // pred_check
        %p1335 = pneg %p424
      $region98: #{transformer_forward.4} parent=95 // pred_check_branch
        %1337 = sbr.rel (%p1335) target = $region100
      $region99: #{transformer_forward.4} parent=95 // pred_region
        %p1338 = scmp.lt.s32.totalorder %s29, 1
        %s1339 = scalar_select %p1338, %s29, 1
        %s1340 = smul.addr %s1339, 2
        %s1341 = smul.addr %s1340, 8
        %s1342 = scalar_lea.vmem %s17, %s1341
      $region100: #{transformer_forward.4} parent=95 // pred_fallthru
        _
    $region96: #{transformer_forward.4} parent=5 // pred_fallthru
      _
  $region6: #{transformer_forward.4} parent=0 // loop_footer
    %s27 = sadd.s32 1, %s23
  $region7: #{transformer_forward.4} parent=0 // loop_footer_branch
    %22 = sbr.rel target = $region3
  $region8: #{transformer_forward.4} parent=0 // loop_exit
    _

// kernel: transformer_forward.6
$region0: #{transformer_forward.6}
  #allocation0 [shape = 'u32[]', space=smem, size = 0x4, offset = 0x4, fixed_abs, tag = 'smem constant byte address 0x4 - core index']
  #allocation1 [shape = 'u32[72,128]{1,0:T(1,128)}', space=vmem, size = 0x9000, scoped, tag = 'internal scratch']
  %s0 = inlined_call_operand.vmem [shape: f32[2,8,32], index: 0, kind: input, shape index: {}]
  %s1 = inlined_call_operand.vmem [shape: f32[8,32], index: 1, kind: input, shape index: {}]
  %s2 = inlined_call_operand.vmem [shape: f32[2,16,32], index: 2, kind: input, shape index: {}]
  %s3 = inlined_call_operand.vmem [shape: f32[2,16,32], index: 3, kind: input, shape index: {}]
  %s4 = inlined_call_operand.vmem [shape: f32[2,1,16], index: 4, kind: input, shape index: {}]
  %s5 = inlined_call_operand.vmem [shape: bf16[32,96], index: 5, kind: input, shape index: {}]
  %s6 = inlined_call_operand.vmem [shape: f32[1,96], index: 6, kind: input, shape index: {}]
  %s7 = inlined_call_operand.vmem [shape: bf16[32,32], index: 7, kind: input, shape index: {}]
  %s8 = inlined_call_operand.vmem [shape: f32[1,32], index: 8, kind: input, shape index: {}]
  %s9 = inlined_call_operand.vmem [shape: f32[1,32], index: 9, kind: input, shape index: {}]
  %s10 = inlined_call_operand.vmem [shape: f32[1,32], index: 10, kind: input, shape index: {}]
  %s11 = inlined_call_operand.vmem [shape: bf16[32,96], index: 11, kind: input, shape index: {}]
  %s12 = inlined_call_operand.vmem [shape: f32[1,96], index: 12, kind: input, shape index: {}]
  %s13 = inlined_call_operand.vmem [shape: bf16[32,32], index: 13, kind: input, shape index: {}]
  %s14 = inlined_call_operand.vmem [shape: f32[1,32], index: 14, kind: input, shape index: {}]
  %s15 = inlined_call_operand.vmem [shape: f32[1,32], index: 15, kind: input, shape index: {}]
  %s16 = inlined_call_operand.vmem [shape: f32[1,32], index: 16, kind: input, shape index: {}]
  %s17 = inlined_call_operand.vmem [shape: bf16[32,64], index: 17, kind: input, shape index: {}]
  %s18 = inlined_call_operand.vmem [shape: f32[1,64], index: 18, kind: input, shape index: {}]
  %s19 = inlined_call_operand.vmem [shape: bf16[64,32], index: 19, kind: input, shape index: {}]
  %s20 = inlined_call_operand.vmem [shape: f32[1,32], index: 20, kind: input, shape index: {}]
  %s21 = inlined_call_operand.vmem [shape: f32[1,32], index: 21, kind: input, shape index: {}]
  %s22 = inlined_call_operand.vmem [shape: f32[1,32], index: 22, kind: input, shape index: {}]
  %s23 = inlined_call_operand.vmem [shape: f32[1,32], index: 23, kind: input, shape index: {}]
  %s24 = inlined_call_operand.vmem [shape: f32[1,32], index: 24, kind: input, shape index: {}]
  %s25 = inlined_call_operand.vmem [shape: f32[2,8,32], index: 25, kind: output, shape index: {}]
  %s26 = sld [smem:[#allocation0]]
  $region110: #{transformer_forward.6} parent=0
    _
  %s28 = ssub.s32 1, %s26
  %s29 = scalar_select 0, %s28, %s26
  // Predicated region
  $region2: #{transformer_forward.6} parent=0 // pred_check
    _
  $region3: #{transformer_forward.6} parent=0 // pred_check_branch
    %31 = sbr.rel (0) target = $region5
  $region4: #{transformer_forward.6} parent=0 // pred_region
    _
  $region5: #{transformer_forward.6} parent=0 // pred_fallthru
    _
  // Predicated region
  $region6: #{transformer_forward.6} parent=0 // pred_check
    _
  $region7: #{transformer_forward.6} parent=0 // pred_check_branch
    %33 = sbr.rel (0) target = $region9
  $region8: #{transformer_forward.6} parent=0 // pred_region
    _
  $region9: #{transformer_forward.6} parent=0 // pred_fallthru
    _
  // Predicated region
  $region10: #{transformer_forward.6} parent=0 // pred_check
    _
  $region11: #{transformer_forward.6} parent=0 // pred_check_branch
    %35 = sbr.rel (0) target = $region13
  $region12: #{transformer_forward.6} parent=0 // pred_region
    _
  $region13: #{transformer_forward.6} parent=0 // pred_fallthru
    _
  // Predicated region
  $region14: #{transformer_forward.6} parent=0 // pred_check
    _
  $region15: #{transformer_forward.6} parent=0 // pred_check_branch
    %37 = sbr.rel (0) target = $region17
  $region16: #{transformer_forward.6} parent=0 // pred_region
    _
  $region17: #{transformer_forward.6} parent=0 // pred_fallthru
    _
  // Predicated region
  $region18: #{transformer_forward.6} parent=0 // pred_check
    _
  $region19: #{transformer_forward.6} parent=0 // pred_check_branch
    %39 = sbr.rel (0) target = $region21
  $region20: #{transformer_forward.6} parent=0 // pred_region
    _
  $region21: #{transformer_forward.6} parent=0 // pred_fallthru
    _
  // Predicated region
  $region22: #{transformer_forward.6} parent=0 // pred_check
    _
  $region23: #{transformer_forward.6} parent=0 // pred_check_branch
    %41 = sbr.rel (0) target = $region25
  $region24: #{transformer_forward.6} parent=0 // pred_region
    _
  $region25: #{transformer_forward.6} parent=0 // pred_fallthru
    _
  // Predicated region
  $region26: #{transformer_forward.6} parent=0 // pred_check
    _
  $region27: #{transformer_forward.6} parent=0 // pred_check_branch
    %43 = sbr.rel (0) target = $region29
  $region28: #{transformer_forward.6} parent=0 // pred_region
    _
  $region29: #{transformer_forward.6} parent=0 // pred_fallthru
    _
  // Predicated region
  $region30: #{transformer_forward.6} parent=0 // pred_check
    _
  $region31: #{transformer_forward.6} parent=0 // pred_check_branch
    %45 = sbr.rel (0) target = $region33
  $region32: #{transformer_forward.6} parent=0 // pred_region
    _
  $region33: #{transformer_forward.6} parent=0 // pred_fallthru
    _
  // Predicated region
  $region34: #{transformer_forward.6} parent=0 // pred_check
    _
  $region35: #{transformer_forward.6} parent=0 // pred_check_branch
    %47 = sbr.rel (0) target = $region37
  $region36: #{transformer_forward.6} parent=0 // pred_region
    _
  $region37: #{transformer_forward.6} parent=0 // pred_fallthru
    _
  // Predicated region
  $region38: #{transformer_forward.6} parent=0 // pred_check
    _
  $region39: #{transformer_forward.6} parent=0 // pred_check_branch
    %49 = sbr.rel (0) target = $region41
  $region40: #{transformer_forward.6} parent=0 // pred_region
    _
  $region41: #{transformer_forward.6} parent=0 // pred_fallthru
    _
  // Predicated region
  $region42: #{transformer_forward.6} parent=0 // pred_check
    _
  $region43: #{transformer_forward.6} parent=0 // pred_check_branch
    %51 = sbr.rel (0) target = $region45
  $region44: #{transformer_forward.6} parent=0 // pred_region
    _
  $region45: #{transformer_forward.6} parent=0 // pred_fallthru
    _
  // Predicated region
  $region46: #{transformer_forward.6} parent=0 // pred_check
    _
  $region47: #{transformer_forward.6} parent=0 // pred_check_branch
    %53 = sbr.rel (0) target = $region49
  $region48: #{transformer_forward.6} parent=0 // pred_region
    _
  $region49: #{transformer_forward.6} parent=0 // pred_fallthru
    _
  // Predicated region
  $region50: #{transformer_forward.6} parent=0 // pred_check
    _
  $region51: #{transformer_forward.6} parent=0 // pred_check_branch
    %55 = sbr.rel (0) target = $region53
  $region52: #{transformer_forward.6} parent=0 // pred_region
    _
  $region53: #{transformer_forward.6} parent=0 // pred_fallthru
    _
  // Predicated region
  $region54: #{transformer_forward.6} parent=0 // pred_check
    _
  $region55: #{transformer_forward.6} parent=0 // pred_check_branch
    %57 = sbr.rel (0) target = $region57
  $region56: #{transformer_forward.6} parent=0 // pred_region
    _
  $region57: #{transformer_forward.6} parent=0 // pred_fallthru
    _
  // Predicated region
  $region58: #{transformer_forward.6} parent=0 // pred_check
    _
  $region59: #{transformer_forward.6} parent=0 // pred_check_branch
    %59 = sbr.rel (0) target = $region61
  $region60: #{transformer_forward.6} parent=0 // pred_region
    _
  $region61: #{transformer_forward.6} parent=0 // pred_fallthru
    _
  // Predicated region
  $region62: #{transformer_forward.6} parent=0 // pred_check
    _
  $region63: #{transformer_forward.6} parent=0 // pred_check_branch
    %61 = sbr.rel (0) target = $region65
  $region64: #{transformer_forward.6} parent=0 // pred_region
    _
  $region65: #{transformer_forward.6} parent=0 // pred_fallthru
    _
  // Predicated region
  $region66: #{transformer_forward.6} parent=0 // pred_check
    _
  $region67: #{transformer_forward.6} parent=0 // pred_check_branch
    %63 = sbr.rel (0) target = $region69
  $region68: #{transformer_forward.6} parent=0 // pred_region
    _
  $region69: #{transformer_forward.6} parent=0 // pred_fallthru
    _
  // Predicated region
  $region70: #{transformer_forward.6} parent=0 // pred_check
    _
  $region71: #{transformer_forward.6} parent=0 // pred_check_branch
    %65 = sbr.rel (0) target = $region73
  $region72: #{transformer_forward.6} parent=0 // pred_region
    _
  $region73: #{transformer_forward.6} parent=0 // pred_fallthru
    _
  // Predicated region
  $region74: #{transformer_forward.6} parent=0 // pred_check
    _
  $region75: #{transformer_forward.6} parent=0 // pred_check_branch
    %67 = sbr.rel (0) target = $region77
  $region76: #{transformer_forward.6} parent=0 // pred_region
    _
  $region77: #{transformer_forward.6} parent=0 // pred_fallthru
    _
  // Predicated region
  $region78: #{transformer_forward.6} parent=0 // pred_check
    _
  $region79: #{transformer_forward.6} parent=0 // pred_check_branch
    %69 = sbr.rel (0) target = $region81
  $region80: #{transformer_forward.6} parent=0 // pred_region
    _
  $region81: #{transformer_forward.6} parent=0 // pred_fallthru
    _
  // Predicated region
  $region82: #{transformer_forward.6} parent=0 // pred_check
    _
  $region83: #{transformer_forward.6} parent=0 // pred_check_branch
    %71 = sbr.rel (0) target = $region85
  $region84: #{transformer_forward.6} parent=0 // pred_region
    _
  $region85: #{transformer_forward.6} parent=0 // pred_fallthru
    _
  // Predicated region
  $region86: #{transformer_forward.6} parent=0 // pred_check
    _
  $region87: #{transformer_forward.6} parent=0 // pred_check_branch
    %73 = sbr.rel (0) target = $region89
  $region88: #{transformer_forward.6} parent=0 // pred_region
    _
  $region89: #{transformer_forward.6} parent=0 // pred_fallthru
    _
  // Predicated region
  $region90: #{transformer_forward.6} parent=0 // pred_check
    _
  $region91: #{transformer_forward.6} parent=0 // pred_check_branch
    %75 = sbr.rel (0) target = $region93
  $region92: #{transformer_forward.6} parent=0 // pred_region
    _
  $region93: #{transformer_forward.6} parent=0 // pred_fallthru
    _
  // Predicated region
  $region94: #{transformer_forward.6} parent=0 // pred_check
    _
  $region95: #{transformer_forward.6} parent=0 // pred_check_branch
    %77 = sbr.rel (0) target = $region97
  $region96: #{transformer_forward.6} parent=0 // pred_region
    _
  $region97: #{transformer_forward.6} parent=0 // pred_fallthru
    _
  // Predicated region
  $region98: #{transformer_forward.6} parent=0 // pred_check
    _
  $region99: #{transformer_forward.6} parent=0 // pred_check_branch
    %79 = sbr.rel (0) target = $region101
  $region100: #{transformer_forward.6} parent=0 // pred_region
    _
  $region101: #{transformer_forward.6} parent=0 // pred_fallthru
    _
  %v81 = vld [vmem:[%s0] sm:$0xff]
  %v82 = vld [vmem:[%s0 + $0x8] sm:$0xff]
  %v83 = vld [vmem:[%s2] sm:$0xff]
  %v84 = vld [vmem:[%s2 + $0x8] sm:$0xff]
  %v85 = vld [vmem:[%s2 + $0x10] sm:$0xff]
  %v86 = vld [vmem:[%s2 + $0x18] sm:$0xff]
  %v87 = vld [vmem:[%s1] sm:$0xff]
  %v88 = vld [vmem:[%s3] sm:$0xff]
  %v89 = vld [vmem:[%s3 + $0x8] sm:$0xff]
  %v90 = vld [vmem:[%s3 + $0x10] sm:$0xff]
  %v91 = vld [vmem:[%s3 + $0x18] sm:$0xff]
  %v92 = vld [vmem:[%s5] sm:$0xf]
  %v93 = vld [vmem:[%s5 + $0x4] sm:$0xf]
  %v94 = vld [vmem:[%s5 + $0x8] sm:$0xf]
  %v95 = vld [vmem:[%s5 + $0xc] sm:$0xf]
  %v96 = vadd.f32 %v81, %v87
  %v97 = vadd.f32 %v82, %v87
  %v98 = vpack.c.bf16 %v97, %v96
  %v99 = vld [vmem:[%s6] sm:$0x1]
  %v101 = vperm.slane %v99, 0
  %v107 = vunpack.c.l.b16 %v92
  %v108 = vunpack.c.l.b16 %v93
  %v109 = vunpack.c.l.b16 %v94
  %v110 = vunpack.c.l.b16 %v95
  %v111 = vpack.c.b16 %v108, %v107
  %v112 = vpack.c.b16 %v110, %v109
  %vm115 = vcmask 261120
  %v117 = vsel %vm115, %v98, 0
  %119 = vmatpush.bf16.msra.mxu0 0
  %120 = vmatpush.bf16.msra.mxu0 0
  %121 = vmatpush.bf16.msra.mxu0 0
  %122 = vmatpush.bf16.msra.mxu0 0
  %123 = vmatpush.bf16.msra.mxu0 0
  %124 = vmatpush.bf16.msra.mxu0 0
  %125 = vmatpush.bf16.msra.mxu0 %v112
  %126 = vmatpush.bf16.msra.mxu0 %v111
  %127 = vmatmul.bf16.gmra.mxu0 %v117
  %v128 = vpop.f32.mrf.mxu0
  %v129 = vadd.f32 %v101, %v128
  %v130 = vpop.f32.mrf.mxu0
  %v131 = vadd.f32 %v101, %v130
  %132 = vdwg.mxu0
  %v133 = vpack.c.bf16 %v82, %v81
  %134 = vrot.lane.b32.xlu0 %v111, 64
  %v135 = vpop.permute.xlu0 %134
  %136 = vrot.lane.b32.xlu0 %v112, 64
  %v137 = vpop.permute.xlu0 %136
  %140 = vrot.lane.b32.xlu0 %v101, 64
  %v141 = vpop.permute.xlu0 %140
  %v144 = vsel %vm115, %v133, 0
  %146 = vmatpush.bf16.msra.mxu0 0
  %147 = vmatpush.bf16.msra.mxu0 0
  %148 = vmatpush.bf16.msra.mxu0 0
  %149 = vmatpush.bf16.msra.mxu0 0
  %150 = vmatpush.bf16.msra.mxu0 0
  %151 = vmatpush.bf16.msra.mxu0 0
  %152 = vmatpush.bf16.msra.mxu0 %v137
  %153 = vmatpush.bf16.msra.mxu0 %v135
  %154 = vmatmul.bf16.gmra.mxu0 %v144
  %v155 = vpop.f32.mrf.mxu0
  %v156 = vadd.f32 %v141, %v155
  %v157 = vpop.f32.mrf.mxu0
  %v158 = vadd.f32 %v141, %v157
  %159 = vdwg.mxu0
  %v160 = vpack.c.bf16 %v129, %v129
  %162 = vrot.lane.b32.xlu0 %v160, 96
  %v163 = vpop.permute.xlu0 %162
  %vm164 = vcmask 64512
  %v166 = vsel %vm164, %v160, 0
  %v169 = vsel %vm164, %v163, 0
  %171 = vmatpush.bf16.xpose.msra.mxu0 0
  %172 = vmatpush.bf16.xpose.msra.mxu0 0
  %173 = vmatpush.bf16.xpose.msra.mxu0 0
  %174 = vmatpush.bf16.xpose.msra.mxu0 0
  %175 = vmatpush.bf16.xpose.msra.mxu0 0
  %176 = vmatpush.bf16.xpose.msra.mxu0 0
  %177 = vmatpush.bf16.xpose.msra.mxu0 0
  %178 = vmatpush.bf16.xpose.msra.mxu0 %v169
  %179 = vmatmul.bf16.gmra.mxu0 %v166
  %v180 = vpop.f32.mrf.mxu0
  %v181 = vadd.f32 0.0, %v180
  %v182 = vpop.f32.mrf.mxu0
  %183 = vdwg.mxu0
  %v184 = vsel %vm164, %v181, -inf
  %185 = vmax.xlane.f32.xlu0 %v184
  %v186 = vpop.xlane.xlu0 %185
  %v187 = vsub.f32 %v181, %v186
  %v188 = vmul.f32 %v187, 1.442695
  %v189 = vpow.pop %v188
  %v190 = vsel %vm164, %v189, 0.0
  %191 = vadd.xlane.f32.xlu0 %v190
  %v192 = vpop.xlane.xlu0 %191
  %v193 = vrcp.pop %v192
  %v194 = vmul.f32 %v192, %v193
  %v195 = vsub.f32 1.0, %v194
  %v196 = vmul.f32 %v193, %v195
  %v197 = vadd.f32 %v193, %v196
  %vm198 = vweird.f32 %v192
  %vm199 = vweird.f32 %v193
  %vm200 = vmor %vm198, %vm199
  %v201 = vsel %vm200, %v193, %v197
  %v202 = vand.u32 2147483647, %v192
  %vm203 = vcmp.eq.f32.partialorder %v202, 8.507059e+37
  %v204 = vand.u32 %v192, 2147483648
  %v205 = vor.u32 1.1754944e-38, %v204
  %v206 = vsel %vm203, %v205, %v201
  %v207 = vmul.f32 %v189, %v206
  %v208 = vpack.c.bf16 %v207, %v207
  %v209 = vpack.c.bf16 %v156, %v156
  %v211 = vsel %vm164, %v208, 0
  %vm213 = vcmask 1043456
  %v215 = vsel %vm213, %v209, 0
  %217 = vmatpush.bf16.msra.mxu0 0
  %218 = vmatpush.bf16.msra.mxu0 0
  %219 = vmatpush.bf16.msra.mxu0 0
  %220 = vmatpush.bf16.msra.mxu0 0
  %221 = vmatpush.bf16.msra.mxu0 0
  %222 = vmatpush.bf16.msra.mxu0 0
  %223 = vmatpush.bf16.msra.mxu0 0
  %224 = vmatpush.bf16.msra.mxu0 %v215
  %225 = vmatmul.bf16.gmra.mxu0 %v211
  %v226 = vpop.f32.mrf.mxu0
  %v227 = vadd.f32 0.0, %v226
  %v228 = vpop.f32.mrf.mxu0
  %229 = vdwg.mxu0
  %230 = vrot.lane.b32.xlu0 %v160, 120
  %v231 = vpop.permute.xlu0 %230
  %232 = vrot.lane.b32.xlu0 %v160, 88
  %v233 = vpop.permute.xlu0 %232
  %v235 = vsel %vm164, %v231, 0
  %v238 = vsel %vm164, %v233, 0
  %240 = vmatpush.bf16.xpose.msra.mxu0 0
  %241 = vmatpush.bf16.xpose.msra.mxu0 0
  %242 = vmatpush.bf16.xpose.msra.mxu0 0
  %243 = vmatpush.bf16.xpose.msra.mxu0 0
  %244 = vmatpush.bf16.xpose.msra.mxu0 0
  %245 = vmatpush.bf16.xpose.msra.mxu0 0
  %246 = vmatpush.bf16.xpose.msra.mxu0 0
  %247 = vmatpush.bf16.xpose.msra.mxu0 %v238
  %248 = vmatmul.bf16.gmra.mxu0 %v235
  %v249 = vpop.f32.mrf.mxu0
  %v250 = vadd.f32 0.0, %v249
  %v251 = vpop.f32.mrf.mxu0
  %252 = vdwg.mxu0
  %v253 = vsel %vm164, %v250, -inf
  %254 = vmax.xlane.f32.xlu0 %v253
  %v255 = vpop.xlane.xlu0 %254
  %v256 = vsub.f32 %v250, %v255
  %v257 = vmul.f32 %v256, 1.442695
  %v258 = vpow.pop %v257
  %v259 = vsel %vm164, %v258, 0.0
  %260 = vadd.xlane.f32.xlu0 %v259
  %v261 = vpop.xlane.xlu0 %260
  %v262 = vrcp.pop %v261
  %v263 = vmul.f32 %v261, %v262
  %v264 = vsub.f32 1.0, %v263
  %v265 = vmul.f32 %v262, %v264
  %v266 = vadd.f32 %v262, %v265
  %vm267 = vweird.f32 %v261
  %vm268 = vweird.f32 %v262
  %vm269 = vmor %vm267, %vm268
  %v270 = vsel %vm269, %v262, %v266
  %v271 = vand.u32 2147483647, %v261
  %vm272 = vcmp.eq.f32.partialorder %v271, 8.507059e+37
  %v273 = vand.u32 %v261, 2147483648
  %v274 = vor.u32 1.1754944e-38, %v273
  %v275 = vsel %vm272, %v274, %v270
  %v276 = vmul.f32 %v258, %v275
  %v277 = vpack.c.bf16 %v276, %v276
  %279 = vrot.lane.b32.xlu0 %v209, 120
  %v280 = vpop.permute.xlu0 %279
  %v282 = vsel %vm164, %v277, 0
  %v285 = vsel %vm213, %v280, 0
  %287 = vmatpush.bf16.msra.mxu0 0
  %288 = vmatpush.bf16.msra.mxu0 0
  %289 = vmatpush.bf16.msra.mxu0 0
  %290 = vmatpush.bf16.msra.mxu0 0
  %291 = vmatpush.bf16.msra.mxu0 0
  %292 = vmatpush.bf16.msra.mxu0 0
  %293 = vmatpush.bf16.msra.mxu0 0
  %294 = vmatpush.bf16.msra.mxu0 %v285
  %295 = vmatmul.bf16.gmra.mxu0 %v282
  %v296 = vpop.f32.mrf.mxu0
  %v297 = vadd.f32 0.0, %v296
  %v298 = vpop.f32.mrf.mxu0
  %299 = vdwg.mxu0
  %300 = vrot.lane.b32.xlu0 %v160, 112
  %v301 = vpop.permute.xlu0 %300
  %302 = vrot.lane.b32.xlu0 %v160, 80
  %v303 = vpop.permute.xlu0 %302
  %v305 = vsel %vm164, %v301, 0
  %v308 = vsel %vm164, %v303, 0
  %310 = vmatpush.bf16.xpose.msra.mxu0 0
  %311 = vmatpush.bf16.xpose.msra.mxu0 0
  %312 = vmatpush.bf16.xpose.msra.mxu0 0
  %313 = vmatpush.bf16.xpose.msra.mxu0 0
  %314 = vmatpush.bf16.xpose.msra.mxu0 0
  %315 = vmatpush.bf16.xpose.msra.mxu0 0
  %316 = vmatpush.bf16.xpose.msra.mxu0 0
  %317 = vmatpush.bf16.xpose.msra.mxu0 %v308
  %318 = vmatmul.bf16.gmra.mxu0 %v305
  %v319 = vpop.f32.mrf.mxu0
  %v320 = vadd.f32 0.0, %v319
  %v321 = vpop.f32.mrf.mxu0
  %322 = vdwg.mxu0
  %v323 = vsel %vm164, %v320, -inf
  %324 = vmax.xlane.f32.xlu0 %v323
  %v325 = vpop.xlane.xlu0 %324
  %v326 = vsub.f32 %v320, %v325
  %v327 = vmul.f32 %v326, 1.442695
  %v328 = vpow.pop %v327
  %v329 = vsel %vm164, %v328, 0.0
  %330 = vadd.xlane.f32.xlu0 %v329
  %v331 = vpop.xlane.xlu0 %330
  %v332 = vrcp.pop %v331
  %v333 = vmul.f32 %v331, %v332
  %v334 = vsub.f32 1.0, %v333
  %v335 = vmul.f32 %v332, %v334
  %v336 = vadd.f32 %v332, %v335
  %vm337 = vweird.f32 %v331
  %vm338 = vweird.f32 %v332
  %vm339 = vmor %vm337, %vm338
  %v340 = vsel %vm339, %v332, %v336
  %v341 = vand.u32 2147483647, %v331
  %vm342 = vcmp.eq.f32.partialorder %v341, 8.507059e+37
  %v343 = vand.u32 %v331, 2147483648
  %v344 = vor.u32 1.1754944e-38, %v343
  %v345 = vsel %vm342, %v344, %v340
  %v346 = vmul.f32 %v328, %v345
  %v347 = vpack.c.bf16 %v346, %v346
  %348 = vrot.lane.b32.xlu0 %v209, 112
  %v349 = vpop.permute.xlu0 %348
  %v351 = vsel %vm164, %v347, 0
  %v354 = vsel %vm213, %v349, 0
  %356 = vmatpush.bf16.msra.mxu0 0
  %357 = vmatpush.bf16.msra.mxu0 0
  %358 = vmatpush.bf16.msra.mxu0 0
  %359 = vmatpush.bf16.msra.mxu0 0
  %360 = vmatpush.bf16.msra.mxu0 0
  %361 = vmatpush.bf16.msra.mxu0 0
  %362 = vmatpush.bf16.msra.mxu0 0
  %363 = vmatpush.bf16.msra.mxu0 %v354
  %364 = vmatmul.bf16.gmra.mxu0 %v351
  %v365 = vpop.f32.mrf.mxu0
  %v366 = vadd.f32 0.0, %v365
  %v367 = vpop.f32.mrf.mxu0
  %368 = vdwg.mxu0
  %369 = vrot.lane.b32.xlu0 %v160, 104
  %v370 = vpop.permute.xlu0 %369
  %371 = vrot.lane.b32.xlu0 %v160, 72
  %v372 = vpop.permute.xlu0 %371
  %v374 = vsel %vm164, %v370, 0
  %v377 = vsel %vm164, %v372, 0
  %379 = vmatpush.bf16.xpose.msra.mxu0 0
  %380 = vmatpush.bf16.xpose.msra.mxu0 0
  %381 = vmatpush.bf16.xpose.msra.mxu0 0
  %382 = vmatpush.bf16.xpose.msra.mxu0 0
  %383 = vmatpush.bf16.xpose.msra.mxu0 0
  %384 = vmatpush.bf16.xpose.msra.mxu0 0
  %385 = vmatpush.bf16.xpose.msra.mxu0 0
  %386 = vmatpush.bf16.xpose.msra.mxu0 %v377
  %387 = vmatmul.bf16.gmra.mxu0 %v374
  %v388 = vpop.f32.mrf.mxu0
  %v389 = vadd.f32 0.0, %v388
  %v390 = vpop.f32.mrf.mxu0
  %391 = vdwg.mxu0
  %v392 = vsel %vm164, %v389, -inf
  %393 = vmax.xlane.f32.xlu0 %v392
  %v394 = vpop.xlane.xlu0 %393
  %v395 = vsub.f32 %v389, %v394
  %v396 = vmul.f32 %v395, 1.442695
  %v397 = vpow.pop %v396
  %v398 = vsel %vm164, %v397, 0.0
  %399 = vadd.xlane.f32.xlu0 %v398
  %v400 = vpop.xlane.xlu0 %399
  %v401 = vrcp.pop %v400
  %v402 = vmul.f32 %v400, %v401
  %v403 = vsub.f32 1.0, %v402
  %v404 = vmul.f32 %v401, %v403
  %v405 = vadd.f32 %v401, %v404
  %vm406 = vweird.f32 %v400
  %vm407 = vweird.f32 %v401
  %vm408 = vmor %vm406, %vm407
  %v409 = vsel %vm408, %v401, %v405
  %v410 = vand.u32 2147483647, %v400
  %vm411 = vcmp.eq.f32.partialorder %v410, 8.507059e+37
  %v412 = vand.u32 %v400, 2147483648
  %v413 = vor.u32 1.1754944e-38, %v412
  %v414 = vsel %vm411, %v413, %v409
  %v415 = vmul.f32 %v397, %v414
  %v416 = vpack.c.bf16 %v415, %v415
  %417 = vrot.lane.b32.xlu0 %v209, 104
  %v418 = vpop.permute.xlu0 %417
  %v420 = vsel %vm164, %v416, 0
  %v423 = vsel %vm213, %v418, 0
  %425 = vmatpush.bf16.msra.mxu0 0
  %426 = vmatpush.bf16.msra.mxu0 0
  %427 = vmatpush.bf16.msra.mxu0 0
  %428 = vmatpush.bf16.msra.mxu0 0
  %429 = vmatpush.bf16.msra.mxu0 0
  %430 = vmatpush.bf16.msra.mxu0 0
  %431 = vmatpush.bf16.msra.mxu0 0
  %432 = vmatpush.bf16.msra.mxu0 %v423
  %433 = vmatmul.bf16.gmra.mxu0 %v420
  %v434 = vpop.f32.mrf.mxu0
  %v435 = vadd.f32 0.0, %v434
  %v436 = vpop.f32.mrf.mxu0
  %437 = vdwg.mxu0
  %439 = vrot.lane.b32.xlu0 %v297, 8
  %v440 = vpop.permute.xlu0 %439
  %443 = vrot.lane.b32.xlu0 %v366, 16
  %v444 = vpop.permute.xlu0 %443
  %447 = vrot.lane.b32.xlu0 %v435, 24
  %v448 = vpop.permute.xlu0 %447
  %v450 = vsel %vm164, %v227, %v440
  %vm451 = vcmask 130048
  %v452 = vsel %vm451, %v450, %v444
  %vm453 = vcmask 195584
  %v454 = vsel %vm453, %v452, %v448
  %v455 = vpack.c.bf16 %v131, %v131
  %457 = vrot.lane.b32.xlu0 %v455, 96
  %v458 = vpop.permute.xlu0 %457
  %v460 = vsel %vm164, %v455, 0
  %v463 = vsel %vm164, %v458, 0
  %465 = vmatpush.bf16.xpose.msra.mxu0 0
  %466 = vmatpush.bf16.xpose.msra.mxu0 0
  %467 = vmatpush.bf16.xpose.msra.mxu0 0
  %468 = vmatpush.bf16.xpose.msra.mxu0 0
  %469 = vmatpush.bf16.xpose.msra.mxu0 0
  %470 = vmatpush.bf16.xpose.msra.mxu0 0
  %471 = vmatpush.bf16.xpose.msra.mxu0 0
  %472 = vmatpush.bf16.xpose.msra.mxu0 %v463
  %473 = vmatmul.bf16.gmra.mxu0 %v460
  %v474 = vpop.f32.mrf.mxu0
  %v475 = vadd.f32 0.0, %v474
  %v476 = vpop.f32.mrf.mxu0
  %477 = vdwg.mxu0
  %v478 = vsel %vm164, %v475, -inf
  %479 = vmax.xlane.f32.xlu0 %v478
  %v480 = vpop.xlane.xlu0 %479
  %v481 = vsub.f32 %v475, %v480
  %v482 = vmul.f32 %v481, 1.442695
  %v483 = vpow.pop %v482
  %v484 = vsel %vm164, %v483, 0.0
  %485 = vadd.xlane.f32.xlu0 %v484
  %v486 = vpop.xlane.xlu0 %485
  %v487 = vrcp.pop %v486
  %v488 = vmul.f32 %v486, %v487
  %v489 = vsub.f32 1.0, %v488
  %v490 = vmul.f32 %v487, %v489
  %v491 = vadd.f32 %v487, %v490
  %vm492 = vweird.f32 %v486
  %vm493 = vweird.f32 %v487
  %vm494 = vmor %vm492, %vm493
  %v495 = vsel %vm494, %v487, %v491
  %v496 = vand.u32 2147483647, %v486
  %vm497 = vcmp.eq.f32.partialorder %v496, 8.507059e+37
  %v498 = vand.u32 %v486, 2147483648
  %v499 = vor.u32 1.1754944e-38, %v498
  %v500 = vsel %vm497, %v499, %v495
  %v501 = vmul.f32 %v483, %v500
  %v502 = vpack.c.bf16 %v501, %v501
  %v503 = vpack.c.bf16 %v158, %v158
  %v505 = vsel %vm164, %v502, 0
  %v508 = vsel %vm213, %v503, 0
  %510 = vmatpush.bf16.msra.mxu0 0
  %511 = vmatpush.bf16.msra.mxu0 0
  %512 = vmatpush.bf16.msra.mxu0 0
  %513 = vmatpush.bf16.msra.mxu0 0
  %514 = vmatpush.bf16.msra.mxu0 0
  %515 = vmatpush.bf16.msra.mxu0 0
  %516 = vmatpush.bf16.msra.mxu0 0
  %517 = vmatpush.bf16.msra.mxu0 %v508
  %518 = vmatmul.bf16.gmra.mxu0 %v505
  %v519 = vpop.f32.mrf.mxu0
  %v520 = vadd.f32 0.0, %v519
  %v521 = vpop.f32.mrf.mxu0
  %522 = vdwg.mxu0
  %523 = vrot.lane.b32.xlu0 %v455, 120
  %v524 = vpop.permute.xlu0 %523
  %525 = vrot.lane.b32.xlu0 %v455, 88
  %v526 = vpop.permute.xlu0 %525
  %v528 = vsel %vm164, %v524, 0
  %v531 = vsel %vm164, %v526, 0
  %533 = vmatpush.bf16.xpose.msra.mxu0 0
  %534 = vmatpush.bf16.xpose.msra.mxu0 0
  %535 = vmatpush.bf16.xpose.msra.mxu0 0
  %536 = vmatpush.bf16.xpose.msra.mxu0 0
  %537 = vmatpush.bf16.xpose.msra.mxu0 0
  %538 = vmatpush.bf16.xpose.msra.mxu0 0
  %539 = vmatpush.bf16.xpose.msra.mxu0 0
  %540 = vmatpush.bf16.xpose.msra.mxu0 %v531
  %541 = vmatmul.bf16.gmra.mxu0 %v528
  %v542 = vpop.f32.mrf.mxu0
  %v543 = vadd.f32 0.0, %v542
  %v544 = vpop.f32.mrf.mxu0
  %545 = vdwg.mxu0
  %v546 = vsel %vm164, %v543, -inf
  %547 = vmax.xlane.f32.xlu0 %v546
  %v548 = vpop.xlane.xlu0 %547
  %v549 = vsub.f32 %v543, %v548
  %v550 = vmul.f32 %v549, 1.442695
  %v551 = vpow.pop %v550
  %v552 = vsel %vm164, %v551, 0.0
  %553 = vadd.xlane.f32.xlu0 %v552
  %v554 = vpop.xlane.xlu0 %553
  %v555 = vrcp.pop %v554
  %v556 = vmul.f32 %v554, %v555
  %v557 = vsub.f32 1.0, %v556
  %v558 = vmul.f32 %v555, %v557
  %v559 = vadd.f32 %v555, %v558
  %vm560 = vweird.f32 %v554
  %vm561 = vweird.f32 %v555
  %vm562 = vmor %vm560, %vm561
  %v563 = vsel %vm562, %v555, %v559
  %v564 = vand.u32 2147483647, %v554
  %vm565 = vcmp.eq.f32.partialorder %v564, 8.507059e+37
  %v566 = vand.u32 %v554, 2147483648
  %v567 = vor.u32 1.1754944e-38, %v566
  %v568 = vsel %vm565, %v567, %v563
  %v569 = vmul.f32 %v551, %v568
  %v570 = vpack.c.bf16 %v569, %v569
  %572 = vrot.lane.b32.xlu0 %v503, 120
  %v573 = vpop.permute.xlu0 %572
  %v575 = vsel %vm164, %v570, 0
  %v578 = vsel %vm213, %v573, 0
  %580 = vmatpush.bf16.msra.mxu0 0
  %581 = vmatpush.bf16.msra.mxu0 0
  %582 = vmatpush.bf16.msra.mxu0 0
  %583 = vmatpush.bf16.msra.mxu0 0
  %584 = vmatpush.bf16.msra.mxu0 0
  %585 = vmatpush.bf16.msra.mxu0 0
  %586 = vmatpush.bf16.msra.mxu0 0
  %587 = vmatpush.bf16.msra.mxu0 %v578
  %588 = vmatmul.bf16.gmra.mxu0 %v575
  %v589 = vpop.f32.mrf.mxu0
  %v590 = vadd.f32 0.0, %v589
  %v591 = vpop.f32.mrf.mxu0
  %592 = vdwg.mxu0
  %593 = vrot.lane.b32.xlu0 %v455, 112
  %v594 = vpop.permute.xlu0 %593
  %595 = vrot.lane.b32.xlu0 %v455, 80
  %v596 = vpop.permute.xlu0 %595
  %v598 = vsel %vm164, %v594, 0
  %v601 = vsel %vm164, %v596, 0
  %603 = vmatpush.bf16.xpose.msra.mxu0 0
  %604 = vmatpush.bf16.xpose.msra.mxu0 0
  %605 = vmatpush.bf16.xpose.msra.mxu0 0
  %606 = vmatpush.bf16.xpose.msra.mxu0 0
  %607 = vmatpush.bf16.xpose.msra.mxu0 0
  %608 = vmatpush.bf16.xpose.msra.mxu0 0
  %609 = vmatpush.bf16.xpose.msra.mxu0 0
  %610 = vmatpush.bf16.xpose.msra.mxu0 %v601
  %611 = vmatmul.bf16.gmra.mxu0 %v598
  %v612 = vpop.f32.mrf.mxu0
  %v613 = vadd.f32 0.0, %v612
  %v614 = vpop.f32.mrf.mxu0
  %615 = vdwg.mxu0
  %v616 = vsel %vm164, %v613, -inf
  %617 = vmax.xlane.f32.xlu0 %v616
  %v618 = vpop.xlane.xlu0 %617
  %v619 = vsub.f32 %v613, %v618
  %v620 = vmul.f32 %v619, 1.442695
  %v621 = vpow.pop %v620
  %v622 = vsel %vm164, %v621, 0.0
  %623 = vadd.xlane.f32.xlu0 %v622
  %v624 = vpop.xlane.xlu0 %623
  %v625 = vrcp.pop %v624
  %v626 = vmul.f32 %v624, %v625
  %v627 = vsub.f32 1.0, %v626
  %v628 = vmul.f32 %v625, %v627
  %v629 = vadd.f32 %v625, %v628
  %vm630 = vweird.f32 %v624
  %vm631 = vweird.f32 %v625
  %vm632 = vmor %vm630, %vm631
  %v633 = vsel %vm632, %v625, %v629
  %v634 = vand.u32 2147483647, %v624
  %vm635 = vcmp.eq.f32.partialorder %v634, 8.507059e+37
  %v636 = vand.u32 %v624, 2147483648
  %v637 = vor.u32 1.1754944e-38, %v636
  %v638 = vsel %vm635, %v637, %v633
  %v639 = vmul.f32 %v621, %v638
  %v640 = vpack.c.bf16 %v639, %v639
  %641 = vrot.lane.b32.xlu0 %v503, 112
  %v642 = vpop.permute.xlu0 %641
  %v644 = vsel %vm164, %v640, 0
  %v647 = vsel %vm213, %v642, 0
  %649 = vmatpush.bf16.msra.mxu0 0
  %650 = vmatpush.bf16.msra.mxu0 0
  %651 = vmatpush.bf16.msra.mxu0 0
  %652 = vmatpush.bf16.msra.mxu0 0
  %653 = vmatpush.bf16.msra.mxu0 0
  %654 = vmatpush.bf16.msra.mxu0 0
  %655 = vmatpush.bf16.msra.mxu0 0
  %656 = vmatpush.bf16.msra.mxu0 %v647
  %657 = vmatmul.bf16.gmra.mxu0 %v644
  %v658 = vpop.f32.mrf.mxu0
  %v659 = vadd.f32 0.0, %v658
  %v660 = vpop.f32.mrf.mxu0
  %661 = vdwg.mxu0
  %662 = vrot.lane.b32.xlu0 %v455, 104
  %v663 = vpop.permute.xlu0 %662
  %664 = vrot.lane.b32.xlu0 %v455, 72
  %v665 = vpop.permute.xlu0 %664
  %v667 = vsel %vm164, %v663, 0
  %v670 = vsel %vm164, %v665, 0
  %672 = vmatpush.bf16.xpose.msra.mxu0 0
  %673 = vmatpush.bf16.xpose.msra.mxu0 0
  %674 = vmatpush.bf16.xpose.msra.mxu0 0
  %675 = vmatpush.bf16.xpose.msra.mxu0 0
  %676 = vmatpush.bf16.xpose.msra.mxu0 0
  %677 = vmatpush.bf16.xpose.msra.mxu0 0
  %678 = vmatpush.bf16.xpose.msra.mxu0 0
  %679 = vmatpush.bf16.xpose.msra.mxu0 %v670
  %680 = vmatmul.bf16.gmra.mxu0 %v667
  %v681 = vpop.f32.mrf.mxu0
  %v682 = vadd.f32 0.0, %v681
  %v683 = vpop.f32.mrf.mxu0
  %684 = vdwg.mxu0
  %v685 = vsel %vm164, %v682, -inf
  %686 = vmax.xlane.f32.xlu0 %v685
  %v687 = vpop.xlane.xlu0 %686
  %v688 = vsub.f32 %v682, %v687
  %v689 = vmul.f32 %v688, 1.442695
  %v690 = vpow.pop %v689
  %v691 = vsel %vm164, %v690, 0.0
  %692 = vadd.xlane.f32.xlu0 %v691
  %v693 = vpop.xlane.xlu0 %692
  %v694 = vrcp.pop %v693
  %v695 = vmul.f32 %v693, %v694
  %v696 = vsub.f32 1.0, %v695
  %v697 = vmul.f32 %v694, %v696
  %v698 = vadd.f32 %v694, %v697
  %vm699 = vweird.f32 %v693
  %vm700 = vweird.f32 %v694
  %vm701 = vmor %vm699, %vm700
  %v702 = vsel %vm701, %v694, %v698
  %v703 = vand.u32 2147483647, %v693
  %vm704 = vcmp.eq.f32.partialorder %v703, 8.507059e+37
  %v705 = vand.u32 %v693, 2147483648
  %v706 = vor.u32 1.1754944e-38, %v705
  %v707 = vsel %vm704, %v706, %v702
  %v708 = vmul.f32 %v690, %v707
  %v709 = vpack.c.bf16 %v708, %v708
  %710 = vrot.lane.b32.xlu0 %v503, 104
  %v711 = vpop.permute.xlu0 %710
  %v713 = vsel %vm164, %v709, 0
  %v716 = vsel %vm213, %v711, 0
  %718 = vmatpush.bf16.msra.mxu0 0
  %719 = vmatpush.bf16.msra.mxu0 0
  %720 = vmatpush.bf16.msra.mxu0 0
  %721 = vmatpush.bf16.msra.mxu0 0
  %722 = vmatpush.bf16.msra.mxu0 0
  %723 = vmatpush.bf16.msra.mxu0 0
  %724 = vmatpush.bf16.msra.mxu0 0
  %725 = vmatpush.bf16.msra.mxu0 %v716
  %726 = vmatmul.bf16.gmra.mxu0 %v713
  %v727 = vpop.f32.mrf.mxu0
  %v728 = vadd.f32 0.0, %v727
  %v729 = vpop.f32.mrf.mxu0
  %730 = vdwg.mxu0
  %732 = vrot.lane.b32.xlu0 %v590, 8
  %v733 = vpop.permute.xlu0 %732
  %736 = vrot.lane.b32.xlu0 %v659, 16
  %v737 = vpop.permute.xlu0 %736
  %740 = vrot.lane.b32.xlu0 %v728, 24
  %v741 = vpop.permute.xlu0 %740
  %v743 = vsel %vm164, %v520, %v733
  %v744 = vsel %vm451, %v743, %v737
  %v745 = vsel %vm453, %v744, %v741
  %v746 = vld [vmem:[%s7] sm:$0xf]
  %v747 = vld [vmem:[%s7 + $0x4] sm:$0xf]
  %v748 = vld [vmem:[%s7 + $0x8] sm:$0xf]
  %v749 = vld [vmem:[%s7 + $0xc] sm:$0xf]
  %v750 = vpack.c.bf16 %v745, %v454
  %v751 = vld [vmem:[%s8] sm:$0x1]
  %v753 = vperm.slane %v751, 0
  %v759 = vunpack.c.l.b16 %v746
  %v760 = vunpack.c.l.b16 %v747
  %v761 = vunpack.c.l.b16 %v748
  %v762 = vunpack.c.l.b16 %v749
  %v763 = vpack.c.b16 %v760, %v759
  %v764 = vpack.c.b16 %v762, %v761
  %v768 = vsel %vm115, %v750, 0
  %770 = vmatpush.bf16.msra.mxu0 0
  %771 = vmatpush.bf16.msra.mxu0 0
  %772 = vmatpush.bf16.msra.mxu0 0
  %773 = vmatpush.bf16.msra.mxu0 0
  %774 = vmatpush.bf16.msra.mxu0 0
  %775 = vmatpush.bf16.msra.mxu0 0
  %776 = vmatpush.bf16.msra.mxu0 %v764
  %777 = vmatpush.bf16.msra.mxu0 %v763
  %778 = vmatmul.bf16.gmra.mxu0 %v768
  %v779 = vpop.f32.mrf.mxu0
  %v780 = vadd.f32 %v753, %v779
  %v781 = vpop.f32.mrf.mxu0
  %v782 = vadd.f32 %v753, %v781
  %783 = vdwg.mxu0
  %v784 = vadd.f32 %v81, %v780
  %v785 = vadd.f32 %v82, %v782
  %v786 = vld [vmem:[%s9] sm:$0x1]
  %v787 = vld [vmem:[%s10] sm:$0x1]
  %v788 = vsel %vm115, %v784, 0.0
  %789 = vadd.xlane.f32.xlu0 %v788
  %v790 = vpop.xlane.xlu0 %789
  %v791 = vsel %vm115, %v785, 0.0
  %792 = vadd.xlane.f32.xlu0 %v791
  %v793 = vpop.xlane.xlu0 %792
  %v794 = vrcp.pop 32.0
  %v795 = vmul.f32 32.0, %v794
  %v796 = vsub.f32 1.0, %v795
  %v797 = vmul.f32 %v794, %v796
  %v798 = vadd.f32 %v794, %v797
  %vm799 = vweird.f32 %v794
  %v800 = vsel %vm799, %v794, %v798
  %v801 = vmul.f32 %v790, %v800
  %v802 = vmul.f32 %v793, %v800
  %v803 = vsub.f32 %v784, %v801
  %v804 = vsub.f32 %v785, %v802
  %v805 = vmul.f32 %v803, %v803
  %v806 = vmul.f32 %v804, %v804
  %v807 = vsel %vm115, %v805, 0.0
  %808 = vadd.xlane.f32.xlu0 %v807
  %v809 = vpop.xlane.xlu0 %808
  %v810 = vsel %vm115, %v806, 0.0
  %811 = vadd.xlane.f32.xlu0 %v810
  %v812 = vpop.xlane.xlu0 %811
  %v813 = vmul.f32 %v809, %v800
  %v814 = vmul.f32 %v812, %v800
  %v815 = vadd.f32 %v813, 1e-05
  %v816 = vadd.f32 %v814, 1e-05
  %v817 = vrsqrt.pop %v815
  %v818 = vmul.f32 %v817, %v815
  %v819 = vmul.f32 %v818, %v817
  %v820 = vmul.f32 0.5, %v819
  %v821 = vsub.f32 1.5, %v820
  %v822 = vmul.f32 %v817, %v821
  %vm823 = vweird.f32 %v815
  %vm824 = vweird.f32 %v817
  %vm825 = vmor %vm823, %vm824
  %v826 = vsel %vm825, %v817, %v822
  %v827 = vrsqrt.pop %v816
  %v828 = vmul.f32 %v827, %v816
  %v829 = vmul.f32 %v828, %v827
  %v830 = vmul.f32 0.5, %v829
  %v831 = vsub.f32 1.5, %v830
  %v832 = vmul.f32 %v827, %v831
  %vm833 = vweird.f32 %v816
  %vm834 = vweird.f32 %v827
  %vm835 = vmor %vm833, %vm834
  %v836 = vsel %vm835, %v827, %v832
  %v837 = vmul.f32 %v803, %v826
  %v838 = vmul.f32 %v804, %v836
  %v840 = vperm.slane %v786, 0
  %v842 = vmul.f32 %v837, %v840
  %v843 = vmul.f32 %v838, %v840
  %v845 = vperm.slane %v787, 0
  %v847 = vadd.f32 %v842, %v845
  %v848 = vadd.f32 %v843, %v845
  %v849 = vld [vmem:[%s11] sm:$0xf]
  %v850 = vld [vmem:[%s11 + $0x4] sm:$0xf]
  %v851 = vld [vmem:[%s11 + $0x8] sm:$0xf]
  %v852 = vld [vmem:[%s11 + $0xc] sm:$0xf]
  %v853 = vadd.f32 %v847, %v87
  %v854 = vadd.f32 %v848, %v87
  %v855 = vpack.c.bf16 %v854, %v853
  %v856 = vld [vmem:[%s12] sm:$0x1]
  %v858 = vperm.slane %v856, 0
  %v864 = vunpack.c.l.b16 %v849
  %v865 = vunpack.c.l.b16 %v850
  %v866 = vunpack.c.l.b16 %v851
  %v867 = vunpack.c.l.b16 %v852
  %v868 = vpack.c.b16 %v865, %v864
  %v869 = vpack.c.b16 %v867, %v866
  %v873 = vsel %vm115, %v855, 0
  %875 = vmatpush.bf16.msra.mxu0 0
  %876 = vmatpush.bf16.msra.mxu0 0
  %877 = vmatpush.bf16.msra.mxu0 0
  %878 = vmatpush.bf16.msra.mxu0 0
  %879 = vmatpush.bf16.msra.mxu0 0
  %880 = vmatpush.bf16.msra.mxu0 0
  %881 = vmatpush.bf16.msra.mxu0 %v869
  %882 = vmatpush.bf16.msra.mxu0 %v868
  %883 = vmatmul.bf16.gmra.mxu0 %v873
  %v884 = vpop.f32.mrf.mxu0
  %v885 = vadd.f32 %v858, %v884
  %v886 = vpop.f32.mrf.mxu0
  %v887 = vadd.f32 %v858, %v886
  %888 = vdwg.mxu0
  %v889 = vadd.f32 %v83, %v88
  %v890 = vadd.f32 %v84, %v89
  %v891 = vadd.f32 %v85, %v90
  %v892 = vadd.f32 %v86, %v91
  %v893 = vpack.c.bf16 %v890, %v889
  %v894 = vpack.c.bf16 %v892, %v891
  %895 = vrot.lane.b32.xlu0 %v868, 96
  %v896 = vpop.permute.xlu0 %895
  %897 = vrot.lane.b32.xlu0 %v869, 96
  %v898 = vpop.permute.xlu0 %897
  %901 = vrot.lane.b32.xlu0 %v858, 96
  %v902 = vpop.permute.xlu0 %901
  %v905 = vsel %vm115, %v893, 0
  %v908 = vsel %vm115, %v894, 0
  %910 = vmatpush.bf16.msra.mxu0 0
  %911 = vmatpush.bf16.msra.mxu0 0
  %912 = vmatpush.bf16.msra.mxu0 0
  %913 = vmatpush.bf16.msra.mxu0 0
  %914 = vmatpush.bf16.msra.mxu0 0
  %915 = vmatpush.bf16.msra.mxu0 0
  %916 = vmatpush.bf16.msra.mxu0 %v898
  %917 = vmatpush.bf16.msra.mxu0 %v896
  %918 = vmatmul.bf16.gmra.mxu0 %v905
  %v919 = vpop.f32.mrf.mxu0
  %v920 = vadd.f32 %v902, %v919
  %v921 = vpop.f32.mrf.mxu0
  %v922 = vadd.f32 %v902, %v921
  %923 = vmatmul.bf16.gmra.mxu0 %v908
  %v924 = vpop.f32.mrf.mxu0
  %v925 = vadd.f32 %v902, %v924
  %v926 = vpop.f32.mrf.mxu0
  %v927 = vadd.f32 %v902, %v926
  %928 = vdwg.mxu0
  %v929 = vpack.c.bf16 %v84, %v83
  %v930 = vpack.c.bf16 %v86, %v85
  %931 = vrot.lane.b32.xlu0 %v868, 64
  %v932 = vpop.permute.xlu0 %931
  %933 = vrot.lane.b32.xlu0 %v869, 64
  %v934 = vpop.permute.xlu0 %933
  %937 = vrot.lane.b32.xlu0 %v858, 64
  %v938 = vpop.permute.xlu0 %937
  %v941 = vsel %vm115, %v929, 0
  %v944 = vsel %vm115, %v930, 0
  %946 = vmatpush.bf16.msra.mxu0 0
  %947 = vmatpush.bf16.msra.mxu0 0
  %948 = vmatpush.bf16.msra.mxu0 0
  %949 = vmatpush.bf16.msra.mxu0 0
  %950 = vmatpush.bf16.msra.mxu0 0
  %951 = vmatpush.bf16.msra.mxu0 0
  %952 = vmatpush.bf16.msra.mxu0 %v934
  %953 = vmatpush.bf16.msra.mxu0 %v932
  %954 = vmatmul.bf16.gmra.mxu0 %v941
  %v955 = vpop.f32.mrf.mxu0
  %v956 = vadd.f32 %v938, %v955
  %v957 = vpop.f32.mrf.mxu0
  %v958 = vadd.f32 %v938, %v957
  %959 = vmatmul.bf16.gmra.mxu0 %v944
  %v960 = vpop.f32.mrf.mxu0
  %v961 = vadd.f32 %v938, %v960
  %v962 = vpop.f32.mrf.mxu0
  %v963 = vadd.f32 %v938, %v962
  %964 = vdwg.mxu0
  %v965 = vld [vmem:[%s4] sm:$0x1]
  %v967 = vperm.slane %v965, 0
  %v969 = vpack.c.bf16 %v885, %v885
  %v970 = vpack.c.bf16 %v922, %v920
  %v972 = vsel %vm164, %v969, 0
  %v975 = vsel %vm164, %v970, 0
  %977 = vmatpush.bf16.xpose.msra.mxu0 0
  %978 = vmatpush.bf16.xpose.msra.mxu0 0
  %979 = vmatpush.bf16.xpose.msra.mxu0 0
  %980 = vmatpush.bf16.xpose.msra.mxu0 0
  %981 = vmatpush.bf16.xpose.msra.mxu0 0
  %982 = vmatpush.bf16.xpose.msra.mxu0 0
  %983 = vmatpush.bf16.xpose.msra.mxu0 0
  %984 = vmatpush.bf16.xpose.msra.mxu0 %v975
  %985 = vmatmul.bf16.gmra.mxu0 %v972
  %v986 = vpop.f32.mrf.mxu0
  %v987 = vadd.f32 %v967, %v986
  %v988 = vpop.f32.mrf.mxu0
  %989 = vdwg.mxu0
  %v990 = vsel %vm451, %v987, -inf
  %991 = vmax.xlane.f32.xlu0 %v990
  %v992 = vpop.xlane.xlu0 %991
  %v993 = vsub.f32 %v987, %v992
  %v994 = vmul.f32 %v993, 1.442695
  %v995 = vpow.pop %v994
  %v996 = vsel %vm451, %v995, 0.0
  %997 = vadd.xlane.f32.xlu0 %v996
  %v998 = vpop.xlane.xlu0 %997
  %v999 = vrcp.pop %v998
  %v1000 = vmul.f32 %v998, %v999
  %v1001 = vsub.f32 1.0, %v1000
  %v1002 = vmul.f32 %v999, %v1001
  %v1003 = vadd.f32 %v999, %v1002
  %vm1004 = vweird.f32 %v998
  %vm1005 = vweird.f32 %v999
  %vm1006 = vmor %vm1004, %vm1005
  %v1007 = vsel %vm1006, %v999, %v1003
  %v1008 = vand.u32 2147483647, %v998
  %vm1009 = vcmp.eq.f32.partialorder %v1008, 8.507059e+37
  %v1010 = vand.u32 %v998, 2147483648
  %v1011 = vor.u32 1.1754944e-38, %v1010
  %v1012 = vsel %vm1009, %v1011, %v1007
  %v1013 = vmul.f32 %v995, %v1012
  %v1014 = vpack.c.bf16 %v1013, %v1013
  %v1015 = vpack.c.bf16 %v958, %v956
  %v1017 = vsel %vm451, %v1014, 0
  %1019 = vmatpush.bf16.msra.mxu0 0
  %1020 = vmatpush.bf16.msra.mxu0 0
  %1021 = vmatpush.bf16.msra.mxu0 0
  %1022 = vmatpush.bf16.msra.mxu0 0
  %1023 = vmatpush.bf16.msra.mxu0 0
  %1024 = vmatpush.bf16.msra.mxu0 0
  %1025 = vmatpush.bf16.msra.mxu0 0
  %1026 = vmatpush.bf16.msra.mxu0 %v1015
  %1027 = vmatmul.bf16.gmra.mxu0 %v1017
  %v1028 = vpop.f32.mrf.mxu0
  %v1029 = vadd.f32 0.0, %v1028
  %v1030 = vpop.f32.mrf.mxu0
  %1031 = vdwg.mxu0
  %1033 = vrot.lane.b32.xlu0 %v969, 120
  %v1034 = vpop.permute.xlu0 %1033
  %1036 = vrot.lane.b32.xlu0 %v970, 120
  %v1037 = vpop.permute.xlu0 %1036
  %v1039 = vsel %vm164, %v1034, 0
  %v1042 = vsel %vm164, %v1037, 0
  %1044 = vmatpush.bf16.xpose.msra.mxu0 0
  %1045 = vmatpush.bf16.xpose.msra.mxu0 0
  %1046 = vmatpush.bf16.xpose.msra.mxu0 0
  %1047 = vmatpush.bf16.xpose.msra.mxu0 0
  %1048 = vmatpush.bf16.xpose.msra.mxu0 0
  %1049 = vmatpush.bf16.xpose.msra.mxu0 0
  %1050 = vmatpush.bf16.xpose.msra.mxu0 0
  %1051 = vmatpush.bf16.xpose.msra.mxu0 %v1042
  %1052 = vmatmul.bf16.gmra.mxu0 %v1039
  %v1053 = vpop.f32.mrf.mxu0
  %v1054 = vadd.f32 %v967, %v1053
  %v1055 = vpop.f32.mrf.mxu0
  %1056 = vdwg.mxu0
  %v1057 = vsel %vm451, %v1054, -inf
  %1058 = vmax.xlane.f32.xlu0 %v1057
  %v1059 = vpop.xlane.xlu0 %1058
  %v1060 = vsub.f32 %v1054, %v1059
  %v1061 = vmul.f32 %v1060, 1.442695
  %v1062 = vpow.pop %v1061
  %v1063 = vsel %vm451, %v1062, 0.0
  %1064 = vadd.xlane.f32.xlu0 %v1063
  %v1065 = vpop.xlane.xlu0 %1064
  %v1066 = vrcp.pop %v1065
  %v1067 = vmul.f32 %v1065, %v1066
  %v1068 = vsub.f32 1.0, %v1067
  %v1069 = vmul.f32 %v1066, %v1068
  %v1070 = vadd.f32 %v1066, %v1069
  %vm1071 = vweird.f32 %v1065
  %vm1072 = vweird.f32 %v1066
  %vm1073 = vmor %vm1071, %vm1072
  %v1074 = vsel %vm1073, %v1066, %v1070
  %v1075 = vand.u32 2147483647, %v1065
  %vm1076 = vcmp.eq.f32.partialorder %v1075, 8.507059e+37
  %v1077 = vand.u32 %v1065, 2147483648
  %v1078 = vor.u32 1.1754944e-38, %v1077
  %v1079 = vsel %vm1076, %v1078, %v1074
  %v1080 = vmul.f32 %v1062, %v1079
  %v1081 = vpack.c.bf16 %v1080, %v1080
  %1083 = vrot.lane.b32.xlu0 %v1015, 120
  %v1084 = vpop.permute.xlu0 %1083
  %v1087 = vsel %vm451, %v1081, 0
  %1089 = vmatpush.bf16.msra.mxu0 0
  %1090 = vmatpush.bf16.msra.mxu0 0
  %1091 = vmatpush.bf16.msra.mxu0 0
  %1092 = vmatpush.bf16.msra.mxu0 0
  %1093 = vmatpush.bf16.msra.mxu0 0
  %1094 = vmatpush.bf16.msra.mxu0 0
  %1095 = vmatpush.bf16.msra.mxu0 0
  %1096 = vmatpush.bf16.msra.mxu0 %v1084
  %1097 = vmatmul.bf16.gmra.mxu0 %v1087
  %v1098 = vpop.f32.mrf.mxu0
  %v1099 = vadd.f32 0.0, %v1098
  %v1100 = vpop.f32.mrf.mxu0
  %1101 = vdwg.mxu0
  %1102 = vrot.lane.b32.xlu0 %v969, 112
  %v1103 = vpop.permute.xlu0 %1102
  %1104 = vrot.lane.b32.xlu0 %v970, 112
  %v1105 = vpop.permute.xlu0 %1104
  %v1107 = vsel %vm164, %v1103, 0
  %v1110 = vsel %vm164, %v1105, 0
  %1112 = vmatpush.bf16.xpose.msra.mxu0 0
  %1113 = vmatpush.bf16.xpose.msra.mxu0 0
  %1114 = vmatpush.bf16.xpose.msra.mxu0 0
  %1115 = vmatpush.bf16.xpose.msra.mxu0 0
  %1116 = vmatpush.bf16.xpose.msra.mxu0 0
  %1117 = vmatpush.bf16.xpose.msra.mxu0 0
  %1118 = vmatpush.bf16.xpose.msra.mxu0 0
  %1119 = vmatpush.bf16.xpose.msra.mxu0 %v1110
  %1120 = vmatmul.bf16.gmra.mxu0 %v1107
  %v1121 = vpop.f32.mrf.mxu0
  %v1122 = vadd.f32 %v967, %v1121
  %v1123 = vpop.f32.mrf.mxu0
  %1124 = vdwg.mxu0
  %v1125 = vsel %vm451, %v1122, -inf
  %1126 = vmax.xlane.f32.xlu0 %v1125
  %v1127 = vpop.xlane.xlu0 %1126
  %v1128 = vsub.f32 %v1122, %v1127
  %v1129 = vmul.f32 %v1128, 1.442695
  %v1130 = vpow.pop %v1129
  %v1131 = vsel %vm451, %v1130, 0.0
  %1132 = vadd.xlane.f32.xlu0 %v1131
  %v1133 = vpop.xlane.xlu0 %1132
  %v1134 = vrcp.pop %v1133
  %v1135 = vmul.f32 %v1133, %v1134
  %v1136 = vsub.f32 1.0, %v1135
  %v1137 = vmul.f32 %v1134, %v1136
  %v1138 = vadd.f32 %v1134, %v1137
  %vm1139 = vweird.f32 %v1133
  %vm1140 = vweird.f32 %v1134
  %vm1141 = vmor %vm1139, %vm1140
  %v1142 = vsel %vm1141, %v1134, %v1138
  %v1143 = vand.u32 2147483647, %v1133
  %vm1144 = vcmp.eq.f32.partialorder %v1143, 8.507059e+37
  %v1145 = vand.u32 %v1133, 2147483648
  %v1146 = vor.u32 1.1754944e-38, %v1145
  %v1147 = vsel %vm1144, %v1146, %v1142
  %v1148 = vmul.f32 %v1130, %v1147
  %v1149 = vpack.c.bf16 %v1148, %v1148
  %1150 = vrot.lane.b32.xlu0 %v1015, 112
  %v1151 = vpop.permute.xlu0 %1150
  %v1154 = vsel %vm451, %v1149, 0
  %1156 = vmatpush.bf16.msra.mxu0 0
  %1157 = vmatpush.bf16.msra.mxu0 0
  %1158 = vmatpush.bf16.msra.mxu0 0
  %1159 = vmatpush.bf16.msra.mxu0 0
  %1160 = vmatpush.bf16.msra.mxu0 0
  %1161 = vmatpush.bf16.msra.mxu0 0
  %1162 = vmatpush.bf16.msra.mxu0 0
  %1163 = vmatpush.bf16.msra.mxu0 %v1151
  %1164 = vmatmul.bf16.gmra.mxu0 %v1154
  %v1165 = vpop.f32.mrf.mxu0
  %v1166 = vadd.f32 0.0, %v1165
  %v1167 = vpop.f32.mrf.mxu0
  %1168 = vdwg.mxu0
  %1169 = vrot.lane.b32.xlu0 %v969, 104
  %v1170 = vpop.permute.xlu0 %1169
  %1171 = vrot.lane.b32.xlu0 %v970, 104
  %v1172 = vpop.permute.xlu0 %1171
  %v1174 = vsel %vm164, %v1170, 0
  %v1177 = vsel %vm164, %v1172, 0
  %1179 = vmatpush.bf16.xpose.msra.mxu0 0
  %1180 = vmatpush.bf16.xpose.msra.mxu0 0
  %1181 = vmatpush.bf16.xpose.msra.mxu0 0
  %1182 = vmatpush.bf16.xpose.msra.mxu0 0
  %1183 = vmatpush.bf16.xpose.msra.mxu0 0
  %1184 = vmatpush.bf16.xpose.msra.mxu0 0
  %1185 = vmatpush.bf16.xpose.msra.mxu0 0
  %1186 = vmatpush.bf16.xpose.msra.mxu0 %v1177
  %1187 = vmatmul.bf16.gmra.mxu0 %v1174
  %v1188 = vpop.f32.mrf.mxu0
  %v1189 = vadd.f32 %v967, %v1188
  %v1190 = vpop.f32.mrf.mxu0
  %1191 = vdwg.mxu0
  %v1192 = vsel %vm451, %v1189, -inf
  %1193 = vmax.xlane.f32.xlu0 %v1192
  %v1194 = vpop.xlane.xlu0 %1193
  %v1195 = vsub.f32 %v1189, %v1194
  %v1196 = vmul.f32 %v1195, 1.442695
  %v1197 = vpow.pop %v1196
  %v1198 = vsel %vm451, %v1197, 0.0
  %1199 = vadd.xlane.f32.xlu0 %v1198
  %v1200 = vpop.xlane.xlu0 %1199
  %v1201 = vrcp.pop %v1200
  %v1202 = vmul.f32 %v1200, %v1201
  %v1203 = vsub.f32 1.0, %v1202
  %v1204 = vmul.f32 %v1201, %v1203
  %v1205 = vadd.f32 %v1201, %v1204
  %vm1206 = vweird.f32 %v1200
  %vm1207 = vweird.f32 %v1201
  %vm1208 = vmor %vm1206, %vm1207
  %v1209 = vsel %vm1208, %v1201, %v1205
  %v1210 = vand.u32 2147483647, %v1200
  %vm1211 = vcmp.eq.f32.partialorder %v1210, 8.507059e+37
  %v1212 = vand.u32 %v1200, 2147483648
  %v1213 = vor.u32 1.1754944e-38, %v1212
  %v1214 = vsel %vm1211, %v1213, %v1209
  %v1215 = vmul.f32 %v1197, %v1214
  %v1216 = vpack.c.bf16 %v1215, %v1215
  %1217 = vrot.lane.b32.xlu0 %v1015, 104
  %v1218 = vpop.permute.xlu0 %1217
  %v1221 = vsel %vm451, %v1216, 0
  %1223 = vmatpush.bf16.msra.mxu0 0
  %1224 = vmatpush.bf16.msra.mxu0 0
  %1225 = vmatpush.bf16.msra.mxu0 0
  %1226 = vmatpush.bf16.msra.mxu0 0
  %1227 = vmatpush.bf16.msra.mxu0 0
  %1228 = vmatpush.bf16.msra.mxu0 0
  %1229 = vmatpush.bf16.msra.mxu0 0
  %1230 = vmatpush.bf16.msra.mxu0 %v1218
  %1231 = vmatmul.bf16.gmra.mxu0 %v1221
  %v1232 = vpop.f32.mrf.mxu0
  %v1233 = vadd.f32 0.0, %v1232
  %v1234 = vpop.f32.mrf.mxu0
  %1235 = vdwg.mxu0
  %1237 = vrot.lane.b32.xlu0 %v1099, 8
  %v1238 = vpop.permute.xlu0 %1237
  %1241 = vrot.lane.b32.xlu0 %v1166, 16
  %v1242 = vpop.permute.xlu0 %1241
  %1245 = vrot.lane.b32.xlu0 %v1233, 24
  %v1246 = vpop.permute.xlu0 %1245
  %v1248 = vsel %vm164, %v1029, %v1238
  %v1249 = vsel %vm451, %v1248, %v1242
  %v1250 = vsel %vm453, %v1249, %v1246
  %s1251 = scalar_lea.vmem %s4, 1
  %v1252 = vld [vmem:[%s1251] sm:$0x1]
  %v1254 = vperm.slane %v1252, 0
  %v1256 = vpack.c.bf16 %v887, %v887
  %v1257 = vpack.c.bf16 %v927, %v925
  %v1259 = vsel %vm164, %v1256, 0
  %v1262 = vsel %vm164, %v1257, 0
  %1264 = vmatpush.bf16.xpose.msra.mxu0 0
  %1265 = vmatpush.bf16.xpose.msra.mxu0 0
  %1266 = vmatpush.bf16.xpose.msra.mxu0 0
  %1267 = vmatpush.bf16.xpose.msra.mxu0 0
  %1268 = vmatpush.bf16.xpose.msra.mxu0 0
  %1269 = vmatpush.bf16.xpose.msra.mxu0 0
  %1270 = vmatpush.bf16.xpose.msra.mxu0 0
  %1271 = vmatpush.bf16.xpose.msra.mxu0 %v1262
  %1272 = vmatmul.bf16.gmra.mxu0 %v1259
  %v1273 = vpop.f32.mrf.mxu0
  %v1274 = vadd.f32 %v1254, %v1273
  %v1275 = vpop.f32.mrf.mxu0
  %1276 = vdwg.mxu0
  %v1277 = vsel %vm451, %v1274, -inf
  %1278 = vmax.xlane.f32.xlu0 %v1277
  %v1279 = vpop.xlane.xlu0 %1278
  %v1280 = vsub.f32 %v1274, %v1279
  %v1281 = vmul.f32 %v1280, 1.442695
  %v1282 = vpow.pop %v1281
  %v1283 = vsel %vm451, %v1282, 0.0
  %1284 = vadd.xlane.f32.xlu0 %v1283
  %v1285 = vpop.xlane.xlu0 %1284
  %v1286 = vrcp.pop %v1285
  %v1287 = vmul.f32 %v1285, %v1286
  %v1288 = vsub.f32 1.0, %v1287
  %v1289 = vmul.f32 %v1286, %v1288
  %v1290 = vadd.f32 %v1286, %v1289
  %vm1291 = vweird.f32 %v1285
  %vm1292 = vweird.f32 %v1286
  %vm1293 = vmor %vm1291, %vm1292
  %v1294 = vsel %vm1293, %v1286, %v1290
  %v1295 = vand.u32 2147483647, %v1285
  %vm1296 = vcmp.eq.f32.partialorder %v1295, 8.507059e+37
  %v1297 = vand.u32 %v1285, 2147483648
  %v1298 = vor.u32 1.1754944e-38, %v1297
  %v1299 = vsel %vm1296, %v1298, %v1294
  %v1300 = vmul.f32 %v1282, %v1299
  %v1301 = vpack.c.bf16 %v1300, %v1300
  %v1302 = vpack.c.bf16 %v963, %v961
  %v1304 = vsel %vm451, %v1301, 0
  %1306 = vmatpush.bf16.msra.mxu0 0
  %1307 = vmatpush.bf16.msra.mxu0 0
  %1308 = vmatpush.bf16.msra.mxu0 0
  %1309 = vmatpush.bf16.msra.mxu0 0
  %1310 = vmatpush.bf16.msra.mxu0 0
  %1311 = vmatpush.bf16.msra.mxu0 0
  %1312 = vmatpush.bf16.msra.mxu0 0
  %1313 = vmatpush.bf16.msra.mxu0 %v1302
  %1314 = vmatmul.bf16.gmra.mxu0 %v1304
  %v1315 = vpop.f32.mrf.mxu0
  %v1316 = vadd.f32 0.0, %v1315
  %v1317 = vpop.f32.mrf.mxu0
  %1318 = vdwg.mxu0
  %1320 = vrot.lane.b32.xlu0 %v1256, 120
  %v1321 = vpop.permute.xlu0 %1320
  %1323 = vrot.lane.b32.xlu0 %v1257, 120
  %v1324 = vpop.permute.xlu0 %1323
  %v1326 = vsel %vm164, %v1321, 0
  %v1329 = vsel %vm164, %v1324, 0
  %1331 = vmatpush.bf16.xpose.msra.mxu0 0
  %1332 = vmatpush.bf16.xpose.msra.mxu0 0
  %1333 = vmatpush.bf16.xpose.msra.mxu0 0
  %1334 = vmatpush.bf16.xpose.msra.mxu0 0
  %1335 = vmatpush.bf16.xpose.msra.mxu0 0
  %1336 = vmatpush.bf16.xpose.msra.mxu0 0
  %1337 = vmatpush.bf16.xpose.msra.mxu0 0
  %1338 = vmatpush.bf16.xpose.msra.mxu0 %v1329
  %1339 = vmatmul.bf16.gmra.mxu0 %v1326
  %v1340 = vpop.f32.mrf.mxu0
  %v1341 = vadd.f32 %v1254, %v1340
  %v1342 = vpop.f32.mrf.mxu0
  %1343 = vdwg.mxu0
  %v1344 = vsel %vm451, %v1341, -inf
  %1345 = vmax.xlane.f32.xlu0 %v1344
  %v1346 = vpop.xlane.xlu0 %1345
  %v1347 = vsub.f32 %v1341, %v1346
  %v1348 = vmul.f32 %v1347, 1.442695
  %v1349 = vpow.pop %v1348
  %v1350 = vsel %vm451, %v1349, 0.0
  %1351 = vadd.xlane.f32.xlu0 %v1350
  %v1352 = vpop.xlane.xlu0 %1351
  %v1353 = vrcp.pop %v1352
  %v1354 = vmul.f32 %v1352, %v1353
  %v1355 = vsub.f32 1.0, %v1354
  %v1356 = vmul.f32 %v1353, %v1355
  %v1357 = vadd.f32 %v1353, %v1356
  %vm1358 = vweird.f32 %v1352
  %vm1359 = vweird.f32 %v1353
  %vm1360 = vmor %vm1358, %vm1359
  %v1361 = vsel %vm1360, %v1353, %v1357
  %v1362 = vand.u32 2147483647, %v1352
  %vm1363 = vcmp.eq.f32.partialorder %v1362, 8.507059e+37
  %v1364 = vand.u32 %v1352, 2147483648
  %v1365 = vor.u32 1.1754944e-38, %v1364
  %v1366 = vsel %vm1363, %v1365, %v1361
  %v1367 = vmul.f32 %v1349, %v1366
  %v1368 = vpack.c.bf16 %v1367, %v1367
  %1370 = vrot.lane.b32.xlu0 %v1302, 120
  %v1371 = vpop.permute.xlu0 %1370
  %v1374 = vsel %vm451, %v1368, 0
  %1376 = vmatpush.bf16.msra.mxu0 0
  %1377 = vmatpush.bf16.msra.mxu0 0
  %1378 = vmatpush.bf16.msra.mxu0 0
  %1379 = vmatpush.bf16.msra.mxu0 0
  %1380 = vmatpush.bf16.msra.mxu0 0
  %1381 = vmatpush.bf16.msra.mxu0 0
  %1382 = vmatpush.bf16.msra.mxu0 0
  %1383 = vmatpush.bf16.msra.mxu0 %v1371
  %1384 = vmatmul.bf16.gmra.mxu0 %v1374
  %v1385 = vpop.f32.mrf.mxu0
  %v1386 = vadd.f32 0.0, %v1385
  %v1387 = vpop.f32.mrf.mxu0
  %1388 = vdwg.mxu0
  %1389 = vrot.lane.b32.xlu0 %v1256, 112
  %v1390 = vpop.permute.xlu0 %1389
  %1391 = vrot.lane.b32.xlu0 %v1257, 112
  %v1392 = vpop.permute.xlu0 %1391
  %v1394 = vsel %vm164, %v1390, 0
  %v1397 = vsel %vm164, %v1392, 0
  %1399 = vmatpush.bf16.xpose.msra.mxu0 0
  %1400 = vmatpush.bf16.xpose.msra.mxu0 0
  %1401 = vmatpush.bf16.xpose.msra.mxu0 0
  %1402 = vmatpush.bf16.xpose.msra.mxu0 0
  %1403 = vmatpush.bf16.xpose.msra.mxu0 0
  %1404 = vmatpush.bf16.xpose.msra.mxu0 0
  %1405 = vmatpush.bf16.xpose.msra.mxu0 0
  %1406 = vmatpush.bf16.xpose.msra.mxu0 %v1397
  %1407 = vmatmul.bf16.gmra.mxu0 %v1394
  %v1408 = vpop.f32.mrf.mxu0
  %v1409 = vadd.f32 %v1254, %v1408
  %v1410 = vpop.f32.mrf.mxu0
  %1411 = vdwg.mxu0
  %v1412 = vsel %vm451, %v1409, -inf
  %1413 = vmax.xlane.f32.xlu0 %v1412
  %v1414 = vpop.xlane.xlu0 %1413
  %v1415 = vsub.f32 %v1409, %v1414
  %v1416 = vmul.f32 %v1415, 1.442695
  %v1417 = vpow.pop %v1416
  %v1418 = vsel %vm451, %v1417, 0.0
  %1419 = vadd.xlane.f32.xlu0 %v1418
  %v1420 = vpop.xlane.xlu0 %1419
  %v1421 = vrcp.pop %v1420
  %v1422 = vmul.f32 %v1420, %v1421
  %v1423 = vsub.f32 1.0, %v1422
  %v1424 = vmul.f32 %v1421, %v1423
  %v1425 = vadd.f32 %v1421, %v1424
  %vm1426 = vweird.f32 %v1420
  %vm1427 = vweird.f32 %v1421
  %vm1428 = vmor %vm1426, %vm1427
  %v1429 = vsel %vm1428, %v1421, %v1425
  %v1430 = vand.u32 2147483647, %v1420
  %vm1431 = vcmp.eq.f32.partialorder %v1430, 8.507059e+37
  %v1432 = vand.u32 %v1420, 2147483648
  %v1433 = vor.u32 1.1754944e-38, %v1432
  %v1434 = vsel %vm1431, %v1433, %v1429
  %v1435 = vmul.f32 %v1417, %v1434
  %v1436 = vpack.c.bf16 %v1435, %v1435
  %1437 = vrot.lane.b32.xlu0 %v1302, 112
  %v1438 = vpop.permute.xlu0 %1437
  %v1441 = vsel %vm451, %v1436, 0
  %1443 = vmatpush.bf16.msra.mxu0 0
  %1444 = vmatpush.bf16.msra.mxu0 0
  %1445 = vmatpush.bf16.msra.mxu0 0
  %1446 = vmatpush.bf16.msra.mxu0 0
  %1447 = vmatpush.bf16.msra.mxu0 0
  %1448 = vmatpush.bf16.msra.mxu0 0
  %1449 = vmatpush.bf16.msra.mxu0 0
  %1450 = vmatpush.bf16.msra.mxu0 %v1438
  %1451 = vmatmul.bf16.gmra.mxu0 %v1441
  %v1452 = vpop.f32.mrf.mxu0
  %v1453 = vadd.f32 0.0, %v1452
  %v1454 = vpop.f32.mrf.mxu0
  %1455 = vdwg.mxu0
  %1456 = vrot.lane.b32.xlu0 %v1256, 104
  %v1457 = vpop.permute.xlu0 %1456
  %1458 = vrot.lane.b32.xlu0 %v1257, 104
  %v1459 = vpop.permute.xlu0 %1458
  %v1461 = vsel %vm164, %v1457, 0
  %v1464 = vsel %vm164, %v1459, 0
  %1466 = vmatpush.bf16.xpose.msra.mxu0 0
  %1467 = vmatpush.bf16.xpose.msra.mxu0 0
  %1468 = vmatpush.bf16.xpose.msra.mxu0 0
  %1469 = vmatpush.bf16.xpose.msra.mxu0 0
  %1470 = vmatpush.bf16.xpose.msra.mxu0 0
  %1471 = vmatpush.bf16.xpose.msra.mxu0 0
  %1472 = vmatpush.bf16.xpose.msra.mxu0 0
  %1473 = vmatpush.bf16.xpose.msra.mxu0 %v1464
  %1474 = vmatmul.bf16.gmra.mxu0 %v1461
  %v1475 = vpop.f32.mrf.mxu0
  %v1476 = vadd.f32 %v1254, %v1475
  %v1477 = vpop.f32.mrf.mxu0
  %1478 = vdwg.mxu0
  %v1479 = vsel %vm451, %v1476, -inf
  %1480 = vmax.xlane.f32.xlu0 %v1479
  %v1481 = vpop.xlane.xlu0 %1480
  %v1482 = vsub.f32 %v1476, %v1481
  %v1483 = vmul.f32 %v1482, 1.442695
  %v1484 = vpow.pop %v1483
  %v1485 = vsel %vm451, %v1484, 0.0
  %1486 = vadd.xlane.f32.xlu0 %v1485
  %v1487 = vpop.xlane.xlu0 %1486
  %v1488 = vrcp.pop %v1487
  %v1489 = vmul.f32 %v1487, %v1488
  %v1490 = vsub.f32 1.0, %v1489
  %v1491 = vmul.f32 %v1488, %v1490
  %v1492 = vadd.f32 %v1488, %v1491
  %vm1493 = vweird.f32 %v1487
  %vm1494 = vweird.f32 %v1488
  %vm1495 = vmor %vm1493, %vm1494
  %v1496 = vsel %vm1495, %v1488, %v1492
  %v1497 = vand.u32 2147483647, %v1487
  %vm1498 = vcmp.eq.f32.partialorder %v1497, 8.507059e+37
  %v1499 = vand.u32 %v1487, 2147483648
  %v1500 = vor.u32 1.1754944e-38, %v1499
  %v1501 = vsel %vm1498, %v1500, %v1496
  %v1502 = vmul.f32 %v1484, %v1501
  %v1503 = vpack.c.bf16 %v1502, %v1502
  %1504 = vrot.lane.b32.xlu0 %v1302, 104
  %v1505 = vpop.permute.xlu0 %1504
  %v1508 = vsel %vm451, %v1503, 0
  %1510 = vmatpush.bf16.msra.mxu0 0
  %1511 = vmatpush.bf16.msra.mxu0 0
  %1512 = vmatpush.bf16.msra.mxu0 0
  %1513 = vmatpush.bf16.msra.mxu0 0
  %1514 = vmatpush.bf16.msra.mxu0 0
  %1515 = vmatpush.bf16.msra.mxu0 0
  %1516 = vmatpush.bf16.msra.mxu0 0
  %1517 = vmatpush.bf16.msra.mxu0 %v1505
  %1518 = vmatmul.bf16.gmra.mxu0 %v1508
  %v1519 = vpop.f32.mrf.mxu0
  %v1520 = vadd.f32 0.0, %v1519
  %v1521 = vpop.f32.mrf.mxu0
  %1522 = vdwg.mxu0
  %1524 = vrot.lane.b32.xlu0 %v1386, 8
  %v1525 = vpop.permute.xlu0 %1524
  %1528 = vrot.lane.b32.xlu0 %v1453, 16
  %v1529 = vpop.permute.xlu0 %1528
  %1532 = vrot.lane.b32.xlu0 %v1520, 24
  %v1533 = vpop.permute.xlu0 %1532
  %v1535 = vsel %vm164, %v1316, %v1525
  %v1536 = vsel %vm451, %v1535, %v1529
  %v1537 = vsel %vm453, %v1536, %v1533
  %v1538 = vld [vmem:[%s13] sm:$0xf]
  %v1539 = vld [vmem:[%s13 + $0x4] sm:$0xf]
  %v1540 = vld [vmem:[%s13 + $0x8] sm:$0xf]
  %v1541 = vld [vmem:[%s13 + $0xc] sm:$0xf]
  %v1542 = vpack.c.bf16 %v1537, %v1250
  %v1543 = vld [vmem:[%s14] sm:$0x1]
  %v1545 = vperm.slane %v1543, 0
  %v1551 = vunpack.c.l.b16 %v1538
  %v1552 = vunpack.c.l.b16 %v1539
  %v1553 = vunpack.c.l.b16 %v1540
  %v1554 = vunpack.c.l.b16 %v1541
  %v1555 = vpack.c.b16 %v1552, %v1551
  %v1556 = vpack.c.b16 %v1554, %v1553
  %v1560 = vsel %vm115, %v1542, 0
  %1562 = vmatpush.bf16.msra.mxu0 0
  %1563 = vmatpush.bf16.msra.mxu0 0
  %1564 = vmatpush.bf16.msra.mxu0 0
  %1565 = vmatpush.bf16.msra.mxu0 0
  %1566 = vmatpush.bf16.msra.mxu0 0
  %1567 = vmatpush.bf16.msra.mxu0 0
  %1568 = vmatpush.bf16.msra.mxu0 %v1556
  %1569 = vmatpush.bf16.msra.mxu0 %v1555
  %1570 = vmatmul.bf16.gmra.mxu0 %v1560
  %v1571 = vpop.f32.mrf.mxu0
  %v1572 = vadd.f32 %v1545, %v1571
  %v1573 = vpop.f32.mrf.mxu0
  %v1574 = vadd.f32 %v1545, %v1573
  %1575 = vdwg.mxu0
  %v1576 = vadd.f32 %v847, %v1572
  %v1577 = vadd.f32 %v848, %v1574
  %v1578 = vld [vmem:[%s15] sm:$0x1]
  %v1579 = vld [vmem:[%s16] sm:$0x1]
  %v1580 = vsel %vm115, %v1576, 0.0
  %1581 = vadd.xlane.f32.xlu0 %v1580
  %v1582 = vpop.xlane.xlu0 %1581
  %v1583 = vsel %vm115, %v1577, 0.0
  %1584 = vadd.xlane.f32.xlu0 %v1583
  %v1585 = vpop.xlane.xlu0 %1584
  %v1586 = vmul.f32 %v1582, %v800
  %v1587 = vmul.f32 %v1585, %v800
  %v1588 = vsub.f32 %v1576, %v1586
  %v1589 = vsub.f32 %v1577, %v1587
  %v1590 = vmul.f32 %v1588, %v1588
  %v1591 = vmul.f32 %v1589, %v1589
  %v1592 = vsel %vm115, %v1590, 0.0
  %1593 = vadd.xlane.f32.xlu0 %v1592
  %v1594 = vpop.xlane.xlu0 %1593
  %v1595 = vsel %vm115, %v1591, 0.0
  %1596 = vadd.xlane.f32.xlu0 %v1595
  %v1597 = vpop.xlane.xlu0 %1596
  %v1598 = vmul.f32 %v1594, %v800
  %v1599 = vmul.f32 %v1597, %v800
  %v1600 = vadd.f32 %v1598, 1e-05
  %v1601 = vadd.f32 %v1599, 1e-05
  %v1602 = vrsqrt.pop %v1600
  %v1603 = vmul.f32 %v1602, %v1600
  %v1604 = vmul.f32 %v1603, %v1602
  %v1605 = vmul.f32 0.5, %v1604
  %v1606 = vsub.f32 1.5, %v1605
  %v1607 = vmul.f32 %v1602, %v1606
  %vm1608 = vweird.f32 %v1600
  %vm1609 = vweird.f32 %v1602
  %vm1610 = vmor %vm1608, %vm1609
  %v1611 = vsel %vm1610, %v1602, %v1607
  %v1612 = vrsqrt.pop %v1601
  %v1613 = vmul.f32 %v1612, %v1601
  %v1614 = vmul.f32 %v1613, %v1612
  %v1615 = vmul.f32 0.5, %v1614
  %v1616 = vsub.f32 1.5, %v1615
  %v1617 = vmul.f32 %v1612, %v1616
  %vm1618 = vweird.f32 %v1601
  %vm1619 = vweird.f32 %v1612
  %vm1620 = vmor %vm1618, %vm1619
  %v1621 = vsel %vm1620, %v1612, %v1617
  %v1622 = vmul.f32 %v1588, %v1611
  %v1623 = vmul.f32 %v1589, %v1621
  %v1625 = vperm.slane %v1578, 0
  %v1627 = vmul.f32 %v1622, %v1625
  %v1628 = vmul.f32 %v1623, %v1625
  %v1630 = vperm.slane %v1579, 0
  %v1632 = vadd.f32 %v1627, %v1630
  %v1633 = vadd.f32 %v1628, %v1630
  %v1634 = vld [vmem:[%s17] sm:$0xf]
  %v1635 = vld [vmem:[%s17 + $0x4] sm:$0xf]
  %v1636 = vld [vmem:[%s17 + $0x8] sm:$0xf]
  %v1637 = vld [vmem:[%s17 + $0xc] sm:$0xf]
  %v1638 = vpack.c.bf16 %v1633, %v1632
  %v1639 = vld [vmem:[%s18] sm:$0x1]
  %v1641 = vperm.slane %v1639, 0
  %v1647 = vunpack.c.l.b16 %v1634
  %v1648 = vunpack.c.l.b16 %v1635
  %v1649 = vunpack.c.l.b16 %v1636
  %v1650 = vunpack.c.l.b16 %v1637
  %v1651 = vpack.c.b16 %v1648, %v1647
  %v1652 = vpack.c.b16 %v1650, %v1649
  %v1656 = vsel %vm115, %v1638, 0
  %1658 = vmatpush.bf16.msra.mxu0 0
  %1659 = vmatpush.bf16.msra.mxu0 0
  %1660 = vmatpush.bf16.msra.mxu0 0
  %1661 = vmatpush.bf16.msra.mxu0 0
  %1662 = vmatpush.bf16.msra.mxu0 0
  %1663 = vmatpush.bf16.msra.mxu0 0
  %1664 = vmatpush.bf16.msra.mxu0 %v1652
  %1665 = vmatpush.bf16.msra.mxu0 %v1651
  %1666 = vmatmul.bf16.gmra.mxu0 %v1656
  %v1667 = vpop.f32.mrf.mxu0
  %v1668 = vadd.f32 %v1641, %v1667
  %v1669 = vpop.f32.mrf.mxu0
  %v1670 = vadd.f32 %v1641, %v1669
  %1671 = vdwg.mxu0
  %v1672 = vmax.f32 %v1668, 0.0
  %v1673 = vmax.f32 %v1670, 0.0
  %v1674 = vld [vmem:[%s19] sm:$0xf]
  %v1675 = vld [vmem:[%s19 + $0x4] sm:$0xf]
  %v1676 = vld [vmem:[%s19 + $0x8] sm:$0xf]
  %v1677 = vld [vmem:[%s19 + $0xc] sm:$0xf]
  %v1678 = vld [vmem:[%s19 + $0x10] sm:$0xf]
  %v1679 = vld [vmem:[%s19 + $0x14] sm:$0xf]
  %v1680 = vld [vmem:[%s19 + $0x18] sm:$0xf]
  %v1681 = vld [vmem:[%s19 + $0x1c] sm:$0xf]
  %v1682 = vpack.c.bf16 %v1673, %v1672
  %v1683 = vld [vmem:[%s20] sm:$0x1]
  %v1685 = vperm.slane %v1683, 0
  %v1695 = vunpack.c.l.b16 %v1674
  %v1696 = vunpack.c.l.b16 %v1675
  %v1697 = vunpack.c.l.b16 %v1676
  %v1698 = vunpack.c.l.b16 %v1677
  %v1699 = vunpack.c.l.b16 %v1678
  %v1700 = vunpack.c.l.b16 %v1679
  %v1701 = vunpack.c.l.b16 %v1680
  %v1702 = vunpack.c.l.b16 %v1681
  %v1703 = vpack.c.b16 %v1696, %v1695
  %v1704 = vpack.c.b16 %v1698, %v1697
  %v1705 = vpack.c.b16 %v1700, %v1699
  %v1706 = vpack.c.b16 %v1702, %v1701
  %vm1711 = vcmask 523264
  %v1713 = vsel %vm1711, %v1682, 0
  %1715 = vmatpush.bf16.msra.mxu0 0
  %1716 = vmatpush.bf16.msra.mxu0 0
  %1717 = vmatpush.bf16.msra.mxu0 0
  %1718 = vmatpush.bf16.msra.mxu0 0
  %1719 = vmatpush.bf16.msra.mxu0 %v1706
  %1720 = vmatpush.bf16.msra.mxu0 %v1705
  %1721 = vmatpush.bf16.msra.mxu0 %v1704
  %1722 = vmatpush.bf16.msra.mxu0 %v1703
  %1723 = vmatmul.bf16.gmra.mxu0 %v1713
  %v1724 = vpop.f32.mrf.mxu0
  %v1725 = vadd.f32 %v1685, %v1724
  %v1726 = vpop.f32.mrf.mxu0
  %v1727 = vadd.f32 %v1685, %v1726
  %1728 = vdwg.mxu0
  %v1729 = vadd.f32 %v1632, %v1725
  %v1730 = vadd.f32 %v1633, %v1727
  %v1731 = vld [vmem:[%s21] sm:$0x1]
  %v1732 = vld [vmem:[%s22] sm:$0x1]
  %v1733 = vsel %vm115, %v1729, 0.0
  %1734 = vadd.xlane.f32.xlu0 %v1733
  %v1735 = vpop.xlane.xlu0 %1734
  %v1736 = vsel %vm115, %v1730, 0.0
  %1737 = vadd.xlane.f32.xlu0 %v1736
  %v1738 = vpop.xlane.xlu0 %1737
  %v1739 = vmul.f32 %v1735, %v800
  %v1740 = vmul.f32 %v1738, %v800
  %v1741 = vsub.f32 %v1729, %v1739
  %v1742 = vsub.f32 %v1730, %v1740
  %v1743 = vmul.f32 %v1741, %v1741
  %v1744 = vmul.f32 %v1742, %v1742
  %v1745 = vsel %vm115, %v1743, 0.0
  %1746 = vadd.xlane.f32.xlu0 %v1745
  %v1747 = vpop.xlane.xlu0 %1746
  %v1748 = vsel %vm115, %v1744, 0.0
  %1749 = vadd.xlane.f32.xlu0 %v1748
  %v1750 = vpop.xlane.xlu0 %1749
  %v1751 = vmul.f32 %v1747, %v800
  %v1752 = vmul.f32 %v1750, %v800
  %v1753 = vadd.f32 %v1751, 1e-05
  %v1754 = vadd.f32 %v1752, 1e-05
  %v1755 = vrsqrt.pop %v1753
  %v1756 = vmul.f32 %v1755, %v1753
  %v1757 = vmul.f32 %v1756, %v1755
  %v1758 = vmul.f32 0.5, %v1757
  %v1759 = vsub.f32 1.5, %v1758
  %v1760 = vmul.f32 %v1755, %v1759
  %vm1761 = vweird.f32 %v1753
  %vm1762 = vweird.f32 %v1755
  %vm1763 = vmor %vm1761, %vm1762
  %v1764 = vsel %vm1763, %v1755, %v1760
  %v1765 = vrsqrt.pop %v1754
  %v1766 = vmul.f32 %v1765, %v1754
  %v1767 = vmul.f32 %v1766, %v1765
  %v1768 = vmul.f32 0.5, %v1767
  %v1769 = vsub.f32 1.5, %v1768
  %v1770 = vmul.f32 %v1765, %v1769
  %vm1771 = vweird.f32 %v1754
  %vm1772 = vweird.f32 %v1765
  %vm1773 = vmor %vm1771, %vm1772
  %v1774 = vsel %vm1773, %v1765, %v1770
  %v1775 = vmul.f32 %v1741, %v1764
  %v1776 = vmul.f32 %v1742, %v1774
  %v1778 = vperm.slane %v1731, 0
  %v1780 = vmul.f32 %v1775, %v1778
  %v1781 = vmul.f32 %v1776, %v1778
  %v1783 = vperm.slane %v1732, 0
  %v1785 = vadd.f32 %v1780, %v1783
  %v1786 = vadd.f32 %v1781, %v1783
  %1787 = vst.msk [vmem:[%s25] sm:$0xff] %vm115, %v1785
  %1788 = vst.msk [vmem:[%s25 + $0x8] sm:$0xff] %vm115, %v1786
  // Predicated region
  $region102: #{transformer_forward.6} parent=0 // pred_check
    _
  $region103: #{transformer_forward.6} parent=0 // pred_check_branch
    %1790 = sbr.rel (0) target = $region105
  $region104: #{transformer_forward.6} parent=0 // pred_region
    _
  $region105: #{transformer_forward.6} parent=0 // pred_fallthru
    _
  // Predicated region
  $region106: #{transformer_forward.6} parent=0 // pred_check
    _
  $region107: #{transformer_forward.6} parent=0 // pred_check_branch
    %1792 = sbr.rel (0) target = $region109
  $region108: #{transformer_forward.6} parent=0 // pred_region
    _
  $region109: #{transformer_forward.6} parent=0 // pred_fallthru
    _

// kernel: transformer_forward.7
$region0: #{transformer_forward.7}
  #allocation0 [shape = 'u32[]', space=smem, size = 0x4, offset = 0x4, fixed_abs, tag = 'smem constant byte address 0x4 - core index']
  #allocation1 [shape = 'u32[72,128]{1,0:T(1,128)}', space=vmem, size = 0x9000, scoped, tag = 'internal scratch']
  %s0 = inlined_call_operand.vmem [shape: f32[2,8,32], index: 0, kind: input, shape index: {}]
  %s1 = inlined_call_operand.vmem [shape: f32[8,32], index: 1, kind: input, shape index: {}]
  %s2 = inlined_call_operand.vmem [shape: f32[2,16,32], index: 2, kind: input, shape index: {}]
  %s3 = inlined_call_operand.vmem [shape: f32[2,16,32], index: 3, kind: input, shape index: {}]
  %s4 = inlined_call_operand.vmem [shape: f32[2,1,16], index: 4, kind: input, shape index: {}]
  %s5 = inlined_call_operand.vmem [shape: bf16[32,96], index: 5, kind: input, shape index: {}]
  %s6 = inlined_call_operand.vmem [shape: f32[1,96], index: 6, kind: input, shape index: {}]
  %s7 = inlined_call_operand.vmem [shape: bf16[32,32], index: 7, kind: input, shape index: {}]
  %s8 = inlined_call_operand.vmem [shape: f32[1,32], index: 8, kind: input, shape index: {}]
  %s9 = inlined_call_operand.vmem [shape: f32[1,32], index: 9, kind: input, shape index: {}]
  %s10 = inlined_call_operand.vmem [shape: f32[1,32], index: 10, kind: input, shape index: {}]
  %s11 = inlined_call_operand.vmem [shape: bf16[32,96], index: 11, kind: input, shape index: {}]
  %s12 = inlined_call_operand.vmem [shape: f32[1,96], index: 12, kind: input, shape index: {}]
  %s13 = inlined_call_operand.vmem [shape: bf16[32,32], index: 13, kind: input, shape index: {}]
  %s14 = inlined_call_operand.vmem [shape: f32[1,32], index: 14, kind: input, shape index: {}]
  %s15 = inlined_call_operand.vmem [shape: f32[1,32], index: 15, kind: input, shape index: {}]
  %s16 = inlined_call_operand.vmem [shape: f32[1,32], index: 16, kind: input, shape index: {}]
  %s17 = inlined_call_operand.vmem [shape: bf16[32,64], index: 17, kind: input, shape index: {}]
  %s18 = inlined_call_operand.vmem [shape: f32[1,64], index: 18, kind: input, shape index: {}]
  %s19 = inlined_call_operand.vmem [shape: bf16[64,32], index: 19, kind: input, shape index: {}]
  %s20 = inlined_call_operand.vmem [shape: f32[1,32], index: 20, kind: input, shape index: {}]
  %s21 = inlined_call_operand.vmem [shape: f32[1,32], index: 21, kind: input, shape index: {}]
  %s22 = inlined_call_operand.vmem [shape: f32[1,32], index: 22, kind: input, shape index: {}]
  %s23 = inlined_call_operand.vmem [shape: f32[1,32], index: 23, kind: input, shape index: {}]
  %s24 = inlined_call_operand.vmem [shape: f32[1,32], index: 24, kind: input, shape index: {}]
  %s25 = inlined_call_operand.hbm [shape: f32[2,8,32], index: 25, kind: output, shape index: {}]
  %s26 = sld [smem:[#allocation0]]
  $region110: #{transformer_forward.7} parent=0
    _
  %s28 = ssub.s32 1, %s26
  %s29 = scalar_select 0, %s28, %s26
  $region1: #{transformer_forward.7} parent=0
    #allocation2 [shape = 'u8[8192]{0}', space=vmem, size = 0x2000, scoped, tag = 'output window, operand 0, single buffered']
    #allocation3 [shape = 's32[1]{0}', space=sflag, size = 0x4, scoped, tag = 'scoped memory for transformer_forward.7']
    %30 = vsyncpa [#allocation3], 0
    // Predicated region
    $region2: #{transformer_forward.7} parent=1 // pred_check
      _
    $region3: #{transformer_forward.7} parent=1 // pred_check_branch
      %32 = sbr.rel (0) target = $region5
    $region4: #{transformer_forward.7} parent=1 // pred_region
      _
    $region5: #{transformer_forward.7} parent=1 // pred_fallthru
      _
    // Predicated region
    $region6: #{transformer_forward.7} parent=1 // pred_check
      _
    $region7: #{transformer_forward.7} parent=1 // pred_check_branch
      %34 = sbr.rel (0) target = $region9
    $region8: #{transformer_forward.7} parent=1 // pred_region
      _
    $region9: #{transformer_forward.7} parent=1 // pred_fallthru
      _
    // Predicated region
    $region10: #{transformer_forward.7} parent=1 // pred_check
      _
    $region11: #{transformer_forward.7} parent=1 // pred_check_branch
      %36 = sbr.rel (0) target = $region13
    $region12: #{transformer_forward.7} parent=1 // pred_region
      _
    $region13: #{transformer_forward.7} parent=1 // pred_fallthru
      _
    // Predicated region
    $region14: #{transformer_forward.7} parent=1 // pred_check
      _
    $region15: #{transformer_forward.7} parent=1 // pred_check_branch
      %38 = sbr.rel (0) target = $region17
    $region16: #{transformer_forward.7} parent=1 // pred_region
      _
    $region17: #{transformer_forward.7} parent=1 // pred_fallthru
      _
    // Predicated region
    $region18: #{transformer_forward.7} parent=1 // pred_check
      _
    $region19: #{transformer_forward.7} parent=1 // pred_check_branch
      %40 = sbr.rel (0) target = $region21
    $region20: #{transformer_forward.7} parent=1 // pred_region
      _
    $region21: #{transformer_forward.7} parent=1 // pred_fallthru
      _
    // Predicated region
    $region22: #{transformer_forward.7} parent=1 // pred_check
      _
    $region23: #{transformer_forward.7} parent=1 // pred_check_branch
      %42 = sbr.rel (0) target = $region25
    $region24: #{transformer_forward.7} parent=1 // pred_region
      _
    $region25: #{transformer_forward.7} parent=1 // pred_fallthru
      _
    // Predicated region
    $region26: #{transformer_forward.7} parent=1 // pred_check
      _
    $region27: #{transformer_forward.7} parent=1 // pred_check_branch
      %44 = sbr.rel (0) target = $region29
    $region28: #{transformer_forward.7} parent=1 // pred_region
      _
    $region29: #{transformer_forward.7} parent=1 // pred_fallthru
      _
    // Predicated region
    $region30: #{transformer_forward.7} parent=1 // pred_check
      _
    $region31: #{transformer_forward.7} parent=1 // pred_check_branch
      %46 = sbr.rel (0) target = $region33
    $region32: #{transformer_forward.7} parent=1 // pred_region
      _
    $region33: #{transformer_forward.7} parent=1 // pred_fallthru
      _
    // Predicated region
    $region34: #{transformer_forward.7} parent=1 // pred_check
      _
    $region35: #{transformer_forward.7} parent=1 // pred_check_branch
      %48 = sbr.rel (0) target = $region37
    $region36: #{transformer_forward.7} parent=1 // pred_region
      _
    $region37: #{transformer_forward.7} parent=1 // pred_fallthru
      _
    // Predicated region
    $region38: #{transformer_forward.7} parent=1 // pred_check
      _
    $region39: #{transformer_forward.7} parent=1 // pred_check_branch
      %50 = sbr.rel (0) target = $region41
    $region40: #{transformer_forward.7} parent=1 // pred_region
      _
    $region41: #{transformer_forward.7} parent=1 // pred_fallthru
      _
    // Predicated region
    $region42: #{transformer_forward.7} parent=1 // pred_check
      _
    $region43: #{transformer_forward.7} parent=1 // pred_check_branch
      %52 = sbr.rel (0) target = $region45
    $region44: #{transformer_forward.7} parent=1 // pred_region
      _
    $region45: #{transformer_forward.7} parent=1 // pred_fallthru
      _
    // Predicated region
    $region46: #{transformer_forward.7} parent=1 // pred_check
      _
    $region47: #{transformer_forward.7} parent=1 // pred_check_branch
      %54 = sbr.rel (0) target = $region49
    $region48: #{transformer_forward.7} parent=1 // pred_region
      _
    $region49: #{transformer_forward.7} parent=1 // pred_fallthru
      _
    // Predicated region
    $region50: #{transformer_forward.7} parent=1 // pred_check
      _
    $region51: #{transformer_forward.7} parent=1 // pred_check_branch
      %56 = sbr.rel (0) target = $region53
    $region52: #{transformer_forward.7} parent=1 // pred_region
      _
    $region53: #{transformer_forward.7} parent=1 // pred_fallthru
      _
    // Predicated region
    $region54: #{transformer_forward.7} parent=1 // pred_check
      _
    $region55: #{transformer_forward.7} parent=1 // pred_check_branch
      %58 = sbr.rel (0) target = $region57
    $region56: #{transformer_forward.7} parent=1 // pred_region
      _
    $region57: #{transformer_forward.7} parent=1 // pred_fallthru
      _
    // Predicated region
    $region58: #{transformer_forward.7} parent=1 // pred_check
      _
    $region59: #{transformer_forward.7} parent=1 // pred_check_branch
      %60 = sbr.rel (0) target = $region61
    $region60: #{transformer_forward.7} parent=1 // pred_region
      _
    $region61: #{transformer_forward.7} parent=1 // pred_fallthru
      _
    // Predicated region
    $region62: #{transformer_forward.7} parent=1 // pred_check
      _
    $region63: #{transformer_forward.7} parent=1 // pred_check_branch
      %62 = sbr.rel (0) target = $region65
    $region64: #{transformer_forward.7} parent=1 // pred_region
      _
    $region65: #{transformer_forward.7} parent=1 // pred_fallthru
      _
    // Predicated region
    $region66: #{transformer_forward.7} parent=1 // pred_check
      _
    $region67: #{transformer_forward.7} parent=1 // pred_check_branch
      %64 = sbr.rel (0) target = $region69
    $region68: #{transformer_forward.7} parent=1 // pred_region
      _
    $region69: #{transformer_forward.7} parent=1 // pred_fallthru
      _
    // Predicated region
    $region70: #{transformer_forward.7} parent=1 // pred_check
      _
    $region71: #{transformer_forward.7} parent=1 // pred_check_branch
      %66 = sbr.rel (0) target = $region73
    $region72: #{transformer_forward.7} parent=1 // pred_region
      _
    $region73: #{transformer_forward.7} parent=1 // pred_fallthru
      _
    // Predicated region
    $region74: #{transformer_forward.7} parent=1 // pred_check
      _
    $region75: #{transformer_forward.7} parent=1 // pred_check_branch
      %68 = sbr.rel (0) target = $region77
    $region76: #{transformer_forward.7} parent=1 // pred_region
      _
    $region77: #{transformer_forward.7} parent=1 // pred_fallthru
      _
    // Predicated region
    $region78: #{transformer_forward.7} parent=1 // pred_check
      _
    $region79: #{transformer_forward.7} parent=1 // pred_check_branch
      %70 = sbr.rel (0) target = $region81
    $region80: #{transformer_forward.7} parent=1 // pred_region
      _
    $region81: #{transformer_forward.7} parent=1 // pred_fallthru
      _
    // Predicated region
    $region82: #{transformer_forward.7} parent=1 // pred_check
      _
    $region83: #{transformer_forward.7} parent=1 // pred_check_branch
      %72 = sbr.rel (0) target = $region85
    $region84: #{transformer_forward.7} parent=1 // pred_region
      _
    $region85: #{transformer_forward.7} parent=1 // pred_fallthru
      _
    // Predicated region
    $region86: #{transformer_forward.7} parent=1 // pred_check
      _
    $region87: #{transformer_forward.7} parent=1 // pred_check_branch
      %74 = sbr.rel (0) target = $region89
    $region88: #{transformer_forward.7} parent=1 // pred_region
      _
    $region89: #{transformer_forward.7} parent=1 // pred_fallthru
      _
    // Predicated region
    $region90: #{transformer_forward.7} parent=1 // pred_check
      _
    $region91: #{transformer_forward.7} parent=1 // pred_check_branch
      %76 = sbr.rel (0) target = $region93
    $region92: #{transformer_forward.7} parent=1 // pred_region
      _
    $region93: #{transformer_forward.7} parent=1 // pred_fallthru
      _
    // Predicated region
    $region94: #{transformer_forward.7} parent=1 // pred_check
      _
    $region95: #{transformer_forward.7} parent=1 // pred_check_branch
      %78 = sbr.rel (0) target = $region97
    $region96: #{transformer_forward.7} parent=1 // pred_region
      _
    $region97: #{transformer_forward.7} parent=1 // pred_fallthru
      _
    // Predicated region
    $region98: #{transformer_forward.7} parent=1 // pred_check
      _
    $region99: #{transformer_forward.7} parent=1 // pred_check_branch
      %80 = sbr.rel (0) target = $region101
    $region100: #{transformer_forward.7} parent=1 // pred_region
      _
    $region101: #{transformer_forward.7} parent=1 // pred_fallthru
      _
    %v82 = vld [vmem:[%s0] sm:$0xff]
    %v83 = vld [vmem:[%s0 + $0x8] sm:$0xff]
    %v84 = vld [vmem:[%s2] sm:$0xff]
    %v85 = vld [vmem:[%s2 + $0x8] sm:$0xff]
    %v86 = vld [vmem:[%s2 + $0x10] sm:$0xff]
    %v87 = vld [vmem:[%s2 + $0x18] sm:$0xff]
    %v88 = vld [vmem:[%s1] sm:$0xff]
    %v89 = vld [vmem:[%s3] sm:$0xff]
    %v90 = vld [vmem:[%s3 + $0x8] sm:$0xff]
    %v91 = vld [vmem:[%s3 + $0x10] sm:$0xff]
    %v92 = vld [vmem:[%s3 + $0x18] sm:$0xff]
    %v93 = vld [vmem:[%s5] sm:$0xf]
    %v94 = vld [vmem:[%s5 + $0x4] sm:$0xf]
    %v95 = vld [vmem:[%s5 + $0x8] sm:$0xf]
    %v96 = vld [vmem:[%s5 + $0xc] sm:$0xf]
    %v97 = vadd.f32 %v82, %v88
    %v98 = vadd.f32 %v83, %v88
    %v99 = vpack.c.bf16 %v98, %v97
    %v100 = vld [vmem:[%s6] sm:$0x1]
    %v102 = vperm.slane %v100, 0
    %v108 = vunpack.c.l.b16 %v93
    %v109 = vunpack.c.l.b16 %v94
    %v110 = vunpack.c.l.b16 %v95
    %v111 = vunpack.c.l.b16 %v96
    %v112 = vpack.c.b16 %v109, %v108
    %v113 = vpack.c.b16 %v111, %v110
    %vm116 = vcmask 261120
    %v118 = vsel %vm116, %v99, 0
    %120 = vmatpush.bf16.msra.mxu0 0
    %121 = vmatpush.bf16.msra.mxu0 0
    %122 = vmatpush.bf16.msra.mxu0 0
    %123 = vmatpush.bf16.msra.mxu0 0
    %124 = vmatpush.bf16.msra.mxu0 0
    %125 = vmatpush.bf16.msra.mxu0 0
    %126 = vmatpush.bf16.msra.mxu0 %v113
    %127 = vmatpush.bf16.msra.mxu0 %v112
    %128 = vmatmul.bf16.gmra.mxu0 %v118
    %v129 = vpop.f32.mrf.mxu0
    %v130 = vadd.f32 %v102, %v129
    %v131 = vpop.f32.mrf.mxu0
    %v132 = vadd.f32 %v102, %v131
    %133 = vdwg.mxu0
    %v134 = vpack.c.bf16 %v83, %v82
    %135 = vrot.lane.b32.xlu0 %v112, 64
    %v136 = vpop.permute.xlu0 %135
    %137 = vrot.lane.b32.xlu0 %v113, 64
    %v138 = vpop.permute.xlu0 %137
    %141 = vrot.lane.b32.xlu0 %v102, 64
    %v142 = vpop.permute.xlu0 %141
    %v145 = vsel %vm116, %v134, 0
    %147 = vmatpush.bf16.msra.mxu0 0
    %148 = vmatpush.bf16.msra.mxu0 0
    %149 = vmatpush.bf16.msra.mxu0 0
    %150 = vmatpush.bf16.msra.mxu0 0
    %151 = vmatpush.bf16.msra.mxu0 0
    %152 = vmatpush.bf16.msra.mxu0 0
    %153 = vmatpush.bf16.msra.mxu0 %v138
    %154 = vmatpush.bf16.msra.mxu0 %v136
    %155 = vmatmul.bf16.gmra.mxu0 %v145
    %v156 = vpop.f32.mrf.mxu0
    %v157 = vadd.f32 %v142, %v156
    %v158 = vpop.f32.mrf.mxu0
    %v159 = vadd.f32 %v142, %v158
    %160 = vdwg.mxu0
    %v161 = vpack.c.bf16 %v130, %v130
    %163 = vrot.lane.b32.xlu0 %v161, 96
    %v164 = vpop.permute.xlu0 %163
    %vm165 = vcmask 64512
    %v167 = vsel %vm165, %v161, 0
    %v170 = vsel %vm165, %v164, 0
    %172 = vmatpush.bf16.xpose.msra.mxu0 0
    %173 = vmatpush.bf16.xpose.msra.mxu0 0
    %174 = vmatpush.bf16.xpose.msra.mxu0 0
    %175 = vmatpush.bf16.xpose.msra.mxu0 0
    %176 = vmatpush.bf16.xpose.msra.mxu0 0
    %177 = vmatpush.bf16.xpose.msra.mxu0 0
    %178 = vmatpush.bf16.xpose.msra.mxu0 0
    %179 = vmatpush.bf16.xpose.msra.mxu0 %v170
    %180 = vmatmul.bf16.gmra.mxu0 %v167
    %v181 = vpop.f32.mrf.mxu0
    %v182 = vadd.f32 0.0, %v181
    %v183 = vpop.f32.mrf.mxu0
    %184 = vdwg.mxu0
    %v185 = vsel %vm165, %v182, -inf
    %186 = vmax.xlane.f32.xlu0 %v185
    %v187 = vpop.xlane.xlu0 %186
    %v188 = vsub.f32 %v182, %v187
    %v189 = vmul.f32 %v188, 1.442695
    %v190 = vpow.pop %v189
    %v191 = vsel %vm165, %v190, 0.0
    %192 = vadd.xlane.f32.xlu0 %v191
    %v193 = vpop.xlane.xlu0 %192
    %v194 = vrcp.pop %v193
    %v195 = vmul.f32 %v193, %v194
    %v196 = vsub.f32 1.0, %v195
    %v197 = vmul.f32 %v194, %v196
    %v198 = vadd.f32 %v194, %v197
    %vm199 = vweird.f32 %v193
    %vm200 = vweird.f32 %v194
    %vm201 = vmor %vm199, %vm200
    %v202 = vsel %vm201, %v194, %v198
    %v203 = vand.u32 2147483647, %v193
    %vm204 = vcmp.eq.f32.partialorder %v203, 8.507059e+37
    %v205 = vand.u32 %v193, 2147483648
    %v206 = vor.u32 1.1754944e-38, %v205
    %v207 = vsel %vm204, %v206, %v202
    %v208 = vmul.f32 %v190, %v207
    %v209 = vpack.c.bf16 %v208, %v208
    %v210 = vpack.c.bf16 %v157, %v157
    %v212 = vsel %vm165, %v209, 0
    %vm214 = vcmask 1043456
    %v216 = vsel %vm214, %v210, 0
    %218 = vmatpush.bf16.msra.mxu0 0
    %219 = vmatpush.bf16.msra.mxu0 0
    %220 = vmatpush.bf16.msra.mxu0 0
    %221 = vmatpush.bf16.msra.mxu0 0
    %222 = vmatpush.bf16.msra.mxu0 0
    %223 = vmatpush.bf16.msra.mxu0 0
    %224 = vmatpush.bf16.msra.mxu0 0
    %225 = vmatpush.bf16.msra.mxu0 %v216
    %226 = vmatmul.bf16.gmra.mxu0 %v212
    %v227 = vpop.f32.mrf.mxu0
    %v228 = vadd.f32 0.0, %v227
    %v229 = vpop.f32.mrf.mxu0
    %230 = vdwg.mxu0
    %231 = vrot.lane.b32.xlu0 %v161, 120
    %v232 = vpop.permute.xlu0 %231
    %233 = vrot.lane.b32.xlu0 %v161, 88
    %v234 = vpop.permute.xlu0 %233
    %v236 = vsel %vm165, %v232, 0
    %v239 = vsel %vm165, %v234, 0
    %241 = vmatpush.bf16.xpose.msra.mxu0 0
    %242 = vmatpush.bf16.xpose.msra.mxu0 0
    %243 = vmatpush.bf16.xpose.msra.mxu0 0
    %244 = vmatpush.bf16.xpose.msra.mxu0 0
    %245 = vmatpush.bf16.xpose.msra.mxu0 0
    %246 = vmatpush.bf16.xpose.msra.mxu0 0
    %247 = vmatpush.bf16.xpose.msra.mxu0 0
    %248 = vmatpush.bf16.xpose.msra.mxu0 %v239
    %249 = vmatmul.bf16.gmra.mxu0 %v236
    %v250 = vpop.f32.mrf.mxu0
    %v251 = vadd.f32 0.0, %v250
    %v252 = vpop.f32.mrf.mxu0
    %253 = vdwg.mxu0
    %v254 = vsel %vm165, %v251, -inf
    %255 = vmax.xlane.f32.xlu0 %v254
    %v256 = vpop.xlane.xlu0 %255
    %v257 = vsub.f32 %v251, %v256
    %v258 = vmul.f32 %v257, 1.442695
    %v259 = vpow.pop %v258
    %v260 = vsel %vm165, %v259, 0.0
    %261 = vadd.xlane.f32.xlu0 %v260
    %v262 = vpop.xlane.xlu0 %261
    %v263 = vrcp.pop %v262
    %v264 = vmul.f32 %v262, %v263
    %v265 = vsub.f32 1.0, %v264
    %v266 = vmul.f32 %v263, %v265
    %v267 = vadd.f32 %v263, %v266
    %vm268 = vweird.f32 %v262
    %vm269 = vweird.f32 %v263
    %vm270 = vmor %vm268, %vm269
    %v271 = vsel %vm270, %v263, %v267
    %v272 = vand.u32 2147483647, %v262
    %vm273 = vcmp.eq.f32.partialorder %v272, 8.507059e+37
    %v274 = vand.u32 %v262, 2147483648
    %v275 = vor.u32 1.1754944e-38, %v274
    %v276 = vsel %vm273, %v275, %v271
    %v277 = vmul.f32 %v259, %v276
    %v278 = vpack.c.bf16 %v277, %v277
    %280 = vrot.lane.b32.xlu0 %v210, 120
    %v281 = vpop.permute.xlu0 %280
    %v283 = vsel %vm165, %v278, 0
    %v286 = vsel %vm214, %v281, 0
    %288 = vmatpush.bf16.msra.mxu0 0
    %289 = vmatpush.bf16.msra.mxu0 0
    %290 = vmatpush.bf16.msra.mxu0 0
    %291 = vmatpush.bf16.msra.mxu0 0
    %292 = vmatpush.bf16.msra.mxu0 0
    %293 = vmatpush.bf16.msra.mxu0 0
    %294 = vmatpush.bf16.msra.mxu0 0
    %295 = vmatpush.bf16.msra.mxu0 %v286
    %296 = vmatmul.bf16.gmra.mxu0 %v283
    %v297 = vpop.f32.mrf.mxu0
    %v298 = vadd.f32 0.0, %v297
    %v299 = vpop.f32.mrf.mxu0
    %300 = vdwg.mxu0
    %301 = vrot.lane.b32.xlu0 %v161, 112
    %v302 = vpop.permute.xlu0 %301
    %303 = vrot.lane.b32.xlu0 %v161, 80
    %v304 = vpop.permute.xlu0 %303
    %v306 = vsel %vm165, %v302, 0
    %v309 = vsel %vm165, %v304, 0
    %311 = vmatpush.bf16.xpose.msra.mxu0 0
    %312 = vmatpush.bf16.xpose.msra.mxu0 0
    %313 = vmatpush.bf16.xpose.msra.mxu0 0
    %314 = vmatpush.bf16.xpose.msra.mxu0 0
    %315 = vmatpush.bf16.xpose.msra.mxu0 0
    %316 = vmatpush.bf16.xpose.msra.mxu0 0
    %317 = vmatpush.bf16.xpose.msra.mxu0 0
    %318 = vmatpush.bf16.xpose.msra.mxu0 %v309
    %319 = vmatmul.bf16.gmra.mxu0 %v306
    %v320 = vpop.f32.mrf.mxu0
    %v321 = vadd.f32 0.0, %v320
    %v322 = vpop.f32.mrf.mxu0
    %323 = vdwg.mxu0
    %v324 = vsel %vm165, %v321, -inf
    %325 = vmax.xlane.f32.xlu0 %v324
    %v326 = vpop.xlane.xlu0 %325
    %v327 = vsub.f32 %v321, %v326
    %v328 = vmul.f32 %v327, 1.442695
    %v329 = vpow.pop %v328
    %v330 = vsel %vm165, %v329, 0.0
    %331 = vadd.xlane.f32.xlu0 %v330
    %v332 = vpop.xlane.xlu0 %331
    %v333 = vrcp.pop %v332
    %v334 = vmul.f32 %v332, %v333
    %v335 = vsub.f32 1.0, %v334
    %v336 = vmul.f32 %v333, %v335
    %v337 = vadd.f32 %v333, %v336
    %vm338 = vweird.f32 %v332
    %vm339 = vweird.f32 %v333
    %vm340 = vmor %vm338, %vm339
    %v341 = vsel %vm340, %v333, %v337
    %v342 = vand.u32 2147483647, %v332
    %vm343 = vcmp.eq.f32.partialorder %v342, 8.507059e+37
    %v344 = vand.u32 %v332, 2147483648
    %v345 = vor.u32 1.1754944e-38, %v344
    %v346 = vsel %vm343, %v345, %v341
    %v347 = vmul.f32 %v329, %v346
    %v348 = vpack.c.bf16 %v347, %v347
    %349 = vrot.lane.b32.xlu0 %v210, 112
    %v350 = vpop.permute.xlu0 %349
    %v352 = vsel %vm165, %v348, 0
    %v355 = vsel %vm214, %v350, 0
    %357 = vmatpush.bf16.msra.mxu0 0
    %358 = vmatpush.bf16.msra.mxu0 0
    %359 = vmatpush.bf16.msra.mxu0 0
    %360 = vmatpush.bf16.msra.mxu0 0
    %361 = vmatpush.bf16.msra.mxu0 0
    %362 = vmatpush.bf16.msra.mxu0 0
    %363 = vmatpush.bf16.msra.mxu0 0
    %364 = vmatpush.bf16.msra.mxu0 %v355
    %365 = vmatmul.bf16.gmra.mxu0 %v352
    %v366 = vpop.f32.mrf.mxu0
    %v367 = vadd.f32 0.0, %v366
    %v368 = vpop.f32.mrf.mxu0
    %369 = vdwg.mxu0
    %370 = vrot.lane.b32.xlu0 %v161, 104
    %v371 = vpop.permute.xlu0 %370
    %372 = vrot.lane.b32.xlu0 %v161, 72
    %v373 = vpop.permute.xlu0 %372
    %v375 = vsel %vm165, %v371, 0
    %v378 = vsel %vm165, %v373, 0
    %380 = vmatpush.bf16.xpose.msra.mxu0 0
    %381 = vmatpush.bf16.xpose.msra.mxu0 0
    %382 = vmatpush.bf16.xpose.msra.mxu0 0
    %383 = vmatpush.bf16.xpose.msra.mxu0 0
    %384 = vmatpush.bf16.xpose.msra.mxu0 0
    %385 = vmatpush.bf16.xpose.msra.mxu0 0
    %386 = vmatpush.bf16.xpose.msra.mxu0 0
    %387 = vmatpush.bf16.xpose.msra.mxu0 %v378
    %388 = vmatmul.bf16.gmra.mxu0 %v375
    %v389 = vpop.f32.mrf.mxu0
    %v390 = vadd.f32 0.0, %v389
    %v391 = vpop.f32.mrf.mxu0
    %392 = vdwg.mxu0
    %v393 = vsel %vm165, %v390, -inf
    %394 = vmax.xlane.f32.xlu0 %v393
    %v395 = vpop.xlane.xlu0 %394
    %v396 = vsub.f32 %v390, %v395
    %v397 = vmul.f32 %v396, 1.442695
    %v398 = vpow.pop %v397
    %v399 = vsel %vm165, %v398, 0.0
    %400 = vadd.xlane.f32.xlu0 %v399
    %v401 = vpop.xlane.xlu0 %400
    %v402 = vrcp.pop %v401
    %v403 = vmul.f32 %v401, %v402
    %v404 = vsub.f32 1.0, %v403
    %v405 = vmul.f32 %v402, %v404
    %v406 = vadd.f32 %v402, %v405
    %vm407 = vweird.f32 %v401
    %vm408 = vweird.f32 %v402
    %vm409 = vmor %vm407, %vm408
    %v410 = vsel %vm409, %v402, %v406
    %v411 = vand.u32 2147483647, %v401
    %vm412 = vcmp.eq.f32.partialorder %v411, 8.507059e+37
    %v413 = vand.u32 %v401, 2147483648
    %v414 = vor.u32 1.1754944e-38, %v413
    %v415 = vsel %vm412, %v414, %v410
    %v416 = vmul.f32 %v398, %v415
    %v417 = vpack.c.bf16 %v416, %v416
    %418 = vrot.lane.b32.xlu0 %v210, 104
    %v419 = vpop.permute.xlu0 %418
    %v421 = vsel %vm165, %v417, 0
    %v424 = vsel %vm214, %v419, 0
    %426 = vmatpush.bf16.msra.mxu0 0
    %427 = vmatpush.bf16.msra.mxu0 0
    %428 = vmatpush.bf16.msra.mxu0 0
    %429 = vmatpush.bf16.msra.mxu0 0
    %430 = vmatpush.bf16.msra.mxu0 0
    %431 = vmatpush.bf16.msra.mxu0 0
    %432 = vmatpush.bf16.msra.mxu0 0
    %433 = vmatpush.bf16.msra.mxu0 %v424
    %434 = vmatmul.bf16.gmra.mxu0 %v421
    %v435 = vpop.f32.mrf.mxu0
    %v436 = vadd.f32 0.0, %v435
    %v437 = vpop.f32.mrf.mxu0
    %438 = vdwg.mxu0
    %440 = vrot.lane.b32.xlu0 %v298, 8
    %v441 = vpop.permute.xlu0 %440
    %444 = vrot.lane.b32.xlu0 %v367, 16
    %v445 = vpop.permute.xlu0 %444
    %448 = vrot.lane.b32.xlu0 %v436, 24
    %v449 = vpop.permute.xlu0 %448
    %v451 = vsel %vm165, %v228, %v441
    %vm452 = vcmask 130048
    %v453 = vsel %vm452, %v451, %v445
    %vm454 = vcmask 195584
    %v455 = vsel %vm454, %v453, %v449
    %v456 = vpack.c.bf16 %v132, %v132
    %458 = vrot.lane.b32.xlu0 %v456, 96
    %v459 = vpop.permute.xlu0 %458
    %v461 = vsel %vm165, %v456, 0
    %v464 = vsel %vm165, %v459, 0
    %466 = vmatpush.bf16.xpose.msra.mxu0 0
    %467 = vmatpush.bf16.xpose.msra.mxu0 0
    %468 = vmatpush.bf16.xpose.msra.mxu0 0
    %469 = vmatpush.bf16.xpose.msra.mxu0 0
    %470 = vmatpush.bf16.xpose.msra.mxu0 0
    %471 = vmatpush.bf16.xpose.msra.mxu0 0
    %472 = vmatpush.bf16.xpose.msra.mxu0 0
    %473 = vmatpush.bf16.xpose.msra.mxu0 %v464
    %474 = vmatmul.bf16.gmra.mxu0 %v461
    %v475 = vpop.f32.mrf.mxu0
    %v476 = vadd.f32 0.0, %v475
    %v477 = vpop.f32.mrf.mxu0
    %478 = vdwg.mxu0
    %v479 = vsel %vm165, %v476, -inf
    %480 = vmax.xlane.f32.xlu0 %v479
    %v481 = vpop.xlane.xlu0 %480
    %v482 = vsub.f32 %v476, %v481
    %v483 = vmul.f32 %v482, 1.442695
    %v484 = vpow.pop %v483
    %v485 = vsel %vm165, %v484, 0.0
    %486 = vadd.xlane.f32.xlu0 %v485
    %v487 = vpop.xlane.xlu0 %486
    %v488 = vrcp.pop %v487
    %v489 = vmul.f32 %v487, %v488
    %v490 = vsub.f32 1.0, %v489
    %v491 = vmul.f32 %v488, %v490
    %v492 = vadd.f32 %v488, %v491
    %vm493 = vweird.f32 %v487
    %vm494 = vweird.f32 %v488
    %vm495 = vmor %vm493, %vm494
    %v496 = vsel %vm495, %v488, %v492
    %v497 = vand.u32 2147483647, %v487
    %vm498 = vcmp.eq.f32.partialorder %v497, 8.507059e+37
    %v499 = vand.u32 %v487, 2147483648
    %v500 = vor.u32 1.1754944e-38, %v499
    %v501 = vsel %vm498, %v500, %v496
    %v502 = vmul.f32 %v484, %v501
    %v503 = vpack.c.bf16 %v502, %v502
    %v504 = vpack.c.bf16 %v159, %v159
    %v506 = vsel %vm165, %v503, 0
    %v509 = vsel %vm214, %v504, 0
    %511 = vmatpush.bf16.msra.mxu0 0
    %512 = vmatpush.bf16.msra.mxu0 0
    %513 = vmatpush.bf16.msra.mxu0 0
    %514 = vmatpush.bf16.msra.mxu0 0
    %515 = vmatpush.bf16.msra.mxu0 0
    %516 = vmatpush.bf16.msra.mxu0 0
    %517 = vmatpush.bf16.msra.mxu0 0
    %518 = vmatpush.bf16.msra.mxu0 %v509
    %519 = vmatmul.bf16.gmra.mxu0 %v506
    %v520 = vpop.f32.mrf.mxu0
    %v521 = vadd.f32 0.0, %v520
    %v522 = vpop.f32.mrf.mxu0
    %523 = vdwg.mxu0
    %524 = vrot.lane.b32.xlu0 %v456, 120
    %v525 = vpop.permute.xlu0 %524
    %526 = vrot.lane.b32.xlu0 %v456, 88
    %v527 = vpop.permute.xlu0 %526
    %v529 = vsel %vm165, %v525, 0
    %v532 = vsel %vm165, %v527, 0
    %534 = vmatpush.bf16.xpose.msra.mxu0 0
    %535 = vmatpush.bf16.xpose.msra.mxu0 0
    %536 = vmatpush.bf16.xpose.msra.mxu0 0
    %537 = vmatpush.bf16.xpose.msra.mxu0 0
    %538 = vmatpush.bf16.xpose.msra.mxu0 0
    %539 = vmatpush.bf16.xpose.msra.mxu0 0
    %540 = vmatpush.bf16.xpose.msra.mxu0 0
    %541 = vmatpush.bf16.xpose.msra.mxu0 %v532
    %542 = vmatmul.bf16.gmra.mxu0 %v529
    %v543 = vpop.f32.mrf.mxu0
    %v544 = vadd.f32 0.0, %v543
    %v545 = vpop.f32.mrf.mxu0
    %546 = vdwg.mxu0
    %v547 = vsel %vm165, %v544, -inf
    %548 = vmax.xlane.f32.xlu0 %v547
    %v549 = vpop.xlane.xlu0 %548
    %v550 = vsub.f32 %v544, %v549
    %v551 = vmul.f32 %v550, 1.442695
    %v552 = vpow.pop %v551
    %v553 = vsel %vm165, %v552, 0.0
    %554 = vadd.xlane.f32.xlu0 %v553
    %v555 = vpop.xlane.xlu0 %554
    %v556 = vrcp.pop %v555
    %v557 = vmul.f32 %v555, %v556
    %v558 = vsub.f32 1.0, %v557
    %v559 = vmul.f32 %v556, %v558
    %v560 = vadd.f32 %v556, %v559
    %vm561 = vweird.f32 %v555
    %vm562 = vweird.f32 %v556
    %vm563 = vmor %vm561, %vm562
    %v564 = vsel %vm563, %v556, %v560
    %v565 = vand.u32 2147483647, %v555
    %vm566 = vcmp.eq.f32.partialorder %v565, 8.507059e+37
    %v567 = vand.u32 %v555, 2147483648
    %v568 = vor.u32 1.1754944e-38, %v567
    %v569 = vsel %vm566, %v568, %v564
    %v570 = vmul.f32 %v552, %v569
    %v571 = vpack.c.bf16 %v570, %v570
    %573 = vrot.lane.b32.xlu0 %v504, 120
    %v574 = vpop.permute.xlu0 %573
    %v576 = vsel %vm165, %v571, 0
    %v579 = vsel %vm214, %v574, 0
    %581 = vmatpush.bf16.msra.mxu0 0
    %582 = vmatpush.bf16.msra.mxu0 0
    %583 = vmatpush.bf16.msra.mxu0 0
    %584 = vmatpush.bf16.msra.mxu0 0
    %585 = vmatpush.bf16.msra.mxu0 0
    %586 = vmatpush.bf16.msra.mxu0 0
    %587 = vmatpush.bf16.msra.mxu0 0
    %588 = vmatpush.bf16.msra.mxu0 %v579
    %589 = vmatmul.bf16.gmra.mxu0 %v576
    %v590 = vpop.f32.mrf.mxu0
    %v591 = vadd.f32 0.0, %v590
    %v592 = vpop.f32.mrf.mxu0
    %593 = vdwg.mxu0
    %594 = vrot.lane.b32.xlu0 %v456, 112
    %v595 = vpop.permute.xlu0 %594
    %596 = vrot.lane.b32.xlu0 %v456, 80
    %v597 = vpop.permute.xlu0 %596
    %v599 = vsel %vm165, %v595, 0
    %v602 = vsel %vm165, %v597, 0
    %604 = vmatpush.bf16.xpose.msra.mxu0 0
    %605 = vmatpush.bf16.xpose.msra.mxu0 0
    %606 = vmatpush.bf16.xpose.msra.mxu0 0
    %607 = vmatpush.bf16.xpose.msra.mxu0 0
    %608 = vmatpush.bf16.xpose.msra.mxu0 0
    %609 = vmatpush.bf16.xpose.msra.mxu0 0
    %610 = vmatpush.bf16.xpose.msra.mxu0 0
    %611 = vmatpush.bf16.xpose.msra.mxu0 %v602
    %612 = vmatmul.bf16.gmra.mxu0 %v599
    %v613 = vpop.f32.mrf.mxu0
    %v614 = vadd.f32 0.0, %v613
    %v615 = vpop.f32.mrf.mxu0
    %616 = vdwg.mxu0
    %v617 = vsel %vm165, %v614, -inf
    %618 = vmax.xlane.f32.xlu0 %v617
    %v619 = vpop.xlane.xlu0 %618
    %v620 = vsub.f32 %v614, %v619
    %v621 = vmul.f32 %v620, 1.442695
    %v622 = vpow.pop %v621
    %v623 = vsel %vm165, %v622, 0.0
    %624 = vadd.xlane.f32.xlu0 %v623
    %v625 = vpop.xlane.xlu0 %624
    %v626 = vrcp.pop %v625
    %v627 = vmul.f32 %v625, %v626
    %v628 = vsub.f32 1.0, %v627
    %v629 = vmul.f32 %v626, %v628
    %v630 = vadd.f32 %v626, %v629
    %vm631 = vweird.f32 %v625
    %vm632 = vweird.f32 %v626
    %vm633 = vmor %vm631, %vm632
    %v634 = vsel %vm633, %v626, %v630
    %v635 = vand.u32 2147483647, %v625
    %vm636 = vcmp.eq.f32.partialorder %v635, 8.507059e+37
    %v637 = vand.u32 %v625, 2147483648
    %v638 = vor.u32 1.1754944e-38, %v637
    %v639 = vsel %vm636, %v638, %v634
    %v640 = vmul.f32 %v622, %v639
    %v641 = vpack.c.bf16 %v640, %v640
    %642 = vrot.lane.b32.xlu0 %v504, 112
    %v643 = vpop.permute.xlu0 %642
    %v645 = vsel %vm165, %v641, 0
    %v648 = vsel %vm214, %v643, 0
    %650 = vmatpush.bf16.msra.mxu0 0
    %651 = vmatpush.bf16.msra.mxu0 0
    %652 = vmatpush.bf16.msra.mxu0 0
    %653 = vmatpush.bf16.msra.mxu0 0
    %654 = vmatpush.bf16.msra.mxu0 0
    %655 = vmatpush.bf16.msra.mxu0 0
    %656 = vmatpush.bf16.msra.mxu0 0
    %657 = vmatpush.bf16.msra.mxu0 %v648
    %658 = vmatmul.bf16.gmra.mxu0 %v645
    %v659 = vpop.f32.mrf.mxu0
    %v660 = vadd.f32 0.0, %v659
    %v661 = vpop.f32.mrf.mxu0
    %662 = vdwg.mxu0
    %663 = vrot.lane.b32.xlu0 %v456, 104
    %v664 = vpop.permute.xlu0 %663
    %665 = vrot.lane.b32.xlu0 %v456, 72
    %v666 = vpop.permute.xlu0 %665
    %v668 = vsel %vm165, %v664, 0
    %v671 = vsel %vm165, %v666, 0
    %673 = vmatpush.bf16.xpose.msra.mxu0 0
    %674 = vmatpush.bf16.xpose.msra.mxu0 0
    %675 = vmatpush.bf16.xpose.msra.mxu0 0
    %676 = vmatpush.bf16.xpose.msra.mxu0 0
    %677 = vmatpush.bf16.xpose.msra.mxu0 0
    %678 = vmatpush.bf16.xpose.msra.mxu0 0
    %679 = vmatpush.bf16.xpose.msra.mxu0 0
    %680 = vmatpush.bf16.xpose.msra.mxu0 %v671
    %681 = vmatmul.bf16.gmra.mxu0 %v668
    %v682 = vpop.f32.mrf.mxu0
    %v683 = vadd.f32 0.0, %v682
    %v684 = vpop.f32.mrf.mxu0
    %685 = vdwg.mxu0
    %v686 = vsel %vm165, %v683, -inf
    %687 = vmax.xlane.f32.xlu0 %v686
    %v688 = vpop.xlane.xlu0 %687
    %v689 = vsub.f32 %v683, %v688
    %v690 = vmul.f32 %v689, 1.442695
    %v691 = vpow.pop %v690
    %v692 = vsel %vm165, %v691, 0.0
    %693 = vadd.xlane.f32.xlu0 %v692
    %v694 = vpop.xlane.xlu0 %693
    %v695 = vrcp.pop %v694
    %v696 = vmul.f32 %v694, %v695
    %v697 = vsub.f32 1.0, %v696
    %v698 = vmul.f32 %v695, %v697
    %v699 = vadd.f32 %v695, %v698
    %vm700 = vweird.f32 %v694
    %vm701 = vweird.f32 %v695
    %vm702 = vmor %vm700, %vm701
    %v703 = vsel %vm702, %v695, %v699
    %v704 = vand.u32 2147483647, %v694
    %vm705 = vcmp.eq.f32.partialorder %v704, 8.507059e+37
    %v706 = vand.u32 %v694, 2147483648
    %v707 = vor.u32 1.1754944e-38, %v706
    %v708 = vsel %vm705, %v707, %v703
    %v709 = vmul.f32 %v691, %v708
    %v710 = vpack.c.bf16 %v709, %v709
    %711 = vrot.lane.b32.xlu0 %v504, 104
    %v712 = vpop.permute.xlu0 %711
    %v714 = vsel %vm165, %v710, 0
    %v717 = vsel %vm214, %v712, 0
    %719 = vmatpush.bf16.msra.mxu0 0
    %720 = vmatpush.bf16.msra.mxu0 0
    %721 = vmatpush.bf16.msra.mxu0 0
    %722 = vmatpush.bf16.msra.mxu0 0
    %723 = vmatpush.bf16.msra.mxu0 0
    %724 = vmatpush.bf16.msra.mxu0 0
    %725 = vmatpush.bf16.msra.mxu0 0
    %726 = vmatpush.bf16.msra.mxu0 %v717
    %727 = vmatmul.bf16.gmra.mxu0 %v714
    %v728 = vpop.f32.mrf.mxu0
    %v729 = vadd.f32 0.0, %v728
    %v730 = vpop.f32.mrf.mxu0
    %731 = vdwg.mxu0
    %733 = vrot.lane.b32.xlu0 %v591, 8
    %v734 = vpop.permute.xlu0 %733
    %737 = vrot.lane.b32.xlu0 %v660, 16
    %v738 = vpop.permute.xlu0 %737
    %741 = vrot.lane.b32.xlu0 %v729, 24
    %v742 = vpop.permute.xlu0 %741
    %v744 = vsel %vm165, %v521, %v734
    %v745 = vsel %vm452, %v744, %v738
    %v746 = vsel %vm454, %v745, %v742
    %v747 = vld [vmem:[%s7] sm:$0xf]
    %v748 = vld [vmem:[%s7 + $0x4] sm:$0xf]
    %v749 = vld [vmem:[%s7 + $0x8] sm:$0xf]
    %v750 = vld [vmem:[%s7 + $0xc] sm:$0xf]
    %v751 = vpack.c.bf16 %v746, %v455
    %v752 = vld [vmem:[%s8] sm:$0x1]
    %v754 = vperm.slane %v752, 0
    %v760 = vunpack.c.l.b16 %v747
    %v761 = vunpack.c.l.b16 %v748
    %v762 = vunpack.c.l.b16 %v749
    %v763 = vunpack.c.l.b16 %v750
    %v764 = vpack.c.b16 %v761, %v760
    %v765 = vpack.c.b16 %v763, %v762
    %v769 = vsel %vm116, %v751, 0
    %771 = vmatpush.bf16.msra.mxu0 0
    %772 = vmatpush.bf16.msra.mxu0 0
    %773 = vmatpush.bf16.msra.mxu0 0
    %774 = vmatpush.bf16.msra.mxu0 0
    %775 = vmatpush.bf16.msra.mxu0 0
    %776 = vmatpush.bf16.msra.mxu0 0
    %777 = vmatpush.bf16.msra.mxu0 %v765
    %778 = vmatpush.bf16.msra.mxu0 %v764
    %779 = vmatmul.bf16.gmra.mxu0 %v769
    %v780 = vpop.f32.mrf.mxu0
    %v781 = vadd.f32 %v754, %v780
    %v782 = vpop.f32.mrf.mxu0
    %v783 = vadd.f32 %v754, %v782
    %784 = vdwg.mxu0
    %v785 = vadd.f32 %v82, %v781
    %v786 = vadd.f32 %v83, %v783
    %v787 = vld [vmem:[%s9] sm:$0x1]
    %v788 = vld [vmem:[%s10] sm:$0x1]
    %v789 = vsel %vm116, %v785, 0.0
    %790 = vadd.xlane.f32.xlu0 %v789
    %v791 = vpop.xlane.xlu0 %790
    %v792 = vsel %vm116, %v786, 0.0
    %793 = vadd.xlane.f32.xlu0 %v792
    %v794 = vpop.xlane.xlu0 %793
    %v795 = vrcp.pop 32.0
    %v796 = vmul.f32 32.0, %v795
    %v797 = vsub.f32 1.0, %v796
    %v798 = vmul.f32 %v795, %v797
    %v799 = vadd.f32 %v795, %v798
    %vm800 = vweird.f32 %v795
    %v801 = vsel %vm800, %v795, %v799
    %v802 = vmul.f32 %v791, %v801
    %v803 = vmul.f32 %v794, %v801
    %v804 = vsub.f32 %v785, %v802
    %v805 = vsub.f32 %v786, %v803
    %v806 = vmul.f32 %v804, %v804
    %v807 = vmul.f32 %v805, %v805
    %v808 = vsel %vm116, %v806, 0.0
    %809 = vadd.xlane.f32.xlu0 %v808
    %v810 = vpop.xlane.xlu0 %809
    %v811 = vsel %vm116, %v807, 0.0
    %812 = vadd.xlane.f32.xlu0 %v811
    %v813 = vpop.xlane.xlu0 %812
    %v814 = vmul.f32 %v810, %v801
    %v815 = vmul.f32 %v813, %v801
    %v816 = vadd.f32 %v814, 1e-05
    %v817 = vadd.f32 %v815, 1e-05
    %v818 = vrsqrt.pop %v816
    %v819 = vmul.f32 %v818, %v816
    %v820 = vmul.f32 %v819, %v818
    %v821 = vmul.f32 0.5, %v820
    %v822 = vsub.f32 1.5, %v821
    %v823 = vmul.f32 %v818, %v822
    %vm824 = vweird.f32 %v816
    %vm825 = vweird.f32 %v818
    %vm826 = vmor %vm824, %vm825
    %v827 = vsel %vm826, %v818, %v823
    %v828 = vrsqrt.pop %v817
    %v829 = vmul.f32 %v828, %v817
    %v830 = vmul.f32 %v829, %v828
    %v831 = vmul.f32 0.5, %v830
    %v832 = vsub.f32 1.5, %v831
    %v833 = vmul.f32 %v828, %v832
    %vm834 = vweird.f32 %v817
    %vm835 = vweird.f32 %v828
    %vm836 = vmor %vm834, %vm835
    %v837 = vsel %vm836, %v828, %v833
    %v838 = vmul.f32 %v804, %v827
    %v839 = vmul.f32 %v805, %v837
    %v841 = vperm.slane %v787, 0
    %v843 = vmul.f32 %v838, %v841
    %v844 = vmul.f32 %v839, %v841
    %v846 = vperm.slane %v788, 0
    %v848 = vadd.f32 %v843, %v846
    %v849 = vadd.f32 %v844, %v846
    %v850 = vld [vmem:[%s11] sm:$0xf]
    %v851 = vld [vmem:[%s11 + $0x4] sm:$0xf]
    %v852 = vld [vmem:[%s11 + $0x8] sm:$0xf]
    %v853 = vld [vmem:[%s11 + $0xc] sm:$0xf]
    %v854 = vadd.f32 %v848, %v88
    %v855 = vadd.f32 %v849, %v88
    %v856 = vpack.c.bf16 %v855, %v854
    %v857 = vld [vmem:[%s12] sm:$0x1]
    %v859 = vperm.slane %v857, 0
    %v865 = vunpack.c.l.b16 %v850
    %v866 = vunpack.c.l.b16 %v851
    %v867 = vunpack.c.l.b16 %v852
    %v868 = vunpack.c.l.b16 %v853
    %v869 = vpack.c.b16 %v866, %v865
    %v870 = vpack.c.b16 %v868, %v867
    %v874 = vsel %vm116, %v856, 0
    %876 = vmatpush.bf16.msra.mxu0 0
    %877 = vmatpush.bf16.msra.mxu0 0
    %878 = vmatpush.bf16.msra.mxu0 0
    %879 = vmatpush.bf16.msra.mxu0 0
    %880 = vmatpush.bf16.msra.mxu0 0
    %881 = vmatpush.bf16.msra.mxu0 0
    %882 = vmatpush.bf16.msra.mxu0 %v870
    %883 = vmatpush.bf16.msra.mxu0 %v869
    %884 = vmatmul.bf16.gmra.mxu0 %v874
    %v885 = vpop.f32.mrf.mxu0
    %v886 = vadd.f32 %v859, %v885
    %v887 = vpop.f32.mrf.mxu0
    %v888 = vadd.f32 %v859, %v887
    %889 = vdwg.mxu0
    %v890 = vadd.f32 %v84, %v89
    %v891 = vadd.f32 %v85, %v90
    %v892 = vadd.f32 %v86, %v91
    %v893 = vadd.f32 %v87, %v92
    %v894 = vpack.c.bf16 %v891, %v890
    %v895 = vpack.c.bf16 %v893, %v892
    %896 = vrot.lane.b32.xlu0 %v869, 96
    %v897 = vpop.permute.xlu0 %896
    %898 = vrot.lane.b32.xlu0 %v870, 96
    %v899 = vpop.permute.xlu0 %898
    %902 = vrot.lane.b32.xlu0 %v859, 96
    %v903 = vpop.permute.xlu0 %902
    %v906 = vsel %vm116, %v894, 0
    %v909 = vsel %vm116, %v895, 0
    %911 = vmatpush.bf16.msra.mxu0 0
    %912 = vmatpush.bf16.msra.mxu0 0
    %913 = vmatpush.bf16.msra.mxu0 0
    %914 = vmatpush.bf16.msra.mxu0 0
    %915 = vmatpush.bf16.msra.mxu0 0
    %916 = vmatpush.bf16.msra.mxu0 0
    %917 = vmatpush.bf16.msra.mxu0 %v899
    %918 = vmatpush.bf16.msra.mxu0 %v897
    %919 = vmatmul.bf16.gmra.mxu0 %v906
    %v920 = vpop.f32.mrf.mxu0
    %v921 = vadd.f32 %v903, %v920
    %v922 = vpop.f32.mrf.mxu0
    %v923 = vadd.f32 %v903, %v922
    %924 = vmatmul.bf16.gmra.mxu0 %v909
    %v925 = vpop.f32.mrf.mxu0
    %v926 = vadd.f32 %v903, %v925
    %v927 = vpop.f32.mrf.mxu0
    %v928 = vadd.f32 %v903, %v927
    %929 = vdwg.mxu0
    %v930 = vpack.c.bf16 %v85, %v84
    %v931 = vpack.c.bf16 %v87, %v86
    %932 = vrot.lane.b32.xlu0 %v869, 64
    %v933 = vpop.permute.xlu0 %932
    %934 = vrot.lane.b32.xlu0 %v870, 64
    %v935 = vpop.permute.xlu0 %934
    %938 = vrot.lane.b32.xlu0 %v859, 64
    %v939 = vpop.permute.xlu0 %938
    %v942 = vsel %vm116, %v930, 0
    %v945 = vsel %vm116, %v931, 0
    %947 = vmatpush.bf16.msra.mxu0 0
    %948 = vmatpush.bf16.msra.mxu0 0
    %949 = vmatpush.bf16.msra.mxu0 0
    %950 = vmatpush.bf16.msra.mxu0 0
    %951 = vmatpush.bf16.msra.mxu0 0
    %952 = vmatpush.bf16.msra.mxu0 0
    %953 = vmatpush.bf16.msra.mxu0 %v935
    %954 = vmatpush.bf16.msra.mxu0 %v933
    %955 = vmatmul.bf16.gmra.mxu0 %v942
    %v956 = vpop.f32.mrf.mxu0
    %v957 = vadd.f32 %v939, %v956
    %v958 = vpop.f32.mrf.mxu0
    %v959 = vadd.f32 %v939, %v958
    %960 = vmatmul.bf16.gmra.mxu0 %v945
    %v961 = vpop.f32.mrf.mxu0
    %v962 = vadd.f32 %v939, %v961
    %v963 = vpop.f32.mrf.mxu0
    %v964 = vadd.f32 %v939, %v963
    %965 = vdwg.mxu0
    %v966 = vld [vmem:[%s4] sm:$0x1]
    %v968 = vperm.slane %v966, 0
    %v970 = vpack.c.bf16 %v886, %v886
    %v971 = vpack.c.bf16 %v923, %v921
    %v973 = vsel %vm165, %v970, 0
    %v976 = vsel %vm165, %v971, 0
    %978 = vmatpush.bf16.xpose.msra.mxu0 0
    %979 = vmatpush.bf16.xpose.msra.mxu0 0
    %980 = vmatpush.bf16.xpose.msra.mxu0 0
    %981 = vmatpush.bf16.xpose.msra.mxu0 0
    %982 = vmatpush.bf16.xpose.msra.mxu0 0
    %983 = vmatpush.bf16.xpose.msra.mxu0 0
    %984 = vmatpush.bf16.xpose.msra.mxu0 0
    %985 = vmatpush.bf16.xpose.msra.mxu0 %v976
    %986 = vmatmul.bf16.gmra.mxu0 %v973
    %v987 = vpop.f32.mrf.mxu0
    %v988 = vadd.f32 %v968, %v987
    %v989 = vpop.f32.mrf.mxu0
    %990 = vdwg.mxu0
    %v991 = vsel %vm452, %v988, -inf
    %992 = vmax.xlane.f32.xlu0 %v991
    %v993 = vpop.xlane.xlu0 %992
    %v994 = vsub.f32 %v988, %v993
    %v995 = vmul.f32 %v994, 1.442695
    %v996 = vpow.pop %v995
    %v997 = vsel %vm452, %v996, 0.0
    %998 = vadd.xlane.f32.xlu0 %v997
    %v999 = vpop.xlane.xlu0 %998
    %v1000 = vrcp.pop %v999
    %v1001 = vmul.f32 %v999, %v1000
    %v1002 = vsub.f32 1.0, %v1001
    %v1003 = vmul.f32 %v1000, %v1002
    %v1004 = vadd.f32 %v1000, %v1003
    %vm1005 = vweird.f32 %v999
    %vm1006 = vweird.f32 %v1000
    %vm1007 = vmor %vm1005, %vm1006
    %v1008 = vsel %vm1007, %v1000, %v1004
    %v1009 = vand.u32 2147483647, %v999
    %vm1010 = vcmp.eq.f32.partialorder %v1009, 8.507059e+37
    %v1011 = vand.u32 %v999, 2147483648
    %v1012 = vor.u32 1.1754944e-38, %v1011
    %v1013 = vsel %vm1010, %v1012, %v1008
    %v1014 = vmul.f32 %v996, %v1013
    %v1015 = vpack.c.bf16 %v1014, %v1014
    %v1016 = vpack.c.bf16 %v959, %v957
    %v1018 = vsel %vm452, %v1015, 0
    %1020 = vmatpush.bf16.msra.mxu0 0
    %1021 = vmatpush.bf16.msra.mxu0 0
    %1022 = vmatpush.bf16.msra.mxu0 0
    %1023 = vmatpush.bf16.msra.mxu0 0
    %1024 = vmatpush.bf16.msra.mxu0 0
    %1025 = vmatpush.bf16.msra.mxu0 0
    %1026 = vmatpush.bf16.msra.mxu0 0
    %1027 = vmatpush.bf16.msra.mxu0 %v1016
    %1028 = vmatmul.bf16.gmra.mxu0 %v1018
    %v1029 = vpop.f32.mrf.mxu0
    %v1030 = vadd.f32 0.0, %v1029
    %v1031 = vpop.f32.mrf.mxu0
    %1032 = vdwg.mxu0
    %1034 = vrot.lane.b32.xlu0 %v970, 120
    %v1035 = vpop.permute.xlu0 %1034
    %1037 = vrot.lane.b32.xlu0 %v971, 120
    %v1038 = vpop.permute.xlu0 %1037
    %v1040 = vsel %vm165, %v1035, 0
    %v1043 = vsel %vm165, %v1038, 0
    %1045 = vmatpush.bf16.xpose.msra.mxu0 0
    %1046 = vmatpush.bf16.xpose.msra.mxu0 0
    %1047 = vmatpush.bf16.xpose.msra.mxu0 0
    %1048 = vmatpush.bf16.xpose.msra.mxu0 0
    %1049 = vmatpush.bf16.xpose.msra.mxu0 0
    %1050 = vmatpush.bf16.xpose.msra.mxu0 0
    %1051 = vmatpush.bf16.xpose.msra.mxu0 0
    %1052 = vmatpush.bf16.xpose.msra.mxu0 %v1043
    %1053 = vmatmul.bf16.gmra.mxu0 %v1040
    %v1054 = vpop.f32.mrf.mxu0
    %v1055 = vadd.f32 %v968, %v1054
    %v1056 = vpop.f32.mrf.mxu0
    %1057 = vdwg.mxu0
    %v1058 = vsel %vm452, %v1055, -inf
    %1059 = vmax.xlane.f32.xlu0 %v1058
    %v1060 = vpop.xlane.xlu0 %1059
    %v1061 = vsub.f32 %v1055, %v1060
    %v1062 = vmul.f32 %v1061, 1.442695
    %v1063 = vpow.pop %v1062
    %v1064 = vsel %vm452, %v1063, 0.0
    %1065 = vadd.xlane.f32.xlu0 %v1064
    %v1066 = vpop.xlane.xlu0 %1065
    %v1067 = vrcp.pop %v1066
    %v1068 = vmul.f32 %v1066, %v1067
    %v1069 = vsub.f32 1.0, %v1068
    %v1070 = vmul.f32 %v1067, %v1069
    %v1071 = vadd.f32 %v1067, %v1070
    %vm1072 = vweird.f32 %v1066
    %vm1073 = vweird.f32 %v1067
    %vm1074 = vmor %vm1072, %vm1073
    %v1075 = vsel %vm1074, %v1067, %v1071
    %v1076 = vand.u32 2147483647, %v1066
    %vm1077 = vcmp.eq.f32.partialorder %v1076, 8.507059e+37
    %v1078 = vand.u32 %v1066, 2147483648
    %v1079 = vor.u32 1.1754944e-38, %v1078
    %v1080 = vsel %vm1077, %v1079, %v1075
    %v1081 = vmul.f32 %v1063, %v1080
    %v1082 = vpack.c.bf16 %v1081, %v1081
    %1084 = vrot.lane.b32.xlu0 %v1016, 120
    %v1085 = vpop.permute.xlu0 %1084
    %v1088 = vsel %vm452, %v1082, 0
    %1090 = vmatpush.bf16.msra.mxu0 0
    %1091 = vmatpush.bf16.msra.mxu0 0
    %1092 = vmatpush.bf16.msra.mxu0 0
    %1093 = vmatpush.bf16.msra.mxu0 0
    %1094 = vmatpush.bf16.msra.mxu0 0
    %1095 = vmatpush.bf16.msra.mxu0 0
    %1096 = vmatpush.bf16.msra.mxu0 0
    %1097 = vmatpush.bf16.msra.mxu0 %v1085
    %1098 = vmatmul.bf16.gmra.mxu0 %v1088
    %v1099 = vpop.f32.mrf.mxu0
    %v1100 = vadd.f32 0.0, %v1099
    %v1101 = vpop.f32.mrf.mxu0
    %1102 = vdwg.mxu0
    %1103 = vrot.lane.b32.xlu0 %v970, 112
    %v1104 = vpop.permute.xlu0 %1103
    %1105 = vrot.lane.b32.xlu0 %v971, 112
    %v1106 = vpop.permute.xlu0 %1105
    %v1108 = vsel %vm165, %v1104, 0
    %v1111 = vsel %vm165, %v1106, 0
    %1113 = vmatpush.bf16.xpose.msra.mxu0 0
    %1114 = vmatpush.bf16.xpose.msra.mxu0 0
    %1115 = vmatpush.bf16.xpose.msra.mxu0 0
    %1116 = vmatpush.bf16.xpose.msra.mxu0 0
    %1117 = vmatpush.bf16.xpose.msra.mxu0 0
    %1118 = vmatpush.bf16.xpose.msra.mxu0 0
    %1119 = vmatpush.bf16.xpose.msra.mxu0 0
    %1120 = vmatpush.bf16.xpose.msra.mxu0 %v1111
    %1121 = vmatmul.bf16.gmra.mxu0 %v1108
    %v1122 = vpop.f32.mrf.mxu0
    %v1123 = vadd.f32 %v968, %v1122
    %v1124 = vpop.f32.mrf.mxu0
    %1125 = vdwg.mxu0
    %v1126 = vsel %vm452, %v1123, -inf
    %1127 = vmax.xlane.f32.xlu0 %v1126
    %v1128 = vpop.xlane.xlu0 %1127
    %v1129 = vsub.f32 %v1123, %v1128
    %v1130 = vmul.f32 %v1129, 1.442695
    %v1131 = vpow.pop %v1130
    %v1132 = vsel %vm452, %v1131, 0.0
    %1133 = vadd.xlane.f32.xlu0 %v1132
    %v1134 = vpop.xlane.xlu0 %1133
    %v1135 = vrcp.pop %v1134
    %v1136 = vmul.f32 %v1134, %v1135
    %v1137 = vsub.f32 1.0, %v1136
    %v1138 = vmul.f32 %v1135, %v1137
    %v1139 = vadd.f32 %v1135, %v1138
    %vm1140 = vweird.f32 %v1134
    %vm1141 = vweird.f32 %v1135
    %vm1142 = vmor %vm1140, %vm1141
    %v1143 = vsel %vm1142, %v1135, %v1139
    %v1144 = vand.u32 2147483647, %v1134
    %vm1145 = vcmp.eq.f32.partialorder %v1144, 8.507059e+37
    %v1146 = vand.u32 %v1134, 2147483648
    %v1147 = vor.u32 1.1754944e-38, %v1146
    %v1148 = vsel %vm1145, %v1147, %v1143
    %v1149 = vmul.f32 %v1131, %v1148
    %v1150 = vpack.c.bf16 %v1149, %v1149
    %1151 = vrot.lane.b32.xlu0 %v1016, 112
    %v1152 = vpop.permute.xlu0 %1151
    %v1155 = vsel %vm452, %v1150, 0
    %1157 = vmatpush.bf16.msra.mxu0 0
    %1158 = vmatpush.bf16.msra.mxu0 0
    %1159 = vmatpush.bf16.msra.mxu0 0
    %1160 = vmatpush.bf16.msra.mxu0 0
    %1161 = vmatpush.bf16.msra.mxu0 0
    %1162 = vmatpush.bf16.msra.mxu0 0
    %1163 = vmatpush.bf16.msra.mxu0 0
    %1164 = vmatpush.bf16.msra.mxu0 %v1152
    %1165 = vmatmul.bf16.gmra.mxu0 %v1155
    %v1166 = vpop.f32.mrf.mxu0
    %v1167 = vadd.f32 0.0, %v1166
    %v1168 = vpop.f32.mrf.mxu0
    %1169 = vdwg.mxu0
    %1170 = vrot.lane.b32.xlu0 %v970, 104
    %v1171 = vpop.permute.xlu0 %1170
    %1172 = vrot.lane.b32.xlu0 %v971, 104
    %v1173 = vpop.permute.xlu0 %1172
    %v1175 = vsel %vm165, %v1171, 0
    %v1178 = vsel %vm165, %v1173, 0
    %1180 = vmatpush.bf16.xpose.msra.mxu0 0
    %1181 = vmatpush.bf16.xpose.msra.mxu0 0
    %1182 = vmatpush.bf16.xpose.msra.mxu0 0
    %1183 = vmatpush.bf16.xpose.msra.mxu0 0
    %1184 = vmatpush.bf16.xpose.msra.mxu0 0
    %1185 = vmatpush.bf16.xpose.msra.mxu0 0
    %1186 = vmatpush.bf16.xpose.msra.mxu0 0
    %1187 = vmatpush.bf16.xpose.msra.mxu0 %v1178
    %1188 = vmatmul.bf16.gmra.mxu0 %v1175
    %v1189 = vpop.f32.mrf.mxu0
    %v1190 = vadd.f32 %v968, %v1189
    %v1191 = vpop.f32.mrf.mxu0
    %1192 = vdwg.mxu0
    %v1193 = vsel %vm452, %v1190, -inf
    %1194 = vmax.xlane.f32.xlu0 %v1193
    %v1195 = vpop.xlane.xlu0 %1194
    %v1196 = vsub.f32 %v1190, %v1195
    %v1197 = vmul.f32 %v1196, 1.442695
    %v1198 = vpow.pop %v1197
    %v1199 = vsel %vm452, %v1198, 0.0
    %1200 = vadd.xlane.f32.xlu0 %v1199
    %v1201 = vpop.xlane.xlu0 %1200
    %v1202 = vrcp.pop %v1201
    %v1203 = vmul.f32 %v1201, %v1202
    %v1204 = vsub.f32 1.0, %v1203
    %v1205 = vmul.f32 %v1202, %v1204
    %v1206 = vadd.f32 %v1202, %v1205
    %vm1207 = vweird.f32 %v1201
    %vm1208 = vweird.f32 %v1202
    %vm1209 = vmor %vm1207, %vm1208
    %v1210 = vsel %vm1209, %v1202, %v1206
    %v1211 = vand.u32 2147483647, %v1201
    %vm1212 = vcmp.eq.f32.partialorder %v1211, 8.507059e+37
    %v1213 = vand.u32 %v1201, 2147483648
    %v1214 = vor.u32 1.1754944e-38, %v1213
    %v1215 = vsel %vm1212, %v1214, %v1210
    %v1216 = vmul.f32 %v1198, %v1215
    %v1217 = vpack.c.bf16 %v1216, %v1216
    %1218 = vrot.lane.b32.xlu0 %v1016, 104
    %v1219 = vpop.permute.xlu0 %1218
    %v1222 = vsel %vm452, %v1217, 0
    %1224 = vmatpush.bf16.msra.mxu0 0
    %1225 = vmatpush.bf16.msra.mxu0 0
    %1226 = vmatpush.bf16.msra.mxu0 0
    %1227 = vmatpush.bf16.msra.mxu0 0
    %1228 = vmatpush.bf16.msra.mxu0 0
    %1229 = vmatpush.bf16.msra.mxu0 0
    %1230 = vmatpush.bf16.msra.mxu0 0
    %1231 = vmatpush.bf16.msra.mxu0 %v1219
    %1232 = vmatmul.bf16.gmra.mxu0 %v1222
    %v1233 = vpop.f32.mrf.mxu0
    %v1234 = vadd.f32 0.0, %v1233
    %v1235 = vpop.f32.mrf.mxu0
    %1236 = vdwg.mxu0
    %1238 = vrot.lane.b32.xlu0 %v1100, 8
    %v1239 = vpop.permute.xlu0 %1238
    %1242 = vrot.lane.b32.xlu0 %v1167, 16
    %v1243 = vpop.permute.xlu0 %1242
    %1246 = vrot.lane.b32.xlu0 %v1234, 24
    %v1247 = vpop.permute.xlu0 %1246
    %v1249 = vsel %vm165, %v1030, %v1239
    %v1250 = vsel %vm452, %v1249, %v1243
    %v1251 = vsel %vm454, %v1250, %v1247
    %s1252 = scalar_lea.vmem %s4, 1
    %v1253 = vld [vmem:[%s1252] sm:$0x1]
    %v1255 = vperm.slane %v1253, 0
    %v1257 = vpack.c.bf16 %v888, %v888
    %v1258 = vpack.c.bf16 %v928, %v926
    %v1260 = vsel %vm165, %v1257, 0
    %v1263 = vsel %vm165, %v1258, 0
    %1265 = vmatpush.bf16.xpose.msra.mxu0 0
    %1266 = vmatpush.bf16.xpose.msra.mxu0 0
    %1267 = vmatpush.bf16.xpose.msra.mxu0 0
    %1268 = vmatpush.bf16.xpose.msra.mxu0 0
    %1269 = vmatpush.bf16.xpose.msra.mxu0 0
    %1270 = vmatpush.bf16.xpose.msra.mxu0 0
    %1271 = vmatpush.bf16.xpose.msra.mxu0 0
    %1272 = vmatpush.bf16.xpose.msra.mxu0 %v1263
    %1273 = vmatmul.bf16.gmra.mxu0 %v1260
    %v1274 = vpop.f32.mrf.mxu0
    %v1275 = vadd.f32 %v1255, %v1274
    %v1276 = vpop.f32.mrf.mxu0
    %1277 = vdwg.mxu0
    %v1278 = vsel %vm452, %v1275, -inf
    %1279 = vmax.xlane.f32.xlu0 %v1278
    %v1280 = vpop.xlane.xlu0 %1279
    %v1281 = vsub.f32 %v1275, %v1280
    %v1282 = vmul.f32 %v1281, 1.442695
    %v1283 = vpow.pop %v1282
    %v1284 = vsel %vm452, %v1283, 0.0
    %1285 = vadd.xlane.f32.xlu0 %v1284
    %v1286 = vpop.xlane.xlu0 %1285
    %v1287 = vrcp.pop %v1286
    %v1288 = vmul.f32 %v1286, %v1287
    %v1289 = vsub.f32 1.0, %v1288
    %v1290 = vmul.f32 %v1287, %v1289
    %v1291 = vadd.f32 %v1287, %v1290
    %vm1292 = vweird.f32 %v1286
    %vm1293 = vweird.f32 %v1287
    %vm1294 = vmor %vm1292, %vm1293
    %v1295 = vsel %vm1294, %v1287, %v1291
    %v1296 = vand.u32 2147483647, %v1286
    %vm1297 = vcmp.eq.f32.partialorder %v1296, 8.507059e+37
    %v1298 = vand.u32 %v1286, 2147483648
    %v1299 = vor.u32 1.1754944e-38, %v1298
    %v1300 = vsel %vm1297, %v1299, %v1295
    %v1301 = vmul.f32 %v1283, %v1300
    %v1302 = vpack.c.bf16 %v1301, %v1301
    %v1303 = vpack.c.bf16 %v964, %v962
    %v1305 = vsel %vm452, %v1302, 0
    %1307 = vmatpush.bf16.msra.mxu0 0
    %1308 = vmatpush.bf16.msra.mxu0 0
    %1309 = vmatpush.bf16.msra.mxu0 0
    %1310 = vmatpush.bf16.msra.mxu0 0
    %1311 = vmatpush.bf16.msra.mxu0 0
    %1312 = vmatpush.bf16.msra.mxu0 0
    %1313 = vmatpush.bf16.msra.mxu0 0
    %1314 = vmatpush.bf16.msra.mxu0 %v1303
    %1315 = vmatmul.bf16.gmra.mxu0 %v1305
    %v1316 = vpop.f32.mrf.mxu0
    %v1317 = vadd.f32 0.0, %v1316
    %v1318 = vpop.f32.mrf.mxu0
    %1319 = vdwg.mxu0
    %1321 = vrot.lane.b32.xlu0 %v1257, 120
    %v1322 = vpop.permute.xlu0 %1321
    %1324 = vrot.lane.b32.xlu0 %v1258, 120
    %v1325 = vpop.permute.xlu0 %1324
    %v1327 = vsel %vm165, %v1322, 0
    %v1330 = vsel %vm165, %v1325, 0
    %1332 = vmatpush.bf16.xpose.msra.mxu0 0
    %1333 = vmatpush.bf16.xpose.msra.mxu0 0
    %1334 = vmatpush.bf16.xpose.msra.mxu0 0
    %1335 = vmatpush.bf16.xpose.msra.mxu0 0
    %1336 = vmatpush.bf16.xpose.msra.mxu0 0
    %1337 = vmatpush.bf16.xpose.msra.mxu0 0
    %1338 = vmatpush.bf16.xpose.msra.mxu0 0
    %1339 = vmatpush.bf16.xpose.msra.mxu0 %v1330
    %1340 = vmatmul.bf16.gmra.mxu0 %v1327
    %v1341 = vpop.f32.mrf.mxu0
    %v1342 = vadd.f32 %v1255, %v1341
    %v1343 = vpop.f32.mrf.mxu0
    %1344 = vdwg.mxu0
    %v1345 = vsel %vm452, %v1342, -inf
    %1346 = vmax.xlane.f32.xlu0 %v1345
    %v1347 = vpop.xlane.xlu0 %1346
    %v1348 = vsub.f32 %v1342, %v1347
    %v1349 = vmul.f32 %v1348, 1.442695
    %v1350 = vpow.pop %v1349
    %v1351 = vsel %vm452, %v1350, 0.0
    %1352 = vadd.xlane.f32.xlu0 %v1351
    %v1353 = vpop.xlane.xlu0 %1352
    %v1354 = vrcp.pop %v1353
    %v1355 = vmul.f32 %v1353, %v1354
    %v1356 = vsub.f32 1.0, %v1355
    %v1357 = vmul.f32 %v1354, %v1356
    %v1358 = vadd.f32 %v1354, %v1357
    %vm1359 = vweird.f32 %v1353
    %vm1360 = vweird.f32 %v1354
    %vm1361 = vmor %vm1359, %vm1360
    %v1362 = vsel %vm1361, %v1354, %v1358
    %v1363 = vand.u32 2147483647, %v1353
    %vm1364 = vcmp.eq.f32.partialorder %v1363, 8.507059e+37
    %v1365 = vand.u32 %v1353, 2147483648
    %v1366 = vor.u32 1.1754944e-38, %v1365
    %v1367 = vsel %vm1364, %v1366, %v1362
    %v1368 = vmul.f32 %v1350, %v1367
    %v1369 = vpack.c.bf16 %v1368, %v1368
    %1371 = vrot.lane.b32.xlu0 %v1303, 120
    %v1372 = vpop.permute.xlu0 %1371
    %v1375 = vsel %vm452, %v1369, 0
    %1377 = vmatpush.bf16.msra.mxu0 0
    %1378 = vmatpush.bf16.msra.mxu0 0
    %1379 = vmatpush.bf16.msra.mxu0 0
    %1380 = vmatpush.bf16.msra.mxu0 0
    %1381 = vmatpush.bf16.msra.mxu0 0
    %1382 = vmatpush.bf16.msra.mxu0 0
    %1383 = vmatpush.bf16.msra.mxu0 0
    %1384 = vmatpush.bf16.msra.mxu0 %v1372
    %1385 = vmatmul.bf16.gmra.mxu0 %v1375
    %v1386 = vpop.f32.mrf.mxu0
    %v1387 = vadd.f32 0.0, %v1386
    %v1388 = vpop.f32.mrf.mxu0
    %1389 = vdwg.mxu0
    %1390 = vrot.lane.b32.xlu0 %v1257, 112
    %v1391 = vpop.permute.xlu0 %1390
    %1392 = vrot.lane.b32.xlu0 %v1258, 112
    %v1393 = vpop.permute.xlu0 %1392
    %v1395 = vsel %vm165, %v1391, 0
    %v1398 = vsel %vm165, %v1393, 0
    %1400 = vmatpush.bf16.xpose.msra.mxu0 0
    %1401 = vmatpush.bf16.xpose.msra.mxu0 0
    %1402 = vmatpush.bf16.xpose.msra.mxu0 0
    %1403 = vmatpush.bf16.xpose.msra.mxu0 0
    %1404 = vmatpush.bf16.xpose.msra.mxu0 0
    %1405 = vmatpush.bf16.xpose.msra.mxu0 0
    %1406 = vmatpush.bf16.xpose.msra.mxu0 0
    %1407 = vmatpush.bf16.xpose.msra.mxu0 %v1398
    %1408 = vmatmul.bf16.gmra.mxu0 %v1395
    %v1409 = vpop.f32.mrf.mxu0
    %v1410 = vadd.f32 %v1255, %v1409
    %v1411 = vpop.f32.mrf.mxu0
    %1412 = vdwg.mxu0
    %v1413 = vsel %vm452, %v1410, -inf
    %1414 = vmax.xlane.f32.xlu0 %v1413
    %v1415 = vpop.xlane.xlu0 %1414
    %v1416 = vsub.f32 %v1410, %v1415
    %v1417 = vmul.f32 %v1416, 1.442695
    %v1418 = vpow.pop %v1417
    %v1419 = vsel %vm452, %v1418, 0.0
    %1420 = vadd.xlane.f32.xlu0 %v1419
    %v1421 = vpop.xlane.xlu0 %1420
    %v1422 = vrcp.pop %v1421
    %v1423 = vmul.f32 %v1421, %v1422
    %v1424 = vsub.f32 1.0, %v1423
    %v1425 = vmul.f32 %v1422, %v1424
    %v1426 = vadd.f32 %v1422, %v1425
    %vm1427 = vweird.f32 %v1421
    %vm1428 = vweird.f32 %v1422
    %vm1429 = vmor %vm1427, %vm1428
    %v1430 = vsel %vm1429, %v1422, %v1426
    %v1431 = vand.u32 2147483647, %v1421
    %vm1432 = vcmp.eq.f32.partialorder %v1431, 8.507059e+37
    %v1433 = vand.u32 %v1421, 2147483648
    %v1434 = vor.u32 1.1754944e-38, %v1433
    %v1435 = vsel %vm1432, %v1434, %v1430
    %v1436 = vmul.f32 %v1418, %v1435
    %v1437 = vpack.c.bf16 %v1436, %v1436
    %1438 = vrot.lane.b32.xlu0 %v1303, 112
    %v1439 = vpop.permute.xlu0 %1438
    %v1442 = vsel %vm452, %v1437, 0
    %1444 = vmatpush.bf16.msra.mxu0 0
    %1445 = vmatpush.bf16.msra.mxu0 0
    %1446 = vmatpush.bf16.msra.mxu0 0
    %1447 = vmatpush.bf16.msra.mxu0 0
    %1448 = vmatpush.bf16.msra.mxu0 0
    %1449 = vmatpush.bf16.msra.mxu0 0
    %1450 = vmatpush.bf16.msra.mxu0 0
    %1451 = vmatpush.bf16.msra.mxu0 %v1439
    %1452 = vmatmul.bf16.gmra.mxu0 %v1442
    %v1453 = vpop.f32.mrf.mxu0
    %v1454 = vadd.f32 0.0, %v1453
    %v1455 = vpop.f32.mrf.mxu0
    %1456 = vdwg.mxu0
    %1457 = vrot.lane.b32.xlu0 %v1257, 104
    %v1458 = vpop.permute.xlu0 %1457
    %1459 = vrot.lane.b32.xlu0 %v1258, 104
    %v1460 = vpop.permute.xlu0 %1459
    %v1462 = vsel %vm165, %v1458, 0
    %v1465 = vsel %vm165, %v1460, 0
    %1467 = vmatpush.bf16.xpose.msra.mxu0 0
    %1468 = vmatpush.bf16.xpose.msra.mxu0 0
    %1469 = vmatpush.bf16.xpose.msra.mxu0 0
    %1470 = vmatpush.bf16.xpose.msra.mxu0 0
    %1471 = vmatpush.bf16.xpose.msra.mxu0 0
    %1472 = vmatpush.bf16.xpose.msra.mxu0 0
    %1473 = vmatpush.bf16.xpose.msra.mxu0 0
    %1474 = vmatpush.bf16.xpose.msra.mxu0 %v1465
    %1475 = vmatmul.bf16.gmra.mxu0 %v1462
    %v1476 = vpop.f32.mrf.mxu0
    %v1477 = vadd.f32 %v1255, %v1476
    %v1478 = vpop.f32.mrf.mxu0
    %1479 = vdwg.mxu0
    %v1480 = vsel %vm452, %v1477, -inf
    %1481 = vmax.xlane.f32.xlu0 %v1480
    %v1482 = vpop.xlane.xlu0 %1481
    %v1483 = vsub.f32 %v1477, %v1482
    %v1484 = vmul.f32 %v1483, 1.442695
    %v1485 = vpow.pop %v1484
    %v1486 = vsel %vm452, %v1485, 0.0
    %1487 = vadd.xlane.f32.xlu0 %v1486
    %v1488 = vpop.xlane.xlu0 %1487
    %v1489 = vrcp.pop %v1488
    %v1490 = vmul.f32 %v1488, %v1489
    %v1491 = vsub.f32 1.0, %v1490
    %v1492 = vmul.f32 %v1489, %v1491
    %v1493 = vadd.f32 %v1489, %v1492
    %vm1494 = vweird.f32 %v1488
    %vm1495 = vweird.f32 %v1489
    %vm1496 = vmor %vm1494, %vm1495
    %v1497 = vsel %vm1496, %v1489, %v1493
    %v1498 = vand.u32 2147483647, %v1488
    %vm1499 = vcmp.eq.f32.partialorder %v1498, 8.507059e+37
    %v1500 = vand.u32 %v1488, 2147483648
    %v1501 = vor.u32 1.1754944e-38, %v1500
    %v1502 = vsel %vm1499, %v1501, %v1497
    %v1503 = vmul.f32 %v1485, %v1502
    %v1504 = vpack.c.bf16 %v1503, %v1503
    %1505 = vrot.lane.b32.xlu0 %v1303, 104
    %v1506 = vpop.permute.xlu0 %1505
    %v1509 = vsel %vm452, %v1504, 0
    %1511 = vmatpush.bf16.msra.mxu0 0
    %1512 = vmatpush.bf16.msra.mxu0 0
    %1513 = vmatpush.bf16.msra.mxu0 0
    %1514 = vmatpush.bf16.msra.mxu0 0
    %1515 = vmatpush.bf16.msra.mxu0 0
    %1516 = vmatpush.bf16.msra.mxu0 0
    %1517 = vmatpush.bf16.msra.mxu0 0
    %1518 = vmatpush.bf16.msra.mxu0 %v1506
    %1519 = vmatmul.bf16.gmra.mxu0 %v1509
    %v1520 = vpop.f32.mrf.mxu0
    %v1521 = vadd.f32 0.0, %v1520
    %v1522 = vpop.f32.mrf.mxu0
    %1523 = vdwg.mxu0
    %1525 = vrot.lane.b32.xlu0 %v1387, 8
    %v1526 = vpop.permute.xlu0 %1525
    %1529 = vrot.lane.b32.xlu0 %v1454, 16
    %v1530 = vpop.permute.xlu0 %1529
    %1533 = vrot.lane.b32.xlu0 %v1521, 24
    %v1534 = vpop.permute.xlu0 %1533
    %v1536 = vsel %vm165, %v1317, %v1526
    %v1537 = vsel %vm452, %v1536, %v1530
    %v1538 = vsel %vm454, %v1537, %v1534
    %v1539 = vld [vmem:[%s13] sm:$0xf]
    %v1540 = vld [vmem:[%s13 + $0x4] sm:$0xf]
    %v1541 = vld [vmem:[%s13 + $0x8] sm:$0xf]
    %v1542 = vld [vmem:[%s13 + $0xc] sm:$0xf]
    %v1543 = vpack.c.bf16 %v1538, %v1251
    %v1544 = vld [vmem:[%s14] sm:$0x1]
    %v1546 = vperm.slane %v1544, 0
    %v1552 = vunpack.c.l.b16 %v1539
    %v1553 = vunpack.c.l.b16 %v1540
    %v1554 = vunpack.c.l.b16 %v1541
    %v1555 = vunpack.c.l.b16 %v1542
    %v1556 = vpack.c.b16 %v1553, %v1552
    %v1557 = vpack.c.b16 %v1555, %v1554
    %v1561 = vsel %vm116, %v1543, 0
    %1563 = vmatpush.bf16.msra.mxu0 0
    %1564 = vmatpush.bf16.msra.mxu0 0
    %1565 = vmatpush.bf16.msra.mxu0 0
    %1566 = vmatpush.bf16.msra.mxu0 0
    %1567 = vmatpush.bf16.msra.mxu0 0
    %1568 = vmatpush.bf16.msra.mxu0 0
    %1569 = vmatpush.bf16.msra.mxu0 %v1557
    %1570 = vmatpush.bf16.msra.mxu0 %v1556
    %1571 = vmatmul.bf16.gmra.mxu0 %v1561
    %v1572 = vpop.f32.mrf.mxu0
    %v1573 = vadd.f32 %v1546, %v1572
    %v1574 = vpop.f32.mrf.mxu0
    %v1575 = vadd.f32 %v1546, %v1574
    %1576 = vdwg.mxu0
    %v1577 = vadd.f32 %v848, %v1573
    %v1578 = vadd.f32 %v849, %v1575
    %v1579 = vld [vmem:[%s15] sm:$0x1]
    %v1580 = vld [vmem:[%s16] sm:$0x1]
    %v1581 = vsel %vm116, %v1577, 0.0
    %1582 = vadd.xlane.f32.xlu0 %v1581
    %v1583 = vpop.xlane.xlu0 %1582
    %v1584 = vsel %vm116, %v1578, 0.0
    %1585 = vadd.xlane.f32.xlu0 %v1584
    %v1586 = vpop.xlane.xlu0 %1585
    %v1587 = vmul.f32 %v1583, %v801
    %v1588 = vmul.f32 %v1586, %v801
    %v1589 = vsub.f32 %v1577, %v1587
    %v1590 = vsub.f32 %v1578, %v1588
    %v1591 = vmul.f32 %v1589, %v1589
    %v1592 = vmul.f32 %v1590, %v1590
    %v1593 = vsel %vm116, %v1591, 0.0
    %1594 = vadd.xlane.f32.xlu0 %v1593
    %v1595 = vpop.xlane.xlu0 %1594
    %v1596 = vsel %vm116, %v1592, 0.0
    %1597 = vadd.xlane.f32.xlu0 %v1596
    %v1598 = vpop.xlane.xlu0 %1597
    %v1599 = vmul.f32 %v1595, %v801
    %v1600 = vmul.f32 %v1598, %v801
    %v1601 = vadd.f32 %v1599, 1e-05
    %v1602 = vadd.f32 %v1600, 1e-05
    %v1603 = vrsqrt.pop %v1601
    %v1604 = vmul.f32 %v1603, %v1601
    %v1605 = vmul.f32 %v1604, %v1603
    %v1606 = vmul.f32 0.5, %v1605
    %v1607 = vsub.f32 1.5, %v1606
    %v1608 = vmul.f32 %v1603, %v1607
    %vm1609 = vweird.f32 %v1601
    %vm1610 = vweird.f32 %v1603
    %vm1611 = vmor %vm1609, %vm1610
    %v1612 = vsel %vm1611, %v1603, %v1608
    %v1613 = vrsqrt.pop %v1602
    %v1614 = vmul.f32 %v1613, %v1602
    %v1615 = vmul.f32 %v1614, %v1613
    %v1616 = vmul.f32 0.5, %v1615
    %v1617 = vsub.f32 1.5, %v1616
    %v1618 = vmul.f32 %v1613, %v1617
    %vm1619 = vweird.f32 %v1602
    %vm1620 = vweird.f32 %v1613
    %vm1621 = vmor %vm1619, %vm1620
    %v1622 = vsel %vm1621, %v1613, %v1618
    %v1623 = vmul.f32 %v1589, %v1612
    %v1624 = vmul.f32 %v1590, %v1622
    %v1626 = vperm.slane %v1579, 0
    %v1628 = vmul.f32 %v1623, %v1626
    %v1629 = vmul.f32 %v1624, %v1626
    %v1631 = vperm.slane %v1580, 0
    %v1633 = vadd.f32 %v1628, %v1631
    %v1634 = vadd.f32 %v1629, %v1631
    %v1635 = vld [vmem:[%s17] sm:$0xf]
    %v1636 = vld [vmem:[%s17 + $0x4] sm:$0xf]
    %v1637 = vld [vmem:[%s17 + $0x8] sm:$0xf]
    %v1638 = vld [vmem:[%s17 + $0xc] sm:$0xf]
    %v1639 = vpack.c.bf16 %v1634, %v1633
    %v1640 = vld [vmem:[%s18] sm:$0x1]
    %v1642 = vperm.slane %v1640, 0
    %v1648 = vunpack.c.l.b16 %v1635
    %v1649 = vunpack.c.l.b16 %v1636
    %v1650 = vunpack.c.l.b16 %v1637
    %v1651 = vunpack.c.l.b16 %v1638
    %v1652 = vpack.c.b16 %v1649, %v1648
    %v1653 = vpack.c.b16 %v1651, %v1650
    %v1657 = vsel %vm116, %v1639, 0
    %1659 = vmatpush.bf16.msra.mxu0 0
    %1660 = vmatpush.bf16.msra.mxu0 0
    %1661 = vmatpush.bf16.msra.mxu0 0
    %1662 = vmatpush.bf16.msra.mxu0 0
    %1663 = vmatpush.bf16.msra.mxu0 0
    %1664 = vmatpush.bf16.msra.mxu0 0
    %1665 = vmatpush.bf16.msra.mxu0 %v1653
    %1666 = vmatpush.bf16.msra.mxu0 %v1652
    %1667 = vmatmul.bf16.gmra.mxu0 %v1657
    %v1668 = vpop.f32.mrf.mxu0
    %v1669 = vadd.f32 %v1642, %v1668
    %v1670 = vpop.f32.mrf.mxu0
    %v1671 = vadd.f32 %v1642, %v1670
    %1672 = vdwg.mxu0
    %v1673 = vmax.f32 %v1669, 0.0
    %v1674 = vmax.f32 %v1671, 0.0
    %v1675 = vld [vmem:[%s19] sm:$0xf]
    %v1676 = vld [vmem:[%s19 + $0x4] sm:$0xf]
    %v1677 = vld [vmem:[%s19 + $0x8] sm:$0xf]
    %v1678 = vld [vmem:[%s19 + $0xc] sm:$0xf]
    %v1679 = vld [vmem:[%s19 + $0x10] sm:$0xf]
    %v1680 = vld [vmem:[%s19 + $0x14] sm:$0xf]
    %v1681 = vld [vmem:[%s19 + $0x18] sm:$0xf]
    %v1682 = vld [vmem:[%s19 + $0x1c] sm:$0xf]
    %v1683 = vpack.c.bf16 %v1674, %v1673
    %v1684 = vld [vmem:[%s20] sm:$0x1]
    %v1686 = vperm.slane %v1684, 0
    %v1696 = vunpack.c.l.b16 %v1675
    %v1697 = vunpack.c.l.b16 %v1676
    %v1698 = vunpack.c.l.b16 %v1677
    %v1699 = vunpack.c.l.b16 %v1678
    %v1700 = vunpack.c.l.b16 %v1679
    %v1701 = vunpack.c.l.b16 %v1680
    %v1702 = vunpack.c.l.b16 %v1681
    %v1703 = vunpack.c.l.b16 %v1682
    %v1704 = vpack.c.b16 %v1697, %v1696
    %v1705 = vpack.c.b16 %v1699, %v1698
    %v1706 = vpack.c.b16 %v1701, %v1700
    %v1707 = vpack.c.b16 %v1703, %v1702
    %vm1712 = vcmask 523264
    %v1714 = vsel %vm1712, %v1683, 0
    %1716 = vmatpush.bf16.msra.mxu0 0
    %1717 = vmatpush.bf16.msra.mxu0 0
    %1718 = vmatpush.bf16.msra.mxu0 0
    %1719 = vmatpush.bf16.msra.mxu0 0
    %1720 = vmatpush.bf16.msra.mxu0 %v1707
    %1721 = vmatpush.bf16.msra.mxu0 %v1706
    %1722 = vmatpush.bf16.msra.mxu0 %v1705
    %1723 = vmatpush.bf16.msra.mxu0 %v1704
    %1724 = vmatmul.bf16.gmra.mxu0 %v1714
    %v1725 = vpop.f32.mrf.mxu0
    %v1726 = vadd.f32 %v1686, %v1725
    %v1727 = vpop.f32.mrf.mxu0
    %v1728 = vadd.f32 %v1686, %v1727
    %1729 = vdwg.mxu0
    %v1730 = vadd.f32 %v1633, %v1726
    %v1731 = vadd.f32 %v1634, %v1728
    %v1732 = vld [vmem:[%s21] sm:$0x1]
    %v1733 = vld [vmem:[%s22] sm:$0x1]
    %v1734 = vsel %vm116, %v1730, 0.0
    %1735 = vadd.xlane.f32.xlu0 %v1734
    %v1736 = vpop.xlane.xlu0 %1735
    %v1737 = vsel %vm116, %v1731, 0.0
    %1738 = vadd.xlane.f32.xlu0 %v1737
    %v1739 = vpop.xlane.xlu0 %1738
    %v1740 = vmul.f32 %v1736, %v801
    %v1741 = vmul.f32 %v1739, %v801
    %v1742 = vsub.f32 %v1730, %v1740
    %v1743 = vsub.f32 %v1731, %v1741
    %v1744 = vmul.f32 %v1742, %v1742
    %v1745 = vmul.f32 %v1743, %v1743
    %v1746 = vsel %vm116, %v1744, 0.0
    %1747 = vadd.xlane.f32.xlu0 %v1746
    %v1748 = vpop.xlane.xlu0 %1747
    %v1749 = vsel %vm116, %v1745, 0.0
    %1750 = vadd.xlane.f32.xlu0 %v1749
    %v1751 = vpop.xlane.xlu0 %1750
    %v1752 = vmul.f32 %v1748, %v801
    %v1753 = vmul.f32 %v1751, %v801
    %v1754 = vadd.f32 %v1752, 1e-05
    %v1755 = vadd.f32 %v1753, 1e-05
    %v1756 = vrsqrt.pop %v1754
    %v1757 = vmul.f32 %v1756, %v1754
    %v1758 = vmul.f32 %v1757, %v1756
    %v1759 = vmul.f32 0.5, %v1758
    %v1760 = vsub.f32 1.5, %v1759
    %v1761 = vmul.f32 %v1756, %v1760
    %vm1762 = vweird.f32 %v1754
    %vm1763 = vweird.f32 %v1756
    %vm1764 = vmor %vm1762, %vm1763
    %v1765 = vsel %vm1764, %v1756, %v1761
    %v1766 = vrsqrt.pop %v1755
    %v1767 = vmul.f32 %v1766, %v1755
    %v1768 = vmul.f32 %v1767, %v1766
    %v1769 = vmul.f32 0.5, %v1768
    %v1770 = vsub.f32 1.5, %v1769
    %v1771 = vmul.f32 %v1766, %v1770
    %vm1772 = vweird.f32 %v1755
    %vm1773 = vweird.f32 %v1766
    %vm1774 = vmor %vm1772, %vm1773
    %v1775 = vsel %vm1774, %v1766, %v1771
    %v1776 = vmul.f32 %v1742, %v1765
    %v1777 = vmul.f32 %v1743, %v1775
    %v1779 = vperm.slane %v1732, 0
    %v1781 = vmul.f32 %v1776, %v1779
    %v1782 = vmul.f32 %v1777, %v1779
    %v1784 = vperm.slane %v1733, 0
    %v1786 = vadd.f32 %v1781, %v1784
    %v1787 = vadd.f32 %v1782, %v1784
    %v1788 = vld [vmem:[%s23] sm:$0x1]
    %v1789 = vld [vmem:[%s24] sm:$0x1]
    %v1790 = vsel %vm116, %v1786, 0.0
    %1791 = vadd.xlane.f32.xlu0 %v1790
    %v1792 = vpop.xlane.xlu0 %1791
    %v1793 = vsel %vm116, %v1787, 0.0
    %1794 = vadd.xlane.f32.xlu0 %v1793
    %v1795 = vpop.xlane.xlu0 %1794
    %v1796 = vmul.f32 %v1792, %v801
    %v1797 = vmul.f32 %v1795, %v801
    %v1798 = vsub.f32 %v1786, %v1796
    %v1799 = vsub.f32 %v1787, %v1797
    %v1800 = vmul.f32 %v1798, %v1798
    %v1801 = vmul.f32 %v1799, %v1799
    %v1802 = vsel %vm116, %v1800, 0.0
    %1803 = vadd.xlane.f32.xlu0 %v1802
    %v1804 = vpop.xlane.xlu0 %1803
    %v1805 = vsel %vm116, %v1801, 0.0
    %1806 = vadd.xlane.f32.xlu0 %v1805
    %v1807 = vpop.xlane.xlu0 %1806
    %v1808 = vmul.f32 %v1804, %v801
    %v1809 = vmul.f32 %v1807, %v801
    %v1810 = vadd.f32 %v1808, 1e-05
    %v1811 = vadd.f32 %v1809, 1e-05
    %v1812 = vrsqrt.pop %v1810
    %v1813 = vmul.f32 %v1812, %v1810
    %v1814 = vmul.f32 %v1813, %v1812
    %v1815 = vmul.f32 0.5, %v1814
    %v1816 = vsub.f32 1.5, %v1815
    %v1817 = vmul.f32 %v1812, %v1816
    %vm1818 = vweird.f32 %v1810
    %vm1819 = vweird.f32 %v1812
    %vm1820 = vmor %vm1818, %vm1819
    %v1821 = vsel %vm1820, %v1812, %v1817
    %v1822 = vrsqrt.pop %v1811
    %v1823 = vmul.f32 %v1822, %v1811
    %v1824 = vmul.f32 %v1823, %v1822
    %v1825 = vmul.f32 0.5, %v1824
    %v1826 = vsub.f32 1.5, %v1825
    %v1827 = vmul.f32 %v1822, %v1826
    %vm1828 = vweird.f32 %v1811
    %vm1829 = vweird.f32 %v1822
    %vm1830 = vmor %vm1828, %vm1829
    %v1831 = vsel %vm1830, %v1822, %v1827
    %v1832 = vmul.f32 %v1798, %v1821
    %v1833 = vmul.f32 %v1799, %v1831
    %v1835 = vperm.slane %v1788, 0
    %v1837 = vmul.f32 %v1832, %v1835
    %v1838 = vmul.f32 %v1833, %v1835
    %v1840 = vperm.slane %v1789, 0
    %v1842 = vadd.f32 %v1837, %v1840
    %v1843 = vadd.f32 %v1838, %v1840
    %1844 = vst.msk [vmem:[#allocation2] sm:$0xff] %vm116, %v1842
    %1845 = vst.msk [vmem:[#allocation2 + $0x8] sm:$0xff] %vm116, %v1843
    // Predicated region
    $region102: #{transformer_forward.7} parent=1 // pred_check
      _
    $region103: #{transformer_forward.7} parent=1 // pred_check_branch
      %1847 = sbr.rel (0) target = $region105
    $region104: #{transformer_forward.7} parent=1 // pred_region
      %1849 = vsyncadd [#allocation3], 0
      %s1850 = sshll.u32 [#allocation2], 4
      %s1851 = int_to_ptr.vmem [resolvable:$true] %s1850
      %s1852 = sshll.u32 %s25, 4
      %s1853 = int_to_ptr.hbm [resolvable:$true] %s1852
      %1858 = dma.vmem_to_hbm [thread:$0]  %s1851, 256, %s1853, [#allocation3], 128, 128, 8
    $region105: #{transformer_forward.7} parent=1 // pred_fallthru
      _
    // Predicated region
    $region106: #{transformer_forward.7} parent=1 // pred_check
      _
    $region107: #{transformer_forward.7} parent=1 // pred_check_branch
      %1860 = sbr.rel (0) target = $region109
    $region108: #{transformer_forward.7} parent=1 // pred_region
      %1862 = dma.done [#allocation3], 256
    $region109: #{transformer_forward.7} parent=1 // pred_fallthru
      _
    %1863 = vsyncpa [#allocation3], 1

</llo_original>
